<compile_context>
chip_gen: v5e
topology: v5e:2x2
jax: 0.10.0
libtpu: 0.0.40
codegen_flags: <defaults>
</compile_context>

<pallas_src>
import functools

import jax
import jax.numpy as jnp
from jax.experimental import pallas as pl
from jax.experimental.pallas import tpu as pltpu


def _round_up(x, m):
    return ((x + m - 1) // m) * m


# ----------------------------------------------------------------------------
# Pallas kernel 1: M-tiled (A @ W + b) with optional ReLU
# ----------------------------------------------------------------------------
def _matmul_bias_kernel(a_ref, w_ref, b_ref, o_ref, *, relu):
    """o_tile = relu(a_tile @ w + b).  a:(TM,K) w:(K,N) b:(1,N) o:(TM,N)."""
    acc = jnp.dot(a_ref[...], w_ref[...], preferred_element_type=jnp.float32)
    acc = acc + b_ref[...]
    if relu:
        acc = jnp.maximum(acc, 0.0)
    o_ref[...] = acc.astype(o_ref.dtype)


def _matmul_bias(a, w, b, *, relu, out_dtype=jnp.bfloat16, tm=512):
    """Tiled over M; W and bias stay resident in VMEM."""
    M, K = a.shape
    K2, N = w.shape
    assert K == K2 and b.shape == (1, N)

    TM = min(tm, _round_up(M, 8))            # multiple of 8 (sublane aligned)
    M_pad = _round_up(M, TM)
    if M_pad != M:
        a = jnp.pad(a, ((0, M_pad - M), (0, 0)))

    out = pl.pallas_call(
        functools.partial(_matmul_bias_kernel, relu=relu),
        out_shape=jax.ShapeDtypeStruct((M_pad, N), out_dtype),
        grid=(M_pad // TM,),
        in_specs=[
            pl.BlockSpec((TM, K), lambda i: (i, 0)),
            pl.BlockSpec((K, N), lambda i: (0, 0)),   # resident weight
            pl.BlockSpec((1, N), lambda i: (0, 0)),   # resident bias
        ],
        out_specs=pl.BlockSpec((TM, N), lambda i: (i, 0)),
        compiler_params=pltpu.CompilerParams(
            dimension_semantics=("parallel",),
            vmem_limit_bytes=32 * 1024 * 1024,
        ),
        cost_estimate=pl.CostEstimate(
            flops=2 * M_pad * K * N,
            transcendentals=0,
            bytes_accessed=(M_pad * K + K * N + M_pad * N) * 2,
        ),
    )(a, w, b)

    if M_pad != M:
        out = out[:M]
    return out


# ----------------------------------------------------------------------------
# Pallas kernel 2: conv5 matmul + ReLU + global-avg-pool + 1x1 head (fused)
# ----------------------------------------------------------------------------
def _conv5_pool_head_kernel(a_ref, w_ref, b_ref, wh_ref, bh_ref, o_ref,
                            pool_acc, *, hw, ts):
    """Per (batch, spatial-tile): conv5 tile + ReLU, accumulate channel sums;
    on the last tile do mean + (1,C)@(C,OUT) head matmul."""
    t = pl.program_id(1)

    @pl.when(t == 0)
    def _():
        pool_acc[...] = jnp.zeros_like(pool_acc)

    acc = jnp.dot(a_ref[0], w_ref[...], preferred_element_type=jnp.float32)
    acc = jnp.maximum(acc + b_ref[...], 0.0)                     # (TS, C)
    # mask out zero-padded spatial rows so the pooled mean is exact
    row = t * ts + jax.lax.broadcasted_iota(jnp.int32, (ts, 1), 0)
    acc = jnp.where(row < hw, acc, 0.0)
    pool_acc[...] += jnp.sum(acc, axis=0, keepdims=True)         # (1, C)

    @pl.when(t == pl.num_programs(1) - 1)
    def _():
        pooled = pool_acc[...] * (1.0 / hw)                      # AdaptiveAvgPool2d(1)
        head = jnp.dot(pooled, wh_ref[...],
                       preferred_element_type=jnp.float32)       # (1, OUT)
        o_ref[0] = (head + bh_ref[...]).astype(o_ref.dtype)


def _conv5_pool_head(h_nhwc, w5, b5, wh, bh, output):
    """ReflPad(1) Conv(256,256,4,2) ReLU + AvgPool(1) + Conv(256,out,1)."""
    N = h_nhwc.shape[0]
    patches, Ho, Wo = _im2col(h_nhwc, k=4, s=2, pad=1)
    HW = Ho * Wo
    K = patches.shape[-1]
    C = w5.shape[0]

    a = patches.reshape(N, HW, K).astype(jnp.bfloat16)
    TS = min(256, _round_up(HW, 8))
    HW_pad = _round_up(HW, TS)
    if HW_pad != HW:
        a = jnp.pad(a, ((0, 0), (0, HW_pad - HW), (0, 0)))

    w5m = jnp.transpose(w5, (2, 3, 1, 0)).reshape(K, C).astype(jnp.bfloat16)
    b5v = b5.reshape(1, C).astype(jnp.float32)
    whm = jnp.transpose(wh, (2, 3, 1, 0)).reshape(C, output).astype(jnp.float32)
    bhv = bh.reshape(1, output).astype(jnp.float32)

    out = pl.pallas_call(
        functools.partial(_conv5_pool_head_kernel, hw=HW, ts=TS),
        out_shape=jax.ShapeDtypeStruct((N, 1, output), jnp.float32),
        grid=(N, HW_pad // TS),
        in_specs=[
            pl.BlockSpec((1, TS, K), lambda b, t: (b, t, 0)),
            pl.BlockSpec((K, C), lambda b, t: (0, 0)),
            pl.BlockSpec((1, C), lambda b, t: (0, 0)),
            pl.BlockSpec((C, output), lambda b, t: (0, 0)),
            pl.BlockSpec((1, output), lambda b, t: (0, 0)),
        ],
        out_specs=pl.BlockSpec((1, 1, output), lambda b, t: (b, 0, 0)),
        scratch_shapes=[pltpu.VMEM((1, C), jnp.float32)],
        compiler_params=pltpu.CompilerParams(
            dimension_semantics=("parallel", "arbitrary"),
            vmem_limit_bytes=32 * 1024 * 1024,
        ),
    )(a, w5m, b5v, whm, bhv)
    return out.reshape(N, output)


# ----------------------------------------------------------------------------
# Glue: reflection padding + im2col (plain JAX); kernels do the matmuls
# ----------------------------------------------------------------------------
def _im2col(x_nhwc, k, s, pad):
    xp = jnp.pad(x_nhwc, ((0, 0), (pad, pad), (pad, pad), (0, 0)), mode="reflect")
    N, Hp, Wp, Cin = xp.shape
    Ho = (Hp - k) // s + 1
    Wo = (Wp - k) // s + 1
    cols = []
    for i in range(k):
        for j in range(k):
            cols.append(xp[:, i: i + (Ho - 1) * s + 1: s,
                              j: j + (Wo - 1) * s + 1: s, :])
    patches = jnp.stack(cols, axis=3)                 # (N,Ho,Wo,k*k,Cin)
    return patches.reshape(N, Ho, Wo, k * k * Cin), Ho, Wo


def _conv_layer(x_nhwc, w_oihw, b, *, k, s, pad):
    """ReflectionPad2d(pad) + Conv2d(k, stride=s) + ReLU, bf16 activations."""
    N = x_nhwc.shape[0]
    Cout = w_oihw.shape[0]
    patches, Ho, Wo = _im2col(x_nhwc, k, s, pad)
    K = patches.shape[-1]
    a = patches.reshape(N * Ho * Wo, K)

    # (Cout, Cin, kh, kw) -> (kh, kw, Cin, Cout) -> (kh*kw*Cin, Cout)
    wm = jnp.transpose(w_oihw, (2, 3, 1, 0)).reshape(K, Cout)

    # Lane / contraction padding (layer 1: K 147->256, Cout 64->128).
    K_pad = _round_up(K, 128)
    Cout_pad = _round_up(Cout, 128)
    if K_pad != K:
        a = jnp.pad(a, ((0, 0), (0, K_pad - K)))
        wm = jnp.pad(wm, ((0, K_pad - K), (0, 0)))
    bvec = b
    if Cout_pad != Cout:
        wm = jnp.pad(wm, ((0, 0), (0, Cout_pad - Cout)))
        bvec = jnp.pad(b, (0, Cout_pad - Cout))

    a = a.astype(jnp.bfloat16)
    wm = wm.astype(jnp.bfloat16)
    bm = bvec.reshape(1, Cout_pad).astype(jnp.float32)

    out = _matmul_bias(a, wm, bm, relu=True, out_dtype=jnp.bfloat16)
    out = out.reshape(N, Ho, Wo, Cout_pad)
    if Cout_pad != Cout:
        out = out[..., :Cout]
    return out


def _encode_branch(x_nchw, params, output):
    x = jnp.transpose(x_nchw, (0, 2, 3, 1)).astype(jnp.bfloat16)  # NCHW -> NHWC
    h = _conv_layer(x, params["w1"], params["b1"], k=7, s=1, pad=3)
    h = _conv_layer(h, params["w2"], params["b2"], k=4, s=2, pad=1)
    h = _conv_layer(h, params["w3"], params["b3"], k=4, s=2, pad=1)
    h = _conv_layer(h, params["w4"], params["b4"], k=4, s=2, pad=1)
    # conv5 + ReLU + AdaptiveAvgPool2d(1) + 1x1 head, fused in one kernel.
    return _conv5_pool_head(h, params["w5"], params["b5"],
                            params["wh"], params["bh"], output)


def style_encoder_forward(x, y, params_x, params_y, output=8):
    out_x = _encode_branch(x, params_x, output)
    out_y = _encode_branch(y, params_y, output)
    return out_x, out_y


# ----------------------------------------------------------------------------
# Deterministic parameter init (shapes match PyTorch Conv2d weights)
# ----------------------------------------------------------------------------
def _init_branch(key, cin, output=8, dim=64):
    ks = jax.random.split(key, 12)

    def w(k, shape, fan_in):
        return jax.random.normal(k, shape, jnp.float32) * (1.0 / jnp.sqrt(fan_in))

    return {
        "w1": w(ks[0], (dim, cin, 7, 7), cin * 49),
        "b1": jax.random.normal(ks[1], (dim,), jnp.float32) * 0.01,
        "w2": w(ks[2], (dim * 2, dim, 4, 4), dim * 16),
        "b2": jax.random.normal(ks[3], (dim * 2,), jnp.float32) * 0.01,
        "w3": w(ks[4], (dim * 4, dim * 2, 4, 4), dim * 2 * 16),
        "b3": jax.random.normal(ks[5], (dim * 4,), jnp.float32) * 0.01,
        "w4": w(ks[6], (dim * 4, dim * 4, 4, 4), dim * 4 * 16),
        "b4": jax.random.normal(ks[7], (dim * 4,), jnp.float32) * 0.01,
        "w5": w(ks[8], (dim * 4, dim * 4, 4, 4), dim * 4 * 16),
        "b5": jax.random.normal(ks[9], (dim * 4,), jnp.float32) * 0.01,
        "wh": w(ks[10], (output, dim * 4, 1, 1), dim * 4),
        "bh": jax.random.normal(ks[11], (output,), jnp.float32) * 0.01,
    }


if __name__ == "__main__":
    key = jax.random.PRNGKey(0)
    kx, ky, kpx, kpy = jax.random.split(key, 4)

    input_dim_x, input_dim_y, output = 3, 1, 8
    N, H, W = 2, 16, 16  # small spatial; 16 -> 16 -> 8 -> 4 -> 2 -> 1

    x = jax.random.normal(kx, (N, input_dim_x, H, W), jnp.float32)
    y = jax.random.normal(ky, (N, input_dim_y, H, W), jnp.float32)

    params_x = _init_branch(kpx, input_dim_x, output)
    params_y = _init_branch(kpy, input_dim_y, output)

    out_x, out_y = jax.jit(
        functools.partial(style_encoder_forward, output=output)
    )(x, y, params_x, params_y)
    jax.block_until_ready((out_x, out_y))

    assert out_x.shape == (N, output), out_x.shape
    assert out_y.shape == (N, output), out_y.shape
    assert jnp.all(jnp.isfinite(out_x)) and jnp.all(jnp.isfinite(out_y))
    print("KERNEL_OK")
</pallas_src>

<mosaic_0001>
module attributes {stable_mosaic.version = 11 : i64} {
  func.func @_matmul_bias_kernel(%arg0: i32, %arg1: memref<512x128xbf16, #tpu.memory_space<vmem>>, %arg2: memref<128x128xbf16, #tpu.memory_space<vmem>>, %arg3: memref<1x128xf32, #tpu.memory_space<vmem>>, %arg4: memref<512x128xbf16, #tpu.memory_space<vmem>>) attributes {dimension_semantics = [#tpu.dimension_semantics<parallel>], iteration_bounds = array<i64: 1>, scalar_prefetch = 0 : i64, scratch_operands = 0 : i64, tpu.core_type = #tpu.core_type<tc>, window_params = [{transform_indices = @transform_0, window_bounds = array<i64: 512, 128>}, {pipeline_mode = #tpu.pipeline_mode<synchronous>, transform_indices = @transform_1, window_bounds = array<i64: 128, 128>}, {pipeline_mode = #tpu.pipeline_mode<synchronous>, transform_indices = @transform_2, window_bounds = array<i64: 1, 128>}, {transform_indices = @transform_3, window_bounds = array<i64: 512, 128>}]} {
    %c0 = arith.constant 0 : index
    %c0_0 = arith.constant 0 : index
    %0 = vector.load %arg1[%c0, %c0_0] : memref<512x128xbf16, #tpu.memory_space<vmem>>, vector<512x128xbf16>
    %c0_1 = arith.constant 0 : index
    %c0_2 = arith.constant 0 : index
    %1 = vector.load %arg2[%c0_1, %c0_2] : memref<128x128xbf16, #tpu.memory_space<vmem>>, vector<128x128xbf16>
    %cst = arith.constant dense<0.000000e+00> : vector<512x128xf32>
    %2 = tpu.matmul %0, %1, %cst {dimension_numbers = #tpu.dot_dimension_numbers<[1], [0], [0], [1], [0, 0, 1, 1], [], []>} : vector<512x128xbf16>, vector<128x128xbf16>, vector<512x128xf32> -> vector<512x128xf32>
    %c0_3 = arith.constant 0 : index
    %c0_4 = arith.constant 0 : index
    %3 = vector.load %arg3[%c0_3, %c0_4] : memref<1x128xf32, #tpu.memory_space<vmem>>, vector<1x128xf32>
    %4 = vector.broadcast %3 : vector<1x128xf32> to vector<512x128xf32>
    %5 = arith.addf %2, %4 : vector<512x128xf32>
    %cst_5 = arith.constant 0.000000e+00 : f32
    %6 = vector.broadcast %cst_5 : f32 to vector<512x128xf32>
    %7 = arith.maximumf %5, %6 : vector<512x128xf32>
    %8 = arith.truncf %7 : vector<512x128xf32> to vector<512x128xbf16>
    %c0_6 = arith.constant 0 : index
    %c0_7 = arith.constant 0 : index
    %9 = vector.load %arg4[%c0_6, %c0_7] : memref<512x128xbf16, #tpu.memory_space<vmem>>, vector<512x128xbf16>
    tpu.vector_store %arg4[%c0_6, %c0_7], %8 {strides = array<i32>} : memref<512x128xbf16, #tpu.memory_space<vmem>>, vector<512x128xbf16>,
    return
  }
  func.func @transform_0(%arg0: i32) -> (i32, i32) {
    %c0_i32 = arith.constant 0 : i32
    %c0_i32_0 = arith.constant 0 : i32
    return %arg0, %c0_i32 : i32, i32
  }
  func.func @transform_1(%arg0: i32) -> (i32, i32) {
    %c0_i32 = arith.constant 0 : i32
    %c0_i32_0 = arith.constant 0 : i32
    %c0_i32_1 = arith.constant 0 : i32
    return %c0_i32, %c0_i32_0 : i32, i32
  }
  func.func @transform_2(%arg0: i32) -> (i32, i32) {
    %c0_i32 = arith.constant 0 : i32
    %c0_i32_0 = arith.constant 0 : i32
    %c0_i32_1 = arith.constant 0 : i32
    return %c0_i32, %c0_i32_0 : i32, i32
  }
  func.func @transform_3(%arg0: i32) -> (i32, i32) {
    %c0_i32 = arith.constant 0 : i32
    %c0_i32_0 = arith.constant 0 : i32
    return %arg0, %c0_i32 : i32, i32
  }
}

module attributes {stable_mosaic.version = 11 : i64} {
  func.func @_matmul_bias_kernel(%arg0: i32, %arg1: memref<128x1024xbf16, #tpu.memory_space<vmem>>, %arg2: memref<1024x128xbf16, #tpu.memory_space<vmem>>, %arg3: memref<1x128xf32, #tpu.memory_space<vmem>>, %arg4: memref<128x128xbf16, #tpu.memory_space<vmem>>) attributes {dimension_semantics = [#tpu.dimension_semantics<parallel>], iteration_bounds = array<i64: 1>, scalar_prefetch = 0 : i64, scratch_operands = 0 : i64, tpu.core_type = #tpu.core_type<tc>, window_params = [{transform_indices = @transform_0, window_bounds = array<i64: 128, 1024>}, {pipeline_mode = #tpu.pipeline_mode<synchronous>, transform_indices = @transform_1, window_bounds = array<i64: 1024, 128>}, {pipeline_mode = #tpu.pipeline_mode<synchronous>, transform_indices = @transform_2, window_bounds = array<i64: 1, 128>}, {transform_indices = @transform_3, window_bounds = array<i64: 128, 128>}]} {
    %c0 = arith.constant 0 : index
    %c0_0 = arith.constant 0 : index
    %0 = vector.load %arg1[%c0, %c0_0] : memref<128x1024xbf16, #tpu.memory_space<vmem>>, vector<128x1024xbf16>
    %c0_1 = arith.constant 0 : index
    %c0_2 = arith.constant 0 : index
    %1 = vector.load %arg2[%c0_1, %c0_2] : memref<1024x128xbf16, #tpu.memory_space<vmem>>, vector<1024x128xbf16>
    %cst = arith.constant dense<0.000000e+00> : vector<128x128xf32>
    %2 = tpu.matmul %0, %1, %cst {dimension_numbers = #tpu.dot_dimension_numbers<[1], [0], [0], [1], [0, 0, 1, 1], [], []>} : vector<128x1024xbf16>, vector<1024x128xbf16>, vector<128x128xf32> -> vector<128x128xf32>
    %c0_3 = arith.constant 0 : index
    %c0_4 = arith.constant 0 : index
    %3 = vector.load %arg3[%c0_3, %c0_4] : memref<1x128xf32, #tpu.memory_space<vmem>>, vector<1x128xf32>
    %4 = vector.broadcast %3 : vector<1x128xf32> to vector<128x128xf32>
    %5 = arith.addf %2, %4 : vector<128x128xf32>
    %cst_5 = arith.constant 0.000000e+00 : f32
    %6 = vector.broadcast %cst_5 : f32 to vector<128x128xf32>
    %7 = arith.maximumf %5, %6 : vector<128x128xf32>
    %8 = arith.truncf %7 : vector<128x128xf32> to vector<128x128xbf16>
    %c0_6 = arith.constant 0 : index
    %c0_7 = arith.constant 0 : index
    %9 = vector.load %arg4[%c0_6, %c0_7] : memref<128x128xbf16, #tpu.memory_space<vmem>>, vector<128x128xbf16>
    tpu.vector_store %arg4[%c0_6, %c0_7], %8 {strides = array<i32>} : memref<128x128xbf16, #tpu.memory_space<vmem>>, vector<128x128xbf16>,
    return
  }
  func.func @transform_0(%arg0: i32) -> (i32, i32) {
    %c0_i32 = arith.constant 0 : i32
    %c0_i32_0 = arith.constant 0 : i32
    return %arg0, %c0_i32 : i32, i32
  }
  func.func @transform_1(%arg0: i32) -> (i32, i32) {
    %c0_i32 = arith.constant 0 : i32
    %c0_i32_0 = arith.constant 0 : i32
    %c0_i32_1 = arith.constant 0 : i32
    return %c0_i32, %c0_i32_0 : i32, i32
  }
  func.func @transform_2(%arg0: i32) -> (i32, i32) {
    %c0_i32 = arith.constant 0 : i32
    %c0_i32_0 = arith.constant 0 : i32
    %c0_i32_1 = arith.constant 0 : i32
    return %c0_i32, %c0_i32_0 : i32, i32
  }
  func.func @transform_3(%arg0: i32) -> (i32, i32) {
    %c0_i32 = arith.constant 0 : i32
    %c0_i32_0 = arith.constant 0 : i32
    return %arg0, %c0_i32 : i32, i32
  }
}

module attributes {stable_mosaic.version = 11 : i64} {
  func.func @_matmul_bias_kernel(%arg0: i32, %arg1: memref<32x2048xbf16, #tpu.memory_space<vmem>>, %arg2: memref<2048x256xbf16, #tpu.memory_space<vmem>>, %arg3: memref<1x256xf32, #tpu.memory_space<vmem>>, %arg4: memref<32x256xbf16, #tpu.memory_space<vmem>>) attributes {dimension_semantics = [#tpu.dimension_semantics<parallel>], iteration_bounds = array<i64: 1>, scalar_prefetch = 0 : i64, scratch_operands = 0 : i64, tpu.core_type = #tpu.core_type<tc>, window_params = [{transform_indices = @transform_0, window_bounds = array<i64: 32, 2048>}, {pipeline_mode = #tpu.pipeline_mode<synchronous>, transform_indices = @transform_1, window_bounds = array<i64: 2048, 256>}, {pipeline_mode = #tpu.pipeline_mode<synchronous>, transform_indices = @transform_2, window_bounds = array<i64: 1, 256>}, {transform_indices = @transform_3, window_bounds = array<i64: 32, 256>}]} {
    %c0 = arith.constant 0 : index
    %c0_0 = arith.constant 0 : index
    %0 = vector.load %arg1[%c0, %c0_0] : memref<32x2048xbf16, #tpu.memory_space<vmem>>, vector<32x2048xbf16>
    %c0_1 = arith.constant 0 : index
    %c0_2 = arith.constant 0 : index
    %1 = vector.load %arg2[%c0_1, %c0_2] : memref<2048x256xbf16, #tpu.memory_space<vmem>>, vector<2048x256xbf16>
    %cst = arith.constant dense<0.000000e+00> : vector<32x256xf32>
    %2 = tpu.matmul %0, %1, %cst {dimension_numbers = #tpu.dot_dimension_numbers<[1], [0], [0], [1], [0, 0, 1, 1], [], []>} : vector<32x2048xbf16>, vector<2048x256xbf16>, vector<32x256xf32> -> vector<32x256xf32>
    %c0_3 = arith.constant 0 : index
    %c0_4 = arith.constant 0 : index
    %3 = vector.load %arg3[%c0_3, %c0_4] : memref<1x256xf32, #tpu.memory_space<vmem>>, vector<1x256xf32>
    %4 = vector.broadcast %3 : vector<1x256xf32> to vector<32x256xf32>
    %5 = arith.addf %2, %4 : vector<32x256xf32>
    %cst_5 = arith.constant 0.000000e+00 : f32
    %6 = vector.broadcast %cst_5 : f32 to vector<32x256xf32>
    %7 = arith.maximumf %5, %6 : vector<32x256xf32>
    %8 = arith.truncf %7 : vector<32x256xf32> to vector<32x256xbf16>
    %c0_6 = arith.constant 0 : index
    %c0_7 = arith.constant 0 : index
    %9 = vector.load %arg4[%c0_6, %c0_7] : memref<32x256xbf16, #tpu.memory_space<vmem>>, vector<32x256xbf16>
    tpu.vector_store %arg4[%c0_6, %c0_7], %8 {strides = array<i32>} : memref<32x256xbf16, #tpu.memory_space<vmem>>, vector<32x256xbf16>,
    return
  }
  func.func @transform_0(%arg0: i32) -> (i32, i32) {
    %c0_i32 = arith.constant 0 : i32
    %c0_i32_0 = arith.constant 0 : i32
    return %arg0, %c0_i32 : i32, i32
  }
  func.func @transform_1(%arg0: i32) -> (i32, i32) {
    %c0_i32 = arith.constant 0 : i32
    %c0_i32_0 = arith.constant 0 : i32
    %c0_i32_1 = arith.constant 0 : i32
    return %c0_i32, %c0_i32_0 : i32, i32
  }
  func.func @transform_2(%arg0: i32) -> (i32, i32) {
    %c0_i32 = arith.constant 0 : i32
    %c0_i32_0 = arith.constant 0 : i32
    %c0_i32_1 = arith.constant 0 : i32
    return %c0_i32, %c0_i32_0 : i32, i32
  }
  func.func @transform_3(%arg0: i32) -> (i32, i32) {
    %c0_i32 = arith.constant 0 : i32
    %c0_i32_0 = arith.constant 0 : i32
    return %arg0, %c0_i32 : i32, i32
  }
}

module attributes {stable_mosaic.version = 11 : i64} {
  func.func @_matmul_bias_kernel(%arg0: i32, %arg1: memref<8x4096xbf16, #tpu.memory_space<vmem>>, %arg2: memref<4096x256xbf16, #tpu.memory_space<vmem>>, %arg3: memref<1x256xf32, #tpu.memory_space<vmem>>, %arg4: memref<8x256xbf16, #tpu.memory_space<vmem>>) attributes {dimension_semantics = [#tpu.dimension_semantics<parallel>], iteration_bounds = array<i64: 1>, scalar_prefetch = 0 : i64, scratch_operands = 0 : i64, tpu.core_type = #tpu.core_type<tc>, window_params = [{transform_indices = @transform_0, window_bounds = array<i64: 8, 4096>}, {pipeline_mode = #tpu.pipeline_mode<synchronous>, transform_indices = @transform_1, window_bounds = array<i64: 4096, 256>}, {pipeline_mode = #tpu.pipeline_mode<synchronous>, transform_indices = @transform_2, window_bounds = array<i64: 1, 256>}, {transform_indices = @transform_3, window_bounds = array<i64: 8, 256>}]} {
    %c0 = arith.constant 0 : index
    %c0_0 = arith.constant 0 : index
    %0 = vector.load %arg1[%c0, %c0_0] : memref<8x4096xbf16, #tpu.memory_space<vmem>>, vector<8x4096xbf16>
    %c0_1 = arith.constant 0 : index
    %c0_2 = arith.constant 0 : index
    %1 = vector.load %arg2[%c0_1, %c0_2] : memref<4096x256xbf16, #tpu.memory_space<vmem>>, vector<4096x256xbf16>
    %cst = arith.constant dense<0.000000e+00> : vector<8x256xf32>
    %2 = tpu.matmul %0, %1, %cst {dimension_numbers = #tpu.dot_dimension_numbers<[1], [0], [0], [1], [0, 0, 1, 1], [], []>} : vector<8x4096xbf16>, vector<4096x256xbf16>, vector<8x256xf32> -> vector<8x256xf32>
    %c0_3 = arith.constant 0 : index
    %c0_4 = arith.constant 0 : index
    %3 = vector.load %arg3[%c0_3, %c0_4] : memref<1x256xf32, #tpu.memory_space<vmem>>, vector<1x256xf32>
    %4 = vector.broadcast %3 : vector<1x256xf32> to vector<8x256xf32>
    %5 = arith.addf %2, %4 : vector<8x256xf32>
    %cst_5 = arith.constant 0.000000e+00 : f32
    %6 = vector.broadcast %cst_5 : f32 to vector<8x256xf32>
    %7 = arith.maximumf %5, %6 : vector<8x256xf32>
    %8 = arith.truncf %7 : vector<8x256xf32> to vector<8x256xbf16>
    %c0_6 = arith.constant 0 : index
    %c0_7 = arith.constant 0 : index
    %9 = vector.load %arg4[%c0_6, %c0_7] : memref<8x256xbf16, #tpu.memory_space<vmem>>, vector<8x256xbf16>
    tpu.vector_store %arg4[%c0_6, %c0_7], %8 {strides = array<i32>} : memref<8x256xbf16, #tpu.memory_space<vmem>>, vector<8x256xbf16>,
    return
  }
  func.func @transform_0(%arg0: i32) -> (i32, i32) {
    %c0_i32 = arith.constant 0 : i32
    %c0_i32_0 = arith.constant 0 : i32
    return %arg0, %c0_i32 : i32, i32
  }
  func.func @transform_1(%arg0: i32) -> (i32, i32) {
    %c0_i32 = arith.constant 0 : i32
    %c0_i32_0 = arith.constant 0 : i32
    %c0_i32_1 = arith.constant 0 : i32
    return %c0_i32, %c0_i32_0 : i32, i32
  }
  func.func @transform_2(%arg0: i32) -> (i32, i32) {
    %c0_i32 = arith.constant 0 : i32
    %c0_i32_0 = arith.constant 0 : i32
    %c0_i32_1 = arith.constant 0 : i32
    return %c0_i32, %c0_i32_0 : i32, i32
  }
  func.func @transform_3(%arg0: i32) -> (i32, i32) {
    %c0_i32 = arith.constant 0 : i32
    %c0_i32_0 = arith.constant 0 : i32
    return %arg0, %c0_i32 : i32, i32
  }
}

module attributes {stable_mosaic.version = 11 : i64} {
  func.func @_conv5_pool_head_kernel(%arg0: i32, %arg1: i32, %arg2: memref<1x8x4096xbf16, #tpu.memory_space<vmem>>, %arg3: memref<4096x256xbf16, #tpu.memory_space<vmem>>, %arg4: memref<1x256xf32, #tpu.memory_space<vmem>>, %arg5: memref<256x8xf32, #tpu.memory_space<vmem>>, %arg6: memref<1x8xf32, #tpu.memory_space<vmem>>, %arg7: memref<1x1x8xf32, #tpu.memory_space<vmem>>, %arg8: memref<1x256xf32, #tpu.memory_space<vmem>>) attributes {dimension_semantics = [#tpu.dimension_semantics<parallel>, #tpu.dimension_semantics<arbitrary>], iteration_bounds = array<i64: 2, 1>, scalar_prefetch = 0 : i64, scratch_operands = 1 : i64, tpu.core_type = #tpu.core_type<tc>, window_params = [{transform_indices = @transform_0, window_bounds = array<i64: 1, 8, 4096>}, {pipeline_mode = #tpu.pipeline_mode<synchronous>, transform_indices = @transform_1, window_bounds = array<i64: 4096, 256>}, {pipeline_mode = #tpu.pipeline_mode<synchronous>, transform_indices = @transform_2, window_bounds = array<i64: 1, 256>}, {pipeline_mode = #tpu.pipeline_mode<synchronous>, transform_indices = @transform_3, window_bounds = array<i64: 256, 8>}, {pipeline_mode = #tpu.pipeline_mode<synchronous>, transform_indices = @transform_4, window_bounds = array<i64: 1, 8>}, {transform_indices = @transform_5, window_bounds = array<i64: 1, 1, 8>}]} {
    %c0_i32 = arith.constant 0 : i32
    %0 = arith.cmpi eq, %arg1, %c0_i32 : i32
    %1 = arith.extui %0 : i1 to i32
    %c0_i32_0 = arith.constant 0 : i32
    %2 = arith.cmpi ne, %1, %c0_i32_0 : i32
    scf.if %2 {
      %cst_16 = arith.constant 0.000000e+00 : f32
      %30 = vector.broadcast %cst_16 : f32 to vector<1x256xf32>
      %c0_17 = arith.constant 0 : index
      %c0_18 = arith.constant 0 : index
      %31 = vector.load %arg8[%c0_17, %c0_18] : memref<1x256xf32, #tpu.memory_space<vmem>>, vector<1x256xf32>
      tpu.vector_store %arg8[%c0_17, %c0_18], %30 {strides = array<i32>} : memref<1x256xf32, #tpu.memory_space<vmem>>, vector<1x256xf32>,
    } else {
    }
    %c0 = arith.constant 0 : index
    %c0_1 = arith.constant 0 : index
    %c0_2 = arith.constant 0 : index
    %3 = vector.load %arg2[%c0, %c0_1, %c0_2] : memref<1x8x4096xbf16, #tpu.memory_space<vmem>>, vector<1x8x4096xbf16>
    %4 = vector.shape_cast %3 : vector<1x8x4096xbf16> to vector<8x4096xbf16>
    %c0_3 = arith.constant 0 : index
    %c0_4 = arith.constant 0 : index
    %5 = vector.load %arg3[%c0_3, %c0_4] : memref<4096x256xbf16, #tpu.memory_space<vmem>>, vector<4096x256xbf16>
    %cst = arith.constant dense<0.000000e+00> : vector<8x256xf32>
    %6 = tpu.matmul %4, %5, %cst {dimension_numbers = #tpu.dot_dimension_numbers<[1], [0], [0], [1], [0, 0, 1, 1], [], []>} : vector<8x4096xbf16>, vector<4096x256xbf16>, vector<8x256xf32> -> vector<8x256xf32>
    %c0_5 = arith.constant 0 : index
    %c0_6 = arith.constant 0 : index
    %7 = vector.load %arg4[%c0_5, %c0_6] : memref<1x256xf32, #tpu.memory_space<vmem>>, vector<1x256xf32>
    %8 = vector.broadcast %7 : vector<1x256xf32> to vector<8x256xf32>
    %9 = arith.addf %6, %8 : vector<8x256xf32>
    %cst_7 = arith.constant 0.000000e+00 : f32
    %10 = vector.broadcast %cst_7 : f32 to vector<8x256xf32>
    %11 = arith.maximumf %9, %10 : vector<8x256xf32>
    %c8_i32 = arith.constant 8 : i32
    %12 = arith.muli %arg1, %c8_i32 : i32
    %13 = tpu.iota {dimensions = array<i32: 0>} : vector<8x1xi32>
    %14 = vector.broadcast %12 : i32 to vector<8x1xi32>
    %15 = arith.addi %14, %13 : vector<8x1xi32>
    %c1_i32 = arith.constant 1 : i32
    %16 = vector.broadcast %c1_i32 : i32 to vector<8x1xi32>
    %17 = arith.cmpi slt, %15, %16 : vector<8x1xi32>
    %cst_8 = arith.constant 0.000000e+00 : f32
    %18 = vector.shape_cast %17 : vector<8x1xi1> to vector<8x1xi1>
    %19 = vector.broadcast %18 : vector<8x1xi1> to vector<8x256xi1>
    %20 = vector.broadcast %cst_8 : f32 to vector<8x256xf32>
    %21 = arith.select %19, %11, %20 : vector<8x256xi1>, vector<8x256xf32>
    %c0_9 = arith.constant 0 : index
    %c0_10 = arith.constant 0 : index
    %22 = vector.load %arg8[%c0_9, %c0_10] : memref<1x256xf32, #tpu.memory_space<vmem>>, vector<1x256xf32>
    %cst_11 = arith.constant dense<0.000000e+00> : vector<256xf32>
    %23 = vector.multi_reduction <add>, %21, %cst_11 [0] : vector<8x256xf32> to vector<256xf32>
    %24 = vector.shape_cast %23 : vector<256xf32> to vector<1x256xf32>
    %25 = arith.addf %22, %24 : vector<1x256xf32>
    %c0_12 = arith.constant 0 : index
    %c0_13 = arith.constant 0 : index
    %26 = vector.load %arg8[%c0_12, %c0_13] : memref<1x256xf32, #tpu.memory_space<vmem>>, vector<1x256xf32>
    tpu.vector_store %arg8[%c0_12, %c0_13], %25 {strides = array<i32>} : memref<1x256xf32, #tpu.memory_space<vmem>>, vector<1x256xf32>,
    %c0_i32_14 = arith.constant 0 : i32
    %27 = arith.cmpi eq, %arg1, %c0_i32_14 : i32
    %28 = arith.extui %27 : i1 to i32
    %c0_i32_15 = arith.constant 0 : i32
    %29 = arith.cmpi ne, %28, %c0_i32_15 : i32
    scf.if %29 {
      %c0_16 = arith.constant 0 : index
      %c0_17 = arith.constant 0 : index
      %30 = vector.load %arg8[%c0_16, %c0_17] : memref<1x256xf32, #tpu.memory_space<vmem>>, vector<1x256xf32>
      %cst_18 = arith.constant 1.000000e+00 : f32
      %31 = vector.broadcast %cst_18 : f32 to vector<1x256xf32>
      %32 = arith.mulf %30, %31 : vector<1x256xf32>
      %c0_19 = arith.constant 0 : index
      %c0_20 = arith.constant 0 : index
      %33 = vector.load %arg5[%c0_19, %c0_20] : memref<256x8xf32, #tpu.memory_space<vmem>>, vector<256x8xf32>
      %cst_21 = arith.constant dense<0.000000e+00> : vector<1x8xf32>
      %34 = tpu.matmul %32, %33, %cst_21 {dimension_numbers = #tpu.dot_dimension_numbers<[1], [0], [0], [1], [0, 0, 1, 1], [], []>} : vector<1x256xf32>, vector<256x8xf32>, vector<1x8xf32> -> vector<1x8xf32>
      %c0_22 = arith.constant 0 : index
      %c0_23 = arith.constant 0 : index
      %35 = vector.load %arg6[%c0_22, %c0_23] : memref<1x8xf32, #tpu.memory_space<vmem>>, vector<1x8xf32>
      %36 = arith.addf %34, %35 : vector<1x8xf32>
      %c0_24 = arith.constant 0 : index
      %c0_25 = arith.constant 0 : index
      %c0_26 = arith.constant 0 : index
      %37 = vector.load %arg7[%c0_24, %c0_25, %c0_26] : memref<1x1x8xf32, #tpu.memory_space<vmem>>, vector<1x1x8xf32>
      %38 = vector.shape_cast %37 : vector<1x1x8xf32> to vector<1x8xf32>
      %39 = vector.shape_cast %36 : vector<1x8xf32> to vector<1x1x8xf32>
      tpu.vector_store %arg7[%c0_24, %c0_25, %c0_26], %39 {strides = array<i32>} : memref<1x1x8xf32, #tpu.memory_space<vmem>>, vector<1x1x8xf32>,
    } else {
    }
    return
  }
  func.func @transform_0(%arg0: i32, %arg1: i32) -> (i32, i32, i32) {
    %c0_i32 = arith.constant 0 : i32
    %c0_i32_0 = arith.constant 0 : i32
    return %arg0, %arg1, %c0_i32 : i32, i32, i32
  }
  func.func @transform_1(%arg0: i32, %arg1: i32) -> (i32, i32) {
    %c0_i32 = arith.constant 0 : i32
    %c0_i32_0 = arith.constant 0 : i32
    %c0_i32_1 = arith.constant 0 : i32
    return %c0_i32, %c0_i32_0 : i32, i32
  }
  func.func @transform_2(%arg0: i32, %arg1: i32) -> (i32, i32) {
    %c0_i32 = arith.constant 0 : i32
    %c0_i32_0 = arith.constant 0 : i32
    %c0_i32_1 = arith.constant 0 : i32
    return %c0_i32, %c0_i32_0 : i32, i32
  }
  func.func @transform_3(%arg0: i32, %arg1: i32) -> (i32, i32) {
    %c0_i32 = arith.constant 0 : i32
    %c0_i32_0 = arith.constant 0 : i32
    %c0_i32_1 = arith.constant 0 : i32
    return %c0_i32, %c0_i32_0 : i32, i32
  }
  func.func @transform_4(%arg0: i32, %arg1: i32) -> (i32, i32) {
    %c0_i32 = arith.constant 0 : i32
    %c0_i32_0 = arith.constant 0 : i32
    %c0_i32_1 = arith.constant 0 : i32
    return %c0_i32, %c0_i32_0 : i32, i32
  }
  func.func @transform_5(%arg0: i32, %arg1: i32) -> (i32, i32, i32) {
    %c0_i32 = arith.constant 0 : i32
    %c0_i32_0 = arith.constant 0 : i32
    %c0_i32_1 = arith.constant 0 : i32
    return %arg0, %c0_i32, %c0_i32_0 : i32, i32, i32
  }
}

module attributes {stable_mosaic.version = 11 : i64} {
  func.func @_matmul_bias_kernel(%arg0: i32, %arg1: memref<512x256xbf16, #tpu.memory_space<vmem>>, %arg2: memref<256x128xbf16, #tpu.memory_space<vmem>>, %arg3: memref<1x128xf32, #tpu.memory_space<vmem>>, %arg4: memref<512x128xbf16, #tpu.memory_space<vmem>>) attributes {dimension_semantics = [#tpu.dimension_semantics<parallel>], iteration_bounds = array<i64: 1>, scalar_prefetch = 0 : i64, scratch_operands = 0 : i64, tpu.core_type = #tpu.core_type<tc>, window_params = [{transform_indices = @transform_0, window_bounds = array<i64: 512, 256>}, {pipeline_mode = #tpu.pipeline_mode<synchronous>, transform_indices = @transform_1, window_bounds = array<i64: 256, 128>}, {pipeline_mode = #tpu.pipeline_mode<synchronous>, transform_indices = @transform_2, window_bounds = array<i64: 1, 128>}, {transform_indices = @transform_3, window_bounds = array<i64: 512, 128>}]} {
    %c0 = arith.constant 0 : index
    %c0_0 = arith.constant 0 : index
    %0 = vector.load %arg1[%c0, %c0_0] : memref<512x256xbf16, #tpu.memory_space<vmem>>, vector<512x256xbf16>
    %c0_1 = arith.constant 0 : index
    %c0_2 = arith.constant 0 : index
    %1 = vector.load %arg2[%c0_1, %c0_2] : memref<256x128xbf16, #tpu.memory_space<vmem>>, vector<256x128xbf16>
    %cst = arith.constant dense<0.000000e+00> : vector<512x128xf32>
    %2 = tpu.matmul %0, %1, %cst {dimension_numbers = #tpu.dot_dimension_numbers<[1], [0], [0], [1], [0, 0, 1, 1], [], []>} : vector<512x256xbf16>, vector<256x128xbf16>, vector<512x128xf32> -> vector<512x128xf32>
    %c0_3 = arith.constant 0 : index
    %c0_4 = arith.constant 0 : index
    %3 = vector.load %arg3[%c0_3, %c0_4] : memref<1x128xf32, #tpu.memory_space<vmem>>, vector<1x128xf32>
    %4 = vector.broadcast %3 : vector<1x128xf32> to vector<512x128xf32>
    %5 = arith.addf %2, %4 : vector<512x128xf32>
    %cst_5 = arith.constant 0.000000e+00 : f32
    %6 = vector.broadcast %cst_5 : f32 to vector<512x128xf32>
    %7 = arith.maximumf %5, %6 : vector<512x128xf32>
    %8 = arith.truncf %7 : vector<512x128xf32> to vector<512x128xbf16>
    %c0_6 = arith.constant 0 : index
    %c0_7 = arith.constant 0 : index
    %9 = vector.load %arg4[%c0_6, %c0_7] : memref<512x128xbf16, #tpu.memory_space<vmem>>, vector<512x128xbf16>
    tpu.vector_store %arg4[%c0_6, %c0_7], %8 {strides = array<i32>} : memref<512x128xbf16, #tpu.memory_space<vmem>>, vector<512x128xbf16>,
    return
  }
  func.func @transform_0(%arg0: i32) -> (i32, i32) {
    %c0_i32 = arith.constant 0 : i32
    %c0_i32_0 = arith.constant 0 : i32
    return %arg0, %c0_i32 : i32, i32
  }
  func.func @transform_1(%arg0: i32) -> (i32, i32) {
    %c0_i32 = arith.constant 0 : i32
    %c0_i32_0 = arith.constant 0 : i32
    %c0_i32_1 = arith.constant 0 : i32
    return %c0_i32, %c0_i32_0 : i32, i32
  }
  func.func @transform_2(%arg0: i32) -> (i32, i32) {
    %c0_i32 = arith.constant 0 : i32
    %c0_i32_0 = arith.constant 0 : i32
    %c0_i32_1 = arith.constant 0 : i32
    return %c0_i32, %c0_i32_0 : i32, i32
  }
  func.func @transform_3(%arg0: i32) -> (i32, i32) {
    %c0_i32 = arith.constant 0 : i32
    %c0_i32_0 = arith.constant 0 : i32
    return %arg0, %c0_i32 : i32, i32
  }
}

</mosaic_0001>

<llo_original>
// kernel: style_encoder_forward.15
$region0: #{style_encoder_forward.15}
  #allocation0 [shape = 'u32[]', space=smem, size = 0x4, offset = 0x4, fixed_abs, tag = 'smem constant byte address 0x4 - core index']
  #allocation1 [shape = 'u32[72,128]{1,0:T(1,128)}', space=vmem, size = 0x9000, scoped, tag = 'internal scratch']
  %s0 = inlined_call_operand.vmem [shape: bf16[512,128], index: 0, kind: input, shape index: {}]
  %s1 = inlined_call_operand.vmem [shape: bf16[128,128], index: 1, kind: input, shape index: {}]
  %s2 = inlined_call_operand.vmem [shape: f32[1,128], index: 2, kind: input, shape index: {}]
  %s3 = inlined_call_operand.vmem [shape: bf16[512,128], index: 3, kind: output, shape index: {}]
  %s4 = sld [smem:[#allocation0]]
  $region22: #{style_encoder_forward.15} parent=0
    _
  %s6 = ssub.s32 1, %s4
  %s7 = scalar_select 0, %s6, %s4
  // Predicated region
  $region2: #{style_encoder_forward.15} parent=0 // pred_check
    _
  $region3: #{style_encoder_forward.15} parent=0 // pred_check_branch
    %9 = sbr.rel (0) target = $region5
  $region4: #{style_encoder_forward.15} parent=0 // pred_region
    _
  $region5: #{style_encoder_forward.15} parent=0 // pred_fallthru
    _
  // Predicated region
  $region6: #{style_encoder_forward.15} parent=0 // pred_check
    _
  $region7: #{style_encoder_forward.15} parent=0 // pred_check_branch
    %11 = sbr.rel (0) target = $region9
  $region8: #{style_encoder_forward.15} parent=0 // pred_region
    _
  $region9: #{style_encoder_forward.15} parent=0 // pred_fallthru
    _
  // Predicated region
  $region10: #{style_encoder_forward.15} parent=0 // pred_check
    _
  $region11: #{style_encoder_forward.15} parent=0 // pred_check_branch
    %13 = sbr.rel (0) target = $region13
  $region12: #{style_encoder_forward.15} parent=0 // pred_region
    _
  $region13: #{style_encoder_forward.15} parent=0 // pred_fallthru
    _
  %v14 = vld [vmem:[%s0] sm:$0xf]
  %v15 = vld [vmem:[%s0 + $0x4] sm:$0xf]
  %v16 = vld [vmem:[%s0 + $0x8] sm:$0xf]
  %v17 = vld [vmem:[%s0 + $0xc] sm:$0xf]
  %v18 = vld [vmem:[%s0 + $0x10] sm:$0xf]
  %v19 = vld [vmem:[%s0 + $0x14] sm:$0xf]
  %v20 = vld [vmem:[%s0 + $0x18] sm:$0xf]
  %v21 = vld [vmem:[%s0 + $0x1c] sm:$0xf]
  %v22 = vld [vmem:[%s0 + $0x20] sm:$0xf]
  %v23 = vld [vmem:[%s0 + $0x24] sm:$0xf]
  %v24 = vld [vmem:[%s0 + $0x28] sm:$0xf]
  %v25 = vld [vmem:[%s0 + $0x2c] sm:$0xf]
  %v26 = vld [vmem:[%s0 + $0x30] sm:$0xf]
  %v27 = vld [vmem:[%s0 + $0x34] sm:$0xf]
  %v28 = vld [vmem:[%s0 + $0x38] sm:$0xf]
  %v29 = vld [vmem:[%s0 + $0x3c] sm:$0xf]
  %v30 = vld [vmem:[%s0 + $0x40] sm:$0xf]
  %v31 = vld [vmem:[%s0 + $0x44] sm:$0xf]
  %v32 = vld [vmem:[%s0 + $0x48] sm:$0xf]
  %v33 = vld [vmem:[%s0 + $0x4c] sm:$0xf]
  %v34 = vld [vmem:[%s0 + $0x50] sm:$0xf]
  %v35 = vld [vmem:[%s0 + $0x54] sm:$0xf]
  %v36 = vld [vmem:[%s0 + $0x58] sm:$0xf]
  %v37 = vld [vmem:[%s0 + $0x5c] sm:$0xf]
  %v38 = vld [vmem:[%s0 + $0x60] sm:$0xf]
  %v39 = vld [vmem:[%s0 + $0x64] sm:$0xf]
  %v40 = vld [vmem:[%s0 + $0x68] sm:$0xf]
  %v41 = vld [vmem:[%s0 + $0x6c] sm:$0xf]
  %v42 = vld [vmem:[%s0 + $0x70] sm:$0xf]
  %v43 = vld [vmem:[%s0 + $0x74] sm:$0xf]
  %v44 = vld [vmem:[%s0 + $0x78] sm:$0xf]
  %v45 = vld [vmem:[%s0 + $0x7c] sm:$0xf]
  %v46 = vld [vmem:[%s0 + $0x80] sm:$0xf]
  %v47 = vld [vmem:[%s0 + $0x84] sm:$0xf]
  %v48 = vld [vmem:[%s0 + $0x88] sm:$0xf]
  %v49 = vld [vmem:[%s0 + $0x8c] sm:$0xf]
  %v50 = vld [vmem:[%s0 + $0x90] sm:$0xf]
  %v51 = vld [vmem:[%s0 + $0x94] sm:$0xf]
  %v52 = vld [vmem:[%s0 + $0x98] sm:$0xf]
  %v53 = vld [vmem:[%s0 + $0x9c] sm:$0xf]
  %v54 = vld [vmem:[%s0 + $0xa0] sm:$0xf]
  %v55 = vld [vmem:[%s0 + $0xa4] sm:$0xf]
  %v56 = vld [vmem:[%s0 + $0xa8] sm:$0xf]
  %v57 = vld [vmem:[%s0 + $0xac] sm:$0xf]
  %v58 = vld [vmem:[%s0 + $0xb0] sm:$0xf]
  %v59 = vld [vmem:[%s0 + $0xb4] sm:$0xf]
  %v60 = vld [vmem:[%s0 + $0xb8] sm:$0xf]
  %v61 = vld [vmem:[%s0 + $0xbc] sm:$0xf]
  %v62 = vld [vmem:[%s0 + $0xc0] sm:$0xf]
  %v63 = vld [vmem:[%s0 + $0xc4] sm:$0xf]
  %v64 = vld [vmem:[%s0 + $0xc8] sm:$0xf]
  %v65 = vld [vmem:[%s0 + $0xcc] sm:$0xf]
  %v66 = vld [vmem:[%s0 + $0xd0] sm:$0xf]
  %v67 = vld [vmem:[%s0 + $0xd4] sm:$0xf]
  %v68 = vld [vmem:[%s0 + $0xd8] sm:$0xf]
  %v69 = vld [vmem:[%s0 + $0xdc] sm:$0xf]
  %v70 = vld [vmem:[%s0 + $0xe0] sm:$0xf]
  %v71 = vld [vmem:[%s0 + $0xe4] sm:$0xf]
  %v72 = vld [vmem:[%s0 + $0xe8] sm:$0xf]
  %v73 = vld [vmem:[%s0 + $0xec] sm:$0xf]
  %v74 = vld [vmem:[%s0 + $0xf0] sm:$0xf]
  %v75 = vld [vmem:[%s0 + $0xf4] sm:$0xf]
  %v76 = vld [vmem:[%s0 + $0xf8] sm:$0xf]
  %v77 = vld [vmem:[%s0 + $0xfc] sm:$0xf]
  %v78 = vld [vmem:[%s1] sm:$0xf]
  %v79 = vld [vmem:[%s1 + $0x4] sm:$0xf]
  %v80 = vld [vmem:[%s1 + $0x8] sm:$0xf]
  %v81 = vld [vmem:[%s1 + $0xc] sm:$0xf]
  %v82 = vld [vmem:[%s1 + $0x10] sm:$0xf]
  %v83 = vld [vmem:[%s1 + $0x14] sm:$0xf]
  %v84 = vld [vmem:[%s1 + $0x18] sm:$0xf]
  %v85 = vld [vmem:[%s1 + $0x1c] sm:$0xf]
  %v86 = vld [vmem:[%s1 + $0x20] sm:$0xf]
  %v87 = vld [vmem:[%s1 + $0x24] sm:$0xf]
  %v88 = vld [vmem:[%s1 + $0x28] sm:$0xf]
  %v89 = vld [vmem:[%s1 + $0x2c] sm:$0xf]
  %v90 = vld [vmem:[%s1 + $0x30] sm:$0xf]
  %v91 = vld [vmem:[%s1 + $0x34] sm:$0xf]
  %v92 = vld [vmem:[%s1 + $0x38] sm:$0xf]
  %v93 = vld [vmem:[%s1 + $0x3c] sm:$0xf]
  %v94 = vld [vmem:[%s2] sm:$0x1]
  %v96 = vperm.slane %v94, 0
  %v162 = vunpack.c.l.b16 %v14
  %v163 = vunpack.c.l.b16 %v15
  %v164 = vunpack.c.l.b16 %v16
  %v165 = vunpack.c.l.b16 %v17
  %v166 = vunpack.c.l.b16 %v18
  %v167 = vunpack.c.l.b16 %v19
  %v168 = vunpack.c.l.b16 %v20
  %v169 = vunpack.c.l.b16 %v21
  %v170 = vunpack.c.l.b16 %v22
  %v171 = vunpack.c.l.b16 %v23
  %v172 = vunpack.c.l.b16 %v24
  %v173 = vunpack.c.l.b16 %v25
  %v174 = vunpack.c.l.b16 %v26
  %v175 = vunpack.c.l.b16 %v27
  %v176 = vunpack.c.l.b16 %v28
  %v177 = vunpack.c.l.b16 %v29
  %v178 = vunpack.c.l.b16 %v30
  %v179 = vunpack.c.l.b16 %v31
  %v180 = vunpack.c.l.b16 %v32
  %v181 = vunpack.c.l.b16 %v33
  %v182 = vunpack.c.l.b16 %v34
  %v183 = vunpack.c.l.b16 %v35
  %v184 = vunpack.c.l.b16 %v36
  %v185 = vunpack.c.l.b16 %v37
  %v186 = vunpack.c.l.b16 %v38
  %v187 = vunpack.c.l.b16 %v39
  %v188 = vunpack.c.l.b16 %v40
  %v189 = vunpack.c.l.b16 %v41
  %v190 = vunpack.c.l.b16 %v42
  %v191 = vunpack.c.l.b16 %v43
  %v192 = vunpack.c.l.b16 %v44
  %v193 = vunpack.c.l.b16 %v45
  %v194 = vunpack.c.l.b16 %v46
  %v195 = vunpack.c.l.b16 %v47
  %v196 = vunpack.c.l.b16 %v48
  %v197 = vunpack.c.l.b16 %v49
  %v198 = vunpack.c.l.b16 %v50
  %v199 = vunpack.c.l.b16 %v51
  %v200 = vunpack.c.l.b16 %v52
  %v201 = vunpack.c.l.b16 %v53
  %v202 = vunpack.c.l.b16 %v54
  %v203 = vunpack.c.l.b16 %v55
  %v204 = vunpack.c.l.b16 %v56
  %v205 = vunpack.c.l.b16 %v57
  %v206 = vunpack.c.l.b16 %v58
  %v207 = vunpack.c.l.b16 %v59
  %v208 = vunpack.c.l.b16 %v60
  %v209 = vunpack.c.l.b16 %v61
  %v210 = vunpack.c.l.b16 %v62
  %v211 = vunpack.c.l.b16 %v63
  %v212 = vunpack.c.l.b16 %v64
  %v213 = vunpack.c.l.b16 %v65
  %v214 = vunpack.c.l.b16 %v66
  %v215 = vunpack.c.l.b16 %v67
  %v216 = vunpack.c.l.b16 %v68
  %v217 = vunpack.c.l.b16 %v69
  %v218 = vunpack.c.l.b16 %v70
  %v219 = vunpack.c.l.b16 %v71
  %v220 = vunpack.c.l.b16 %v72
  %v221 = vunpack.c.l.b16 %v73
  %v222 = vunpack.c.l.b16 %v74
  %v223 = vunpack.c.l.b16 %v75
  %v224 = vunpack.c.l.b16 %v76
  %v225 = vunpack.c.l.b16 %v77
  %v226 = vpack.c.b16 %v163, %v162
  %v227 = vpack.c.b16 %v165, %v164
  %v228 = vpack.c.b16 %v167, %v166
  %v229 = vpack.c.b16 %v169, %v168
  %v230 = vpack.c.b16 %v171, %v170
  %v231 = vpack.c.b16 %v173, %v172
  %v232 = vpack.c.b16 %v175, %v174
  %v233 = vpack.c.b16 %v177, %v176
  %v234 = vpack.c.b16 %v179, %v178
  %v235 = vpack.c.b16 %v181, %v180
  %v236 = vpack.c.b16 %v183, %v182
  %v237 = vpack.c.b16 %v185, %v184
  %v238 = vpack.c.b16 %v187, %v186
  %v239 = vpack.c.b16 %v189, %v188
  %v240 = vpack.c.b16 %v191, %v190
  %v241 = vpack.c.b16 %v193, %v192
  %v242 = vpack.c.b16 %v195, %v194
  %v243 = vpack.c.b16 %v197, %v196
  %v244 = vpack.c.b16 %v199, %v198
  %v245 = vpack.c.b16 %v201, %v200
  %v246 = vpack.c.b16 %v203, %v202
  %v247 = vpack.c.b16 %v205, %v204
  %v248 = vpack.c.b16 %v207, %v206
  %v249 = vpack.c.b16 %v209, %v208
  %v250 = vpack.c.b16 %v211, %v210
  %v251 = vpack.c.b16 %v213, %v212
  %v252 = vpack.c.b16 %v215, %v214
  %v253 = vpack.c.b16 %v217, %v216
  %v254 = vpack.c.b16 %v219, %v218
  %v255 = vpack.c.b16 %v221, %v220
  %v256 = vpack.c.b16 %v223, %v222
  %v257 = vpack.c.b16 %v225, %v224
  %v306 = vunpack.c.l.b16 %v78
  %v307 = vunpack.c.l.b16 %v79
  %v308 = vunpack.c.l.b16 %v80
  %v309 = vunpack.c.l.b16 %v81
  %v310 = vunpack.c.l.b16 %v82
  %v311 = vunpack.c.l.b16 %v83
  %v312 = vunpack.c.l.b16 %v84
  %v313 = vunpack.c.l.b16 %v85
  %v314 = vunpack.c.l.b16 %v86
  %v315 = vunpack.c.l.b16 %v87
  %v316 = vunpack.c.l.b16 %v88
  %v317 = vunpack.c.l.b16 %v89
  %v318 = vunpack.c.l.b16 %v90
  %v319 = vunpack.c.l.b16 %v91
  %v320 = vunpack.c.l.b16 %v92
  %v321 = vunpack.c.l.b16 %v93
  %v322 = vpack.c.b16 %v307, %v306
  %v323 = vpack.c.b16 %v309, %v308
  %v324 = vpack.c.b16 %v311, %v310
  %v325 = vpack.c.b16 %v313, %v312
  %v326 = vpack.c.b16 %v315, %v314
  %v327 = vpack.c.b16 %v317, %v316
  %v328 = vpack.c.b16 %v319, %v318
  %v329 = vpack.c.b16 %v321, %v320
  %338 = vmatpush.bf16.msra.mxu0 %v329
  %339 = vmatpush.bf16.msra.mxu0 %v328
  %340 = vmatpush.bf16.msra.mxu0 %v327
  %341 = vmatpush.bf16.msra.mxu0 %v326
  %342 = vmatpush.bf16.msra.mxu0 %v325
  %343 = vmatpush.bf16.msra.mxu0 %v324
  %344 = vmatpush.bf16.msra.mxu0 %v323
  %345 = vmatpush.bf16.msra.mxu0 %v322
  %346 = vmatmul.bf16.gmra.mxu0 %v226
  %v347 = vpop.f32.mrf.mxu0
  %v348 = vadd.f32 %v96, %v347
  %v349 = vpop.f32.mrf.mxu0
  %v350 = vadd.f32 %v96, %v349
  %351 = vmatmul.bf16.gmra.mxu0 %v227
  %v352 = vpop.f32.mrf.mxu0
  %v353 = vadd.f32 %v96, %v352
  %v354 = vpop.f32.mrf.mxu0
  %v355 = vadd.f32 %v96, %v354
  %356 = vmatmul.bf16.gmra.mxu0 %v228
  %v357 = vpop.f32.mrf.mxu0
  %v358 = vadd.f32 %v96, %v357
  %v359 = vpop.f32.mrf.mxu0
  %v360 = vadd.f32 %v96, %v359
  %361 = vmatmul.bf16.gmra.mxu0 %v229
  %v362 = vpop.f32.mrf.mxu0
  %v363 = vadd.f32 %v96, %v362
  %v364 = vpop.f32.mrf.mxu0
  %v365 = vadd.f32 %v96, %v364
  %366 = vmatmul.bf16.gmra.mxu0 %v230
  %v367 = vpop.f32.mrf.mxu0
  %v368 = vadd.f32 %v96, %v367
  %v369 = vpop.f32.mrf.mxu0
  %v370 = vadd.f32 %v96, %v369
  %371 = vmatmul.bf16.gmra.mxu0 %v231
  %v372 = vpop.f32.mrf.mxu0
  %v373 = vadd.f32 %v96, %v372
  %v374 = vpop.f32.mrf.mxu0
  %v375 = vadd.f32 %v96, %v374
  %376 = vmatmul.bf16.gmra.mxu0 %v232
  %v377 = vpop.f32.mrf.mxu0
  %v378 = vadd.f32 %v96, %v377
  %v379 = vpop.f32.mrf.mxu0
  %v380 = vadd.f32 %v96, %v379
  %381 = vmatmul.bf16.gmra.mxu0 %v233
  %v382 = vpop.f32.mrf.mxu0
  %v383 = vadd.f32 %v96, %v382
  %v384 = vpop.f32.mrf.mxu0
  %v385 = vadd.f32 %v96, %v384
  %386 = vmatmul.bf16.gmra.mxu0 %v234
  %v387 = vpop.f32.mrf.mxu0
  %v388 = vadd.f32 %v96, %v387
  %v389 = vpop.f32.mrf.mxu0
  %v390 = vadd.f32 %v96, %v389
  %391 = vmatmul.bf16.gmra.mxu0 %v235
  %v392 = vpop.f32.mrf.mxu0
  %v393 = vadd.f32 %v96, %v392
  %v394 = vpop.f32.mrf.mxu0
  %v395 = vadd.f32 %v96, %v394
  %396 = vmatmul.bf16.gmra.mxu0 %v236
  %v397 = vpop.f32.mrf.mxu0
  %v398 = vadd.f32 %v96, %v397
  %v399 = vpop.f32.mrf.mxu0
  %v400 = vadd.f32 %v96, %v399
  %401 = vmatmul.bf16.gmra.mxu0 %v237
  %v402 = vpop.f32.mrf.mxu0
  %v403 = vadd.f32 %v96, %v402
  %v404 = vpop.f32.mrf.mxu0
  %v405 = vadd.f32 %v96, %v404
  %406 = vmatmul.bf16.gmra.mxu0 %v238
  %v407 = vpop.f32.mrf.mxu0
  %v408 = vadd.f32 %v96, %v407
  %v409 = vpop.f32.mrf.mxu0
  %v410 = vadd.f32 %v96, %v409
  %411 = vmatmul.bf16.gmra.mxu0 %v239
  %v412 = vpop.f32.mrf.mxu0
  %v413 = vadd.f32 %v96, %v412
  %v414 = vpop.f32.mrf.mxu0
  %v415 = vadd.f32 %v96, %v414
  %416 = vmatmul.bf16.gmra.mxu0 %v240
  %v417 = vpop.f32.mrf.mxu0
  %v418 = vadd.f32 %v96, %v417
  %v419 = vpop.f32.mrf.mxu0
  %v420 = vadd.f32 %v96, %v419
  %421 = vmatmul.bf16.gmra.mxu0 %v241
  %v422 = vpop.f32.mrf.mxu0
  %v423 = vadd.f32 %v96, %v422
  %v424 = vpop.f32.mrf.mxu0
  %v425 = vadd.f32 %v96, %v424
  %426 = vmatmul.bf16.gmra.mxu0 %v242
  %v427 = vpop.f32.mrf.mxu0
  %v428 = vadd.f32 %v96, %v427
  %v429 = vpop.f32.mrf.mxu0
  %v430 = vadd.f32 %v96, %v429
  %431 = vmatmul.bf16.gmra.mxu0 %v243
  %v432 = vpop.f32.mrf.mxu0
  %v433 = vadd.f32 %v96, %v432
  %v434 = vpop.f32.mrf.mxu0
  %v435 = vadd.f32 %v96, %v434
  %436 = vmatmul.bf16.gmra.mxu0 %v244
  %v437 = vpop.f32.mrf.mxu0
  %v438 = vadd.f32 %v96, %v437
  %v439 = vpop.f32.mrf.mxu0
  %v440 = vadd.f32 %v96, %v439
  %441 = vmatmul.bf16.gmra.mxu0 %v245
  %v442 = vpop.f32.mrf.mxu0
  %v443 = vadd.f32 %v96, %v442
  %v444 = vpop.f32.mrf.mxu0
  %v445 = vadd.f32 %v96, %v444
  %446 = vmatmul.bf16.gmra.mxu0 %v246
  %v447 = vpop.f32.mrf.mxu0
  %v448 = vadd.f32 %v96, %v447
  %v449 = vpop.f32.mrf.mxu0
  %v450 = vadd.f32 %v96, %v449
  %451 = vmatmul.bf16.gmra.mxu0 %v247
  %v452 = vpop.f32.mrf.mxu0
  %v453 = vadd.f32 %v96, %v452
  %v454 = vpop.f32.mrf.mxu0
  %v455 = vadd.f32 %v96, %v454
  %456 = vmatmul.bf16.gmra.mxu0 %v248
  %v457 = vpop.f32.mrf.mxu0
  %v458 = vadd.f32 %v96, %v457
  %v459 = vpop.f32.mrf.mxu0
  %v460 = vadd.f32 %v96, %v459
  %461 = vmatmul.bf16.gmra.mxu0 %v249
  %v462 = vpop.f32.mrf.mxu0
  %v463 = vadd.f32 %v96, %v462
  %v464 = vpop.f32.mrf.mxu0
  %v465 = vadd.f32 %v96, %v464
  %466 = vmatmul.bf16.gmra.mxu0 %v250
  %v467 = vpop.f32.mrf.mxu0
  %v468 = vadd.f32 %v96, %v467
  %v469 = vpop.f32.mrf.mxu0
  %v470 = vadd.f32 %v96, %v469
  %471 = vmatmul.bf16.gmra.mxu0 %v251
  %v472 = vpop.f32.mrf.mxu0
  %v473 = vadd.f32 %v96, %v472
  %v474 = vpop.f32.mrf.mxu0
  %v475 = vadd.f32 %v96, %v474
  %476 = vmatmul.bf16.gmra.mxu0 %v252
  %v477 = vpop.f32.mrf.mxu0
  %v478 = vadd.f32 %v96, %v477
  %v479 = vpop.f32.mrf.mxu0
  %v480 = vadd.f32 %v96, %v479
  %481 = vmatmul.bf16.gmra.mxu0 %v253
  %v482 = vpop.f32.mrf.mxu0
  %v483 = vadd.f32 %v96, %v482
  %v484 = vpop.f32.mrf.mxu0
  %v485 = vadd.f32 %v96, %v484
  %486 = vmatmul.bf16.gmra.mxu0 %v254
  %v487 = vpop.f32.mrf.mxu0
  %v488 = vadd.f32 %v96, %v487
  %v489 = vpop.f32.mrf.mxu0
  %v490 = vadd.f32 %v96, %v489
  %491 = vmatmul.bf16.gmra.mxu0 %v255
  %v492 = vpop.f32.mrf.mxu0
  %v493 = vadd.f32 %v96, %v492
  %v494 = vpop.f32.mrf.mxu0
  %v495 = vadd.f32 %v96, %v494
  %496 = vmatmul.bf16.gmra.mxu0 %v256
  %v497 = vpop.f32.mrf.mxu0
  %v498 = vadd.f32 %v96, %v497
  %v499 = vpop.f32.mrf.mxu0
  %v500 = vadd.f32 %v96, %v499
  %501 = vmatmul.bf16.gmra.mxu0 %v257
  %v502 = vpop.f32.mrf.mxu0
  %v503 = vadd.f32 %v96, %v502
  %v504 = vpop.f32.mrf.mxu0
  %v505 = vadd.f32 %v96, %v504
  %506 = vdwg.mxu0
  %v507 = vmax.f32 %v348, 0.0
  %v508 = vmax.f32 %v350, 0.0
  %v509 = vmax.f32 %v353, 0.0
  %v510 = vmax.f32 %v355, 0.0
  %v511 = vmax.f32 %v358, 0.0
  %v512 = vmax.f32 %v360, 0.0
  %v513 = vmax.f32 %v363, 0.0
  %v514 = vmax.f32 %v365, 0.0
  %v515 = vmax.f32 %v368, 0.0
  %v516 = vmax.f32 %v370, 0.0
  %v517 = vmax.f32 %v373, 0.0
  %v518 = vmax.f32 %v375, 0.0
  %v519 = vmax.f32 %v378, 0.0
  %v520 = vmax.f32 %v380, 0.0
  %v521 = vmax.f32 %v383, 0.0
  %v522 = vmax.f32 %v385, 0.0
  %v523 = vmax.f32 %v388, 0.0
  %v524 = vmax.f32 %v390, 0.0
  %v525 = vmax.f32 %v393, 0.0
  %v526 = vmax.f32 %v395, 0.0
  %v527 = vmax.f32 %v398, 0.0
  %v528 = vmax.f32 %v400, 0.0
  %v529 = vmax.f32 %v403, 0.0
  %v530 = vmax.f32 %v405, 0.0
  %v531 = vmax.f32 %v408, 0.0
  %v532 = vmax.f32 %v410, 0.0
  %v533 = vmax.f32 %v413, 0.0
  %v534 = vmax.f32 %v415, 0.0
  %v535 = vmax.f32 %v418, 0.0
  %v536 = vmax.f32 %v420, 0.0
  %v537 = vmax.f32 %v423, 0.0
  %v538 = vmax.f32 %v425, 0.0
  %v539 = vmax.f32 %v428, 0.0
  %v540 = vmax.f32 %v430, 0.0
  %v541 = vmax.f32 %v433, 0.0
  %v542 = vmax.f32 %v435, 0.0
  %v543 = vmax.f32 %v438, 0.0
  %v544 = vmax.f32 %v440, 0.0
  %v545 = vmax.f32 %v443, 0.0
  %v546 = vmax.f32 %v445, 0.0
  %v547 = vmax.f32 %v448, 0.0
  %v548 = vmax.f32 %v450, 0.0
  %v549 = vmax.f32 %v453, 0.0
  %v550 = vmax.f32 %v455, 0.0
  %v551 = vmax.f32 %v458, 0.0
  %v552 = vmax.f32 %v460, 0.0
  %v553 = vmax.f32 %v463, 0.0
  %v554 = vmax.f32 %v465, 0.0
  %v555 = vmax.f32 %v468, 0.0
  %v556 = vmax.f32 %v470, 0.0
  %v557 = vmax.f32 %v473, 0.0
  %v558 = vmax.f32 %v475, 0.0
  %v559 = vmax.f32 %v478, 0.0
  %v560 = vmax.f32 %v480, 0.0
  %v561 = vmax.f32 %v483, 0.0
  %v562 = vmax.f32 %v485, 0.0
  %v563 = vmax.f32 %v488, 0.0
  %v564 = vmax.f32 %v490, 0.0
  %v565 = vmax.f32 %v493, 0.0
  %v566 = vmax.f32 %v495, 0.0
  %v567 = vmax.f32 %v498, 0.0
  %v568 = vmax.f32 %v500, 0.0
  %v569 = vmax.f32 %v503, 0.0
  %v570 = vmax.f32 %v505, 0.0
  %v571 = vpack.c.bf16 %v507, %v507
  %v572 = vpack.c.bf16 %v508, %v508
  %v573 = vpack.c.bf16 %v509, %v509
  %v574 = vpack.c.bf16 %v510, %v510
  %v575 = vpack.c.bf16 %v511, %v511
  %v576 = vpack.c.bf16 %v512, %v512
  %v577 = vpack.c.bf16 %v513, %v513
  %v578 = vpack.c.bf16 %v514, %v514
  %v579 = vpack.c.bf16 %v515, %v515
  %v580 = vpack.c.bf16 %v516, %v516
  %v581 = vpack.c.bf16 %v517, %v517
  %v582 = vpack.c.bf16 %v518, %v518
  %v583 = vpack.c.bf16 %v519, %v519
  %v584 = vpack.c.bf16 %v520, %v520
  %v585 = vpack.c.bf16 %v521, %v521
  %v586 = vpack.c.bf16 %v522, %v522
  %v587 = vpack.c.bf16 %v523, %v523
  %v588 = vpack.c.bf16 %v524, %v524
  %v589 = vpack.c.bf16 %v525, %v525
  %v590 = vpack.c.bf16 %v526, %v526
  %v591 = vpack.c.bf16 %v527, %v527
  %v592 = vpack.c.bf16 %v528, %v528
  %v593 = vpack.c.bf16 %v529, %v529
  %v594 = vpack.c.bf16 %v530, %v530
  %v595 = vpack.c.bf16 %v531, %v531
  %v596 = vpack.c.bf16 %v532, %v532
  %v597 = vpack.c.bf16 %v533, %v533
  %v598 = vpack.c.bf16 %v534, %v534
  %v599 = vpack.c.bf16 %v535, %v535
  %v600 = vpack.c.bf16 %v536, %v536
  %v601 = vpack.c.bf16 %v537, %v537
  %v602 = vpack.c.bf16 %v538, %v538
  %v603 = vpack.c.bf16 %v539, %v539
  %v604 = vpack.c.bf16 %v540, %v540
  %v605 = vpack.c.bf16 %v541, %v541
  %v606 = vpack.c.bf16 %v542, %v542
  %v607 = vpack.c.bf16 %v543, %v543
  %v608 = vpack.c.bf16 %v544, %v544
  %v609 = vpack.c.bf16 %v545, %v545
  %v610 = vpack.c.bf16 %v546, %v546
  %v611 = vpack.c.bf16 %v547, %v547
  %v612 = vpack.c.bf16 %v548, %v548
  %v613 = vpack.c.bf16 %v549, %v549
  %v614 = vpack.c.bf16 %v550, %v550
  %v615 = vpack.c.bf16 %v551, %v551
  %v616 = vpack.c.bf16 %v552, %v552
  %v617 = vpack.c.bf16 %v553, %v553
  %v618 = vpack.c.bf16 %v554, %v554
  %v619 = vpack.c.bf16 %v555, %v555
  %v620 = vpack.c.bf16 %v556, %v556
  %v621 = vpack.c.bf16 %v557, %v557
  %v622 = vpack.c.bf16 %v558, %v558
  %v623 = vpack.c.bf16 %v559, %v559
  %v624 = vpack.c.bf16 %v560, %v560
  %v625 = vpack.c.bf16 %v561, %v561
  %v626 = vpack.c.bf16 %v562, %v562
  %v627 = vpack.c.bf16 %v563, %v563
  %v628 = vpack.c.bf16 %v564, %v564
  %v629 = vpack.c.bf16 %v565, %v565
  %v630 = vpack.c.bf16 %v566, %v566
  %v631 = vpack.c.bf16 %v567, %v567
  %v632 = vpack.c.bf16 %v568, %v568
  %v633 = vpack.c.bf16 %v569, %v569
  %v634 = vpack.c.bf16 %v570, %v570
  %635 = vst [vmem:[%s3] sm:$0xf] %v571
  %636 = vst [vmem:[%s3 + $0x4] sm:$0xf] %v572
  %637 = vst [vmem:[%s3 + $0x8] sm:$0xf] %v573
  %638 = vst [vmem:[%s3 + $0xc] sm:$0xf] %v574
  %639 = vst [vmem:[%s3 + $0x10] sm:$0xf] %v575
  %640 = vst [vmem:[%s3 + $0x14] sm:$0xf] %v576
  %641 = vst [vmem:[%s3 + $0x18] sm:$0xf] %v577
  %642 = vst [vmem:[%s3 + $0x1c] sm:$0xf] %v578
  %643 = vst [vmem:[%s3 + $0x20] sm:$0xf] %v579
  %644 = vst [vmem:[%s3 + $0x24] sm:$0xf] %v580
  %645 = vst [vmem:[%s3 + $0x28] sm:$0xf] %v581
  %646 = vst [vmem:[%s3 + $0x2c] sm:$0xf] %v582
  %647 = vst [vmem:[%s3 + $0x30] sm:$0xf] %v583
  %648 = vst [vmem:[%s3 + $0x34] sm:$0xf] %v584
  %649 = vst [vmem:[%s3 + $0x38] sm:$0xf] %v585
  %650 = vst [vmem:[%s3 + $0x3c] sm:$0xf] %v586
  %651 = vst [vmem:[%s3 + $0x40] sm:$0xf] %v587
  %652 = vst [vmem:[%s3 + $0x44] sm:$0xf] %v588
  %653 = vst [vmem:[%s3 + $0x48] sm:$0xf] %v589
  %654 = vst [vmem:[%s3 + $0x4c] sm:$0xf] %v590
  %655 = vst [vmem:[%s3 + $0x50] sm:$0xf] %v591
  %656 = vst [vmem:[%s3 + $0x54] sm:$0xf] %v592
  %657 = vst [vmem:[%s3 + $0x58] sm:$0xf] %v593
  %658 = vst [vmem:[%s3 + $0x5c] sm:$0xf] %v594
  %659 = vst [vmem:[%s3 + $0x60] sm:$0xf] %v595
  %660 = vst [vmem:[%s3 + $0x64] sm:$0xf] %v596
  %661 = vst [vmem:[%s3 + $0x68] sm:$0xf] %v597
  %662 = vst [vmem:[%s3 + $0x6c] sm:$0xf] %v598
  %663 = vst [vmem:[%s3 + $0x70] sm:$0xf] %v599
  %664 = vst [vmem:[%s3 + $0x74] sm:$0xf] %v600
  %665 = vst [vmem:[%s3 + $0x78] sm:$0xf] %v601
  %666 = vst [vmem:[%s3 + $0x7c] sm:$0xf] %v602
  %667 = vst [vmem:[%s3 + $0x80] sm:$0xf] %v603
  %668 = vst [vmem:[%s3 + $0x84] sm:$0xf] %v604
  %669 = vst [vmem:[%s3 + $0x88] sm:$0xf] %v605
  %670 = vst [vmem:[%s3 + $0x8c] sm:$0xf] %v606
  %671 = vst [vmem:[%s3 + $0x90] sm:$0xf] %v607
  %672 = vst [vmem:[%s3 + $0x94] sm:$0xf] %v608
  %673 = vst [vmem:[%s3 + $0x98] sm:$0xf] %v609
  %674 = vst [vmem:[%s3 + $0x9c] sm:$0xf] %v610
  %675 = vst [vmem:[%s3 + $0xa0] sm:$0xf] %v611
  %676 = vst [vmem:[%s3 + $0xa4] sm:$0xf] %v612
  %677 = vst [vmem:[%s3 + $0xa8] sm:$0xf] %v613
  %678 = vst [vmem:[%s3 + $0xac] sm:$0xf] %v614
  %679 = vst [vmem:[%s3 + $0xb0] sm:$0xf] %v615
  %680 = vst [vmem:[%s3 + $0xb4] sm:$0xf] %v616
  %681 = vst [vmem:[%s3 + $0xb8] sm:$0xf] %v617
  %682 = vst [vmem:[%s3 + $0xbc] sm:$0xf] %v618
  %683 = vst [vmem:[%s3 + $0xc0] sm:$0xf] %v619
  %684 = vst [vmem:[%s3 + $0xc4] sm:$0xf] %v620
  %685 = vst [vmem:[%s3 + $0xc8] sm:$0xf] %v621
  %686 = vst [vmem:[%s3 + $0xcc] sm:$0xf] %v622
  %687 = vst [vmem:[%s3 + $0xd0] sm:$0xf] %v623
  %688 = vst [vmem:[%s3 + $0xd4] sm:$0xf] %v624
  %689 = vst [vmem:[%s3 + $0xd8] sm:$0xf] %v625
  %690 = vst [vmem:[%s3 + $0xdc] sm:$0xf] %v626
  %691 = vst [vmem:[%s3 + $0xe0] sm:$0xf] %v627
  %692 = vst [vmem:[%s3 + $0xe4] sm:$0xf] %v628
  %693 = vst [vmem:[%s3 + $0xe8] sm:$0xf] %v629
  %694 = vst [vmem:[%s3 + $0xec] sm:$0xf] %v630
  %695 = vst [vmem:[%s3 + $0xf0] sm:$0xf] %v631
  %696 = vst [vmem:[%s3 + $0xf4] sm:$0xf] %v632
  %697 = vst [vmem:[%s3 + $0xf8] sm:$0xf] %v633
  %698 = vst [vmem:[%s3 + $0xfc] sm:$0xf] %v634
  // Predicated region
  $region14: #{style_encoder_forward.15} parent=0 // pred_check
    _
  $region15: #{style_encoder_forward.15} parent=0 // pred_check_branch
    %700 = sbr.rel (0) target = $region17
  $region16: #{style_encoder_forward.15} parent=0 // pred_region
    _
  $region17: #{style_encoder_forward.15} parent=0 // pred_fallthru
    _
  // Predicated region
  $region18: #{style_encoder_forward.15} parent=0 // pred_check
    _
  $region19: #{style_encoder_forward.15} parent=0 // pred_check_branch
    %702 = sbr.rel (0) target = $region21
  $region20: #{style_encoder_forward.15} parent=0 // pred_region
    _
  $region21: #{style_encoder_forward.15} parent=0 // pred_fallthru
    _

// kernel: style_encoder_forward.16
$region0: #{style_encoder_forward.16}
  #allocation0 [shape = 'u32[]', space=smem, size = 0x4, offset = 0x4, fixed_abs, tag = 'smem constant byte address 0x4 - core index']
  #allocation1 [shape = 'u32[72,128]{1,0:T(1,128)}', space=vmem, size = 0x9000, scoped, tag = 'internal scratch']
  %s0 = inlined_call_operand.vmem [shape: bf16[128,1024], index: 0, kind: input, shape index: {}]
  %s1 = inlined_call_operand.vmem [shape: bf16[1024,128], index: 1, kind: input, shape index: {}]
  %s2 = inlined_call_operand.vmem [shape: f32[1,128], index: 2, kind: input, shape index: {}]
  %s3 = inlined_call_operand.vmem [shape: bf16[128,128], index: 3, kind: output, shape index: {}]
  %s4 = sld [smem:[#allocation0]]
  $region22: #{style_encoder_forward.16} parent=0
    _
  %s6 = ssub.s32 1, %s4
  %s7 = scalar_select 0, %s6, %s4
  // Predicated region
  $region2: #{style_encoder_forward.16} parent=0 // pred_check
    _
  $region3: #{style_encoder_forward.16} parent=0 // pred_check_branch
    %9 = sbr.rel (0) target = $region5
  $region4: #{style_encoder_forward.16} parent=0 // pred_region
    _
  $region5: #{style_encoder_forward.16} parent=0 // pred_fallthru
    _
  // Predicated region
  $region6: #{style_encoder_forward.16} parent=0 // pred_check
    _
  $region7: #{style_encoder_forward.16} parent=0 // pred_check_branch
    %11 = sbr.rel (0) target = $region9
  $region8: #{style_encoder_forward.16} parent=0 // pred_region
    _
  $region9: #{style_encoder_forward.16} parent=0 // pred_fallthru
    _
  // Predicated region
  $region10: #{style_encoder_forward.16} parent=0 // pred_check
    _
  $region11: #{style_encoder_forward.16} parent=0 // pred_check_branch
    %13 = sbr.rel (0) target = $region13
  $region12: #{style_encoder_forward.16} parent=0 // pred_region
    _
  $region13: #{style_encoder_forward.16} parent=0 // pred_fallthru
    _
  %v14 = vld [vmem:[%s0] sm:$0xff]
  %v15 = vld [vmem:[%s0 + $0x8] sm:$0xff]
  %v16 = vld [vmem:[%s0 + $0x10] sm:$0xff]
  %v17 = vld [vmem:[%s0 + $0x18] sm:$0xff]
  %v18 = vld [vmem:[%s0 + $0x20] sm:$0xff]
  %v19 = vld [vmem:[%s0 + $0x28] sm:$0xff]
  %v20 = vld [vmem:[%s0 + $0x30] sm:$0xff]
  %v21 = vld [vmem:[%s0 + $0x38] sm:$0xff]
  %v22 = vld [vmem:[%s0 + $0x40] sm:$0xff]
  %v23 = vld [vmem:[%s0 + $0x48] sm:$0xff]
  %v24 = vld [vmem:[%s0 + $0x50] sm:$0xff]
  %v25 = vld [vmem:[%s0 + $0x58] sm:$0xff]
  %v26 = vld [vmem:[%s0 + $0x60] sm:$0xff]
  %v27 = vld [vmem:[%s0 + $0x68] sm:$0xff]
  %v28 = vld [vmem:[%s0 + $0x70] sm:$0xff]
  %v29 = vld [vmem:[%s0 + $0x78] sm:$0xff]
  %v30 = vld [vmem:[%s0 + $0x80] sm:$0xff]
  %v31 = vld [vmem:[%s0 + $0x88] sm:$0xff]
  %v32 = vld [vmem:[%s0 + $0x90] sm:$0xff]
  %v33 = vld [vmem:[%s0 + $0x98] sm:$0xff]
  %v34 = vld [vmem:[%s0 + $0xa0] sm:$0xff]
  %v35 = vld [vmem:[%s0 + $0xa8] sm:$0xff]
  %v36 = vld [vmem:[%s0 + $0xb0] sm:$0xff]
  %v37 = vld [vmem:[%s0 + $0xb8] sm:$0xff]
  %v38 = vld [vmem:[%s0 + $0xc0] sm:$0xff]
  %v39 = vld [vmem:[%s0 + $0xc8] sm:$0xff]
  %v40 = vld [vmem:[%s0 + $0xd0] sm:$0xff]
  %v41 = vld [vmem:[%s0 + $0xd8] sm:$0xff]
  %v42 = vld [vmem:[%s0 + $0xe0] sm:$0xff]
  %v43 = vld [vmem:[%s0 + $0xe8] sm:$0xff]
  %v44 = vld [vmem:[%s0 + $0xf0] sm:$0xff]
  %v45 = vld [vmem:[%s0 + $0xf8] sm:$0xff]
  %v46 = vld [vmem:[%s0 + $0x100] sm:$0xff]
  %v47 = vld [vmem:[%s0 + $0x108] sm:$0xff]
  %v48 = vld [vmem:[%s0 + $0x110] sm:$0xff]
  %v49 = vld [vmem:[%s0 + $0x118] sm:$0xff]
  %v50 = vld [vmem:[%s0 + $0x120] sm:$0xff]
  %v51 = vld [vmem:[%s0 + $0x128] sm:$0xff]
  %v52 = vld [vmem:[%s0 + $0x130] sm:$0xff]
  %v53 = vld [vmem:[%s0 + $0x138] sm:$0xff]
  %v54 = vld [vmem:[%s0 + $0x140] sm:$0xff]
  %v55 = vld [vmem:[%s0 + $0x148] sm:$0xff]
  %v56 = vld [vmem:[%s0 + $0x150] sm:$0xff]
  %v57 = vld [vmem:[%s0 + $0x158] sm:$0xff]
  %v58 = vld [vmem:[%s0 + $0x160] sm:$0xff]
  %v59 = vld [vmem:[%s0 + $0x168] sm:$0xff]
  %v60 = vld [vmem:[%s0 + $0x170] sm:$0xff]
  %v61 = vld [vmem:[%s0 + $0x178] sm:$0xff]
  %v62 = vld [vmem:[%s0 + $0x180] sm:$0xff]
  %v63 = vld [vmem:[%s0 + $0x188] sm:$0xff]
  %v64 = vld [vmem:[%s0 + $0x190] sm:$0xff]
  %v65 = vld [vmem:[%s0 + $0x198] sm:$0xff]
  %v66 = vld [vmem:[%s0 + $0x1a0] sm:$0xff]
  %v67 = vld [vmem:[%s0 + $0x1a8] sm:$0xff]
  %v68 = vld [vmem:[%s0 + $0x1b0] sm:$0xff]
  %v69 = vld [vmem:[%s0 + $0x1b8] sm:$0xff]
  %v70 = vld [vmem:[%s0 + $0x1c0] sm:$0xff]
  %v71 = vld [vmem:[%s0 + $0x1c8] sm:$0xff]
  %v72 = vld [vmem:[%s0 + $0x1d0] sm:$0xff]
  %v73 = vld [vmem:[%s0 + $0x1d8] sm:$0xff]
  %v74 = vld [vmem:[%s0 + $0x1e0] sm:$0xff]
  %v75 = vld [vmem:[%s0 + $0x1e8] sm:$0xff]
  %v76 = vld [vmem:[%s0 + $0x1f0] sm:$0xff]
  %v77 = vld [vmem:[%s0 + $0x1f8] sm:$0xff]
  %v78 = vld [vmem:[%s1] sm:$0xf]
  %v79 = vld [vmem:[%s1 + $0x4] sm:$0xf]
  %v80 = vld [vmem:[%s1 + $0x8] sm:$0xf]
  %v81 = vld [vmem:[%s1 + $0xc] sm:$0xf]
  %v82 = vld [vmem:[%s1 + $0x10] sm:$0xf]
  %v83 = vld [vmem:[%s1 + $0x14] sm:$0xf]
  %v84 = vld [vmem:[%s1 + $0x18] sm:$0xf]
  %v85 = vld [vmem:[%s1 + $0x1c] sm:$0xf]
  %v86 = vld [vmem:[%s1 + $0x20] sm:$0xf]
  %v87 = vld [vmem:[%s1 + $0x24] sm:$0xf]
  %v88 = vld [vmem:[%s1 + $0x28] sm:$0xf]
  %v89 = vld [vmem:[%s1 + $0x2c] sm:$0xf]
  %v90 = vld [vmem:[%s1 + $0x30] sm:$0xf]
  %v91 = vld [vmem:[%s1 + $0x34] sm:$0xf]
  %v92 = vld [vmem:[%s1 + $0x38] sm:$0xf]
  %v93 = vld [vmem:[%s1 + $0x3c] sm:$0xf]
  %v94 = vld [vmem:[%s1 + $0x40] sm:$0xf]
  %v95 = vld [vmem:[%s1 + $0x44] sm:$0xf]
  %v96 = vld [vmem:[%s1 + $0x48] sm:$0xf]
  %v97 = vld [vmem:[%s1 + $0x4c] sm:$0xf]
  %v98 = vld [vmem:[%s1 + $0x50] sm:$0xf]
  %v99 = vld [vmem:[%s1 + $0x54] sm:$0xf]
  %v100 = vld [vmem:[%s1 + $0x58] sm:$0xf]
  %v101 = vld [vmem:[%s1 + $0x5c] sm:$0xf]
  %v102 = vld [vmem:[%s1 + $0x60] sm:$0xf]
  %v103 = vld [vmem:[%s1 + $0x64] sm:$0xf]
  %v104 = vld [vmem:[%s1 + $0x68] sm:$0xf]
  %v105 = vld [vmem:[%s1 + $0x6c] sm:$0xf]
  %v106 = vld [vmem:[%s1 + $0x70] sm:$0xf]
  %v107 = vld [vmem:[%s1 + $0x74] sm:$0xf]
  %v108 = vld [vmem:[%s1 + $0x78] sm:$0xf]
  %v109 = vld [vmem:[%s1 + $0x7c] sm:$0xf]
  %v110 = vld [vmem:[%s1 + $0x80] sm:$0xf]
  %v111 = vld [vmem:[%s1 + $0x84] sm:$0xf]
  %v112 = vld [vmem:[%s1 + $0x88] sm:$0xf]
  %v113 = vld [vmem:[%s1 + $0x8c] sm:$0xf]
  %v114 = vld [vmem:[%s1 + $0x90] sm:$0xf]
  %v115 = vld [vmem:[%s1 + $0x94] sm:$0xf]
  %v116 = vld [vmem:[%s1 + $0x98] sm:$0xf]
  %v117 = vld [vmem:[%s1 + $0x9c] sm:$0xf]
  %v118 = vld [vmem:[%s1 + $0xa0] sm:$0xf]
  %v119 = vld [vmem:[%s1 + $0xa4] sm:$0xf]
  %v120 = vld [vmem:[%s1 + $0xa8] sm:$0xf]
  %v121 = vld [vmem:[%s1 + $0xac] sm:$0xf]
  %v122 = vld [vmem:[%s1 + $0xb0] sm:$0xf]
  %v123 = vld [vmem:[%s1 + $0xb4] sm:$0xf]
  %v124 = vld [vmem:[%s1 + $0xb8] sm:$0xf]
  %v125 = vld [vmem:[%s1 + $0xbc] sm:$0xf]
  %v126 = vld [vmem:[%s1 + $0xc0] sm:$0xf]
  %v127 = vld [vmem:[%s1 + $0xc4] sm:$0xf]
  %v128 = vld [vmem:[%s1 + $0xc8] sm:$0xf]
  %v129 = vld [vmem:[%s1 + $0xcc] sm:$0xf]
  %v130 = vld [vmem:[%s1 + $0xd0] sm:$0xf]
  %v131 = vld [vmem:[%s1 + $0xd4] sm:$0xf]
  %v132 = vld [vmem:[%s1 + $0xd8] sm:$0xf]
  %v133 = vld [vmem:[%s1 + $0xdc] sm:$0xf]
  %v134 = vld [vmem:[%s1 + $0xe0] sm:$0xf]
  %v135 = vld [vmem:[%s1 + $0xe4] sm:$0xf]
  %v136 = vld [vmem:[%s1 + $0xe8] sm:$0xf]
  %v137 = vld [vmem:[%s1 + $0xec] sm:$0xf]
  %v138 = vld [vmem:[%s1 + $0xf0] sm:$0xf]
  %v139 = vld [vmem:[%s1 + $0xf4] sm:$0xf]
  %v140 = vld [vmem:[%s1 + $0xf8] sm:$0xf]
  %v141 = vld [vmem:[%s1 + $0xfc] sm:$0xf]
  %v142 = vld [vmem:[%s1 + $0x100] sm:$0xf]
  %v143 = vld [vmem:[%s1 + $0x104] sm:$0xf]
  %v144 = vld [vmem:[%s1 + $0x108] sm:$0xf]
  %v145 = vld [vmem:[%s1 + $0x10c] sm:$0xf]
  %v146 = vld [vmem:[%s1 + $0x110] sm:$0xf]
  %v147 = vld [vmem:[%s1 + $0x114] sm:$0xf]
  %v148 = vld [vmem:[%s1 + $0x118] sm:$0xf]
  %v149 = vld [vmem:[%s1 + $0x11c] sm:$0xf]
  %v150 = vld [vmem:[%s1 + $0x120] sm:$0xf]
  %v151 = vld [vmem:[%s1 + $0x124] sm:$0xf]
  %v152 = vld [vmem:[%s1 + $0x128] sm:$0xf]
  %v153 = vld [vmem:[%s1 + $0x12c] sm:$0xf]
  %v154 = vld [vmem:[%s1 + $0x130] sm:$0xf]
  %v155 = vld [vmem:[%s1 + $0x134] sm:$0xf]
  %v156 = vld [vmem:[%s1 + $0x138] sm:$0xf]
  %v157 = vld [vmem:[%s1 + $0x13c] sm:$0xf]
  %v158 = vld [vmem:[%s1 + $0x140] sm:$0xf]
  %v159 = vld [vmem:[%s1 + $0x144] sm:$0xf]
  %v160 = vld [vmem:[%s1 + $0x148] sm:$0xf]
  %v161 = vld [vmem:[%s1 + $0x14c] sm:$0xf]
  %v162 = vld [vmem:[%s1 + $0x150] sm:$0xf]
  %v163 = vld [vmem:[%s1 + $0x154] sm:$0xf]
  %v164 = vld [vmem:[%s1 + $0x158] sm:$0xf]
  %v165 = vld [vmem:[%s1 + $0x15c] sm:$0xf]
  %v166 = vld [vmem:[%s1 + $0x160] sm:$0xf]
  %v167 = vld [vmem:[%s1 + $0x164] sm:$0xf]
  %v168 = vld [vmem:[%s1 + $0x168] sm:$0xf]
  %v169 = vld [vmem:[%s1 + $0x16c] sm:$0xf]
  %v170 = vld [vmem:[%s1 + $0x170] sm:$0xf]
  %v171 = vld [vmem:[%s1 + $0x174] sm:$0xf]
  %v172 = vld [vmem:[%s1 + $0x178] sm:$0xf]
  %v173 = vld [vmem:[%s1 + $0x17c] sm:$0xf]
  %v174 = vld [vmem:[%s1 + $0x180] sm:$0xf]
  %v175 = vld [vmem:[%s1 + $0x184] sm:$0xf]
  %v176 = vld [vmem:[%s1 + $0x188] sm:$0xf]
  %v177 = vld [vmem:[%s1 + $0x18c] sm:$0xf]
  %v178 = vld [vmem:[%s1 + $0x190] sm:$0xf]
  %v179 = vld [vmem:[%s1 + $0x194] sm:$0xf]
  %v180 = vld [vmem:[%s1 + $0x198] sm:$0xf]
  %v181 = vld [vmem:[%s1 + $0x19c] sm:$0xf]
  %v182 = vld [vmem:[%s1 + $0x1a0] sm:$0xf]
  %v183 = vld [vmem:[%s1 + $0x1a4] sm:$0xf]
  %v184 = vld [vmem:[%s1 + $0x1a8] sm:$0xf]
  %v185 = vld [vmem:[%s1 + $0x1ac] sm:$0xf]
  %v186 = vld [vmem:[%s1 + $0x1b0] sm:$0xf]
  %v187 = vld [vmem:[%s1 + $0x1b4] sm:$0xf]
  %v188 = vld [vmem:[%s1 + $0x1b8] sm:$0xf]
  %v189 = vld [vmem:[%s1 + $0x1bc] sm:$0xf]
  %v190 = vld [vmem:[%s1 + $0x1c0] sm:$0xf]
  %v191 = vld [vmem:[%s1 + $0x1c4] sm:$0xf]
  %v192 = vld [vmem:[%s1 + $0x1c8] sm:$0xf]
  %v193 = vld [vmem:[%s1 + $0x1cc] sm:$0xf]
  %v194 = vld [vmem:[%s1 + $0x1d0] sm:$0xf]
  %v195 = vld [vmem:[%s1 + $0x1d4] sm:$0xf]
  %v196 = vld [vmem:[%s1 + $0x1d8] sm:$0xf]
  %v197 = vld [vmem:[%s1 + $0x1dc] sm:$0xf]
  %v198 = vld [vmem:[%s1 + $0x1e0] sm:$0xf]
  %v199 = vld [vmem:[%s1 + $0x1e4] sm:$0xf]
  %v200 = vld [vmem:[%s1 + $0x1e8] sm:$0xf]
  %v201 = vld [vmem:[%s1 + $0x1ec] sm:$0xf]
  %v202 = vld [vmem:[%s1 + $0x1f0] sm:$0xf]
  %v203 = vld [vmem:[%s1 + $0x1f4] sm:$0xf]
  %v204 = vld [vmem:[%s1 + $0x1f8] sm:$0xf]
  %v205 = vld [vmem:[%s1 + $0x1fc] sm:$0xf]
  %v206 = vld [vmem:[%s2] sm:$0x1]
  %v208 = vperm.slane %v206, 0
  %v274 = vunpack.c.l.b16 %v14
  %v275 = vunpack.c.h.b16 %v14
  %v276 = vunpack.c.l.b16 %v15
  %v277 = vunpack.c.h.b16 %v15
  %v278 = vunpack.c.l.b16 %v16
  %v279 = vunpack.c.h.b16 %v16
  %v280 = vunpack.c.l.b16 %v17
  %v281 = vunpack.c.h.b16 %v17
  %v282 = vunpack.c.l.b16 %v18
  %v283 = vunpack.c.h.b16 %v18
  %v284 = vunpack.c.l.b16 %v19
  %v285 = vunpack.c.h.b16 %v19
  %v286 = vunpack.c.l.b16 %v20
  %v287 = vunpack.c.h.b16 %v20
  %v288 = vunpack.c.l.b16 %v21
  %v289 = vunpack.c.h.b16 %v21
  %v290 = vunpack.c.l.b16 %v22
  %v291 = vunpack.c.h.b16 %v22
  %v292 = vunpack.c.l.b16 %v23
  %v293 = vunpack.c.h.b16 %v23
  %v294 = vunpack.c.l.b16 %v24
  %v295 = vunpack.c.h.b16 %v24
  %v296 = vunpack.c.l.b16 %v25
  %v297 = vunpack.c.h.b16 %v25
  %v298 = vunpack.c.l.b16 %v26
  %v299 = vunpack.c.h.b16 %v26
  %v300 = vunpack.c.l.b16 %v27
  %v301 = vunpack.c.h.b16 %v27
  %v302 = vunpack.c.l.b16 %v28
  %v303 = vunpack.c.h.b16 %v28
  %v304 = vunpack.c.l.b16 %v29
  %v305 = vunpack.c.h.b16 %v29
  %v306 = vunpack.c.l.b16 %v30
  %v307 = vunpack.c.h.b16 %v30
  %v308 = vunpack.c.l.b16 %v31
  %v309 = vunpack.c.h.b16 %v31
  %v310 = vunpack.c.l.b16 %v32
  %v311 = vunpack.c.h.b16 %v32
  %v312 = vunpack.c.l.b16 %v33
  %v313 = vunpack.c.h.b16 %v33
  %v314 = vunpack.c.l.b16 %v34
  %v315 = vunpack.c.h.b16 %v34
  %v316 = vunpack.c.l.b16 %v35
  %v317 = vunpack.c.h.b16 %v35
  %v318 = vunpack.c.l.b16 %v36
  %v319 = vunpack.c.h.b16 %v36
  %v320 = vunpack.c.l.b16 %v37
  %v321 = vunpack.c.h.b16 %v37
  %v322 = vunpack.c.l.b16 %v38
  %v323 = vunpack.c.h.b16 %v38
  %v324 = vunpack.c.l.b16 %v39
  %v325 = vunpack.c.h.b16 %v39
  %v326 = vunpack.c.l.b16 %v40
  %v327 = vunpack.c.h.b16 %v40
  %v328 = vunpack.c.l.b16 %v41
  %v329 = vunpack.c.h.b16 %v41
  %v330 = vunpack.c.l.b16 %v42
  %v331 = vunpack.c.h.b16 %v42
  %v332 = vunpack.c.l.b16 %v43
  %v333 = vunpack.c.h.b16 %v43
  %v334 = vunpack.c.l.b16 %v44
  %v335 = vunpack.c.h.b16 %v44
  %v336 = vunpack.c.l.b16 %v45
  %v337 = vunpack.c.h.b16 %v45
  %v338 = vunpack.c.l.b16 %v46
  %v339 = vunpack.c.h.b16 %v46
  %v340 = vunpack.c.l.b16 %v47
  %v341 = vunpack.c.h.b16 %v47
  %v342 = vunpack.c.l.b16 %v48
  %v343 = vunpack.c.h.b16 %v48
  %v344 = vunpack.c.l.b16 %v49
  %v345 = vunpack.c.h.b16 %v49
  %v346 = vunpack.c.l.b16 %v50
  %v347 = vunpack.c.h.b16 %v50
  %v348 = vunpack.c.l.b16 %v51
  %v349 = vunpack.c.h.b16 %v51
  %v350 = vunpack.c.l.b16 %v52
  %v351 = vunpack.c.h.b16 %v52
  %v352 = vunpack.c.l.b16 %v53
  %v353 = vunpack.c.h.b16 %v53
  %v354 = vunpack.c.l.b16 %v54
  %v355 = vunpack.c.h.b16 %v54
  %v356 = vunpack.c.l.b16 %v55
  %v357 = vunpack.c.h.b16 %v55
  %v358 = vunpack.c.l.b16 %v56
  %v359 = vunpack.c.h.b16 %v56
  %v360 = vunpack.c.l.b16 %v57
  %v361 = vunpack.c.h.b16 %v57
  %v362 = vunpack.c.l.b16 %v58
  %v363 = vunpack.c.h.b16 %v58
  %v364 = vunpack.c.l.b16 %v59
  %v365 = vunpack.c.h.b16 %v59
  %v366 = vunpack.c.l.b16 %v60
  %v367 = vunpack.c.h.b16 %v60
  %v368 = vunpack.c.l.b16 %v61
  %v369 = vunpack.c.h.b16 %v61
  %v370 = vunpack.c.l.b16 %v62
  %v371 = vunpack.c.h.b16 %v62
  %v372 = vunpack.c.l.b16 %v63
  %v373 = vunpack.c.h.b16 %v63
  %v374 = vunpack.c.l.b16 %v64
  %v375 = vunpack.c.h.b16 %v64
  %v376 = vunpack.c.l.b16 %v65
  %v377 = vunpack.c.h.b16 %v65
  %v378 = vunpack.c.l.b16 %v66
  %v379 = vunpack.c.h.b16 %v66
  %v380 = vunpack.c.l.b16 %v67
  %v381 = vunpack.c.h.b16 %v67
  %v382 = vunpack.c.l.b16 %v68
  %v383 = vunpack.c.h.b16 %v68
  %v384 = vunpack.c.l.b16 %v69
  %v385 = vunpack.c.h.b16 %v69
  %v386 = vunpack.c.l.b16 %v70
  %v387 = vunpack.c.h.b16 %v70
  %v388 = vunpack.c.l.b16 %v71
  %v389 = vunpack.c.h.b16 %v71
  %v390 = vunpack.c.l.b16 %v72
  %v391 = vunpack.c.h.b16 %v72
  %v392 = vunpack.c.l.b16 %v73
  %v393 = vunpack.c.h.b16 %v73
  %v394 = vunpack.c.l.b16 %v74
  %v395 = vunpack.c.h.b16 %v74
  %v396 = vunpack.c.l.b16 %v75
  %v397 = vunpack.c.h.b16 %v75
  %v398 = vunpack.c.l.b16 %v76
  %v399 = vunpack.c.h.b16 %v76
  %v400 = vunpack.c.l.b16 %v77
  %v401 = vunpack.c.h.b16 %v77
  %v402 = vpack.c.b16 %v282, %v274
  %v403 = vpack.c.b16 %v283, %v275
  %v404 = vpack.c.b16 %v284, %v276
  %v405 = vpack.c.b16 %v285, %v277
  %v406 = vpack.c.b16 %v286, %v278
  %v407 = vpack.c.b16 %v287, %v279
  %v408 = vpack.c.b16 %v288, %v280
  %v409 = vpack.c.b16 %v289, %v281
  %v410 = vpack.c.b16 %v298, %v290
  %v411 = vpack.c.b16 %v299, %v291
  %v412 = vpack.c.b16 %v300, %v292
  %v413 = vpack.c.b16 %v301, %v293
  %v414 = vpack.c.b16 %v302, %v294
  %v415 = vpack.c.b16 %v303, %v295
  %v416 = vpack.c.b16 %v304, %v296
  %v417 = vpack.c.b16 %v305, %v297
  %v418 = vpack.c.b16 %v314, %v306
  %v419 = vpack.c.b16 %v315, %v307
  %v420 = vpack.c.b16 %v316, %v308
  %v421 = vpack.c.b16 %v317, %v309
  %v422 = vpack.c.b16 %v318, %v310
  %v423 = vpack.c.b16 %v319, %v311
  %v424 = vpack.c.b16 %v320, %v312
  %v425 = vpack.c.b16 %v321, %v313
  %v426 = vpack.c.b16 %v330, %v322
  %v427 = vpack.c.b16 %v331, %v323
  %v428 = vpack.c.b16 %v332, %v324
  %v429 = vpack.c.b16 %v333, %v325
  %v430 = vpack.c.b16 %v334, %v326
  %v431 = vpack.c.b16 %v335, %v327
  %v432 = vpack.c.b16 %v336, %v328
  %v433 = vpack.c.b16 %v337, %v329
  %v434 = vpack.c.b16 %v346, %v338
  %v435 = vpack.c.b16 %v347, %v339
  %v436 = vpack.c.b16 %v348, %v340
  %v437 = vpack.c.b16 %v349, %v341
  %v438 = vpack.c.b16 %v350, %v342
  %v439 = vpack.c.b16 %v351, %v343
  %v440 = vpack.c.b16 %v352, %v344
  %v441 = vpack.c.b16 %v353, %v345
  %v442 = vpack.c.b16 %v362, %v354
  %v443 = vpack.c.b16 %v363, %v355
  %v444 = vpack.c.b16 %v364, %v356
  %v445 = vpack.c.b16 %v365, %v357
  %v446 = vpack.c.b16 %v366, %v358
  %v447 = vpack.c.b16 %v367, %v359
  %v448 = vpack.c.b16 %v368, %v360
  %v449 = vpack.c.b16 %v369, %v361
  %v450 = vpack.c.b16 %v378, %v370
  %v451 = vpack.c.b16 %v379, %v371
  %v452 = vpack.c.b16 %v380, %v372
  %v453 = vpack.c.b16 %v381, %v373
  %v454 = vpack.c.b16 %v382, %v374
  %v455 = vpack.c.b16 %v383, %v375
  %v456 = vpack.c.b16 %v384, %v376
  %v457 = vpack.c.b16 %v385, %v377
  %v458 = vpack.c.b16 %v394, %v386
  %v459 = vpack.c.b16 %v395, %v387
  %v460 = vpack.c.b16 %v396, %v388
  %v461 = vpack.c.b16 %v397, %v389
  %v462 = vpack.c.b16 %v398, %v390
  %v463 = vpack.c.b16 %v399, %v391
  %v464 = vpack.c.b16 %v400, %v392
  %v465 = vpack.c.b16 %v401, %v393
  %v658 = vunpack.c.l.b16 %v78
  %v659 = vunpack.c.l.b16 %v79
  %v660 = vunpack.c.l.b16 %v80
  %v661 = vunpack.c.l.b16 %v81
  %v662 = vunpack.c.l.b16 %v82
  %v663 = vunpack.c.l.b16 %v83
  %v664 = vunpack.c.l.b16 %v84
  %v665 = vunpack.c.l.b16 %v85
  %v666 = vunpack.c.l.b16 %v86
  %v667 = vunpack.c.l.b16 %v87
  %v668 = vunpack.c.l.b16 %v88
  %v669 = vunpack.c.l.b16 %v89
  %v670 = vunpack.c.l.b16 %v90
  %v671 = vunpack.c.l.b16 %v91
  %v672 = vunpack.c.l.b16 %v92
  %v673 = vunpack.c.l.b16 %v93
  %v674 = vunpack.c.l.b16 %v94
  %v675 = vunpack.c.l.b16 %v95
  %v676 = vunpack.c.l.b16 %v96
  %v677 = vunpack.c.l.b16 %v97
  %v678 = vunpack.c.l.b16 %v98
  %v679 = vunpack.c.l.b16 %v99
  %v680 = vunpack.c.l.b16 %v100
  %v681 = vunpack.c.l.b16 %v101
  %v682 = vunpack.c.l.b16 %v102
  %v683 = vunpack.c.l.b16 %v103
  %v684 = vunpack.c.l.b16 %v104
  %v685 = vunpack.c.l.b16 %v105
  %v686 = vunpack.c.l.b16 %v106
  %v687 = vunpack.c.l.b16 %v107
  %v688 = vunpack.c.l.b16 %v108
  %v689 = vunpack.c.l.b16 %v109
  %v690 = vunpack.c.l.b16 %v110
  %v691 = vunpack.c.l.b16 %v111
  %v692 = vunpack.c.l.b16 %v112
  %v693 = vunpack.c.l.b16 %v113
  %v694 = vunpack.c.l.b16 %v114
  %v695 = vunpack.c.l.b16 %v115
  %v696 = vunpack.c.l.b16 %v116
  %v697 = vunpack.c.l.b16 %v117
  %v698 = vunpack.c.l.b16 %v118
  %v699 = vunpack.c.l.b16 %v119
  %v700 = vunpack.c.l.b16 %v120
  %v701 = vunpack.c.l.b16 %v121
  %v702 = vunpack.c.l.b16 %v122
  %v703 = vunpack.c.l.b16 %v123
  %v704 = vunpack.c.l.b16 %v124
  %v705 = vunpack.c.l.b16 %v125
  %v706 = vunpack.c.l.b16 %v126
  %v707 = vunpack.c.l.b16 %v127
  %v708 = vunpack.c.l.b16 %v128
  %v709 = vunpack.c.l.b16 %v129
  %v710 = vunpack.c.l.b16 %v130
  %v711 = vunpack.c.l.b16 %v131
  %v712 = vunpack.c.l.b16 %v132
  %v713 = vunpack.c.l.b16 %v133
  %v714 = vunpack.c.l.b16 %v134
  %v715 = vunpack.c.l.b16 %v135
  %v716 = vunpack.c.l.b16 %v136
  %v717 = vunpack.c.l.b16 %v137
  %v718 = vunpack.c.l.b16 %v138
  %v719 = vunpack.c.l.b16 %v139
  %v720 = vunpack.c.l.b16 %v140
  %v721 = vunpack.c.l.b16 %v141
  %v722 = vunpack.c.l.b16 %v142
  %v723 = vunpack.c.l.b16 %v143
  %v724 = vunpack.c.l.b16 %v144
  %v725 = vunpack.c.l.b16 %v145
  %v726 = vunpack.c.l.b16 %v146
  %v727 = vunpack.c.l.b16 %v147
  %v728 = vunpack.c.l.b16 %v148
  %v729 = vunpack.c.l.b16 %v149
  %v730 = vunpack.c.l.b16 %v150
  %v731 = vunpack.c.l.b16 %v151
  %v732 = vunpack.c.l.b16 %v152
  %v733 = vunpack.c.l.b16 %v153
  %v734 = vunpack.c.l.b16 %v154
  %v735 = vunpack.c.l.b16 %v155
  %v736 = vunpack.c.l.b16 %v156
  %v737 = vunpack.c.l.b16 %v157
  %v738 = vunpack.c.l.b16 %v158
  %v739 = vunpack.c.l.b16 %v159
  %v740 = vunpack.c.l.b16 %v160
  %v741 = vunpack.c.l.b16 %v161
  %v742 = vunpack.c.l.b16 %v162
  %v743 = vunpack.c.l.b16 %v163
  %v744 = vunpack.c.l.b16 %v164
  %v745 = vunpack.c.l.b16 %v165
  %v746 = vunpack.c.l.b16 %v166
  %v747 = vunpack.c.l.b16 %v167
  %v748 = vunpack.c.l.b16 %v168
  %v749 = vunpack.c.l.b16 %v169
  %v750 = vunpack.c.l.b16 %v170
  %v751 = vunpack.c.l.b16 %v171
  %v752 = vunpack.c.l.b16 %v172
  %v753 = vunpack.c.l.b16 %v173
  %v754 = vunpack.c.l.b16 %v174
  %v755 = vunpack.c.l.b16 %v175
  %v756 = vunpack.c.l.b16 %v176
  %v757 = vunpack.c.l.b16 %v177
  %v758 = vunpack.c.l.b16 %v178
  %v759 = vunpack.c.l.b16 %v179
  %v760 = vunpack.c.l.b16 %v180
  %v761 = vunpack.c.l.b16 %v181
  %v762 = vunpack.c.l.b16 %v182
  %v763 = vunpack.c.l.b16 %v183
  %v764 = vunpack.c.l.b16 %v184
  %v765 = vunpack.c.l.b16 %v185
  %v766 = vunpack.c.l.b16 %v186
  %v767 = vunpack.c.l.b16 %v187
  %v768 = vunpack.c.l.b16 %v188
  %v769 = vunpack.c.l.b16 %v189
  %v770 = vunpack.c.l.b16 %v190
  %v771 = vunpack.c.l.b16 %v191
  %v772 = vunpack.c.l.b16 %v192
  %v773 = vunpack.c.l.b16 %v193
  %v774 = vunpack.c.l.b16 %v194
  %v775 = vunpack.c.l.b16 %v195
  %v776 = vunpack.c.l.b16 %v196
  %v777 = vunpack.c.l.b16 %v197
  %v778 = vunpack.c.l.b16 %v198
  %v779 = vunpack.c.l.b16 %v199
  %v780 = vunpack.c.l.b16 %v200
  %v781 = vunpack.c.l.b16 %v201
  %v782 = vunpack.c.l.b16 %v202
  %v783 = vunpack.c.l.b16 %v203
  %v784 = vunpack.c.l.b16 %v204
  %v785 = vunpack.c.l.b16 %v205
  %v786 = vpack.c.b16 %v659, %v658
  %v787 = vpack.c.b16 %v661, %v660
  %v788 = vpack.c.b16 %v663, %v662
  %v789 = vpack.c.b16 %v665, %v664
  %v790 = vpack.c.b16 %v667, %v666
  %v791 = vpack.c.b16 %v669, %v668
  %v792 = vpack.c.b16 %v671, %v670
  %v793 = vpack.c.b16 %v673, %v672
  %v794 = vpack.c.b16 %v675, %v674
  %v795 = vpack.c.b16 %v677, %v676
  %v796 = vpack.c.b16 %v679, %v678
  %v797 = vpack.c.b16 %v681, %v680
  %v798 = vpack.c.b16 %v683, %v682
  %v799 = vpack.c.b16 %v685, %v684
  %v800 = vpack.c.b16 %v687, %v686
  %v801 = vpack.c.b16 %v689, %v688
  %v802 = vpack.c.b16 %v691, %v690
  %v803 = vpack.c.b16 %v693, %v692
  %v804 = vpack.c.b16 %v695, %v694
  %v805 = vpack.c.b16 %v697, %v696
  %v806 = vpack.c.b16 %v699, %v698
  %v807 = vpack.c.b16 %v701, %v700
  %v808 = vpack.c.b16 %v703, %v702
  %v809 = vpack.c.b16 %v705, %v704
  %v810 = vpack.c.b16 %v707, %v706
  %v811 = vpack.c.b16 %v709, %v708
  %v812 = vpack.c.b16 %v711, %v710
  %v813 = vpack.c.b16 %v713, %v712
  %v814 = vpack.c.b16 %v715, %v714
  %v815 = vpack.c.b16 %v717, %v716
  %v816 = vpack.c.b16 %v719, %v718
  %v817 = vpack.c.b16 %v721, %v720
  %v818 = vpack.c.b16 %v723, %v722
  %v819 = vpack.c.b16 %v725, %v724
  %v820 = vpack.c.b16 %v727, %v726
  %v821 = vpack.c.b16 %v729, %v728
  %v822 = vpack.c.b16 %v731, %v730
  %v823 = vpack.c.b16 %v733, %v732
  %v824 = vpack.c.b16 %v735, %v734
  %v825 = vpack.c.b16 %v737, %v736
  %v826 = vpack.c.b16 %v739, %v738
  %v827 = vpack.c.b16 %v741, %v740
  %v828 = vpack.c.b16 %v743, %v742
  %v829 = vpack.c.b16 %v745, %v744
  %v830 = vpack.c.b16 %v747, %v746
  %v831 = vpack.c.b16 %v749, %v748
  %v832 = vpack.c.b16 %v751, %v750
  %v833 = vpack.c.b16 %v753, %v752
  %v834 = vpack.c.b16 %v755, %v754
  %v835 = vpack.c.b16 %v757, %v756
  %v836 = vpack.c.b16 %v759, %v758
  %v837 = vpack.c.b16 %v761, %v760
  %v838 = vpack.c.b16 %v763, %v762
  %v839 = vpack.c.b16 %v765, %v764
  %v840 = vpack.c.b16 %v767, %v766
  %v841 = vpack.c.b16 %v769, %v768
  %v842 = vpack.c.b16 %v771, %v770
  %v843 = vpack.c.b16 %v773, %v772
  %v844 = vpack.c.b16 %v775, %v774
  %v845 = vpack.c.b16 %v777, %v776
  %v846 = vpack.c.b16 %v779, %v778
  %v847 = vpack.c.b16 %v781, %v780
  %v848 = vpack.c.b16 %v783, %v782
  %v849 = vpack.c.b16 %v785, %v784
  %914 = vmatpush.bf16.msra.mxu0 %v793
  %915 = vmatpush.bf16.msra.mxu0 %v792
  %916 = vmatpush.bf16.msra.mxu0 %v791
  %917 = vmatpush.bf16.msra.mxu0 %v790
  %918 = vmatpush.bf16.msra.mxu0 %v789
  %919 = vmatpush.bf16.msra.mxu0 %v788
  %920 = vmatpush.bf16.msra.mxu0 %v787
  %921 = vmatpush.bf16.msra.mxu0 %v786
  %922 = vmatmul.bf16.gmra.mxu0 %v402
  %v923 = vpop.f32.mrf.mxu0
  %v924 = vadd.f32 %v208, %v923
  %v925 = vpop.f32.mrf.mxu0
  %v926 = vadd.f32 %v208, %v925
  %927 = vmatmul.bf16.gmra.mxu0 %v410
  %v928 = vpop.f32.mrf.mxu0
  %v929 = vadd.f32 %v208, %v928
  %v930 = vpop.f32.mrf.mxu0
  %v931 = vadd.f32 %v208, %v930
  %932 = vmatmul.bf16.gmra.mxu0 %v418
  %v933 = vpop.f32.mrf.mxu0
  %v934 = vadd.f32 %v208, %v933
  %v935 = vpop.f32.mrf.mxu0
  %v936 = vadd.f32 %v208, %v935
  %937 = vmatmul.bf16.gmra.mxu0 %v426
  %v938 = vpop.f32.mrf.mxu0
  %v939 = vadd.f32 %v208, %v938
  %v940 = vpop.f32.mrf.mxu0
  %v941 = vadd.f32 %v208, %v940
  %942 = vmatmul.bf16.gmra.mxu0 %v434
  %v943 = vpop.f32.mrf.mxu0
  %v944 = vadd.f32 %v208, %v943
  %v945 = vpop.f32.mrf.mxu0
  %v946 = vadd.f32 %v208, %v945
  %947 = vmatmul.bf16.gmra.mxu0 %v442
  %v948 = vpop.f32.mrf.mxu0
  %v949 = vadd.f32 %v208, %v948
  %v950 = vpop.f32.mrf.mxu0
  %v951 = vadd.f32 %v208, %v950
  %952 = vmatmul.bf16.gmra.mxu0 %v450
  %v953 = vpop.f32.mrf.mxu0
  %v954 = vadd.f32 %v208, %v953
  %v955 = vpop.f32.mrf.mxu0
  %v956 = vadd.f32 %v208, %v955
  %957 = vmatmul.bf16.gmra.mxu0 %v458
  %v958 = vpop.f32.mrf.mxu0
  %v959 = vadd.f32 %v208, %v958
  %v960 = vpop.f32.mrf.mxu0
  %v961 = vadd.f32 %v208, %v960
  %962 = vdwg.mxu0
  %963 = vmatpush.bf16.msra.mxu0 %v801
  %964 = vmatpush.bf16.msra.mxu0 %v800
  %965 = vmatpush.bf16.msra.mxu0 %v799
  %966 = vmatpush.bf16.msra.mxu0 %v798
  %967 = vmatpush.bf16.msra.mxu0 %v797
  %968 = vmatpush.bf16.msra.mxu0 %v796
  %969 = vmatpush.bf16.msra.mxu0 %v795
  %970 = vmatpush.bf16.msra.mxu0 %v794
  %971 = vmatmul.bf16.gmra.mxu0 %v403
  %v972 = vpop.f32.mrf.mxu0
  %v973 = vadd.f32 %v924, %v972
  %v974 = vpop.f32.mrf.mxu0
  %v975 = vadd.f32 %v926, %v974
  %976 = vmatmul.bf16.gmra.mxu0 %v411
  %v977 = vpop.f32.mrf.mxu0
  %v978 = vadd.f32 %v929, %v977
  %v979 = vpop.f32.mrf.mxu0
  %v980 = vadd.f32 %v931, %v979
  %981 = vmatmul.bf16.gmra.mxu0 %v419
  %v982 = vpop.f32.mrf.mxu0
  %v983 = vadd.f32 %v934, %v982
  %v984 = vpop.f32.mrf.mxu0
  %v985 = vadd.f32 %v936, %v984
  %986 = vmatmul.bf16.gmra.mxu0 %v427
  %v987 = vpop.f32.mrf.mxu0
  %v988 = vadd.f32 %v939, %v987
  %v989 = vpop.f32.mrf.mxu0
  %v990 = vadd.f32 %v941, %v989
  %991 = vmatmul.bf16.gmra.mxu0 %v435
  %v992 = vpop.f32.mrf.mxu0
  %v993 = vadd.f32 %v944, %v992
  %v994 = vpop.f32.mrf.mxu0
  %v995 = vadd.f32 %v946, %v994
  %996 = vmatmul.bf16.gmra.mxu0 %v443
  %v997 = vpop.f32.mrf.mxu0
  %v998 = vadd.f32 %v949, %v997
  %v999 = vpop.f32.mrf.mxu0
  %v1000 = vadd.f32 %v951, %v999
  %1001 = vmatmul.bf16.gmra.mxu0 %v451
  %v1002 = vpop.f32.mrf.mxu0
  %v1003 = vadd.f32 %v954, %v1002
  %v1004 = vpop.f32.mrf.mxu0
  %v1005 = vadd.f32 %v956, %v1004
  %1006 = vmatmul.bf16.gmra.mxu0 %v459
  %v1007 = vpop.f32.mrf.mxu0
  %v1008 = vadd.f32 %v959, %v1007
  %v1009 = vpop.f32.mrf.mxu0
  %v1010 = vadd.f32 %v961, %v1009
  %1011 = vdwg.mxu0
  %1012 = vmatpush.bf16.msra.mxu0 %v809
  %1013 = vmatpush.bf16.msra.mxu0 %v808
  %1014 = vmatpush.bf16.msra.mxu0 %v807
  %1015 = vmatpush.bf16.msra.mxu0 %v806
  %1016 = vmatpush.bf16.msra.mxu0 %v805
  %1017 = vmatpush.bf16.msra.mxu0 %v804
  %1018 = vmatpush.bf16.msra.mxu0 %v803
  %1019 = vmatpush.bf16.msra.mxu0 %v802
  %1020 = vmatmul.bf16.gmra.mxu0 %v404
  %v1021 = vpop.f32.mrf.mxu0
  %v1022 = vadd.f32 %v973, %v1021
  %v1023 = vpop.f32.mrf.mxu0
  %v1024 = vadd.f32 %v975, %v1023
  %1025 = vmatmul.bf16.gmra.mxu0 %v412
  %v1026 = vpop.f32.mrf.mxu0
  %v1027 = vadd.f32 %v978, %v1026
  %v1028 = vpop.f32.mrf.mxu0
  %v1029 = vadd.f32 %v980, %v1028
  %1030 = vmatmul.bf16.gmra.mxu0 %v420
  %v1031 = vpop.f32.mrf.mxu0
  %v1032 = vadd.f32 %v983, %v1031
  %v1033 = vpop.f32.mrf.mxu0
  %v1034 = vadd.f32 %v985, %v1033
  %1035 = vmatmul.bf16.gmra.mxu0 %v428
  %v1036 = vpop.f32.mrf.mxu0
  %v1037 = vadd.f32 %v988, %v1036
  %v1038 = vpop.f32.mrf.mxu0
  %v1039 = vadd.f32 %v990, %v1038
  %1040 = vmatmul.bf16.gmra.mxu0 %v436
  %v1041 = vpop.f32.mrf.mxu0
  %v1042 = vadd.f32 %v993, %v1041
  %v1043 = vpop.f32.mrf.mxu0
  %v1044 = vadd.f32 %v995, %v1043
  %1045 = vmatmul.bf16.gmra.mxu0 %v444
  %v1046 = vpop.f32.mrf.mxu0
  %v1047 = vadd.f32 %v998, %v1046
  %v1048 = vpop.f32.mrf.mxu0
  %v1049 = vadd.f32 %v1000, %v1048
  %1050 = vmatmul.bf16.gmra.mxu0 %v452
  %v1051 = vpop.f32.mrf.mxu0
  %v1052 = vadd.f32 %v1003, %v1051
  %v1053 = vpop.f32.mrf.mxu0
  %v1054 = vadd.f32 %v1005, %v1053
  %1055 = vmatmul.bf16.gmra.mxu0 %v460
  %v1056 = vpop.f32.mrf.mxu0
  %v1057 = vadd.f32 %v1008, %v1056
  %v1058 = vpop.f32.mrf.mxu0
  %v1059 = vadd.f32 %v1010, %v1058
  %1060 = vdwg.mxu0
  %1061 = vmatpush.bf16.msra.mxu0 %v817
  %1062 = vmatpush.bf16.msra.mxu0 %v816
  %1063 = vmatpush.bf16.msra.mxu0 %v815
  %1064 = vmatpush.bf16.msra.mxu0 %v814
  %1065 = vmatpush.bf16.msra.mxu0 %v813
  %1066 = vmatpush.bf16.msra.mxu0 %v812
  %1067 = vmatpush.bf16.msra.mxu0 %v811
  %1068 = vmatpush.bf16.msra.mxu0 %v810
  %1069 = vmatmul.bf16.gmra.mxu0 %v405
  %v1070 = vpop.f32.mrf.mxu0
  %v1071 = vadd.f32 %v1022, %v1070
  %v1072 = vpop.f32.mrf.mxu0
  %v1073 = vadd.f32 %v1024, %v1072
  %1074 = vmatmul.bf16.gmra.mxu0 %v413
  %v1075 = vpop.f32.mrf.mxu0
  %v1076 = vadd.f32 %v1027, %v1075
  %v1077 = vpop.f32.mrf.mxu0
  %v1078 = vadd.f32 %v1029, %v1077
  %1079 = vmatmul.bf16.gmra.mxu0 %v421
  %v1080 = vpop.f32.mrf.mxu0
  %v1081 = vadd.f32 %v1032, %v1080
  %v1082 = vpop.f32.mrf.mxu0
  %v1083 = vadd.f32 %v1034, %v1082
  %1084 = vmatmul.bf16.gmra.mxu0 %v429
  %v1085 = vpop.f32.mrf.mxu0
  %v1086 = vadd.f32 %v1037, %v1085
  %v1087 = vpop.f32.mrf.mxu0
  %v1088 = vadd.f32 %v1039, %v1087
  %1089 = vmatmul.bf16.gmra.mxu0 %v437
  %v1090 = vpop.f32.mrf.mxu0
  %v1091 = vadd.f32 %v1042, %v1090
  %v1092 = vpop.f32.mrf.mxu0
  %v1093 = vadd.f32 %v1044, %v1092
  %1094 = vmatmul.bf16.gmra.mxu0 %v445
  %v1095 = vpop.f32.mrf.mxu0
  %v1096 = vadd.f32 %v1047, %v1095
  %v1097 = vpop.f32.mrf.mxu0
  %v1098 = vadd.f32 %v1049, %v1097
  %1099 = vmatmul.bf16.gmra.mxu0 %v453
  %v1100 = vpop.f32.mrf.mxu0
  %v1101 = vadd.f32 %v1052, %v1100
  %v1102 = vpop.f32.mrf.mxu0
  %v1103 = vadd.f32 %v1054, %v1102
  %1104 = vmatmul.bf16.gmra.mxu0 %v461
  %v1105 = vpop.f32.mrf.mxu0
  %v1106 = vadd.f32 %v1057, %v1105
  %v1107 = vpop.f32.mrf.mxu0
  %v1108 = vadd.f32 %v1059, %v1107
  %1109 = vdwg.mxu0
  %1110 = vmatpush.bf16.msra.mxu0 %v825
  %1111 = vmatpush.bf16.msra.mxu0 %v824
  %1112 = vmatpush.bf16.msra.mxu0 %v823
  %1113 = vmatpush.bf16.msra.mxu0 %v822
  %1114 = vmatpush.bf16.msra.mxu0 %v821
  %1115 = vmatpush.bf16.msra.mxu0 %v820
  %1116 = vmatpush.bf16.msra.mxu0 %v819
  %1117 = vmatpush.bf16.msra.mxu0 %v818
  %1118 = vmatmul.bf16.gmra.mxu0 %v406
  %v1119 = vpop.f32.mrf.mxu0
  %v1120 = vadd.f32 %v1071, %v1119
  %v1121 = vpop.f32.mrf.mxu0
  %v1122 = vadd.f32 %v1073, %v1121
  %1123 = vmatmul.bf16.gmra.mxu0 %v414
  %v1124 = vpop.f32.mrf.mxu0
  %v1125 = vadd.f32 %v1076, %v1124
  %v1126 = vpop.f32.mrf.mxu0
  %v1127 = vadd.f32 %v1078, %v1126
  %1128 = vmatmul.bf16.gmra.mxu0 %v422
  %v1129 = vpop.f32.mrf.mxu0
  %v1130 = vadd.f32 %v1081, %v1129
  %v1131 = vpop.f32.mrf.mxu0
  %v1132 = vadd.f32 %v1083, %v1131
  %1133 = vmatmul.bf16.gmra.mxu0 %v430
  %v1134 = vpop.f32.mrf.mxu0
  %v1135 = vadd.f32 %v1086, %v1134
  %v1136 = vpop.f32.mrf.mxu0
  %v1137 = vadd.f32 %v1088, %v1136
  %1138 = vmatmul.bf16.gmra.mxu0 %v438
  %v1139 = vpop.f32.mrf.mxu0
  %v1140 = vadd.f32 %v1091, %v1139
  %v1141 = vpop.f32.mrf.mxu0
  %v1142 = vadd.f32 %v1093, %v1141
  %1143 = vmatmul.bf16.gmra.mxu0 %v446
  %v1144 = vpop.f32.mrf.mxu0
  %v1145 = vadd.f32 %v1096, %v1144
  %v1146 = vpop.f32.mrf.mxu0
  %v1147 = vadd.f32 %v1098, %v1146
  %1148 = vmatmul.bf16.gmra.mxu0 %v454
  %v1149 = vpop.f32.mrf.mxu0
  %v1150 = vadd.f32 %v1101, %v1149
  %v1151 = vpop.f32.mrf.mxu0
  %v1152 = vadd.f32 %v1103, %v1151
  %1153 = vmatmul.bf16.gmra.mxu0 %v462
  %v1154 = vpop.f32.mrf.mxu0
  %v1155 = vadd.f32 %v1106, %v1154
  %v1156 = vpop.f32.mrf.mxu0
  %v1157 = vadd.f32 %v1108, %v1156
  %1158 = vdwg.mxu0
  %1159 = vmatpush.bf16.msra.mxu0 %v833
  %1160 = vmatpush.bf16.msra.mxu0 %v832
  %1161 = vmatpush.bf16.msra.mxu0 %v831
  %1162 = vmatpush.bf16.msra.mxu0 %v830
  %1163 = vmatpush.bf16.msra.mxu0 %v829
  %1164 = vmatpush.bf16.msra.mxu0 %v828
  %1165 = vmatpush.bf16.msra.mxu0 %v827
  %1166 = vmatpush.bf16.msra.mxu0 %v826
  %1167 = vmatmul.bf16.gmra.mxu0 %v407
  %v1168 = vpop.f32.mrf.mxu0
  %v1169 = vadd.f32 %v1120, %v1168
  %v1170 = vpop.f32.mrf.mxu0
  %v1171 = vadd.f32 %v1122, %v1170
  %1172 = vmatmul.bf16.gmra.mxu0 %v415
  %v1173 = vpop.f32.mrf.mxu0
  %v1174 = vadd.f32 %v1125, %v1173
  %v1175 = vpop.f32.mrf.mxu0
  %v1176 = vadd.f32 %v1127, %v1175
  %1177 = vmatmul.bf16.gmra.mxu0 %v423
  %v1178 = vpop.f32.mrf.mxu0
  %v1179 = vadd.f32 %v1130, %v1178
  %v1180 = vpop.f32.mrf.mxu0
  %v1181 = vadd.f32 %v1132, %v1180
  %1182 = vmatmul.bf16.gmra.mxu0 %v431
  %v1183 = vpop.f32.mrf.mxu0
  %v1184 = vadd.f32 %v1135, %v1183
  %v1185 = vpop.f32.mrf.mxu0
  %v1186 = vadd.f32 %v1137, %v1185
  %1187 = vmatmul.bf16.gmra.mxu0 %v439
  %v1188 = vpop.f32.mrf.mxu0
  %v1189 = vadd.f32 %v1140, %v1188
  %v1190 = vpop.f32.mrf.mxu0
  %v1191 = vadd.f32 %v1142, %v1190
  %1192 = vmatmul.bf16.gmra.mxu0 %v447
  %v1193 = vpop.f32.mrf.mxu0
  %v1194 = vadd.f32 %v1145, %v1193
  %v1195 = vpop.f32.mrf.mxu0
  %v1196 = vadd.f32 %v1147, %v1195
  %1197 = vmatmul.bf16.gmra.mxu0 %v455
  %v1198 = vpop.f32.mrf.mxu0
  %v1199 = vadd.f32 %v1150, %v1198
  %v1200 = vpop.f32.mrf.mxu0
  %v1201 = vadd.f32 %v1152, %v1200
  %1202 = vmatmul.bf16.gmra.mxu0 %v463
  %v1203 = vpop.f32.mrf.mxu0
  %v1204 = vadd.f32 %v1155, %v1203
  %v1205 = vpop.f32.mrf.mxu0
  %v1206 = vadd.f32 %v1157, %v1205
  %1207 = vdwg.mxu0
  %1208 = vmatpush.bf16.msra.mxu0 %v841
  %1209 = vmatpush.bf16.msra.mxu0 %v840
  %1210 = vmatpush.bf16.msra.mxu0 %v839
  %1211 = vmatpush.bf16.msra.mxu0 %v838
  %1212 = vmatpush.bf16.msra.mxu0 %v837
  %1213 = vmatpush.bf16.msra.mxu0 %v836
  %1214 = vmatpush.bf16.msra.mxu0 %v835
  %1215 = vmatpush.bf16.msra.mxu0 %v834
  %1216 = vmatmul.bf16.gmra.mxu0 %v408
  %v1217 = vpop.f32.mrf.mxu0
  %v1218 = vadd.f32 %v1169, %v1217
  %v1219 = vpop.f32.mrf.mxu0
  %v1220 = vadd.f32 %v1171, %v1219
  %1221 = vmatmul.bf16.gmra.mxu0 %v416
  %v1222 = vpop.f32.mrf.mxu0
  %v1223 = vadd.f32 %v1174, %v1222
  %v1224 = vpop.f32.mrf.mxu0
  %v1225 = vadd.f32 %v1176, %v1224
  %1226 = vmatmul.bf16.gmra.mxu0 %v424
  %v1227 = vpop.f32.mrf.mxu0
  %v1228 = vadd.f32 %v1179, %v1227
  %v1229 = vpop.f32.mrf.mxu0
  %v1230 = vadd.f32 %v1181, %v1229
  %1231 = vmatmul.bf16.gmra.mxu0 %v432
  %v1232 = vpop.f32.mrf.mxu0
  %v1233 = vadd.f32 %v1184, %v1232
  %v1234 = vpop.f32.mrf.mxu0
  %v1235 = vadd.f32 %v1186, %v1234
  %1236 = vmatmul.bf16.gmra.mxu0 %v440
  %v1237 = vpop.f32.mrf.mxu0
  %v1238 = vadd.f32 %v1189, %v1237
  %v1239 = vpop.f32.mrf.mxu0
  %v1240 = vadd.f32 %v1191, %v1239
  %1241 = vmatmul.bf16.gmra.mxu0 %v448
  %v1242 = vpop.f32.mrf.mxu0
  %v1243 = vadd.f32 %v1194, %v1242
  %v1244 = vpop.f32.mrf.mxu0
  %v1245 = vadd.f32 %v1196, %v1244
  %1246 = vmatmul.bf16.gmra.mxu0 %v456
  %v1247 = vpop.f32.mrf.mxu0
  %v1248 = vadd.f32 %v1199, %v1247
  %v1249 = vpop.f32.mrf.mxu0
  %v1250 = vadd.f32 %v1201, %v1249
  %1251 = vmatmul.bf16.gmra.mxu0 %v464
  %v1252 = vpop.f32.mrf.mxu0
  %v1253 = vadd.f32 %v1204, %v1252
  %v1254 = vpop.f32.mrf.mxu0
  %v1255 = vadd.f32 %v1206, %v1254
  %1256 = vdwg.mxu0
  %1257 = vmatpush.bf16.msra.mxu0 %v849
  %1258 = vmatpush.bf16.msra.mxu0 %v848
  %1259 = vmatpush.bf16.msra.mxu0 %v847
  %1260 = vmatpush.bf16.msra.mxu0 %v846
  %1261 = vmatpush.bf16.msra.mxu0 %v845
  %1262 = vmatpush.bf16.msra.mxu0 %v844
  %1263 = vmatpush.bf16.msra.mxu0 %v843
  %1264 = vmatpush.bf16.msra.mxu0 %v842
  %1265 = vmatmul.bf16.gmra.mxu0 %v409
  %v1266 = vpop.f32.mrf.mxu0
  %v1267 = vadd.f32 %v1218, %v1266
  %v1268 = vpop.f32.mrf.mxu0
  %v1269 = vadd.f32 %v1220, %v1268
  %1270 = vmatmul.bf16.gmra.mxu0 %v417
  %v1271 = vpop.f32.mrf.mxu0
  %v1272 = vadd.f32 %v1223, %v1271
  %v1273 = vpop.f32.mrf.mxu0
  %v1274 = vadd.f32 %v1225, %v1273
  %1275 = vmatmul.bf16.gmra.mxu0 %v425
  %v1276 = vpop.f32.mrf.mxu0
  %v1277 = vadd.f32 %v1228, %v1276
  %v1278 = vpop.f32.mrf.mxu0
  %v1279 = vadd.f32 %v1230, %v1278
  %1280 = vmatmul.bf16.gmra.mxu0 %v433
  %v1281 = vpop.f32.mrf.mxu0
  %v1282 = vadd.f32 %v1233, %v1281
  %v1283 = vpop.f32.mrf.mxu0
  %v1284 = vadd.f32 %v1235, %v1283
  %1285 = vmatmul.bf16.gmra.mxu0 %v441
  %v1286 = vpop.f32.mrf.mxu0
  %v1287 = vadd.f32 %v1238, %v1286
  %v1288 = vpop.f32.mrf.mxu0
  %v1289 = vadd.f32 %v1240, %v1288
  %1290 = vmatmul.bf16.gmra.mxu0 %v449
  %v1291 = vpop.f32.mrf.mxu0
  %v1292 = vadd.f32 %v1243, %v1291
  %v1293 = vpop.f32.mrf.mxu0
  %v1294 = vadd.f32 %v1245, %v1293
  %1295 = vmatmul.bf16.gmra.mxu0 %v457
  %v1296 = vpop.f32.mrf.mxu0
  %v1297 = vadd.f32 %v1248, %v1296
  %v1298 = vpop.f32.mrf.mxu0
  %v1299 = vadd.f32 %v1250, %v1298
  %1300 = vmatmul.bf16.gmra.mxu0 %v465
  %v1301 = vpop.f32.mrf.mxu0
  %v1302 = vadd.f32 %v1253, %v1301
  %v1303 = vpop.f32.mrf.mxu0
  %v1304 = vadd.f32 %v1255, %v1303
  %1305 = vdwg.mxu0
  %v1306 = vmax.f32 %v1267, 0.0
  %v1307 = vmax.f32 %v1269, 0.0
  %v1308 = vmax.f32 %v1272, 0.0
  %v1309 = vmax.f32 %v1274, 0.0
  %v1310 = vmax.f32 %v1277, 0.0
  %v1311 = vmax.f32 %v1279, 0.0
  %v1312 = vmax.f32 %v1282, 0.0
  %v1313 = vmax.f32 %v1284, 0.0
  %v1314 = vmax.f32 %v1287, 0.0
  %v1315 = vmax.f32 %v1289, 0.0
  %v1316 = vmax.f32 %v1292, 0.0
  %v1317 = vmax.f32 %v1294, 0.0
  %v1318 = vmax.f32 %v1297, 0.0
  %v1319 = vmax.f32 %v1299, 0.0
  %v1320 = vmax.f32 %v1302, 0.0
  %v1321 = vmax.f32 %v1304, 0.0
  %v1322 = vpack.c.bf16 %v1306, %v1306
  %v1323 = vpack.c.bf16 %v1307, %v1307
  %v1324 = vpack.c.bf16 %v1308, %v1308
  %v1325 = vpack.c.bf16 %v1309, %v1309
  %v1326 = vpack.c.bf16 %v1310, %v1310
  %v1327 = vpack.c.bf16 %v1311, %v1311
  %v1328 = vpack.c.bf16 %v1312, %v1312
  %v1329 = vpack.c.bf16 %v1313, %v1313
  %v1330 = vpack.c.bf16 %v1314, %v1314
  %v1331 = vpack.c.bf16 %v1315, %v1315
  %v1332 = vpack.c.bf16 %v1316, %v1316
  %v1333 = vpack.c.bf16 %v1317, %v1317
  %v1334 = vpack.c.bf16 %v1318, %v1318
  %v1335 = vpack.c.bf16 %v1319, %v1319
  %v1336 = vpack.c.bf16 %v1320, %v1320
  %v1337 = vpack.c.bf16 %v1321, %v1321
  %1338 = vst [vmem:[%s3] sm:$0xf] %v1322
  %1339 = vst [vmem:[%s3 + $0x4] sm:$0xf] %v1323
  %1340 = vst [vmem:[%s3 + $0x8] sm:$0xf] %v1324
  %1341 = vst [vmem:[%s3 + $0xc] sm:$0xf] %v1325
  %1342 = vst [vmem:[%s3 + $0x10] sm:$0xf] %v1326
  %1343 = vst [vmem:[%s3 + $0x14] sm:$0xf] %v1327
  %1344 = vst [vmem:[%s3 + $0x18] sm:$0xf] %v1328
  %1345 = vst [vmem:[%s3 + $0x1c] sm:$0xf] %v1329
  %1346 = vst [vmem:[%s3 + $0x20] sm:$0xf] %v1330
  %1347 = vst [vmem:[%s3 + $0x24] sm:$0xf] %v1331
  %1348 = vst [vmem:[%s3 + $0x28] sm:$0xf] %v1332
  %1349 = vst [vmem:[%s3 + $0x2c] sm:$0xf] %v1333
  %1350 = vst [vmem:[%s3 + $0x30] sm:$0xf] %v1334
  %1351 = vst [vmem:[%s3 + $0x34] sm:$0xf] %v1335
  %1352 = vst [vmem:[%s3 + $0x38] sm:$0xf] %v1336
  %1353 = vst [vmem:[%s3 + $0x3c] sm:$0xf] %v1337
  // Predicated region
  $region14: #{style_encoder_forward.16} parent=0 // pred_check
    _
  $region15: #{style_encoder_forward.16} parent=0 // pred_check_branch
    %1355 = sbr.rel (0) target = $region17
  $region16: #{style_encoder_forward.16} parent=0 // pred_region
    _
  $region17: #{style_encoder_forward.16} parent=0 // pred_fallthru
    _
  // Predicated region
  $region18: #{style_encoder_forward.16} parent=0 // pred_check
    _
  $region19: #{style_encoder_forward.16} parent=0 // pred_check_branch
    %1357 = sbr.rel (0) target = $region21
  $region20: #{style_encoder_forward.16} parent=0 // pred_region
    _
  $region21: #{style_encoder_forward.16} parent=0 // pred_fallthru
    _

// kernel: style_encoder_forward.17
$region0: #{style_encoder_forward.17}
  #allocation0 [shape = 'u32[]', space=smem, size = 0x4, offset = 0x4, fixed_abs, tag = 'smem constant byte address 0x4 - core index']
  #allocation1 [shape = 'u32[72,128]{1,0:T(1,128)}', space=vmem, size = 0x9000, scoped, tag = 'internal scratch']
  %s0 = inlined_call_operand.vmem [shape: bf16[32,2048], index: 0, kind: input, shape index: {}]
  %s1 = inlined_call_operand.vmem [shape: bf16[2048,256], index: 1, kind: input, shape index: {}]
  %s2 = inlined_call_operand.vmem [shape: f32[1,256], index: 2, kind: input, shape index: {}]
  %s3 = inlined_call_operand.vmem [shape: bf16[32,256], index: 3, kind: output, shape index: {}]
  %s4 = sld [smem:[#allocation0]]
  $region22: #{style_encoder_forward.17} parent=0
    _
  %s6 = ssub.s32 1, %s4
  %s7 = scalar_select 0, %s6, %s4
  // Predicated region
  $region2: #{style_encoder_forward.17} parent=0 // pred_check
    _
  $region3: #{style_encoder_forward.17} parent=0 // pred_check_branch
    %9 = sbr.rel (0) target = $region5
  $region4: #{style_encoder_forward.17} parent=0 // pred_region
    _
  $region5: #{style_encoder_forward.17} parent=0 // pred_fallthru
    _
  // Predicated region
  $region6: #{style_encoder_forward.17} parent=0 // pred_check
    _
  $region7: #{style_encoder_forward.17} parent=0 // pred_check_branch
    %11 = sbr.rel (0) target = $region9
  $region8: #{style_encoder_forward.17} parent=0 // pred_region
    _
  $region9: #{style_encoder_forward.17} parent=0 // pred_fallthru
    _
  // Predicated region
  $region10: #{style_encoder_forward.17} parent=0 // pred_check
    _
  $region11: #{style_encoder_forward.17} parent=0 // pred_check_branch
    %13 = sbr.rel (0) target = $region13
  $region12: #{style_encoder_forward.17} parent=0 // pred_region
    _
  $region13: #{style_encoder_forward.17} parent=0 // pred_fallthru
    _
  %v14 = vld [vmem:[%s0] sm:$0xff]
  %v15 = vld [vmem:[%s0 + $0x8] sm:$0xff]
  %v16 = vld [vmem:[%s0 + $0x10] sm:$0xff]
  %v17 = vld [vmem:[%s0 + $0x18] sm:$0xff]
  %v18 = vld [vmem:[%s0 + $0x20] sm:$0xff]
  %v19 = vld [vmem:[%s0 + $0x28] sm:$0xff]
  %v20 = vld [vmem:[%s0 + $0x30] sm:$0xff]
  %v21 = vld [vmem:[%s0 + $0x38] sm:$0xff]
  %v22 = vld [vmem:[%s0 + $0x40] sm:$0xff]
  %v23 = vld [vmem:[%s0 + $0x48] sm:$0xff]
  %v24 = vld [vmem:[%s0 + $0x50] sm:$0xff]
  %v25 = vld [vmem:[%s0 + $0x58] sm:$0xff]
  %v26 = vld [vmem:[%s0 + $0x60] sm:$0xff]
  %v27 = vld [vmem:[%s0 + $0x68] sm:$0xff]
  %v28 = vld [vmem:[%s0 + $0x70] sm:$0xff]
  %v29 = vld [vmem:[%s0 + $0x78] sm:$0xff]
  %v30 = vld [vmem:[%s0 + $0x80] sm:$0xff]
  %v31 = vld [vmem:[%s0 + $0x88] sm:$0xff]
  %v32 = vld [vmem:[%s0 + $0x90] sm:$0xff]
  %v33 = vld [vmem:[%s0 + $0x98] sm:$0xff]
  %v34 = vld [vmem:[%s0 + $0xa0] sm:$0xff]
  %v35 = vld [vmem:[%s0 + $0xa8] sm:$0xff]
  %v36 = vld [vmem:[%s0 + $0xb0] sm:$0xff]
  %v37 = vld [vmem:[%s0 + $0xb8] sm:$0xff]
  %v38 = vld [vmem:[%s0 + $0xc0] sm:$0xff]
  %v39 = vld [vmem:[%s0 + $0xc8] sm:$0xff]
  %v40 = vld [vmem:[%s0 + $0xd0] sm:$0xff]
  %v41 = vld [vmem:[%s0 + $0xd8] sm:$0xff]
  %v42 = vld [vmem:[%s0 + $0xe0] sm:$0xff]
  %v43 = vld [vmem:[%s0 + $0xe8] sm:$0xff]
  %v44 = vld [vmem:[%s0 + $0xf0] sm:$0xff]
  %v45 = vld [vmem:[%s0 + $0xf8] sm:$0xff]
  %v46 = vld [vmem:[%s1] sm:$0xff]
  %v47 = vld [vmem:[%s1 + $0x8] sm:$0xff]
  %v48 = vld [vmem:[%s1 + $0x10] sm:$0xff]
  %v49 = vld [vmem:[%s1 + $0x18] sm:$0xff]
  %v50 = vld [vmem:[%s1 + $0x20] sm:$0xff]
  %v51 = vld [vmem:[%s1 + $0x28] sm:$0xff]
  %v52 = vld [vmem:[%s1 + $0x30] sm:$0xff]
  %v53 = vld [vmem:[%s1 + $0x38] sm:$0xff]
  %v54 = vld [vmem:[%s1 + $0x40] sm:$0xff]
  %v55 = vld [vmem:[%s1 + $0x48] sm:$0xff]
  %v56 = vld [vmem:[%s1 + $0x50] sm:$0xff]
  %v57 = vld [vmem:[%s1 + $0x58] sm:$0xff]
  %v58 = vld [vmem:[%s1 + $0x60] sm:$0xff]
  %v59 = vld [vmem:[%s1 + $0x68] sm:$0xff]
  %v60 = vld [vmem:[%s1 + $0x70] sm:$0xff]
  %v61 = vld [vmem:[%s1 + $0x78] sm:$0xff]
  %v62 = vld [vmem:[%s1 + $0x80] sm:$0xff]
  %v63 = vld [vmem:[%s1 + $0x88] sm:$0xff]
  %v64 = vld [vmem:[%s1 + $0x90] sm:$0xff]
  %v65 = vld [vmem:[%s1 + $0x98] sm:$0xff]
  %v66 = vld [vmem:[%s1 + $0xa0] sm:$0xff]
  %v67 = vld [vmem:[%s1 + $0xa8] sm:$0xff]
  %v68 = vld [vmem:[%s1 + $0xb0] sm:$0xff]
  %v69 = vld [vmem:[%s1 + $0xb8] sm:$0xff]
  %v70 = vld [vmem:[%s1 + $0xc0] sm:$0xff]
  %v71 = vld [vmem:[%s1 + $0xc8] sm:$0xff]
  %v72 = vld [vmem:[%s1 + $0xd0] sm:$0xff]
  %v73 = vld [vmem:[%s1 + $0xd8] sm:$0xff]
  %v74 = vld [vmem:[%s1 + $0xe0] sm:$0xff]
  %v75 = vld [vmem:[%s1 + $0xe8] sm:$0xff]
  %v76 = vld [vmem:[%s1 + $0xf0] sm:$0xff]
  %v77 = vld [vmem:[%s1 + $0xf8] sm:$0xff]
  %v78 = vld [vmem:[%s1 + $0x100] sm:$0xff]
  %v79 = vld [vmem:[%s1 + $0x108] sm:$0xff]
  %v80 = vld [vmem:[%s1 + $0x110] sm:$0xff]
  %v81 = vld [vmem:[%s1 + $0x118] sm:$0xff]
  %v82 = vld [vmem:[%s1 + $0x120] sm:$0xff]
  %v83 = vld [vmem:[%s1 + $0x128] sm:$0xff]
  %v84 = vld [vmem:[%s1 + $0x130] sm:$0xff]
  %v85 = vld [vmem:[%s1 + $0x138] sm:$0xff]
  %v86 = vld [vmem:[%s1 + $0x140] sm:$0xff]
  %v87 = vld [vmem:[%s1 + $0x148] sm:$0xff]
  %v88 = vld [vmem:[%s1 + $0x150] sm:$0xff]
  %v89 = vld [vmem:[%s1 + $0x158] sm:$0xff]
  %v90 = vld [vmem:[%s1 + $0x160] sm:$0xff]
  %v91 = vld [vmem:[%s1 + $0x168] sm:$0xff]
  %v92 = vld [vmem:[%s1 + $0x170] sm:$0xff]
  %v93 = vld [vmem:[%s1 + $0x178] sm:$0xff]
  %v94 = vld [vmem:[%s1 + $0x180] sm:$0xff]
  %v95 = vld [vmem:[%s1 + $0x188] sm:$0xff]
  %v96 = vld [vmem:[%s1 + $0x190] sm:$0xff]
  %v97 = vld [vmem:[%s1 + $0x198] sm:$0xff]
  %v98 = vld [vmem:[%s1 + $0x1a0] sm:$0xff]
  %v99 = vld [vmem:[%s1 + $0x1a8] sm:$0xff]
  %v100 = vld [vmem:[%s1 + $0x1b0] sm:$0xff]
  %v101 = vld [vmem:[%s1 + $0x1b8] sm:$0xff]
  %v102 = vld [vmem:[%s1 + $0x1c0] sm:$0xff]
  %v103 = vld [vmem:[%s1 + $0x1c8] sm:$0xff]
  %v104 = vld [vmem:[%s1 + $0x1d0] sm:$0xff]
  %v105 = vld [vmem:[%s1 + $0x1d8] sm:$0xff]
  %v106 = vld [vmem:[%s1 + $0x1e0] sm:$0xff]
  %v107 = vld [vmem:[%s1 + $0x1e8] sm:$0xff]
  %v108 = vld [vmem:[%s1 + $0x1f0] sm:$0xff]
  %v109 = vld [vmem:[%s1 + $0x1f8] sm:$0xff]
  %v110 = vld [vmem:[%s1 + $0x200] sm:$0xff]
  %v111 = vld [vmem:[%s1 + $0x208] sm:$0xff]
  %v112 = vld [vmem:[%s1 + $0x210] sm:$0xff]
  %v113 = vld [vmem:[%s1 + $0x218] sm:$0xff]
  %v114 = vld [vmem:[%s1 + $0x220] sm:$0xff]
  %v115 = vld [vmem:[%s1 + $0x228] sm:$0xff]
  %v116 = vld [vmem:[%s1 + $0x230] sm:$0xff]
  %v117 = vld [vmem:[%s1 + $0x238] sm:$0xff]
  %v118 = vld [vmem:[%s1 + $0x240] sm:$0xff]
  %v119 = vld [vmem:[%s1 + $0x248] sm:$0xff]
  %v120 = vld [vmem:[%s1 + $0x250] sm:$0xff]
  %v121 = vld [vmem:[%s1 + $0x258] sm:$0xff]
  %v122 = vld [vmem:[%s1 + $0x260] sm:$0xff]
  %v123 = vld [vmem:[%s1 + $0x268] sm:$0xff]
  %v124 = vld [vmem:[%s1 + $0x270] sm:$0xff]
  %v125 = vld [vmem:[%s1 + $0x278] sm:$0xff]
  %v126 = vld [vmem:[%s1 + $0x280] sm:$0xff]
  %v127 = vld [vmem:[%s1 + $0x288] sm:$0xff]
  %v128 = vld [vmem:[%s1 + $0x290] sm:$0xff]
  %v129 = vld [vmem:[%s1 + $0x298] sm:$0xff]
  %v130 = vld [vmem:[%s1 + $0x2a0] sm:$0xff]
  %v131 = vld [vmem:[%s1 + $0x2a8] sm:$0xff]
  %v132 = vld [vmem:[%s1 + $0x2b0] sm:$0xff]
  %v133 = vld [vmem:[%s1 + $0x2b8] sm:$0xff]
  %v134 = vld [vmem:[%s1 + $0x2c0] sm:$0xff]
  %v135 = vld [vmem:[%s1 + $0x2c8] sm:$0xff]
  %v136 = vld [vmem:[%s1 + $0x2d0] sm:$0xff]
  %v137 = vld [vmem:[%s1 + $0x2d8] sm:$0xff]
  %v138 = vld [vmem:[%s1 + $0x2e0] sm:$0xff]
  %v139 = vld [vmem:[%s1 + $0x2e8] sm:$0xff]
  %v140 = vld [vmem:[%s1 + $0x2f0] sm:$0xff]
  %v141 = vld [vmem:[%s1 + $0x2f8] sm:$0xff]
  %v142 = vld [vmem:[%s1 + $0x300] sm:$0xff]
  %v143 = vld [vmem:[%s1 + $0x308] sm:$0xff]
  %v144 = vld [vmem:[%s1 + $0x310] sm:$0xff]
  %v145 = vld [vmem:[%s1 + $0x318] sm:$0xff]
  %v146 = vld [vmem:[%s1 + $0x320] sm:$0xff]
  %v147 = vld [vmem:[%s1 + $0x328] sm:$0xff]
  %v148 = vld [vmem:[%s1 + $0x330] sm:$0xff]
  %v149 = vld [vmem:[%s1 + $0x338] sm:$0xff]
  %v150 = vld [vmem:[%s1 + $0x340] sm:$0xff]
  %v151 = vld [vmem:[%s1 + $0x348] sm:$0xff]
  %v152 = vld [vmem:[%s1 + $0x350] sm:$0xff]
  %v153 = vld [vmem:[%s1 + $0x358] sm:$0xff]
  %v154 = vld [vmem:[%s1 + $0x360] sm:$0xff]
  %v155 = vld [vmem:[%s1 + $0x368] sm:$0xff]
  %v156 = vld [vmem:[%s1 + $0x370] sm:$0xff]
  %v157 = vld [vmem:[%s1 + $0x378] sm:$0xff]
  %v158 = vld [vmem:[%s1 + $0x380] sm:$0xff]
  %v159 = vld [vmem:[%s1 + $0x388] sm:$0xff]
  %v160 = vld [vmem:[%s1 + $0x390] sm:$0xff]
  %v161 = vld [vmem:[%s1 + $0x398] sm:$0xff]
  %v162 = vld [vmem:[%s1 + $0x3a0] sm:$0xff]
  %v163 = vld [vmem:[%s1 + $0x3a8] sm:$0xff]
  %v164 = vld [vmem:[%s1 + $0x3b0] sm:$0xff]
  %v165 = vld [vmem:[%s1 + $0x3b8] sm:$0xff]
  %v166 = vld [vmem:[%s1 + $0x3c0] sm:$0xff]
  %v167 = vld [vmem:[%s1 + $0x3c8] sm:$0xff]
  %v168 = vld [vmem:[%s1 + $0x3d0] sm:$0xff]
  %v169 = vld [vmem:[%s1 + $0x3d8] sm:$0xff]
  %v170 = vld [vmem:[%s1 + $0x3e0] sm:$0xff]
  %v171 = vld [vmem:[%s1 + $0x3e8] sm:$0xff]
  %v172 = vld [vmem:[%s1 + $0x3f0] sm:$0xff]
  %v173 = vld [vmem:[%s1 + $0x3f8] sm:$0xff]
  %v174 = vld [vmem:[%s1 + $0x400] sm:$0xff]
  %v175 = vld [vmem:[%s1 + $0x408] sm:$0xff]
  %v176 = vld [vmem:[%s1 + $0x410] sm:$0xff]
  %v177 = vld [vmem:[%s1 + $0x418] sm:$0xff]
  %v178 = vld [vmem:[%s1 + $0x420] sm:$0xff]
  %v179 = vld [vmem:[%s1 + $0x428] sm:$0xff]
  %v180 = vld [vmem:[%s1 + $0x430] sm:$0xff]
  %v181 = vld [vmem:[%s1 + $0x438] sm:$0xff]
  %v182 = vld [vmem:[%s1 + $0x440] sm:$0xff]
  %v183 = vld [vmem:[%s1 + $0x448] sm:$0xff]
  %v184 = vld [vmem:[%s1 + $0x450] sm:$0xff]
  %v185 = vld [vmem:[%s1 + $0x458] sm:$0xff]
  %v186 = vld [vmem:[%s1 + $0x460] sm:$0xff]
  %v187 = vld [vmem:[%s1 + $0x468] sm:$0xff]
  %v188 = vld [vmem:[%s1 + $0x470] sm:$0xff]
  %v189 = vld [vmem:[%s1 + $0x478] sm:$0xff]
  %v190 = vld [vmem:[%s1 + $0x480] sm:$0xff]
  %v191 = vld [vmem:[%s1 + $0x488] sm:$0xff]
  %v192 = vld [vmem:[%s1 + $0x490] sm:$0xff]
  %v193 = vld [vmem:[%s1 + $0x498] sm:$0xff]
  %v194 = vld [vmem:[%s1 + $0x4a0] sm:$0xff]
  %v195 = vld [vmem:[%s1 + $0x4a8] sm:$0xff]
  %v196 = vld [vmem:[%s1 + $0x4b0] sm:$0xff]
  %v197 = vld [vmem:[%s1 + $0x4b8] sm:$0xff]
  %v198 = vld [vmem:[%s1 + $0x4c0] sm:$0xff]
  %v199 = vld [vmem:[%s1 + $0x4c8] sm:$0xff]
  %v200 = vld [vmem:[%s1 + $0x4d0] sm:$0xff]
  %v201 = vld [vmem:[%s1 + $0x4d8] sm:$0xff]
  %v202 = vld [vmem:[%s1 + $0x4e0] sm:$0xff]
  %v203 = vld [vmem:[%s1 + $0x4e8] sm:$0xff]
  %v204 = vld [vmem:[%s1 + $0x4f0] sm:$0xff]
  %v205 = vld [vmem:[%s1 + $0x4f8] sm:$0xff]
  %v206 = vld [vmem:[%s1 + $0x500] sm:$0xff]
  %v207 = vld [vmem:[%s1 + $0x508] sm:$0xff]
  %v208 = vld [vmem:[%s1 + $0x510] sm:$0xff]
  %v209 = vld [vmem:[%s1 + $0x518] sm:$0xff]
  %v210 = vld [vmem:[%s1 + $0x520] sm:$0xff]
  %v211 = vld [vmem:[%s1 + $0x528] sm:$0xff]
  %v212 = vld [vmem:[%s1 + $0x530] sm:$0xff]
  %v213 = vld [vmem:[%s1 + $0x538] sm:$0xff]
  %v214 = vld [vmem:[%s1 + $0x540] sm:$0xff]
  %v215 = vld [vmem:[%s1 + $0x548] sm:$0xff]
  %v216 = vld [vmem:[%s1 + $0x550] sm:$0xff]
  %v217 = vld [vmem:[%s1 + $0x558] sm:$0xff]
  %v218 = vld [vmem:[%s1 + $0x560] sm:$0xff]
  %v219 = vld [vmem:[%s1 + $0x568] sm:$0xff]
  %v220 = vld [vmem:[%s1 + $0x570] sm:$0xff]
  %v221 = vld [vmem:[%s1 + $0x578] sm:$0xff]
  %v222 = vld [vmem:[%s1 + $0x580] sm:$0xff]
  %v223 = vld [vmem:[%s1 + $0x588] sm:$0xff]
  %v224 = vld [vmem:[%s1 + $0x590] sm:$0xff]
  %v225 = vld [vmem:[%s1 + $0x598] sm:$0xff]
  %v226 = vld [vmem:[%s1 + $0x5a0] sm:$0xff]
  %v227 = vld [vmem:[%s1 + $0x5a8] sm:$0xff]
  %v228 = vld [vmem:[%s1 + $0x5b0] sm:$0xff]
  %v229 = vld [vmem:[%s1 + $0x5b8] sm:$0xff]
  %v230 = vld [vmem:[%s1 + $0x5c0] sm:$0xff]
  %v231 = vld [vmem:[%s1 + $0x5c8] sm:$0xff]
  %v232 = vld [vmem:[%s1 + $0x5d0] sm:$0xff]
  %v233 = vld [vmem:[%s1 + $0x5d8] sm:$0xff]
  %v234 = vld [vmem:[%s1 + $0x5e0] sm:$0xff]
  %v235 = vld [vmem:[%s1 + $0x5e8] sm:$0xff]
  %v236 = vld [vmem:[%s1 + $0x5f0] sm:$0xff]
  %v237 = vld [vmem:[%s1 + $0x5f8] sm:$0xff]
  %v238 = vld [vmem:[%s1 + $0x600] sm:$0xff]
  %v239 = vld [vmem:[%s1 + $0x608] sm:$0xff]
  %v240 = vld [vmem:[%s1 + $0x610] sm:$0xff]
  %v241 = vld [vmem:[%s1 + $0x618] sm:$0xff]
  %v242 = vld [vmem:[%s1 + $0x620] sm:$0xff]
  %v243 = vld [vmem:[%s1 + $0x628] sm:$0xff]
  %v244 = vld [vmem:[%s1 + $0x630] sm:$0xff]
  %v245 = vld [vmem:[%s1 + $0x638] sm:$0xff]
  %v246 = vld [vmem:[%s1 + $0x640] sm:$0xff]
  %v247 = vld [vmem:[%s1 + $0x648] sm:$0xff]
  %v248 = vld [vmem:[%s1 + $0x650] sm:$0xff]
  %v249 = vld [vmem:[%s1 + $0x658] sm:$0xff]
  %v250 = vld [vmem:[%s1 + $0x660] sm:$0xff]
  %v251 = vld [vmem:[%s1 + $0x668] sm:$0xff]
  %v252 = vld [vmem:[%s1 + $0x670] sm:$0xff]
  %v253 = vld [vmem:[%s1 + $0x678] sm:$0xff]
  %v254 = vld [vmem:[%s1 + $0x680] sm:$0xff]
  %v255 = vld [vmem:[%s1 + $0x688] sm:$0xff]
  %v256 = vld [vmem:[%s1 + $0x690] sm:$0xff]
  %v257 = vld [vmem:[%s1 + $0x698] sm:$0xff]
  %v258 = vld [vmem:[%s1 + $0x6a0] sm:$0xff]
  %v259 = vld [vmem:[%s1 + $0x6a8] sm:$0xff]
  %v260 = vld [vmem:[%s1 + $0x6b0] sm:$0xff]
  %v261 = vld [vmem:[%s1 + $0x6b8] sm:$0xff]
  %v262 = vld [vmem:[%s1 + $0x6c0] sm:$0xff]
  %v263 = vld [vmem:[%s1 + $0x6c8] sm:$0xff]
  %v264 = vld [vmem:[%s1 + $0x6d0] sm:$0xff]
  %v265 = vld [vmem:[%s1 + $0x6d8] sm:$0xff]
  %v266 = vld [vmem:[%s1 + $0x6e0] sm:$0xff]
  %v267 = vld [vmem:[%s1 + $0x6e8] sm:$0xff]
  %v268 = vld [vmem:[%s1 + $0x6f0] sm:$0xff]
  %v269 = vld [vmem:[%s1 + $0x6f8] sm:$0xff]
  %v270 = vld [vmem:[%s1 + $0x700] sm:$0xff]
  %v271 = vld [vmem:[%s1 + $0x708] sm:$0xff]
  %v272 = vld [vmem:[%s1 + $0x710] sm:$0xff]
  %v273 = vld [vmem:[%s1 + $0x718] sm:$0xff]
  %v274 = vld [vmem:[%s1 + $0x720] sm:$0xff]
  %v275 = vld [vmem:[%s1 + $0x728] sm:$0xff]
  %v276 = vld [vmem:[%s1 + $0x730] sm:$0xff]
  %v277 = vld [vmem:[%s1 + $0x738] sm:$0xff]
  %v278 = vld [vmem:[%s1 + $0x740] sm:$0xff]
  %v279 = vld [vmem:[%s1 + $0x748] sm:$0xff]
  %v280 = vld [vmem:[%s1 + $0x750] sm:$0xff]
  %v281 = vld [vmem:[%s1 + $0x758] sm:$0xff]
  %v282 = vld [vmem:[%s1 + $0x760] sm:$0xff]
  %v283 = vld [vmem:[%s1 + $0x768] sm:$0xff]
  %v284 = vld [vmem:[%s1 + $0x770] sm:$0xff]
  %v285 = vld [vmem:[%s1 + $0x778] sm:$0xff]
  %v286 = vld [vmem:[%s1 + $0x780] sm:$0xff]
  %v287 = vld [vmem:[%s1 + $0x788] sm:$0xff]
  %v288 = vld [vmem:[%s1 + $0x790] sm:$0xff]
  %v289 = vld [vmem:[%s1 + $0x798] sm:$0xff]
  %v290 = vld [vmem:[%s1 + $0x7a0] sm:$0xff]
  %v291 = vld [vmem:[%s1 + $0x7a8] sm:$0xff]
  %v292 = vld [vmem:[%s1 + $0x7b0] sm:$0xff]
  %v293 = vld [vmem:[%s1 + $0x7b8] sm:$0xff]
  %v294 = vld [vmem:[%s1 + $0x7c0] sm:$0xff]
  %v295 = vld [vmem:[%s1 + $0x7c8] sm:$0xff]
  %v296 = vld [vmem:[%s1 + $0x7d0] sm:$0xff]
  %v297 = vld [vmem:[%s1 + $0x7d8] sm:$0xff]
  %v298 = vld [vmem:[%s1 + $0x7e0] sm:$0xff]
  %v299 = vld [vmem:[%s1 + $0x7e8] sm:$0xff]
  %v300 = vld [vmem:[%s1 + $0x7f0] sm:$0xff]
  %v301 = vld [vmem:[%s1 + $0x7f8] sm:$0xff]
  %v302 = vld [vmem:[%s2] sm:$0x3]
  %v304 = vperm.slane %v302, 0
  %v305 = vperm.slane %v302, 1
  %v340 = vunpack.c.l.b16 %v14
  %v341 = vunpack.c.h.b16 %v14
  %v342 = vunpack.c.l.b16 %v15
  %v343 = vunpack.c.h.b16 %v15
  %v344 = vunpack.c.l.b16 %v16
  %v345 = vunpack.c.h.b16 %v16
  %v346 = vunpack.c.l.b16 %v17
  %v347 = vunpack.c.h.b16 %v17
  %v348 = vunpack.c.l.b16 %v18
  %v349 = vunpack.c.h.b16 %v18
  %v350 = vunpack.c.l.b16 %v19
  %v351 = vunpack.c.h.b16 %v19
  %v352 = vunpack.c.l.b16 %v20
  %v353 = vunpack.c.h.b16 %v20
  %v354 = vunpack.c.l.b16 %v21
  %v355 = vunpack.c.h.b16 %v21
  %v356 = vunpack.c.l.b16 %v22
  %v357 = vunpack.c.h.b16 %v22
  %v358 = vunpack.c.l.b16 %v23
  %v359 = vunpack.c.h.b16 %v23
  %v360 = vunpack.c.l.b16 %v24
  %v361 = vunpack.c.h.b16 %v24
  %v362 = vunpack.c.l.b16 %v25
  %v363 = vunpack.c.h.b16 %v25
  %v364 = vunpack.c.l.b16 %v26
  %v365 = vunpack.c.h.b16 %v26
  %v366 = vunpack.c.l.b16 %v27
  %v367 = vunpack.c.h.b16 %v27
  %v368 = vunpack.c.l.b16 %v28
  %v369 = vunpack.c.h.b16 %v28
  %v370 = vunpack.c.l.b16 %v29
  %v371 = vunpack.c.h.b16 %v29
  %v372 = vunpack.c.l.b16 %v30
  %v373 = vunpack.c.h.b16 %v30
  %v374 = vunpack.c.l.b16 %v31
  %v375 = vunpack.c.h.b16 %v31
  %v376 = vunpack.c.l.b16 %v32
  %v377 = vunpack.c.h.b16 %v32
  %v378 = vunpack.c.l.b16 %v33
  %v379 = vunpack.c.h.b16 %v33
  %v380 = vunpack.c.l.b16 %v34
  %v381 = vunpack.c.h.b16 %v34
  %v382 = vunpack.c.l.b16 %v35
  %v383 = vunpack.c.h.b16 %v35
  %v384 = vunpack.c.l.b16 %v36
  %v385 = vunpack.c.h.b16 %v36
  %v386 = vunpack.c.l.b16 %v37
  %v387 = vunpack.c.h.b16 %v37
  %v388 = vunpack.c.l.b16 %v38
  %v389 = vunpack.c.h.b16 %v38
  %v390 = vunpack.c.l.b16 %v39
  %v391 = vunpack.c.h.b16 %v39
  %v392 = vunpack.c.l.b16 %v40
  %v393 = vunpack.c.h.b16 %v40
  %v394 = vunpack.c.l.b16 %v41
  %v395 = vunpack.c.h.b16 %v41
  %v396 = vunpack.c.l.b16 %v42
  %v397 = vunpack.c.h.b16 %v42
  %v398 = vunpack.c.l.b16 %v43
  %v399 = vunpack.c.h.b16 %v43
  %v400 = vunpack.c.l.b16 %v44
  %v401 = vunpack.c.h.b16 %v44
  %v402 = vunpack.c.l.b16 %v45
  %v403 = vunpack.c.h.b16 %v45
  %v404 = vpack.c.b16 %v356, %v340
  %v405 = vpack.c.b16 %v357, %v341
  %v406 = vpack.c.b16 %v358, %v342
  %v407 = vpack.c.b16 %v359, %v343
  %v408 = vpack.c.b16 %v360, %v344
  %v409 = vpack.c.b16 %v361, %v345
  %v410 = vpack.c.b16 %v362, %v346
  %v411 = vpack.c.b16 %v363, %v347
  %v412 = vpack.c.b16 %v364, %v348
  %v413 = vpack.c.b16 %v365, %v349
  %v414 = vpack.c.b16 %v366, %v350
  %v415 = vpack.c.b16 %v367, %v351
  %v416 = vpack.c.b16 %v368, %v352
  %v417 = vpack.c.b16 %v369, %v353
  %v418 = vpack.c.b16 %v370, %v354
  %v419 = vpack.c.b16 %v371, %v355
  %v420 = vpack.c.b16 %v388, %v372
  %v421 = vpack.c.b16 %v389, %v373
  %v422 = vpack.c.b16 %v390, %v374
  %v423 = vpack.c.b16 %v391, %v375
  %v424 = vpack.c.b16 %v392, %v376
  %v425 = vpack.c.b16 %v393, %v377
  %v426 = vpack.c.b16 %v394, %v378
  %v427 = vpack.c.b16 %v395, %v379
  %v428 = vpack.c.b16 %v396, %v380
  %v429 = vpack.c.b16 %v397, %v381
  %v430 = vpack.c.b16 %v398, %v382
  %v431 = vpack.c.b16 %v399, %v383
  %v432 = vpack.c.b16 %v400, %v384
  %v433 = vpack.c.b16 %v401, %v385
  %v434 = vpack.c.b16 %v402, %v386
  %v435 = vpack.c.b16 %v403, %v387
  %v724 = vunpack.c.l.b16 %v46
  %v725 = vunpack.c.h.b16 %v46
  %v726 = vunpack.c.l.b16 %v47
  %v727 = vunpack.c.h.b16 %v47
  %v728 = vunpack.c.l.b16 %v48
  %v729 = vunpack.c.h.b16 %v48
  %v730 = vunpack.c.l.b16 %v49
  %v731 = vunpack.c.h.b16 %v49
  %v732 = vunpack.c.l.b16 %v50
  %v733 = vunpack.c.h.b16 %v50
  %v734 = vunpack.c.l.b16 %v51
  %v735 = vunpack.c.h.b16 %v51
  %v736 = vunpack.c.l.b16 %v52
  %v737 = vunpack.c.h.b16 %v52
  %v738 = vunpack.c.l.b16 %v53
  %v739 = vunpack.c.h.b16 %v53
  %v740 = vunpack.c.l.b16 %v54
  %v741 = vunpack.c.h.b16 %v54
  %v742 = vunpack.c.l.b16 %v55
  %v743 = vunpack.c.h.b16 %v55
  %v744 = vunpack.c.l.b16 %v56
  %v745 = vunpack.c.h.b16 %v56
  %v746 = vunpack.c.l.b16 %v57
  %v747 = vunpack.c.h.b16 %v57
  %v748 = vunpack.c.l.b16 %v58
  %v749 = vunpack.c.h.b16 %v58
  %v750 = vunpack.c.l.b16 %v59
  %v751 = vunpack.c.h.b16 %v59
  %v752 = vunpack.c.l.b16 %v60
  %v753 = vunpack.c.h.b16 %v60
  %v754 = vunpack.c.l.b16 %v61
  %v755 = vunpack.c.h.b16 %v61
  %v756 = vunpack.c.l.b16 %v62
  %v757 = vunpack.c.h.b16 %v62
  %v758 = vunpack.c.l.b16 %v63
  %v759 = vunpack.c.h.b16 %v63
  %v760 = vunpack.c.l.b16 %v64
  %v761 = vunpack.c.h.b16 %v64
  %v762 = vunpack.c.l.b16 %v65
  %v763 = vunpack.c.h.b16 %v65
  %v764 = vunpack.c.l.b16 %v66
  %v765 = vunpack.c.h.b16 %v66
  %v766 = vunpack.c.l.b16 %v67
  %v767 = vunpack.c.h.b16 %v67
  %v768 = vunpack.c.l.b16 %v68
  %v769 = vunpack.c.h.b16 %v68
  %v770 = vunpack.c.l.b16 %v69
  %v771 = vunpack.c.h.b16 %v69
  %v772 = vunpack.c.l.b16 %v70
  %v773 = vunpack.c.h.b16 %v70
  %v774 = vunpack.c.l.b16 %v71
  %v775 = vunpack.c.h.b16 %v71
  %v776 = vunpack.c.l.b16 %v72
  %v777 = vunpack.c.h.b16 %v72
  %v778 = vunpack.c.l.b16 %v73
  %v779 = vunpack.c.h.b16 %v73
  %v780 = vunpack.c.l.b16 %v74
  %v781 = vunpack.c.h.b16 %v74
  %v782 = vunpack.c.l.b16 %v75
  %v783 = vunpack.c.h.b16 %v75
  %v784 = vunpack.c.l.b16 %v76
  %v785 = vunpack.c.h.b16 %v76
  %v786 = vunpack.c.l.b16 %v77
  %v787 = vunpack.c.h.b16 %v77
  %v788 = vunpack.c.l.b16 %v78
  %v789 = vunpack.c.h.b16 %v78
  %v790 = vunpack.c.l.b16 %v79
  %v791 = vunpack.c.h.b16 %v79
  %v792 = vunpack.c.l.b16 %v80
  %v793 = vunpack.c.h.b16 %v80
  %v794 = vunpack.c.l.b16 %v81
  %v795 = vunpack.c.h.b16 %v81
  %v796 = vunpack.c.l.b16 %v82
  %v797 = vunpack.c.h.b16 %v82
  %v798 = vunpack.c.l.b16 %v83
  %v799 = vunpack.c.h.b16 %v83
  %v800 = vunpack.c.l.b16 %v84
  %v801 = vunpack.c.h.b16 %v84
  %v802 = vunpack.c.l.b16 %v85
  %v803 = vunpack.c.h.b16 %v85
  %v804 = vunpack.c.l.b16 %v86
  %v805 = vunpack.c.h.b16 %v86
  %v806 = vunpack.c.l.b16 %v87
  %v807 = vunpack.c.h.b16 %v87
  %v808 = vunpack.c.l.b16 %v88
  %v809 = vunpack.c.h.b16 %v88
  %v810 = vunpack.c.l.b16 %v89
  %v811 = vunpack.c.h.b16 %v89
  %v812 = vunpack.c.l.b16 %v90
  %v813 = vunpack.c.h.b16 %v90
  %v814 = vunpack.c.l.b16 %v91
  %v815 = vunpack.c.h.b16 %v91
  %v816 = vunpack.c.l.b16 %v92
  %v817 = vunpack.c.h.b16 %v92
  %v818 = vunpack.c.l.b16 %v93
  %v819 = vunpack.c.h.b16 %v93
  %v820 = vunpack.c.l.b16 %v94
  %v821 = vunpack.c.h.b16 %v94
  %v822 = vunpack.c.l.b16 %v95
  %v823 = vunpack.c.h.b16 %v95
  %v824 = vunpack.c.l.b16 %v96
  %v825 = vunpack.c.h.b16 %v96
  %v826 = vunpack.c.l.b16 %v97
  %v827 = vunpack.c.h.b16 %v97
  %v828 = vunpack.c.l.b16 %v98
  %v829 = vunpack.c.h.b16 %v98
  %v830 = vunpack.c.l.b16 %v99
  %v831 = vunpack.c.h.b16 %v99
  %v832 = vunpack.c.l.b16 %v100
  %v833 = vunpack.c.h.b16 %v100
  %v834 = vunpack.c.l.b16 %v101
  %v835 = vunpack.c.h.b16 %v101
  %v836 = vunpack.c.l.b16 %v102
  %v837 = vunpack.c.h.b16 %v102
  %v838 = vunpack.c.l.b16 %v103
  %v839 = vunpack.c.h.b16 %v103
  %v840 = vunpack.c.l.b16 %v104
  %v841 = vunpack.c.h.b16 %v104
  %v842 = vunpack.c.l.b16 %v105
  %v843 = vunpack.c.h.b16 %v105
  %v844 = vunpack.c.l.b16 %v106
  %v845 = vunpack.c.h.b16 %v106
  %v846 = vunpack.c.l.b16 %v107
  %v847 = vunpack.c.h.b16 %v107
  %v848 = vunpack.c.l.b16 %v108
  %v849 = vunpack.c.h.b16 %v108
  %v850 = vunpack.c.l.b16 %v109
  %v851 = vunpack.c.h.b16 %v109
  %v852 = vunpack.c.l.b16 %v110
  %v853 = vunpack.c.h.b16 %v110
  %v854 = vunpack.c.l.b16 %v111
  %v855 = vunpack.c.h.b16 %v111
  %v856 = vunpack.c.l.b16 %v112
  %v857 = vunpack.c.h.b16 %v112
  %v858 = vunpack.c.l.b16 %v113
  %v859 = vunpack.c.h.b16 %v113
  %v860 = vunpack.c.l.b16 %v114
  %v861 = vunpack.c.h.b16 %v114
  %v862 = vunpack.c.l.b16 %v115
  %v863 = vunpack.c.h.b16 %v115
  %v864 = vunpack.c.l.b16 %v116
  %v865 = vunpack.c.h.b16 %v116
  %v866 = vunpack.c.l.b16 %v117
  %v867 = vunpack.c.h.b16 %v117
  %v868 = vunpack.c.l.b16 %v118
  %v869 = vunpack.c.h.b16 %v118
  %v870 = vunpack.c.l.b16 %v119
  %v871 = vunpack.c.h.b16 %v119
  %v872 = vunpack.c.l.b16 %v120
  %v873 = vunpack.c.h.b16 %v120
  %v874 = vunpack.c.l.b16 %v121
  %v875 = vunpack.c.h.b16 %v121
  %v876 = vunpack.c.l.b16 %v122
  %v877 = vunpack.c.h.b16 %v122
  %v878 = vunpack.c.l.b16 %v123
  %v879 = vunpack.c.h.b16 %v123
  %v880 = vunpack.c.l.b16 %v124
  %v881 = vunpack.c.h.b16 %v124
  %v882 = vunpack.c.l.b16 %v125
  %v883 = vunpack.c.h.b16 %v125
  %v884 = vunpack.c.l.b16 %v126
  %v885 = vunpack.c.h.b16 %v126
  %v886 = vunpack.c.l.b16 %v127
  %v887 = vunpack.c.h.b16 %v127
  %v888 = vunpack.c.l.b16 %v128
  %v889 = vunpack.c.h.b16 %v128
  %v890 = vunpack.c.l.b16 %v129
  %v891 = vunpack.c.h.b16 %v129
  %v892 = vunpack.c.l.b16 %v130
  %v893 = vunpack.c.h.b16 %v130
  %v894 = vunpack.c.l.b16 %v131
  %v895 = vunpack.c.h.b16 %v131
  %v896 = vunpack.c.l.b16 %v132
  %v897 = vunpack.c.h.b16 %v132
  %v898 = vunpack.c.l.b16 %v133
  %v899 = vunpack.c.h.b16 %v133
  %v900 = vunpack.c.l.b16 %v134
  %v901 = vunpack.c.h.b16 %v134
  %v902 = vunpack.c.l.b16 %v135
  %v903 = vunpack.c.h.b16 %v135
  %v904 = vunpack.c.l.b16 %v136
  %v905 = vunpack.c.h.b16 %v136
  %v906 = vunpack.c.l.b16 %v137
  %v907 = vunpack.c.h.b16 %v137
  %v908 = vunpack.c.l.b16 %v138
  %v909 = vunpack.c.h.b16 %v138
  %v910 = vunpack.c.l.b16 %v139
  %v911 = vunpack.c.h.b16 %v139
  %v912 = vunpack.c.l.b16 %v140
  %v913 = vunpack.c.h.b16 %v140
  %v914 = vunpack.c.l.b16 %v141
  %v915 = vunpack.c.h.b16 %v141
  %v916 = vunpack.c.l.b16 %v142
  %v917 = vunpack.c.h.b16 %v142
  %v918 = vunpack.c.l.b16 %v143
  %v919 = vunpack.c.h.b16 %v143
  %v920 = vunpack.c.l.b16 %v144
  %v921 = vunpack.c.h.b16 %v144
  %v922 = vunpack.c.l.b16 %v145
  %v923 = vunpack.c.h.b16 %v145
  %v924 = vunpack.c.l.b16 %v146
  %v925 = vunpack.c.h.b16 %v146
  %v926 = vunpack.c.l.b16 %v147
  %v927 = vunpack.c.h.b16 %v147
  %v928 = vunpack.c.l.b16 %v148
  %v929 = vunpack.c.h.b16 %v148
  %v930 = vunpack.c.l.b16 %v149
  %v931 = vunpack.c.h.b16 %v149
  %v932 = vunpack.c.l.b16 %v150
  %v933 = vunpack.c.h.b16 %v150
  %v934 = vunpack.c.l.b16 %v151
  %v935 = vunpack.c.h.b16 %v151
  %v936 = vunpack.c.l.b16 %v152
  %v937 = vunpack.c.h.b16 %v152
  %v938 = vunpack.c.l.b16 %v153
  %v939 = vunpack.c.h.b16 %v153
  %v940 = vunpack.c.l.b16 %v154
  %v941 = vunpack.c.h.b16 %v154
  %v942 = vunpack.c.l.b16 %v155
  %v943 = vunpack.c.h.b16 %v155
  %v944 = vunpack.c.l.b16 %v156
  %v945 = vunpack.c.h.b16 %v156
  %v946 = vunpack.c.l.b16 %v157
  %v947 = vunpack.c.h.b16 %v157
  %v948 = vunpack.c.l.b16 %v158
  %v949 = vunpack.c.h.b16 %v158
  %v950 = vunpack.c.l.b16 %v159
  %v951 = vunpack.c.h.b16 %v159
  %v952 = vunpack.c.l.b16 %v160
  %v953 = vunpack.c.h.b16 %v160
  %v954 = vunpack.c.l.b16 %v161
  %v955 = vunpack.c.h.b16 %v161
  %v956 = vunpack.c.l.b16 %v162
  %v957 = vunpack.c.h.b16 %v162
  %v958 = vunpack.c.l.b16 %v163
  %v959 = vunpack.c.h.b16 %v163
  %v960 = vunpack.c.l.b16 %v164
  %v961 = vunpack.c.h.b16 %v164
  %v962 = vunpack.c.l.b16 %v165
  %v963 = vunpack.c.h.b16 %v165
  %v964 = vunpack.c.l.b16 %v166
  %v965 = vunpack.c.h.b16 %v166
  %v966 = vunpack.c.l.b16 %v167
  %v967 = vunpack.c.h.b16 %v167
  %v968 = vunpack.c.l.b16 %v168
  %v969 = vunpack.c.h.b16 %v168
  %v970 = vunpack.c.l.b16 %v169
  %v971 = vunpack.c.h.b16 %v169
  %v972 = vunpack.c.l.b16 %v170
  %v973 = vunpack.c.h.b16 %v170
  %v974 = vunpack.c.l.b16 %v171
  %v975 = vunpack.c.h.b16 %v171
  %v976 = vunpack.c.l.b16 %v172
  %v977 = vunpack.c.h.b16 %v172
  %v978 = vunpack.c.l.b16 %v173
  %v979 = vunpack.c.h.b16 %v173
  %v980 = vunpack.c.l.b16 %v174
  %v981 = vunpack.c.h.b16 %v174
  %v982 = vunpack.c.l.b16 %v175
  %v983 = vunpack.c.h.b16 %v175
  %v984 = vunpack.c.l.b16 %v176
  %v985 = vunpack.c.h.b16 %v176
  %v986 = vunpack.c.l.b16 %v177
  %v987 = vunpack.c.h.b16 %v177
  %v988 = vunpack.c.l.b16 %v178
  %v989 = vunpack.c.h.b16 %v178
  %v990 = vunpack.c.l.b16 %v179
  %v991 = vunpack.c.h.b16 %v179
  %v992 = vunpack.c.l.b16 %v180
  %v993 = vunpack.c.h.b16 %v180
  %v994 = vunpack.c.l.b16 %v181
  %v995 = vunpack.c.h.b16 %v181
  %v996 = vunpack.c.l.b16 %v182
  %v997 = vunpack.c.h.b16 %v182
  %v998 = vunpack.c.l.b16 %v183
  %v999 = vunpack.c.h.b16 %v183
  %v1000 = vunpack.c.l.b16 %v184
  %v1001 = vunpack.c.h.b16 %v184
  %v1002 = vunpack.c.l.b16 %v185
  %v1003 = vunpack.c.h.b16 %v185
  %v1004 = vunpack.c.l.b16 %v186
  %v1005 = vunpack.c.h.b16 %v186
  %v1006 = vunpack.c.l.b16 %v187
  %v1007 = vunpack.c.h.b16 %v187
  %v1008 = vunpack.c.l.b16 %v188
  %v1009 = vunpack.c.h.b16 %v188
  %v1010 = vunpack.c.l.b16 %v189
  %v1011 = vunpack.c.h.b16 %v189
  %v1012 = vunpack.c.l.b16 %v190
  %v1013 = vunpack.c.h.b16 %v190
  %v1014 = vunpack.c.l.b16 %v191
  %v1015 = vunpack.c.h.b16 %v191
  %v1016 = vunpack.c.l.b16 %v192
  %v1017 = vunpack.c.h.b16 %v192
  %v1018 = vunpack.c.l.b16 %v193
  %v1019 = vunpack.c.h.b16 %v193
  %v1020 = vunpack.c.l.b16 %v194
  %v1021 = vunpack.c.h.b16 %v194
  %v1022 = vunpack.c.l.b16 %v195
  %v1023 = vunpack.c.h.b16 %v195
  %v1024 = vunpack.c.l.b16 %v196
  %v1025 = vunpack.c.h.b16 %v196
  %v1026 = vunpack.c.l.b16 %v197
  %v1027 = vunpack.c.h.b16 %v197
  %v1028 = vunpack.c.l.b16 %v198
  %v1029 = vunpack.c.h.b16 %v198
  %v1030 = vunpack.c.l.b16 %v199
  %v1031 = vunpack.c.h.b16 %v199
  %v1032 = vunpack.c.l.b16 %v200
  %v1033 = vunpack.c.h.b16 %v200
  %v1034 = vunpack.c.l.b16 %v201
  %v1035 = vunpack.c.h.b16 %v201
  %v1036 = vunpack.c.l.b16 %v202
  %v1037 = vunpack.c.h.b16 %v202
  %v1038 = vunpack.c.l.b16 %v203
  %v1039 = vunpack.c.h.b16 %v203
  %v1040 = vunpack.c.l.b16 %v204
  %v1041 = vunpack.c.h.b16 %v204
  %v1042 = vunpack.c.l.b16 %v205
  %v1043 = vunpack.c.h.b16 %v205
  %v1044 = vunpack.c.l.b16 %v206
  %v1045 = vunpack.c.h.b16 %v206
  %v1046 = vunpack.c.l.b16 %v207
  %v1047 = vunpack.c.h.b16 %v207
  %v1048 = vunpack.c.l.b16 %v208
  %v1049 = vunpack.c.h.b16 %v208
  %v1050 = vunpack.c.l.b16 %v209
  %v1051 = vunpack.c.h.b16 %v209
  %v1052 = vunpack.c.l.b16 %v210
  %v1053 = vunpack.c.h.b16 %v210
  %v1054 = vunpack.c.l.b16 %v211
  %v1055 = vunpack.c.h.b16 %v211
  %v1056 = vunpack.c.l.b16 %v212
  %v1057 = vunpack.c.h.b16 %v212
  %v1058 = vunpack.c.l.b16 %v213
  %v1059 = vunpack.c.h.b16 %v213
  %v1060 = vunpack.c.l.b16 %v214
  %v1061 = vunpack.c.h.b16 %v214
  %v1062 = vunpack.c.l.b16 %v215
  %v1063 = vunpack.c.h.b16 %v215
  %v1064 = vunpack.c.l.b16 %v216
  %v1065 = vunpack.c.h.b16 %v216
  %v1066 = vunpack.c.l.b16 %v217
  %v1067 = vunpack.c.h.b16 %v217
  %v1068 = vunpack.c.l.b16 %v218
  %v1069 = vunpack.c.h.b16 %v218
  %v1070 = vunpack.c.l.b16 %v219
  %v1071 = vunpack.c.h.b16 %v219
  %v1072 = vunpack.c.l.b16 %v220
  %v1073 = vunpack.c.h.b16 %v220
  %v1074 = vunpack.c.l.b16 %v221
  %v1075 = vunpack.c.h.b16 %v221
  %v1076 = vunpack.c.l.b16 %v222
  %v1077 = vunpack.c.h.b16 %v222
  %v1078 = vunpack.c.l.b16 %v223
  %v1079 = vunpack.c.h.b16 %v223
  %v1080 = vunpack.c.l.b16 %v224
  %v1081 = vunpack.c.h.b16 %v224
  %v1082 = vunpack.c.l.b16 %v225
  %v1083 = vunpack.c.h.b16 %v225
  %v1084 = vunpack.c.l.b16 %v226
  %v1085 = vunpack.c.h.b16 %v226
  %v1086 = vunpack.c.l.b16 %v227
  %v1087 = vunpack.c.h.b16 %v227
  %v1088 = vunpack.c.l.b16 %v228
  %v1089 = vunpack.c.h.b16 %v228
  %v1090 = vunpack.c.l.b16 %v229
  %v1091 = vunpack.c.h.b16 %v229
  %v1092 = vunpack.c.l.b16 %v230
  %v1093 = vunpack.c.h.b16 %v230
  %v1094 = vunpack.c.l.b16 %v231
  %v1095 = vunpack.c.h.b16 %v231
  %v1096 = vunpack.c.l.b16 %v232
  %v1097 = vunpack.c.h.b16 %v232
  %v1098 = vunpack.c.l.b16 %v233
  %v1099 = vunpack.c.h.b16 %v233
  %v1100 = vunpack.c.l.b16 %v234
  %v1101 = vunpack.c.h.b16 %v234
  %v1102 = vunpack.c.l.b16 %v235
  %v1103 = vunpack.c.h.b16 %v235
  %v1104 = vunpack.c.l.b16 %v236
  %v1105 = vunpack.c.h.b16 %v236
  %v1106 = vunpack.c.l.b16 %v237
  %v1107 = vunpack.c.h.b16 %v237
  %v1108 = vunpack.c.l.b16 %v238
  %v1109 = vunpack.c.h.b16 %v238
  %v1110 = vunpack.c.l.b16 %v239
  %v1111 = vunpack.c.h.b16 %v239
  %v1112 = vunpack.c.l.b16 %v240
  %v1113 = vunpack.c.h.b16 %v240
  %v1114 = vunpack.c.l.b16 %v241
  %v1115 = vunpack.c.h.b16 %v241
  %v1116 = vunpack.c.l.b16 %v242
  %v1117 = vunpack.c.h.b16 %v242
  %v1118 = vunpack.c.l.b16 %v243
  %v1119 = vunpack.c.h.b16 %v243
  %v1120 = vunpack.c.l.b16 %v244
  %v1121 = vunpack.c.h.b16 %v244
  %v1122 = vunpack.c.l.b16 %v245
  %v1123 = vunpack.c.h.b16 %v245
  %v1124 = vunpack.c.l.b16 %v246
  %v1125 = vunpack.c.h.b16 %v246
  %v1126 = vunpack.c.l.b16 %v247
  %v1127 = vunpack.c.h.b16 %v247
  %v1128 = vunpack.c.l.b16 %v248
  %v1129 = vunpack.c.h.b16 %v248
  %v1130 = vunpack.c.l.b16 %v249
  %v1131 = vunpack.c.h.b16 %v249
  %v1132 = vunpack.c.l.b16 %v250
  %v1133 = vunpack.c.h.b16 %v250
  %v1134 = vunpack.c.l.b16 %v251
  %v1135 = vunpack.c.h.b16 %v251
  %v1136 = vunpack.c.l.b16 %v252
  %v1137 = vunpack.c.h.b16 %v252
  %v1138 = vunpack.c.l.b16 %v253
  %v1139 = vunpack.c.h.b16 %v253
  %v1140 = vunpack.c.l.b16 %v254
  %v1141 = vunpack.c.h.b16 %v254
  %v1142 = vunpack.c.l.b16 %v255
  %v1143 = vunpack.c.h.b16 %v255
  %v1144 = vunpack.c.l.b16 %v256
  %v1145 = vunpack.c.h.b16 %v256
  %v1146 = vunpack.c.l.b16 %v257
  %v1147 = vunpack.c.h.b16 %v257
  %v1148 = vunpack.c.l.b16 %v258
  %v1149 = vunpack.c.h.b16 %v258
  %v1150 = vunpack.c.l.b16 %v259
  %v1151 = vunpack.c.h.b16 %v259
  %v1152 = vunpack.c.l.b16 %v260
  %v1153 = vunpack.c.h.b16 %v260
  %v1154 = vunpack.c.l.b16 %v261
  %v1155 = vunpack.c.h.b16 %v261
  %v1156 = vunpack.c.l.b16 %v262
  %v1157 = vunpack.c.h.b16 %v262
  %v1158 = vunpack.c.l.b16 %v263
  %v1159 = vunpack.c.h.b16 %v263
  %v1160 = vunpack.c.l.b16 %v264
  %v1161 = vunpack.c.h.b16 %v264
  %v1162 = vunpack.c.l.b16 %v265
  %v1163 = vunpack.c.h.b16 %v265
  %v1164 = vunpack.c.l.b16 %v266
  %v1165 = vunpack.c.h.b16 %v266
  %v1166 = vunpack.c.l.b16 %v267
  %v1167 = vunpack.c.h.b16 %v267
  %v1168 = vunpack.c.l.b16 %v268
  %v1169 = vunpack.c.h.b16 %v268
  %v1170 = vunpack.c.l.b16 %v269
  %v1171 = vunpack.c.h.b16 %v269
  %v1172 = vunpack.c.l.b16 %v270
  %v1173 = vunpack.c.h.b16 %v270
  %v1174 = vunpack.c.l.b16 %v271
  %v1175 = vunpack.c.h.b16 %v271
  %v1176 = vunpack.c.l.b16 %v272
  %v1177 = vunpack.c.h.b16 %v272
  %v1178 = vunpack.c.l.b16 %v273
  %v1179 = vunpack.c.h.b16 %v273
  %v1180 = vunpack.c.l.b16 %v274
  %v1181 = vunpack.c.h.b16 %v274
  %v1182 = vunpack.c.l.b16 %v275
  %v1183 = vunpack.c.h.b16 %v275
  %v1184 = vunpack.c.l.b16 %v276
  %v1185 = vunpack.c.h.b16 %v276
  %v1186 = vunpack.c.l.b16 %v277
  %v1187 = vunpack.c.h.b16 %v277
  %v1188 = vunpack.c.l.b16 %v278
  %v1189 = vunpack.c.h.b16 %v278
  %v1190 = vunpack.c.l.b16 %v279
  %v1191 = vunpack.c.h.b16 %v279
  %v1192 = vunpack.c.l.b16 %v280
  %v1193 = vunpack.c.h.b16 %v280
  %v1194 = vunpack.c.l.b16 %v281
  %v1195 = vunpack.c.h.b16 %v281
  %v1196 = vunpack.c.l.b16 %v282
  %v1197 = vunpack.c.h.b16 %v282
  %v1198 = vunpack.c.l.b16 %v283
  %v1199 = vunpack.c.h.b16 %v283
  %v1200 = vunpack.c.l.b16 %v284
  %v1201 = vunpack.c.h.b16 %v284
  %v1202 = vunpack.c.l.b16 %v285
  %v1203 = vunpack.c.h.b16 %v285
  %v1204 = vunpack.c.l.b16 %v286
  %v1205 = vunpack.c.h.b16 %v286
  %v1206 = vunpack.c.l.b16 %v287
  %v1207 = vunpack.c.h.b16 %v287
  %v1208 = vunpack.c.l.b16 %v288
  %v1209 = vunpack.c.h.b16 %v288
  %v1210 = vunpack.c.l.b16 %v289
  %v1211 = vunpack.c.h.b16 %v289
  %v1212 = vunpack.c.l.b16 %v290
  %v1213 = vunpack.c.h.b16 %v290
  %v1214 = vunpack.c.l.b16 %v291
  %v1215 = vunpack.c.h.b16 %v291
  %v1216 = vunpack.c.l.b16 %v292
  %v1217 = vunpack.c.h.b16 %v292
  %v1218 = vunpack.c.l.b16 %v293
  %v1219 = vunpack.c.h.b16 %v293
  %v1220 = vunpack.c.l.b16 %v294
  %v1221 = vunpack.c.h.b16 %v294
  %v1222 = vunpack.c.l.b16 %v295
  %v1223 = vunpack.c.h.b16 %v295
  %v1224 = vunpack.c.l.b16 %v296
  %v1225 = vunpack.c.h.b16 %v296
  %v1226 = vunpack.c.l.b16 %v297
  %v1227 = vunpack.c.h.b16 %v297
  %v1228 = vunpack.c.l.b16 %v298
  %v1229 = vunpack.c.h.b16 %v298
  %v1230 = vunpack.c.l.b16 %v299
  %v1231 = vunpack.c.h.b16 %v299
  %v1232 = vunpack.c.l.b16 %v300
  %v1233 = vunpack.c.h.b16 %v300
  %v1234 = vunpack.c.l.b16 %v301
  %v1235 = vunpack.c.h.b16 %v301
  %v1236 = vpack.c.b16 %v726, %v724
  %v1237 = vpack.c.b16 %v727, %v725
  %v1238 = vpack.c.b16 %v730, %v728
  %v1239 = vpack.c.b16 %v731, %v729
  %v1240 = vpack.c.b16 %v734, %v732
  %v1241 = vpack.c.b16 %v735, %v733
  %v1242 = vpack.c.b16 %v738, %v736
  %v1243 = vpack.c.b16 %v739, %v737
  %v1244 = vpack.c.b16 %v742, %v740
  %v1245 = vpack.c.b16 %v743, %v741
  %v1246 = vpack.c.b16 %v746, %v744
  %v1247 = vpack.c.b16 %v747, %v745
  %v1248 = vpack.c.b16 %v750, %v748
  %v1249 = vpack.c.b16 %v751, %v749
  %v1250 = vpack.c.b16 %v754, %v752
  %v1251 = vpack.c.b16 %v755, %v753
  %v1252 = vpack.c.b16 %v758, %v756
  %v1253 = vpack.c.b16 %v759, %v757
  %v1254 = vpack.c.b16 %v762, %v760
  %v1255 = vpack.c.b16 %v763, %v761
  %v1256 = vpack.c.b16 %v766, %v764
  %v1257 = vpack.c.b16 %v767, %v765
  %v1258 = vpack.c.b16 %v770, %v768
  %v1259 = vpack.c.b16 %v771, %v769
  %v1260 = vpack.c.b16 %v774, %v772
  %v1261 = vpack.c.b16 %v775, %v773
  %v1262 = vpack.c.b16 %v778, %v776
  %v1263 = vpack.c.b16 %v779, %v777
  %v1264 = vpack.c.b16 %v782, %v780
  %v1265 = vpack.c.b16 %v783, %v781
  %v1266 = vpack.c.b16 %v786, %v784
  %v1267 = vpack.c.b16 %v787, %v785
  %v1268 = vpack.c.b16 %v790, %v788
  %v1269 = vpack.c.b16 %v791, %v789
  %v1270 = vpack.c.b16 %v794, %v792
  %v1271 = vpack.c.b16 %v795, %v793
  %v1272 = vpack.c.b16 %v798, %v796
  %v1273 = vpack.c.b16 %v799, %v797
  %v1274 = vpack.c.b16 %v802, %v800
  %v1275 = vpack.c.b16 %v803, %v801
  %v1276 = vpack.c.b16 %v806, %v804
  %v1277 = vpack.c.b16 %v807, %v805
  %v1278 = vpack.c.b16 %v810, %v808
  %v1279 = vpack.c.b16 %v811, %v809
  %v1280 = vpack.c.b16 %v814, %v812
  %v1281 = vpack.c.b16 %v815, %v813
  %v1282 = vpack.c.b16 %v818, %v816
  %v1283 = vpack.c.b16 %v819, %v817
  %v1284 = vpack.c.b16 %v822, %v820
  %v1285 = vpack.c.b16 %v823, %v821
  %v1286 = vpack.c.b16 %v826, %v824
  %v1287 = vpack.c.b16 %v827, %v825
  %v1288 = vpack.c.b16 %v830, %v828
  %v1289 = vpack.c.b16 %v831, %v829
  %v1290 = vpack.c.b16 %v834, %v832
  %v1291 = vpack.c.b16 %v835, %v833
  %v1292 = vpack.c.b16 %v838, %v836
  %v1293 = vpack.c.b16 %v839, %v837
  %v1294 = vpack.c.b16 %v842, %v840
  %v1295 = vpack.c.b16 %v843, %v841
  %v1296 = vpack.c.b16 %v846, %v844
  %v1297 = vpack.c.b16 %v847, %v845
  %v1298 = vpack.c.b16 %v850, %v848
  %v1299 = vpack.c.b16 %v851, %v849
  %v1300 = vpack.c.b16 %v854, %v852
  %v1301 = vpack.c.b16 %v855, %v853
  %v1302 = vpack.c.b16 %v858, %v856
  %v1303 = vpack.c.b16 %v859, %v857
  %v1304 = vpack.c.b16 %v862, %v860
  %v1305 = vpack.c.b16 %v863, %v861
  %v1306 = vpack.c.b16 %v866, %v864
  %v1307 = vpack.c.b16 %v867, %v865
  %v1308 = vpack.c.b16 %v870, %v868
  %v1309 = vpack.c.b16 %v871, %v869
  %v1310 = vpack.c.b16 %v874, %v872
  %v1311 = vpack.c.b16 %v875, %v873
  %v1312 = vpack.c.b16 %v878, %v876
  %v1313 = vpack.c.b16 %v879, %v877
  %v1314 = vpack.c.b16 %v882, %v880
  %v1315 = vpack.c.b16 %v883, %v881
  %v1316 = vpack.c.b16 %v886, %v884
  %v1317 = vpack.c.b16 %v887, %v885
  %v1318 = vpack.c.b16 %v890, %v888
  %v1319 = vpack.c.b16 %v891, %v889
  %v1320 = vpack.c.b16 %v894, %v892
  %v1321 = vpack.c.b16 %v895, %v893
  %v1322 = vpack.c.b16 %v898, %v896
  %v1323 = vpack.c.b16 %v899, %v897
  %v1324 = vpack.c.b16 %v902, %v900
  %v1325 = vpack.c.b16 %v903, %v901
  %v1326 = vpack.c.b16 %v906, %v904
  %v1327 = vpack.c.b16 %v907, %v905
  %v1328 = vpack.c.b16 %v910, %v908
  %v1329 = vpack.c.b16 %v911, %v909
  %v1330 = vpack.c.b16 %v914, %v912
  %v1331 = vpack.c.b16 %v915, %v913
  %v1332 = vpack.c.b16 %v918, %v916
  %v1333 = vpack.c.b16 %v919, %v917
  %v1334 = vpack.c.b16 %v922, %v920
  %v1335 = vpack.c.b16 %v923, %v921
  %v1336 = vpack.c.b16 %v926, %v924
  %v1337 = vpack.c.b16 %v927, %v925
  %v1338 = vpack.c.b16 %v930, %v928
  %v1339 = vpack.c.b16 %v931, %v929
  %v1340 = vpack.c.b16 %v934, %v932
  %v1341 = vpack.c.b16 %v935, %v933
  %v1342 = vpack.c.b16 %v938, %v936
  %v1343 = vpack.c.b16 %v939, %v937
  %v1344 = vpack.c.b16 %v942, %v940
  %v1345 = vpack.c.b16 %v943, %v941
  %v1346 = vpack.c.b16 %v946, %v944
  %v1347 = vpack.c.b16 %v947, %v945
  %v1348 = vpack.c.b16 %v950, %v948
  %v1349 = vpack.c.b16 %v951, %v949
  %v1350 = vpack.c.b16 %v954, %v952
  %v1351 = vpack.c.b16 %v955, %v953
  %v1352 = vpack.c.b16 %v958, %v956
  %v1353 = vpack.c.b16 %v959, %v957
  %v1354 = vpack.c.b16 %v962, %v960
  %v1355 = vpack.c.b16 %v963, %v961
  %v1356 = vpack.c.b16 %v966, %v964
  %v1357 = vpack.c.b16 %v967, %v965
  %v1358 = vpack.c.b16 %v970, %v968
  %v1359 = vpack.c.b16 %v971, %v969
  %v1360 = vpack.c.b16 %v974, %v972
  %v1361 = vpack.c.b16 %v975, %v973
  %v1362 = vpack.c.b16 %v978, %v976
  %v1363 = vpack.c.b16 %v979, %v977
  %v1364 = vpack.c.b16 %v982, %v980
  %v1365 = vpack.c.b16 %v983, %v981
  %v1366 = vpack.c.b16 %v986, %v984
  %v1367 = vpack.c.b16 %v987, %v985
  %v1368 = vpack.c.b16 %v990, %v988
  %v1369 = vpack.c.b16 %v991, %v989
  %v1370 = vpack.c.b16 %v994, %v992
  %v1371 = vpack.c.b16 %v995, %v993
  %v1372 = vpack.c.b16 %v998, %v996
  %v1373 = vpack.c.b16 %v999, %v997
  %v1374 = vpack.c.b16 %v1002, %v1000
  %v1375 = vpack.c.b16 %v1003, %v1001
  %v1376 = vpack.c.b16 %v1006, %v1004
  %v1377 = vpack.c.b16 %v1007, %v1005
  %v1378 = vpack.c.b16 %v1010, %v1008
  %v1379 = vpack.c.b16 %v1011, %v1009
  %v1380 = vpack.c.b16 %v1014, %v1012
  %v1381 = vpack.c.b16 %v1015, %v1013
  %v1382 = vpack.c.b16 %v1018, %v1016
  %v1383 = vpack.c.b16 %v1019, %v1017
  %v1384 = vpack.c.b16 %v1022, %v1020
  %v1385 = vpack.c.b16 %v1023, %v1021
  %v1386 = vpack.c.b16 %v1026, %v1024
  %v1387 = vpack.c.b16 %v1027, %v1025
  %v1388 = vpack.c.b16 %v1030, %v1028
  %v1389 = vpack.c.b16 %v1031, %v1029
  %v1390 = vpack.c.b16 %v1034, %v1032
  %v1391 = vpack.c.b16 %v1035, %v1033
  %v1392 = vpack.c.b16 %v1038, %v1036
  %v1393 = vpack.c.b16 %v1039, %v1037
  %v1394 = vpack.c.b16 %v1042, %v1040
  %v1395 = vpack.c.b16 %v1043, %v1041
  %v1396 = vpack.c.b16 %v1046, %v1044
  %v1397 = vpack.c.b16 %v1047, %v1045
  %v1398 = vpack.c.b16 %v1050, %v1048
  %v1399 = vpack.c.b16 %v1051, %v1049
  %v1400 = vpack.c.b16 %v1054, %v1052
  %v1401 = vpack.c.b16 %v1055, %v1053
  %v1402 = vpack.c.b16 %v1058, %v1056
  %v1403 = vpack.c.b16 %v1059, %v1057
  %v1404 = vpack.c.b16 %v1062, %v1060
  %v1405 = vpack.c.b16 %v1063, %v1061
  %v1406 = vpack.c.b16 %v1066, %v1064
  %v1407 = vpack.c.b16 %v1067, %v1065
  %v1408 = vpack.c.b16 %v1070, %v1068
  %v1409 = vpack.c.b16 %v1071, %v1069
  %v1410 = vpack.c.b16 %v1074, %v1072
  %v1411 = vpack.c.b16 %v1075, %v1073
  %v1412 = vpack.c.b16 %v1078, %v1076
  %v1413 = vpack.c.b16 %v1079, %v1077
  %v1414 = vpack.c.b16 %v1082, %v1080
  %v1415 = vpack.c.b16 %v1083, %v1081
  %v1416 = vpack.c.b16 %v1086, %v1084
  %v1417 = vpack.c.b16 %v1087, %v1085
  %v1418 = vpack.c.b16 %v1090, %v1088
  %v1419 = vpack.c.b16 %v1091, %v1089
  %v1420 = vpack.c.b16 %v1094, %v1092
  %v1421 = vpack.c.b16 %v1095, %v1093
  %v1422 = vpack.c.b16 %v1098, %v1096
  %v1423 = vpack.c.b16 %v1099, %v1097
  %v1424 = vpack.c.b16 %v1102, %v1100
  %v1425 = vpack.c.b16 %v1103, %v1101
  %v1426 = vpack.c.b16 %v1106, %v1104
  %v1427 = vpack.c.b16 %v1107, %v1105
  %v1428 = vpack.c.b16 %v1110, %v1108
  %v1429 = vpack.c.b16 %v1111, %v1109
  %v1430 = vpack.c.b16 %v1114, %v1112
  %v1431 = vpack.c.b16 %v1115, %v1113
  %v1432 = vpack.c.b16 %v1118, %v1116
  %v1433 = vpack.c.b16 %v1119, %v1117
  %v1434 = vpack.c.b16 %v1122, %v1120
  %v1435 = vpack.c.b16 %v1123, %v1121
  %v1436 = vpack.c.b16 %v1126, %v1124
  %v1437 = vpack.c.b16 %v1127, %v1125
  %v1438 = vpack.c.b16 %v1130, %v1128
  %v1439 = vpack.c.b16 %v1131, %v1129
  %v1440 = vpack.c.b16 %v1134, %v1132
  %v1441 = vpack.c.b16 %v1135, %v1133
  %v1442 = vpack.c.b16 %v1138, %v1136
  %v1443 = vpack.c.b16 %v1139, %v1137
  %v1444 = vpack.c.b16 %v1142, %v1140
  %v1445 = vpack.c.b16 %v1143, %v1141
  %v1446 = vpack.c.b16 %v1146, %v1144
  %v1447 = vpack.c.b16 %v1147, %v1145
  %v1448 = vpack.c.b16 %v1150, %v1148
  %v1449 = vpack.c.b16 %v1151, %v1149
  %v1450 = vpack.c.b16 %v1154, %v1152
  %v1451 = vpack.c.b16 %v1155, %v1153
  %v1452 = vpack.c.b16 %v1158, %v1156
  %v1453 = vpack.c.b16 %v1159, %v1157
  %v1454 = vpack.c.b16 %v1162, %v1160
  %v1455 = vpack.c.b16 %v1163, %v1161
  %v1456 = vpack.c.b16 %v1166, %v1164
  %v1457 = vpack.c.b16 %v1167, %v1165
  %v1458 = vpack.c.b16 %v1170, %v1168
  %v1459 = vpack.c.b16 %v1171, %v1169
  %v1460 = vpack.c.b16 %v1174, %v1172
  %v1461 = vpack.c.b16 %v1175, %v1173
  %v1462 = vpack.c.b16 %v1178, %v1176
  %v1463 = vpack.c.b16 %v1179, %v1177
  %v1464 = vpack.c.b16 %v1182, %v1180
  %v1465 = vpack.c.b16 %v1183, %v1181
  %v1466 = vpack.c.b16 %v1186, %v1184
  %v1467 = vpack.c.b16 %v1187, %v1185
  %v1468 = vpack.c.b16 %v1190, %v1188
  %v1469 = vpack.c.b16 %v1191, %v1189
  %v1470 = vpack.c.b16 %v1194, %v1192
  %v1471 = vpack.c.b16 %v1195, %v1193
  %v1472 = vpack.c.b16 %v1198, %v1196
  %v1473 = vpack.c.b16 %v1199, %v1197
  %v1474 = vpack.c.b16 %v1202, %v1200
  %v1475 = vpack.c.b16 %v1203, %v1201
  %v1476 = vpack.c.b16 %v1206, %v1204
  %v1477 = vpack.c.b16 %v1207, %v1205
  %v1478 = vpack.c.b16 %v1210, %v1208
  %v1479 = vpack.c.b16 %v1211, %v1209
  %v1480 = vpack.c.b16 %v1214, %v1212
  %v1481 = vpack.c.b16 %v1215, %v1213
  %v1482 = vpack.c.b16 %v1218, %v1216
  %v1483 = vpack.c.b16 %v1219, %v1217
  %v1484 = vpack.c.b16 %v1222, %v1220
  %v1485 = vpack.c.b16 %v1223, %v1221
  %v1486 = vpack.c.b16 %v1226, %v1224
  %v1487 = vpack.c.b16 %v1227, %v1225
  %v1488 = vpack.c.b16 %v1230, %v1228
  %v1489 = vpack.c.b16 %v1231, %v1229
  %v1490 = vpack.c.b16 %v1234, %v1232
  %v1491 = vpack.c.b16 %v1235, %v1233
  %1748 = vmatpush.bf16.msra.mxu0 %v1250
  %1749 = vmatpush.bf16.msra.mxu0 %v1248
  %1750 = vmatpush.bf16.msra.mxu0 %v1246
  %1751 = vmatpush.bf16.msra.mxu0 %v1244
  %1752 = vmatpush.bf16.msra.mxu0 %v1242
  %1753 = vmatpush.bf16.msra.mxu0 %v1240
  %1754 = vmatpush.bf16.msra.mxu0 %v1238
  %1755 = vmatpush.bf16.msra.mxu0 %v1236
  %1756 = vmatmul.bf16.gmra.mxu0 %v404
  %v1757 = vpop.f32.mrf.mxu0
  %v1758 = vadd.f32 %v304, %v1757
  %v1759 = vpop.f32.mrf.mxu0
  %v1760 = vadd.f32 %v304, %v1759
  %1761 = vmatmul.bf16.gmra.mxu0 %v420
  %v1762 = vpop.f32.mrf.mxu0
  %v1763 = vadd.f32 %v304, %v1762
  %v1764 = vpop.f32.mrf.mxu0
  %v1765 = vadd.f32 %v304, %v1764
  %1766 = vdwg.mxu0
  %1767 = vmatpush.bf16.msra.mxu0 %v1266
  %1768 = vmatpush.bf16.msra.mxu0 %v1264
  %1769 = vmatpush.bf16.msra.mxu0 %v1262
  %1770 = vmatpush.bf16.msra.mxu0 %v1260
  %1771 = vmatpush.bf16.msra.mxu0 %v1258
  %1772 = vmatpush.bf16.msra.mxu0 %v1256
  %1773 = vmatpush.bf16.msra.mxu0 %v1254
  %1774 = vmatpush.bf16.msra.mxu0 %v1252
  %1775 = vmatmul.bf16.gmra.mxu0 %v405
  %v1776 = vpop.f32.mrf.mxu0
  %v1777 = vadd.f32 %v1758, %v1776
  %v1778 = vpop.f32.mrf.mxu0
  %v1779 = vadd.f32 %v1760, %v1778
  %1780 = vmatmul.bf16.gmra.mxu0 %v421
  %v1781 = vpop.f32.mrf.mxu0
  %v1782 = vadd.f32 %v1763, %v1781
  %v1783 = vpop.f32.mrf.mxu0
  %v1784 = vadd.f32 %v1765, %v1783
  %1785 = vdwg.mxu0
  %1786 = vmatpush.bf16.msra.mxu0 %v1282
  %1787 = vmatpush.bf16.msra.mxu0 %v1280
  %1788 = vmatpush.bf16.msra.mxu0 %v1278
  %1789 = vmatpush.bf16.msra.mxu0 %v1276
  %1790 = vmatpush.bf16.msra.mxu0 %v1274
  %1791 = vmatpush.bf16.msra.mxu0 %v1272
  %1792 = vmatpush.bf16.msra.mxu0 %v1270
  %1793 = vmatpush.bf16.msra.mxu0 %v1268
  %1794 = vmatmul.bf16.gmra.mxu0 %v406
  %v1795 = vpop.f32.mrf.mxu0
  %v1796 = vadd.f32 %v1777, %v1795
  %v1797 = vpop.f32.mrf.mxu0
  %v1798 = vadd.f32 %v1779, %v1797
  %1799 = vmatmul.bf16.gmra.mxu0 %v422
  %v1800 = vpop.f32.mrf.mxu0
  %v1801 = vadd.f32 %v1782, %v1800
  %v1802 = vpop.f32.mrf.mxu0
  %v1803 = vadd.f32 %v1784, %v1802
  %1804 = vdwg.mxu0
  %1805 = vmatpush.bf16.msra.mxu0 %v1298
  %1806 = vmatpush.bf16.msra.mxu0 %v1296
  %1807 = vmatpush.bf16.msra.mxu0 %v1294
  %1808 = vmatpush.bf16.msra.mxu0 %v1292
  %1809 = vmatpush.bf16.msra.mxu0 %v1290
  %1810 = vmatpush.bf16.msra.mxu0 %v1288
  %1811 = vmatpush.bf16.msra.mxu0 %v1286
  %1812 = vmatpush.bf16.msra.mxu0 %v1284
  %1813 = vmatmul.bf16.gmra.mxu0 %v407
  %v1814 = vpop.f32.mrf.mxu0
  %v1815 = vadd.f32 %v1796, %v1814
  %v1816 = vpop.f32.mrf.mxu0
  %v1817 = vadd.f32 %v1798, %v1816
  %1818 = vmatmul.bf16.gmra.mxu0 %v423
  %v1819 = vpop.f32.mrf.mxu0
  %v1820 = vadd.f32 %v1801, %v1819
  %v1821 = vpop.f32.mrf.mxu0
  %v1822 = vadd.f32 %v1803, %v1821
  %1823 = vdwg.mxu0
  %1824 = vmatpush.bf16.msra.mxu0 %v1314
  %1825 = vmatpush.bf16.msra.mxu0 %v1312
  %1826 = vmatpush.bf16.msra.mxu0 %v1310
  %1827 = vmatpush.bf16.msra.mxu0 %v1308
  %1828 = vmatpush.bf16.msra.mxu0 %v1306
  %1829 = vmatpush.bf16.msra.mxu0 %v1304
  %1830 = vmatpush.bf16.msra.mxu0 %v1302
  %1831 = vmatpush.bf16.msra.mxu0 %v1300
  %1832 = vmatmul.bf16.gmra.mxu0 %v408
  %v1833 = vpop.f32.mrf.mxu0
  %v1834 = vadd.f32 %v1815, %v1833
  %v1835 = vpop.f32.mrf.mxu0
  %v1836 = vadd.f32 %v1817, %v1835
  %1837 = vmatmul.bf16.gmra.mxu0 %v424
  %v1838 = vpop.f32.mrf.mxu0
  %v1839 = vadd.f32 %v1820, %v1838
  %v1840 = vpop.f32.mrf.mxu0
  %v1841 = vadd.f32 %v1822, %v1840
  %1842 = vdwg.mxu0
  %1843 = vmatpush.bf16.msra.mxu0 %v1330
  %1844 = vmatpush.bf16.msra.mxu0 %v1328
  %1845 = vmatpush.bf16.msra.mxu0 %v1326
  %1846 = vmatpush.bf16.msra.mxu0 %v1324
  %1847 = vmatpush.bf16.msra.mxu0 %v1322
  %1848 = vmatpush.bf16.msra.mxu0 %v1320
  %1849 = vmatpush.bf16.msra.mxu0 %v1318
  %1850 = vmatpush.bf16.msra.mxu0 %v1316
  %1851 = vmatmul.bf16.gmra.mxu0 %v409
  %v1852 = vpop.f32.mrf.mxu0
  %v1853 = vadd.f32 %v1834, %v1852
  %v1854 = vpop.f32.mrf.mxu0
  %v1855 = vadd.f32 %v1836, %v1854
  %1856 = vmatmul.bf16.gmra.mxu0 %v425
  %v1857 = vpop.f32.mrf.mxu0
  %v1858 = vadd.f32 %v1839, %v1857
  %v1859 = vpop.f32.mrf.mxu0
  %v1860 = vadd.f32 %v1841, %v1859
  %1861 = vdwg.mxu0
  %1862 = vmatpush.bf16.msra.mxu0 %v1346
  %1863 = vmatpush.bf16.msra.mxu0 %v1344
  %1864 = vmatpush.bf16.msra.mxu0 %v1342
  %1865 = vmatpush.bf16.msra.mxu0 %v1340
  %1866 = vmatpush.bf16.msra.mxu0 %v1338
  %1867 = vmatpush.bf16.msra.mxu0 %v1336
  %1868 = vmatpush.bf16.msra.mxu0 %v1334
  %1869 = vmatpush.bf16.msra.mxu0 %v1332
  %1870 = vmatmul.bf16.gmra.mxu0 %v410
  %v1871 = vpop.f32.mrf.mxu0
  %v1872 = vadd.f32 %v1853, %v1871
  %v1873 = vpop.f32.mrf.mxu0
  %v1874 = vadd.f32 %v1855, %v1873
  %1875 = vmatmul.bf16.gmra.mxu0 %v426
  %v1876 = vpop.f32.mrf.mxu0
  %v1877 = vadd.f32 %v1858, %v1876
  %v1878 = vpop.f32.mrf.mxu0
  %v1879 = vadd.f32 %v1860, %v1878
  %1880 = vdwg.mxu0
  %1881 = vmatpush.bf16.msra.mxu0 %v1362
  %1882 = vmatpush.bf16.msra.mxu0 %v1360
  %1883 = vmatpush.bf16.msra.mxu0 %v1358
  %1884 = vmatpush.bf16.msra.mxu0 %v1356
  %1885 = vmatpush.bf16.msra.mxu0 %v1354
  %1886 = vmatpush.bf16.msra.mxu0 %v1352
  %1887 = vmatpush.bf16.msra.mxu0 %v1350
  %1888 = vmatpush.bf16.msra.mxu0 %v1348
  %1889 = vmatmul.bf16.gmra.mxu0 %v411
  %v1890 = vpop.f32.mrf.mxu0
  %v1891 = vadd.f32 %v1872, %v1890
  %v1892 = vpop.f32.mrf.mxu0
  %v1893 = vadd.f32 %v1874, %v1892
  %1894 = vmatmul.bf16.gmra.mxu0 %v427
  %v1895 = vpop.f32.mrf.mxu0
  %v1896 = vadd.f32 %v1877, %v1895
  %v1897 = vpop.f32.mrf.mxu0
  %v1898 = vadd.f32 %v1879, %v1897
  %1899 = vdwg.mxu0
  %1900 = vmatpush.bf16.msra.mxu0 %v1378
  %1901 = vmatpush.bf16.msra.mxu0 %v1376
  %1902 = vmatpush.bf16.msra.mxu0 %v1374
  %1903 = vmatpush.bf16.msra.mxu0 %v1372
  %1904 = vmatpush.bf16.msra.mxu0 %v1370
  %1905 = vmatpush.bf16.msra.mxu0 %v1368
  %1906 = vmatpush.bf16.msra.mxu0 %v1366
  %1907 = vmatpush.bf16.msra.mxu0 %v1364
  %1908 = vmatmul.bf16.gmra.mxu0 %v412
  %v1909 = vpop.f32.mrf.mxu0
  %v1910 = vadd.f32 %v1891, %v1909
  %v1911 = vpop.f32.mrf.mxu0
  %v1912 = vadd.f32 %v1893, %v1911
  %1913 = vmatmul.bf16.gmra.mxu0 %v428
  %v1914 = vpop.f32.mrf.mxu0
  %v1915 = vadd.f32 %v1896, %v1914
  %v1916 = vpop.f32.mrf.mxu0
  %v1917 = vadd.f32 %v1898, %v1916
  %1918 = vdwg.mxu0
  %1919 = vmatpush.bf16.msra.mxu0 %v1394
  %1920 = vmatpush.bf16.msra.mxu0 %v1392
  %1921 = vmatpush.bf16.msra.mxu0 %v1390
  %1922 = vmatpush.bf16.msra.mxu0 %v1388
  %1923 = vmatpush.bf16.msra.mxu0 %v1386
  %1924 = vmatpush.bf16.msra.mxu0 %v1384
  %1925 = vmatpush.bf16.msra.mxu0 %v1382
  %1926 = vmatpush.bf16.msra.mxu0 %v1380
  %1927 = vmatmul.bf16.gmra.mxu0 %v413
  %v1928 = vpop.f32.mrf.mxu0
  %v1929 = vadd.f32 %v1910, %v1928
  %v1930 = vpop.f32.mrf.mxu0
  %v1931 = vadd.f32 %v1912, %v1930
  %1932 = vmatmul.bf16.gmra.mxu0 %v429
  %v1933 = vpop.f32.mrf.mxu0
  %v1934 = vadd.f32 %v1915, %v1933
  %v1935 = vpop.f32.mrf.mxu0
  %v1936 = vadd.f32 %v1917, %v1935
  %1937 = vdwg.mxu0
  %1938 = vmatpush.bf16.msra.mxu0 %v1410
  %1939 = vmatpush.bf16.msra.mxu0 %v1408
  %1940 = vmatpush.bf16.msra.mxu0 %v1406
  %1941 = vmatpush.bf16.msra.mxu0 %v1404
  %1942 = vmatpush.bf16.msra.mxu0 %v1402
  %1943 = vmatpush.bf16.msra.mxu0 %v1400
  %1944 = vmatpush.bf16.msra.mxu0 %v1398
  %1945 = vmatpush.bf16.msra.mxu0 %v1396
  %1946 = vmatmul.bf16.gmra.mxu0 %v414
  %v1947 = vpop.f32.mrf.mxu0
  %v1948 = vadd.f32 %v1929, %v1947
  %v1949 = vpop.f32.mrf.mxu0
  %v1950 = vadd.f32 %v1931, %v1949
  %1951 = vmatmul.bf16.gmra.mxu0 %v430
  %v1952 = vpop.f32.mrf.mxu0
  %v1953 = vadd.f32 %v1934, %v1952
  %v1954 = vpop.f32.mrf.mxu0
  %v1955 = vadd.f32 %v1936, %v1954
  %1956 = vdwg.mxu0
  %1957 = vmatpush.bf16.msra.mxu0 %v1426
  %1958 = vmatpush.bf16.msra.mxu0 %v1424
  %1959 = vmatpush.bf16.msra.mxu0 %v1422
  %1960 = vmatpush.bf16.msra.mxu0 %v1420
  %1961 = vmatpush.bf16.msra.mxu0 %v1418
  %1962 = vmatpush.bf16.msra.mxu0 %v1416
  %1963 = vmatpush.bf16.msra.mxu0 %v1414
  %1964 = vmatpush.bf16.msra.mxu0 %v1412
  %1965 = vmatmul.bf16.gmra.mxu0 %v415
  %v1966 = vpop.f32.mrf.mxu0
  %v1967 = vadd.f32 %v1948, %v1966
  %v1968 = vpop.f32.mrf.mxu0
  %v1969 = vadd.f32 %v1950, %v1968
  %1970 = vmatmul.bf16.gmra.mxu0 %v431
  %v1971 = vpop.f32.mrf.mxu0
  %v1972 = vadd.f32 %v1953, %v1971
  %v1973 = vpop.f32.mrf.mxu0
  %v1974 = vadd.f32 %v1955, %v1973
  %1975 = vdwg.mxu0
  %1976 = vmatpush.bf16.msra.mxu0 %v1442
  %1977 = vmatpush.bf16.msra.mxu0 %v1440
  %1978 = vmatpush.bf16.msra.mxu0 %v1438
  %1979 = vmatpush.bf16.msra.mxu0 %v1436
  %1980 = vmatpush.bf16.msra.mxu0 %v1434
  %1981 = vmatpush.bf16.msra.mxu0 %v1432
  %1982 = vmatpush.bf16.msra.mxu0 %v1430
  %1983 = vmatpush.bf16.msra.mxu0 %v1428
  %1984 = vmatmul.bf16.gmra.mxu0 %v416
  %v1985 = vpop.f32.mrf.mxu0
  %v1986 = vadd.f32 %v1967, %v1985
  %v1987 = vpop.f32.mrf.mxu0
  %v1988 = vadd.f32 %v1969, %v1987
  %1989 = vmatmul.bf16.gmra.mxu0 %v432
  %v1990 = vpop.f32.mrf.mxu0
  %v1991 = vadd.f32 %v1972, %v1990
  %v1992 = vpop.f32.mrf.mxu0
  %v1993 = vadd.f32 %v1974, %v1992
  %1994 = vdwg.mxu0
  %1995 = vmatpush.bf16.msra.mxu0 %v1458
  %1996 = vmatpush.bf16.msra.mxu0 %v1456
  %1997 = vmatpush.bf16.msra.mxu0 %v1454
  %1998 = vmatpush.bf16.msra.mxu0 %v1452
  %1999 = vmatpush.bf16.msra.mxu0 %v1450
  %2000 = vmatpush.bf16.msra.mxu0 %v1448
  %2001 = vmatpush.bf16.msra.mxu0 %v1446
  %2002 = vmatpush.bf16.msra.mxu0 %v1444
  %2003 = vmatmul.bf16.gmra.mxu0 %v417
  %v2004 = vpop.f32.mrf.mxu0
  %v2005 = vadd.f32 %v1986, %v2004
  %v2006 = vpop.f32.mrf.mxu0
  %v2007 = vadd.f32 %v1988, %v2006
  %2008 = vmatmul.bf16.gmra.mxu0 %v433
  %v2009 = vpop.f32.mrf.mxu0
  %v2010 = vadd.f32 %v1991, %v2009
  %v2011 = vpop.f32.mrf.mxu0
  %v2012 = vadd.f32 %v1993, %v2011
  %2013 = vdwg.mxu0
  %2014 = vmatpush.bf16.msra.mxu0 %v1474
  %2015 = vmatpush.bf16.msra.mxu0 %v1472
  %2016 = vmatpush.bf16.msra.mxu0 %v1470
  %2017 = vmatpush.bf16.msra.mxu0 %v1468
  %2018 = vmatpush.bf16.msra.mxu0 %v1466
  %2019 = vmatpush.bf16.msra.mxu0 %v1464
  %2020 = vmatpush.bf16.msra.mxu0 %v1462
  %2021 = vmatpush.bf16.msra.mxu0 %v1460
  %2022 = vmatmul.bf16.gmra.mxu0 %v418
  %v2023 = vpop.f32.mrf.mxu0
  %v2024 = vadd.f32 %v2005, %v2023
  %v2025 = vpop.f32.mrf.mxu0
  %v2026 = vadd.f32 %v2007, %v2025
  %2027 = vmatmul.bf16.gmra.mxu0 %v434
  %v2028 = vpop.f32.mrf.mxu0
  %v2029 = vadd.f32 %v2010, %v2028
  %v2030 = vpop.f32.mrf.mxu0
  %v2031 = vadd.f32 %v2012, %v2030
  %2032 = vdwg.mxu0
  %2033 = vmatpush.bf16.msra.mxu0 %v1490
  %2034 = vmatpush.bf16.msra.mxu0 %v1488
  %2035 = vmatpush.bf16.msra.mxu0 %v1486
  %2036 = vmatpush.bf16.msra.mxu0 %v1484
  %2037 = vmatpush.bf16.msra.mxu0 %v1482
  %2038 = vmatpush.bf16.msra.mxu0 %v1480
  %2039 = vmatpush.bf16.msra.mxu0 %v1478
  %2040 = vmatpush.bf16.msra.mxu0 %v1476
  %2041 = vmatmul.bf16.gmra.mxu0 %v419
  %v2042 = vpop.f32.mrf.mxu0
  %v2043 = vadd.f32 %v2024, %v2042
  %v2044 = vpop.f32.mrf.mxu0
  %v2045 = vadd.f32 %v2026, %v2044
  %2046 = vmatmul.bf16.gmra.mxu0 %v435
  %v2047 = vpop.f32.mrf.mxu0
  %v2048 = vadd.f32 %v2029, %v2047
  %v2049 = vpop.f32.mrf.mxu0
  %v2050 = vadd.f32 %v2031, %v2049
  %2051 = vdwg.mxu0
  %2052 = vmatpush.bf16.msra.mxu0 %v1251
  %2053 = vmatpush.bf16.msra.mxu0 %v1249
  %2054 = vmatpush.bf16.msra.mxu0 %v1247
  %2055 = vmatpush.bf16.msra.mxu0 %v1245
  %2056 = vmatpush.bf16.msra.mxu0 %v1243
  %2057 = vmatpush.bf16.msra.mxu0 %v1241
  %2058 = vmatpush.bf16.msra.mxu0 %v1239
  %2059 = vmatpush.bf16.msra.mxu0 %v1237
  %2060 = vmatmul.bf16.gmra.mxu0 %v404
  %v2061 = vpop.f32.mrf.mxu0
  %v2062 = vadd.f32 %v305, %v2061
  %v2063 = vpop.f32.mrf.mxu0
  %v2064 = vadd.f32 %v305, %v2063
  %2065 = vmatmul.bf16.gmra.mxu0 %v420
  %v2066 = vpop.f32.mrf.mxu0
  %v2067 = vadd.f32 %v305, %v2066
  %v2068 = vpop.f32.mrf.mxu0
  %v2069 = vadd.f32 %v305, %v2068
  %2070 = vdwg.mxu0
  %2071 = vmatpush.bf16.msra.mxu0 %v1267
  %2072 = vmatpush.bf16.msra.mxu0 %v1265
  %2073 = vmatpush.bf16.msra.mxu0 %v1263
  %2074 = vmatpush.bf16.msra.mxu0 %v1261
  %2075 = vmatpush.bf16.msra.mxu0 %v1259
  %2076 = vmatpush.bf16.msra.mxu0 %v1257
  %2077 = vmatpush.bf16.msra.mxu0 %v1255
  %2078 = vmatpush.bf16.msra.mxu0 %v1253
  %2079 = vmatmul.bf16.gmra.mxu0 %v405
  %v2080 = vpop.f32.mrf.mxu0
  %v2081 = vadd.f32 %v2062, %v2080
  %v2082 = vpop.f32.mrf.mxu0
  %v2083 = vadd.f32 %v2064, %v2082
  %2084 = vmatmul.bf16.gmra.mxu0 %v421
  %v2085 = vpop.f32.mrf.mxu0
  %v2086 = vadd.f32 %v2067, %v2085
  %v2087 = vpop.f32.mrf.mxu0
  %v2088 = vadd.f32 %v2069, %v2087
  %2089 = vdwg.mxu0
  %2090 = vmatpush.bf16.msra.mxu0 %v1283
  %2091 = vmatpush.bf16.msra.mxu0 %v1281
  %2092 = vmatpush.bf16.msra.mxu0 %v1279
  %2093 = vmatpush.bf16.msra.mxu0 %v1277
  %2094 = vmatpush.bf16.msra.mxu0 %v1275
  %2095 = vmatpush.bf16.msra.mxu0 %v1273
  %2096 = vmatpush.bf16.msra.mxu0 %v1271
  %2097 = vmatpush.bf16.msra.mxu0 %v1269
  %2098 = vmatmul.bf16.gmra.mxu0 %v406
  %v2099 = vpop.f32.mrf.mxu0
  %v2100 = vadd.f32 %v2081, %v2099
  %v2101 = vpop.f32.mrf.mxu0
  %v2102 = vadd.f32 %v2083, %v2101
  %2103 = vmatmul.bf16.gmra.mxu0 %v422
  %v2104 = vpop.f32.mrf.mxu0
  %v2105 = vadd.f32 %v2086, %v2104
  %v2106 = vpop.f32.mrf.mxu0
  %v2107 = vadd.f32 %v2088, %v2106
  %2108 = vdwg.mxu0
  %2109 = vmatpush.bf16.msra.mxu0 %v1299
  %2110 = vmatpush.bf16.msra.mxu0 %v1297
  %2111 = vmatpush.bf16.msra.mxu0 %v1295
  %2112 = vmatpush.bf16.msra.mxu0 %v1293
  %2113 = vmatpush.bf16.msra.mxu0 %v1291
  %2114 = vmatpush.bf16.msra.mxu0 %v1289
  %2115 = vmatpush.bf16.msra.mxu0 %v1287
  %2116 = vmatpush.bf16.msra.mxu0 %v1285
  %2117 = vmatmul.bf16.gmra.mxu0 %v407
  %v2118 = vpop.f32.mrf.mxu0
  %v2119 = vadd.f32 %v2100, %v2118
  %v2120 = vpop.f32.mrf.mxu0
  %v2121 = vadd.f32 %v2102, %v2120
  %2122 = vmatmul.bf16.gmra.mxu0 %v423
  %v2123 = vpop.f32.mrf.mxu0
  %v2124 = vadd.f32 %v2105, %v2123
  %v2125 = vpop.f32.mrf.mxu0
  %v2126 = vadd.f32 %v2107, %v2125
  %2127 = vdwg.mxu0
  %2128 = vmatpush.bf16.msra.mxu0 %v1315
  %2129 = vmatpush.bf16.msra.mxu0 %v1313
  %2130 = vmatpush.bf16.msra.mxu0 %v1311
  %2131 = vmatpush.bf16.msra.mxu0 %v1309
  %2132 = vmatpush.bf16.msra.mxu0 %v1307
  %2133 = vmatpush.bf16.msra.mxu0 %v1305
  %2134 = vmatpush.bf16.msra.mxu0 %v1303
  %2135 = vmatpush.bf16.msra.mxu0 %v1301
  %2136 = vmatmul.bf16.gmra.mxu0 %v408
  %v2137 = vpop.f32.mrf.mxu0
  %v2138 = vadd.f32 %v2119, %v2137
  %v2139 = vpop.f32.mrf.mxu0
  %v2140 = vadd.f32 %v2121, %v2139
  %2141 = vmatmul.bf16.gmra.mxu0 %v424
  %v2142 = vpop.f32.mrf.mxu0
  %v2143 = vadd.f32 %v2124, %v2142
  %v2144 = vpop.f32.mrf.mxu0
  %v2145 = vadd.f32 %v2126, %v2144
  %2146 = vdwg.mxu0
  %2147 = vmatpush.bf16.msra.mxu0 %v1331
  %2148 = vmatpush.bf16.msra.mxu0 %v1329
  %2149 = vmatpush.bf16.msra.mxu0 %v1327
  %2150 = vmatpush.bf16.msra.mxu0 %v1325
  %2151 = vmatpush.bf16.msra.mxu0 %v1323
  %2152 = vmatpush.bf16.msra.mxu0 %v1321
  %2153 = vmatpush.bf16.msra.mxu0 %v1319
  %2154 = vmatpush.bf16.msra.mxu0 %v1317
  %2155 = vmatmul.bf16.gmra.mxu0 %v409
  %v2156 = vpop.f32.mrf.mxu0
  %v2157 = vadd.f32 %v2138, %v2156
  %v2158 = vpop.f32.mrf.mxu0
  %v2159 = vadd.f32 %v2140, %v2158
  %2160 = vmatmul.bf16.gmra.mxu0 %v425
  %v2161 = vpop.f32.mrf.mxu0
  %v2162 = vadd.f32 %v2143, %v2161
  %v2163 = vpop.f32.mrf.mxu0
  %v2164 = vadd.f32 %v2145, %v2163
  %2165 = vdwg.mxu0
  %2166 = vmatpush.bf16.msra.mxu0 %v1347
  %2167 = vmatpush.bf16.msra.mxu0 %v1345
  %2168 = vmatpush.bf16.msra.mxu0 %v1343
  %2169 = vmatpush.bf16.msra.mxu0 %v1341
  %2170 = vmatpush.bf16.msra.mxu0 %v1339
  %2171 = vmatpush.bf16.msra.mxu0 %v1337
  %2172 = vmatpush.bf16.msra.mxu0 %v1335
  %2173 = vmatpush.bf16.msra.mxu0 %v1333
  %2174 = vmatmul.bf16.gmra.mxu0 %v410
  %v2175 = vpop.f32.mrf.mxu0
  %v2176 = vadd.f32 %v2157, %v2175
  %v2177 = vpop.f32.mrf.mxu0
  %v2178 = vadd.f32 %v2159, %v2177
  %2179 = vmatmul.bf16.gmra.mxu0 %v426
  %v2180 = vpop.f32.mrf.mxu0
  %v2181 = vadd.f32 %v2162, %v2180
  %v2182 = vpop.f32.mrf.mxu0
  %v2183 = vadd.f32 %v2164, %v2182
  %2184 = vdwg.mxu0
  %2185 = vmatpush.bf16.msra.mxu0 %v1363
  %2186 = vmatpush.bf16.msra.mxu0 %v1361
  %2187 = vmatpush.bf16.msra.mxu0 %v1359
  %2188 = vmatpush.bf16.msra.mxu0 %v1357
  %2189 = vmatpush.bf16.msra.mxu0 %v1355
  %2190 = vmatpush.bf16.msra.mxu0 %v1353
  %2191 = vmatpush.bf16.msra.mxu0 %v1351
  %2192 = vmatpush.bf16.msra.mxu0 %v1349
  %2193 = vmatmul.bf16.gmra.mxu0 %v411
  %v2194 = vpop.f32.mrf.mxu0
  %v2195 = vadd.f32 %v2176, %v2194
  %v2196 = vpop.f32.mrf.mxu0
  %v2197 = vadd.f32 %v2178, %v2196
  %2198 = vmatmul.bf16.gmra.mxu0 %v427
  %v2199 = vpop.f32.mrf.mxu0
  %v2200 = vadd.f32 %v2181, %v2199
  %v2201 = vpop.f32.mrf.mxu0
  %v2202 = vadd.f32 %v2183, %v2201
  %2203 = vdwg.mxu0
  %2204 = vmatpush.bf16.msra.mxu0 %v1379
  %2205 = vmatpush.bf16.msra.mxu0 %v1377
  %2206 = vmatpush.bf16.msra.mxu0 %v1375
  %2207 = vmatpush.bf16.msra.mxu0 %v1373
  %2208 = vmatpush.bf16.msra.mxu0 %v1371
  %2209 = vmatpush.bf16.msra.mxu0 %v1369
  %2210 = vmatpush.bf16.msra.mxu0 %v1367
  %2211 = vmatpush.bf16.msra.mxu0 %v1365
  %2212 = vmatmul.bf16.gmra.mxu0 %v412
  %v2213 = vpop.f32.mrf.mxu0
  %v2214 = vadd.f32 %v2195, %v2213
  %v2215 = vpop.f32.mrf.mxu0
  %v2216 = vadd.f32 %v2197, %v2215
  %2217 = vmatmul.bf16.gmra.mxu0 %v428
  %v2218 = vpop.f32.mrf.mxu0
  %v2219 = vadd.f32 %v2200, %v2218
  %v2220 = vpop.f32.mrf.mxu0
  %v2221 = vadd.f32 %v2202, %v2220
  %2222 = vdwg.mxu0
  %2223 = vmatpush.bf16.msra.mxu0 %v1395
  %2224 = vmatpush.bf16.msra.mxu0 %v1393
  %2225 = vmatpush.bf16.msra.mxu0 %v1391
  %2226 = vmatpush.bf16.msra.mxu0 %v1389
  %2227 = vmatpush.bf16.msra.mxu0 %v1387
  %2228 = vmatpush.bf16.msra.mxu0 %v1385
  %2229 = vmatpush.bf16.msra.mxu0 %v1383
  %2230 = vmatpush.bf16.msra.mxu0 %v1381
  %2231 = vmatmul.bf16.gmra.mxu0 %v413
  %v2232 = vpop.f32.mrf.mxu0
  %v2233 = vadd.f32 %v2214, %v2232
  %v2234 = vpop.f32.mrf.mxu0
  %v2235 = vadd.f32 %v2216, %v2234
  %2236 = vmatmul.bf16.gmra.mxu0 %v429
  %v2237 = vpop.f32.mrf.mxu0
  %v2238 = vadd.f32 %v2219, %v2237
  %v2239 = vpop.f32.mrf.mxu0
  %v2240 = vadd.f32 %v2221, %v2239
  %2241 = vdwg.mxu0
  %2242 = vmatpush.bf16.msra.mxu0 %v1411
  %2243 = vmatpush.bf16.msra.mxu0 %v1409
  %2244 = vmatpush.bf16.msra.mxu0 %v1407
  %2245 = vmatpush.bf16.msra.mxu0 %v1405
  %2246 = vmatpush.bf16.msra.mxu0 %v1403
  %2247 = vmatpush.bf16.msra.mxu0 %v1401
  %2248 = vmatpush.bf16.msra.mxu0 %v1399
  %2249 = vmatpush.bf16.msra.mxu0 %v1397
  %2250 = vmatmul.bf16.gmra.mxu0 %v414
  %v2251 = vpop.f32.mrf.mxu0
  %v2252 = vadd.f32 %v2233, %v2251
  %v2253 = vpop.f32.mrf.mxu0
  %v2254 = vadd.f32 %v2235, %v2253
  %2255 = vmatmul.bf16.gmra.mxu0 %v430
  %v2256 = vpop.f32.mrf.mxu0
  %v2257 = vadd.f32 %v2238, %v2256
  %v2258 = vpop.f32.mrf.mxu0
  %v2259 = vadd.f32 %v2240, %v2258
  %2260 = vdwg.mxu0
  %2261 = vmatpush.bf16.msra.mxu0 %v1427
  %2262 = vmatpush.bf16.msra.mxu0 %v1425
  %2263 = vmatpush.bf16.msra.mxu0 %v1423
  %2264 = vmatpush.bf16.msra.mxu0 %v1421
  %2265 = vmatpush.bf16.msra.mxu0 %v1419
  %2266 = vmatpush.bf16.msra.mxu0 %v1417
  %2267 = vmatpush.bf16.msra.mxu0 %v1415
  %2268 = vmatpush.bf16.msra.mxu0 %v1413
  %2269 = vmatmul.bf16.gmra.mxu0 %v415
  %v2270 = vpop.f32.mrf.mxu0
  %v2271 = vadd.f32 %v2252, %v2270
  %v2272 = vpop.f32.mrf.mxu0
  %v2273 = vadd.f32 %v2254, %v2272
  %2274 = vmatmul.bf16.gmra.mxu0 %v431
  %v2275 = vpop.f32.mrf.mxu0
  %v2276 = vadd.f32 %v2257, %v2275
  %v2277 = vpop.f32.mrf.mxu0
  %v2278 = vadd.f32 %v2259, %v2277
  %2279 = vdwg.mxu0
  %2280 = vmatpush.bf16.msra.mxu0 %v1443
  %2281 = vmatpush.bf16.msra.mxu0 %v1441
  %2282 = vmatpush.bf16.msra.mxu0 %v1439
  %2283 = vmatpush.bf16.msra.mxu0 %v1437
  %2284 = vmatpush.bf16.msra.mxu0 %v1435
  %2285 = vmatpush.bf16.msra.mxu0 %v1433
  %2286 = vmatpush.bf16.msra.mxu0 %v1431
  %2287 = vmatpush.bf16.msra.mxu0 %v1429
  %2288 = vmatmul.bf16.gmra.mxu0 %v416
  %v2289 = vpop.f32.mrf.mxu0
  %v2290 = vadd.f32 %v2271, %v2289
  %v2291 = vpop.f32.mrf.mxu0
  %v2292 = vadd.f32 %v2273, %v2291
  %2293 = vmatmul.bf16.gmra.mxu0 %v432
  %v2294 = vpop.f32.mrf.mxu0
  %v2295 = vadd.f32 %v2276, %v2294
  %v2296 = vpop.f32.mrf.mxu0
  %v2297 = vadd.f32 %v2278, %v2296
  %2298 = vdwg.mxu0
  %2299 = vmatpush.bf16.msra.mxu0 %v1459
  %2300 = vmatpush.bf16.msra.mxu0 %v1457
  %2301 = vmatpush.bf16.msra.mxu0 %v1455
  %2302 = vmatpush.bf16.msra.mxu0 %v1453
  %2303 = vmatpush.bf16.msra.mxu0 %v1451
  %2304 = vmatpush.bf16.msra.mxu0 %v1449
  %2305 = vmatpush.bf16.msra.mxu0 %v1447
  %2306 = vmatpush.bf16.msra.mxu0 %v1445
  %2307 = vmatmul.bf16.gmra.mxu0 %v417
  %v2308 = vpop.f32.mrf.mxu0
  %v2309 = vadd.f32 %v2290, %v2308
  %v2310 = vpop.f32.mrf.mxu0
  %v2311 = vadd.f32 %v2292, %v2310
  %2312 = vmatmul.bf16.gmra.mxu0 %v433
  %v2313 = vpop.f32.mrf.mxu0
  %v2314 = vadd.f32 %v2295, %v2313
  %v2315 = vpop.f32.mrf.mxu0
  %v2316 = vadd.f32 %v2297, %v2315
  %2317 = vdwg.mxu0
  %2318 = vmatpush.bf16.msra.mxu0 %v1475
  %2319 = vmatpush.bf16.msra.mxu0 %v1473
  %2320 = vmatpush.bf16.msra.mxu0 %v1471
  %2321 = vmatpush.bf16.msra.mxu0 %v1469
  %2322 = vmatpush.bf16.msra.mxu0 %v1467
  %2323 = vmatpush.bf16.msra.mxu0 %v1465
  %2324 = vmatpush.bf16.msra.mxu0 %v1463
  %2325 = vmatpush.bf16.msra.mxu0 %v1461
  %2326 = vmatmul.bf16.gmra.mxu0 %v418
  %v2327 = vpop.f32.mrf.mxu0
  %v2328 = vadd.f32 %v2309, %v2327
  %v2329 = vpop.f32.mrf.mxu0
  %v2330 = vadd.f32 %v2311, %v2329
  %2331 = vmatmul.bf16.gmra.mxu0 %v434
  %v2332 = vpop.f32.mrf.mxu0
  %v2333 = vadd.f32 %v2314, %v2332
  %v2334 = vpop.f32.mrf.mxu0
  %v2335 = vadd.f32 %v2316, %v2334
  %2336 = vdwg.mxu0
  %2337 = vmatpush.bf16.msra.mxu0 %v1491
  %2338 = vmatpush.bf16.msra.mxu0 %v1489
  %2339 = vmatpush.bf16.msra.mxu0 %v1487
  %2340 = vmatpush.bf16.msra.mxu0 %v1485
  %2341 = vmatpush.bf16.msra.mxu0 %v1483
  %2342 = vmatpush.bf16.msra.mxu0 %v1481
  %2343 = vmatpush.bf16.msra.mxu0 %v1479
  %2344 = vmatpush.bf16.msra.mxu0 %v1477
  %2345 = vmatmul.bf16.gmra.mxu0 %v419
  %v2346 = vpop.f32.mrf.mxu0
  %v2347 = vadd.f32 %v2328, %v2346
  %v2348 = vpop.f32.mrf.mxu0
  %v2349 = vadd.f32 %v2330, %v2348
  %2350 = vmatmul.bf16.gmra.mxu0 %v435
  %v2351 = vpop.f32.mrf.mxu0
  %v2352 = vadd.f32 %v2333, %v2351
  %v2353 = vpop.f32.mrf.mxu0
  %v2354 = vadd.f32 %v2335, %v2353
  %2355 = vdwg.mxu0
  %v2356 = vmax.f32 %v2043, 0.0
  %v2357 = vmax.f32 %v2347, 0.0
  %v2358 = vmax.f32 %v2045, 0.0
  %v2359 = vmax.f32 %v2349, 0.0
  %v2360 = vmax.f32 %v2048, 0.0
  %v2361 = vmax.f32 %v2352, 0.0
  %v2362 = vmax.f32 %v2050, 0.0
  %v2363 = vmax.f32 %v2354, 0.0
  %v2364 = vpack.c.bf16 %v2357, %v2356
  %v2365 = vpack.c.bf16 %v2359, %v2358
  %v2366 = vpack.c.bf16 %v2361, %v2360
  %v2367 = vpack.c.bf16 %v2363, %v2362
  %2368 = vst [vmem:[%s3] sm:$0xff] %v2364
  %2369 = vst [vmem:[%s3 + $0x8] sm:$0xff] %v2365
  %2370 = vst [vmem:[%s3 + $0x10] sm:$0xff] %v2366
  %2371 = vst [vmem:[%s3 + $0x18] sm:$0xff] %v2367
  // Predicated region
  $region14: #{style_encoder_forward.17} parent=0 // pred_check
    _
  $region15: #{style_encoder_forward.17} parent=0 // pred_check_branch
    %2373 = sbr.rel (0) target = $region17
  $region16: #{style_encoder_forward.17} parent=0 // pred_region
    _
  $region17: #{style_encoder_forward.17} parent=0 // pred_fallthru
    _
  // Predicated region
  $region18: #{style_encoder_forward.17} parent=0 // pred_check
    _
  $region19: #{style_encoder_forward.17} parent=0 // pred_check_branch
    %2375 = sbr.rel (0) target = $region21
  $region20: #{style_encoder_forward.17} parent=0 // pred_region
    _
  $region21: #{style_encoder_forward.17} parent=0 // pred_fallthru
    _

// kernel: style_encoder_forward.18
$region0: #{style_encoder_forward.18}
  #allocation0 [shape = 'u32[]', space=smem, size = 0x4, offset = 0x4, fixed_abs, tag = 'smem constant byte address 0x4 - core index']
  #allocation1 [shape = 'u32[72,128]{1,0:T(1,128)}', space=vmem, size = 0x9000, scoped, tag = 'internal scratch']
  %s0 = inlined_call_operand.vmem [shape: bf16[8,4096], index: 0, kind: input, shape index: {}]
  %s1 = inlined_call_operand.vmem [shape: bf16[4096,256], index: 1, kind: input, shape index: {}]
  %s2 = inlined_call_operand.vmem [shape: f32[1,256], index: 2, kind: input, shape index: {}]
  %s3 = inlined_call_operand.vmem [shape: bf16[8,256], index: 3, kind: output, shape index: {}]
  %s4 = sld [smem:[#allocation0]]
  $region22: #{style_encoder_forward.18} parent=0
    _
  %s6 = ssub.s32 1, %s4
  %s7 = scalar_select 0, %s6, %s4
  // Predicated region
  $region2: #{style_encoder_forward.18} parent=0 // pred_check
    _
  $region3: #{style_encoder_forward.18} parent=0 // pred_check_branch
    %9 = sbr.rel (0) target = $region5
  $region4: #{style_encoder_forward.18} parent=0 // pred_region
    _
  $region5: #{style_encoder_forward.18} parent=0 // pred_fallthru
    _
  // Predicated region
  $region6: #{style_encoder_forward.18} parent=0 // pred_check
    _
  $region7: #{style_encoder_forward.18} parent=0 // pred_check_branch
    %11 = sbr.rel (0) target = $region9
  $region8: #{style_encoder_forward.18} parent=0 // pred_region
    _
  $region9: #{style_encoder_forward.18} parent=0 // pred_fallthru
    _
  // Predicated region
  $region10: #{style_encoder_forward.18} parent=0 // pred_check
    _
  $region11: #{style_encoder_forward.18} parent=0 // pred_check_branch
    %13 = sbr.rel (0) target = $region13
  $region12: #{style_encoder_forward.18} parent=0 // pred_region
    _
  $region13: #{style_encoder_forward.18} parent=0 // pred_fallthru
    _
  %v14 = vld [vmem:[%s0] sm:$0xff]
  %v15 = vld [vmem:[%s0 + $0x8] sm:$0xff]
  %v16 = vld [vmem:[%s0 + $0x10] sm:$0xff]
  %v17 = vld [vmem:[%s0 + $0x18] sm:$0xff]
  %v18 = vld [vmem:[%s0 + $0x20] sm:$0xff]
  %v19 = vld [vmem:[%s0 + $0x28] sm:$0xff]
  %v20 = vld [vmem:[%s0 + $0x30] sm:$0xff]
  %v21 = vld [vmem:[%s0 + $0x38] sm:$0xff]
  %v22 = vld [vmem:[%s0 + $0x40] sm:$0xff]
  %v23 = vld [vmem:[%s0 + $0x48] sm:$0xff]
  %v24 = vld [vmem:[%s0 + $0x50] sm:$0xff]
  %v25 = vld [vmem:[%s0 + $0x58] sm:$0xff]
  %v26 = vld [vmem:[%s0 + $0x60] sm:$0xff]
  %v27 = vld [vmem:[%s0 + $0x68] sm:$0xff]
  %v28 = vld [vmem:[%s0 + $0x70] sm:$0xff]
  %v29 = vld [vmem:[%s0 + $0x78] sm:$0xff]
  %v30 = vld [vmem:[%s1] sm:$0xff]
  %v31 = vld [vmem:[%s1 + $0x8] sm:$0xff]
  %v32 = vld [vmem:[%s1 + $0x10] sm:$0xff]
  %v33 = vld [vmem:[%s1 + $0x18] sm:$0xff]
  %v34 = vld [vmem:[%s1 + $0x20] sm:$0xff]
  %v35 = vld [vmem:[%s1 + $0x28] sm:$0xff]
  %v36 = vld [vmem:[%s1 + $0x30] sm:$0xff]
  %v37 = vld [vmem:[%s1 + $0x38] sm:$0xff]
  %v38 = vld [vmem:[%s1 + $0x40] sm:$0xff]
  %v39 = vld [vmem:[%s1 + $0x48] sm:$0xff]
  %v40 = vld [vmem:[%s1 + $0x50] sm:$0xff]
  %v41 = vld [vmem:[%s1 + $0x58] sm:$0xff]
  %v42 = vld [vmem:[%s1 + $0x60] sm:$0xff]
  %v43 = vld [vmem:[%s1 + $0x68] sm:$0xff]
  %v44 = vld [vmem:[%s1 + $0x70] sm:$0xff]
  %v45 = vld [vmem:[%s1 + $0x78] sm:$0xff]
  %v46 = vld [vmem:[%s1 + $0x80] sm:$0xff]
  %v47 = vld [vmem:[%s1 + $0x88] sm:$0xff]
  %v48 = vld [vmem:[%s1 + $0x90] sm:$0xff]
  %v49 = vld [vmem:[%s1 + $0x98] sm:$0xff]
  %v50 = vld [vmem:[%s1 + $0xa0] sm:$0xff]
  %v51 = vld [vmem:[%s1 + $0xa8] sm:$0xff]
  %v52 = vld [vmem:[%s1 + $0xb0] sm:$0xff]
  %v53 = vld [vmem:[%s1 + $0xb8] sm:$0xff]
  %v54 = vld [vmem:[%s1 + $0xc0] sm:$0xff]
  %v55 = vld [vmem:[%s1 + $0xc8] sm:$0xff]
  %v56 = vld [vmem:[%s1 + $0xd0] sm:$0xff]
  %v57 = vld [vmem:[%s1 + $0xd8] sm:$0xff]
  %v58 = vld [vmem:[%s1 + $0xe0] sm:$0xff]
  %v59 = vld [vmem:[%s1 + $0xe8] sm:$0xff]
  %v60 = vld [vmem:[%s1 + $0xf0] sm:$0xff]
  %v61 = vld [vmem:[%s1 + $0xf8] sm:$0xff]
  %v62 = vld [vmem:[%s1 + $0x100] sm:$0xff]
  %v63 = vld [vmem:[%s1 + $0x108] sm:$0xff]
  %v64 = vld [vmem:[%s1 + $0x110] sm:$0xff]
  %v65 = vld [vmem:[%s1 + $0x118] sm:$0xff]
  %v66 = vld [vmem:[%s1 + $0x120] sm:$0xff]
  %v67 = vld [vmem:[%s1 + $0x128] sm:$0xff]
  %v68 = vld [vmem:[%s1 + $0x130] sm:$0xff]
  %v69 = vld [vmem:[%s1 + $0x138] sm:$0xff]
  %v70 = vld [vmem:[%s1 + $0x140] sm:$0xff]
  %v71 = vld [vmem:[%s1 + $0x148] sm:$0xff]
  %v72 = vld [vmem:[%s1 + $0x150] sm:$0xff]
  %v73 = vld [vmem:[%s1 + $0x158] sm:$0xff]
  %v74 = vld [vmem:[%s1 + $0x160] sm:$0xff]
  %v75 = vld [vmem:[%s1 + $0x168] sm:$0xff]
  %v76 = vld [vmem:[%s1 + $0x170] sm:$0xff]
  %v77 = vld [vmem:[%s1 + $0x178] sm:$0xff]
  %v78 = vld [vmem:[%s1 + $0x180] sm:$0xff]
  %v79 = vld [vmem:[%s1 + $0x188] sm:$0xff]
  %v80 = vld [vmem:[%s1 + $0x190] sm:$0xff]
  %v81 = vld [vmem:[%s1 + $0x198] sm:$0xff]
  %v82 = vld [vmem:[%s1 + $0x1a0] sm:$0xff]
  %v83 = vld [vmem:[%s1 + $0x1a8] sm:$0xff]
  %v84 = vld [vmem:[%s1 + $0x1b0] sm:$0xff]
  %v85 = vld [vmem:[%s1 + $0x1b8] sm:$0xff]
  %v86 = vld [vmem:[%s1 + $0x1c0] sm:$0xff]
  %v87 = vld [vmem:[%s1 + $0x1c8] sm:$0xff]
  %v88 = vld [vmem:[%s1 + $0x1d0] sm:$0xff]
  %v89 = vld [vmem:[%s1 + $0x1d8] sm:$0xff]
  %v90 = vld [vmem:[%s1 + $0x1e0] sm:$0xff]
  %v91 = vld [vmem:[%s1 + $0x1e8] sm:$0xff]
  %v92 = vld [vmem:[%s1 + $0x1f0] sm:$0xff]
  %v93 = vld [vmem:[%s1 + $0x1f8] sm:$0xff]
  %v94 = vld [vmem:[%s1 + $0x200] sm:$0xff]
  %v95 = vld [vmem:[%s1 + $0x208] sm:$0xff]
  %v96 = vld [vmem:[%s1 + $0x210] sm:$0xff]
  %v97 = vld [vmem:[%s1 + $0x218] sm:$0xff]
  %v98 = vld [vmem:[%s1 + $0x220] sm:$0xff]
  %v99 = vld [vmem:[%s1 + $0x228] sm:$0xff]
  %v100 = vld [vmem:[%s1 + $0x230] sm:$0xff]
  %v101 = vld [vmem:[%s1 + $0x238] sm:$0xff]
  %v102 = vld [vmem:[%s1 + $0x240] sm:$0xff]
  %v103 = vld [vmem:[%s1 + $0x248] sm:$0xff]
  %v104 = vld [vmem:[%s1 + $0x250] sm:$0xff]
  %v105 = vld [vmem:[%s1 + $0x258] sm:$0xff]
  %v106 = vld [vmem:[%s1 + $0x260] sm:$0xff]
  %v107 = vld [vmem:[%s1 + $0x268] sm:$0xff]
  %v108 = vld [vmem:[%s1 + $0x270] sm:$0xff]
  %v109 = vld [vmem:[%s1 + $0x278] sm:$0xff]
  %v110 = vld [vmem:[%s1 + $0x280] sm:$0xff]
  %v111 = vld [vmem:[%s1 + $0x288] sm:$0xff]
  %v112 = vld [vmem:[%s1 + $0x290] sm:$0xff]
  %v113 = vld [vmem:[%s1 + $0x298] sm:$0xff]
  %v114 = vld [vmem:[%s1 + $0x2a0] sm:$0xff]
  %v115 = vld [vmem:[%s1 + $0x2a8] sm:$0xff]
  %v116 = vld [vmem:[%s1 + $0x2b0] sm:$0xff]
  %v117 = vld [vmem:[%s1 + $0x2b8] sm:$0xff]
  %v118 = vld [vmem:[%s1 + $0x2c0] sm:$0xff]
  %v119 = vld [vmem:[%s1 + $0x2c8] sm:$0xff]
  %v120 = vld [vmem:[%s1 + $0x2d0] sm:$0xff]
  %v121 = vld [vmem:[%s1 + $0x2d8] sm:$0xff]
  %v122 = vld [vmem:[%s1 + $0x2e0] sm:$0xff]
  %v123 = vld [vmem:[%s1 + $0x2e8] sm:$0xff]
  %v124 = vld [vmem:[%s1 + $0x2f0] sm:$0xff]
  %v125 = vld [vmem:[%s1 + $0x2f8] sm:$0xff]
  %v126 = vld [vmem:[%s1 + $0x300] sm:$0xff]
  %v127 = vld [vmem:[%s1 + $0x308] sm:$0xff]
  %v128 = vld [vmem:[%s1 + $0x310] sm:$0xff]
  %v129 = vld [vmem:[%s1 + $0x318] sm:$0xff]
  %v130 = vld [vmem:[%s1 + $0x320] sm:$0xff]
  %v131 = vld [vmem:[%s1 + $0x328] sm:$0xff]
  %v132 = vld [vmem:[%s1 + $0x330] sm:$0xff]
  %v133 = vld [vmem:[%s1 + $0x338] sm:$0xff]
  %v134 = vld [vmem:[%s1 + $0x340] sm:$0xff]
  %v135 = vld [vmem:[%s1 + $0x348] sm:$0xff]
  %v136 = vld [vmem:[%s1 + $0x350] sm:$0xff]
  %v137 = vld [vmem:[%s1 + $0x358] sm:$0xff]
  %v138 = vld [vmem:[%s1 + $0x360] sm:$0xff]
  %v139 = vld [vmem:[%s1 + $0x368] sm:$0xff]
  %v140 = vld [vmem:[%s1 + $0x370] sm:$0xff]
  %v141 = vld [vmem:[%s1 + $0x378] sm:$0xff]
  %v142 = vld [vmem:[%s1 + $0x380] sm:$0xff]
  %v143 = vld [vmem:[%s1 + $0x388] sm:$0xff]
  %v144 = vld [vmem:[%s1 + $0x390] sm:$0xff]
  %v145 = vld [vmem:[%s1 + $0x398] sm:$0xff]
  %v146 = vld [vmem:[%s1 + $0x3a0] sm:$0xff]
  %v147 = vld [vmem:[%s1 + $0x3a8] sm:$0xff]
  %v148 = vld [vmem:[%s1 + $0x3b0] sm:$0xff]
  %v149 = vld [vmem:[%s1 + $0x3b8] sm:$0xff]
  %v150 = vld [vmem:[%s1 + $0x3c0] sm:$0xff]
  %v151 = vld [vmem:[%s1 + $0x3c8] sm:$0xff]
  %v152 = vld [vmem:[%s1 + $0x3d0] sm:$0xff]
  %v153 = vld [vmem:[%s1 + $0x3d8] sm:$0xff]
  %v154 = vld [vmem:[%s1 + $0x3e0] sm:$0xff]
  %v155 = vld [vmem:[%s1 + $0x3e8] sm:$0xff]
  %v156 = vld [vmem:[%s1 + $0x3f0] sm:$0xff]
  %v157 = vld [vmem:[%s1 + $0x3f8] sm:$0xff]
  %v158 = vld [vmem:[%s1 + $0x400] sm:$0xff]
  %v159 = vld [vmem:[%s1 + $0x408] sm:$0xff]
  %v160 = vld [vmem:[%s1 + $0x410] sm:$0xff]
  %v161 = vld [vmem:[%s1 + $0x418] sm:$0xff]
  %v162 = vld [vmem:[%s1 + $0x420] sm:$0xff]
  %v163 = vld [vmem:[%s1 + $0x428] sm:$0xff]
  %v164 = vld [vmem:[%s1 + $0x430] sm:$0xff]
  %v165 = vld [vmem:[%s1 + $0x438] sm:$0xff]
  %v166 = vld [vmem:[%s1 + $0x440] sm:$0xff]
  %v167 = vld [vmem:[%s1 + $0x448] sm:$0xff]
  %v168 = vld [vmem:[%s1 + $0x450] sm:$0xff]
  %v169 = vld [vmem:[%s1 + $0x458] sm:$0xff]
  %v170 = vld [vmem:[%s1 + $0x460] sm:$0xff]
  %v171 = vld [vmem:[%s1 + $0x468] sm:$0xff]
  %v172 = vld [vmem:[%s1 + $0x470] sm:$0xff]
  %v173 = vld [vmem:[%s1 + $0x478] sm:$0xff]
  %v174 = vld [vmem:[%s1 + $0x480] sm:$0xff]
  %v175 = vld [vmem:[%s1 + $0x488] sm:$0xff]
  %v176 = vld [vmem:[%s1 + $0x490] sm:$0xff]
  %v177 = vld [vmem:[%s1 + $0x498] sm:$0xff]
  %v178 = vld [vmem:[%s1 + $0x4a0] sm:$0xff]
  %v179 = vld [vmem:[%s1 + $0x4a8] sm:$0xff]
  %v180 = vld [vmem:[%s1 + $0x4b0] sm:$0xff]
  %v181 = vld [vmem:[%s1 + $0x4b8] sm:$0xff]
  %v182 = vld [vmem:[%s1 + $0x4c0] sm:$0xff]
  %v183 = vld [vmem:[%s1 + $0x4c8] sm:$0xff]
  %v184 = vld [vmem:[%s1 + $0x4d0] sm:$0xff]
  %v185 = vld [vmem:[%s1 + $0x4d8] sm:$0xff]
  %v186 = vld [vmem:[%s1 + $0x4e0] sm:$0xff]
  %v187 = vld [vmem:[%s1 + $0x4e8] sm:$0xff]
  %v188 = vld [vmem:[%s1 + $0x4f0] sm:$0xff]
  %v189 = vld [vmem:[%s1 + $0x4f8] sm:$0xff]
  %v190 = vld [vmem:[%s1 + $0x500] sm:$0xff]
  %v191 = vld [vmem:[%s1 + $0x508] sm:$0xff]
  %v192 = vld [vmem:[%s1 + $0x510] sm:$0xff]
  %v193 = vld [vmem:[%s1 + $0x518] sm:$0xff]
  %v194 = vld [vmem:[%s1 + $0x520] sm:$0xff]
  %v195 = vld [vmem:[%s1 + $0x528] sm:$0xff]
  %v196 = vld [vmem:[%s1 + $0x530] sm:$0xff]
  %v197 = vld [vmem:[%s1 + $0x538] sm:$0xff]
  %v198 = vld [vmem:[%s1 + $0x540] sm:$0xff]
  %v199 = vld [vmem:[%s1 + $0x548] sm:$0xff]
  %v200 = vld [vmem:[%s1 + $0x550] sm:$0xff]
  %v201 = vld [vmem:[%s1 + $0x558] sm:$0xff]
  %v202 = vld [vmem:[%s1 + $0x560] sm:$0xff]
  %v203 = vld [vmem:[%s1 + $0x568] sm:$0xff]
  %v204 = vld [vmem:[%s1 + $0x570] sm:$0xff]
  %v205 = vld [vmem:[%s1 + $0x578] sm:$0xff]
  %v206 = vld [vmem:[%s1 + $0x580] sm:$0xff]
  %v207 = vld [vmem:[%s1 + $0x588] sm:$0xff]
  %v208 = vld [vmem:[%s1 + $0x590] sm:$0xff]
  %v209 = vld [vmem:[%s1 + $0x598] sm:$0xff]
  %v210 = vld [vmem:[%s1 + $0x5a0] sm:$0xff]
  %v211 = vld [vmem:[%s1 + $0x5a8] sm:$0xff]
  %v212 = vld [vmem:[%s1 + $0x5b0] sm:$0xff]
  %v213 = vld [vmem:[%s1 + $0x5b8] sm:$0xff]
  %v214 = vld [vmem:[%s1 + $0x5c0] sm:$0xff]
  %v215 = vld [vmem:[%s1 + $0x5c8] sm:$0xff]
  %v216 = vld [vmem:[%s1 + $0x5d0] sm:$0xff]
  %v217 = vld [vmem:[%s1 + $0x5d8] sm:$0xff]
  %v218 = vld [vmem:[%s1 + $0x5e0] sm:$0xff]
  %v219 = vld [vmem:[%s1 + $0x5e8] sm:$0xff]
  %v220 = vld [vmem:[%s1 + $0x5f0] sm:$0xff]
  %v221 = vld [vmem:[%s1 + $0x5f8] sm:$0xff]
  %v222 = vld [vmem:[%s1 + $0x600] sm:$0xff]
  %v223 = vld [vmem:[%s1 + $0x608] sm:$0xff]
  %v224 = vld [vmem:[%s1 + $0x610] sm:$0xff]
  %v225 = vld [vmem:[%s1 + $0x618] sm:$0xff]
  %v226 = vld [vmem:[%s1 + $0x620] sm:$0xff]
  %v227 = vld [vmem:[%s1 + $0x628] sm:$0xff]
  %v228 = vld [vmem:[%s1 + $0x630] sm:$0xff]
  %v229 = vld [vmem:[%s1 + $0x638] sm:$0xff]
  %v230 = vld [vmem:[%s1 + $0x640] sm:$0xff]
  %v231 = vld [vmem:[%s1 + $0x648] sm:$0xff]
  %v232 = vld [vmem:[%s1 + $0x650] sm:$0xff]
  %v233 = vld [vmem:[%s1 + $0x658] sm:$0xff]
  %v234 = vld [vmem:[%s1 + $0x660] sm:$0xff]
  %v235 = vld [vmem:[%s1 + $0x668] sm:$0xff]
  %v236 = vld [vmem:[%s1 + $0x670] sm:$0xff]
  %v237 = vld [vmem:[%s1 + $0x678] sm:$0xff]
  %v238 = vld [vmem:[%s1 + $0x680] sm:$0xff]
  %v239 = vld [vmem:[%s1 + $0x688] sm:$0xff]
  %v240 = vld [vmem:[%s1 + $0x690] sm:$0xff]
  %v241 = vld [vmem:[%s1 + $0x698] sm:$0xff]
  %v242 = vld [vmem:[%s1 + $0x6a0] sm:$0xff]
  %v243 = vld [vmem:[%s1 + $0x6a8] sm:$0xff]
  %v244 = vld [vmem:[%s1 + $0x6b0] sm:$0xff]
  %v245 = vld [vmem:[%s1 + $0x6b8] sm:$0xff]
  %v246 = vld [vmem:[%s1 + $0x6c0] sm:$0xff]
  %v247 = vld [vmem:[%s1 + $0x6c8] sm:$0xff]
  %v248 = vld [vmem:[%s1 + $0x6d0] sm:$0xff]
  %v249 = vld [vmem:[%s1 + $0x6d8] sm:$0xff]
  %v250 = vld [vmem:[%s1 + $0x6e0] sm:$0xff]
  %v251 = vld [vmem:[%s1 + $0x6e8] sm:$0xff]
  %v252 = vld [vmem:[%s1 + $0x6f0] sm:$0xff]
  %v253 = vld [vmem:[%s1 + $0x6f8] sm:$0xff]
  %v254 = vld [vmem:[%s1 + $0x700] sm:$0xff]
  %v255 = vld [vmem:[%s1 + $0x708] sm:$0xff]
  %v256 = vld [vmem:[%s1 + $0x710] sm:$0xff]
  %v257 = vld [vmem:[%s1 + $0x718] sm:$0xff]
  %v258 = vld [vmem:[%s1 + $0x720] sm:$0xff]
  %v259 = vld [vmem:[%s1 + $0x728] sm:$0xff]
  %v260 = vld [vmem:[%s1 + $0x730] sm:$0xff]
  %v261 = vld [vmem:[%s1 + $0x738] sm:$0xff]
  %v262 = vld [vmem:[%s1 + $0x740] sm:$0xff]
  %v263 = vld [vmem:[%s1 + $0x748] sm:$0xff]
  %v264 = vld [vmem:[%s1 + $0x750] sm:$0xff]
  %v265 = vld [vmem:[%s1 + $0x758] sm:$0xff]
  %v266 = vld [vmem:[%s1 + $0x760] sm:$0xff]
  %v267 = vld [vmem:[%s1 + $0x768] sm:$0xff]
  %v268 = vld [vmem:[%s1 + $0x770] sm:$0xff]
  %v269 = vld [vmem:[%s1 + $0x778] sm:$0xff]
  %v270 = vld [vmem:[%s1 + $0x780] sm:$0xff]
  %v271 = vld [vmem:[%s1 + $0x788] sm:$0xff]
  %v272 = vld [vmem:[%s1 + $0x790] sm:$0xff]
  %v273 = vld [vmem:[%s1 + $0x798] sm:$0xff]
  %v274 = vld [vmem:[%s1 + $0x7a0] sm:$0xff]
  %v275 = vld [vmem:[%s1 + $0x7a8] sm:$0xff]
  %v276 = vld [vmem:[%s1 + $0x7b0] sm:$0xff]
  %v277 = vld [vmem:[%s1 + $0x7b8] sm:$0xff]
  %v278 = vld [vmem:[%s1 + $0x7c0] sm:$0xff]
  %v279 = vld [vmem:[%s1 + $0x7c8] sm:$0xff]
  %v280 = vld [vmem:[%s1 + $0x7d0] sm:$0xff]
  %v281 = vld [vmem:[%s1 + $0x7d8] sm:$0xff]
  %v282 = vld [vmem:[%s1 + $0x7e0] sm:$0xff]
  %v283 = vld [vmem:[%s1 + $0x7e8] sm:$0xff]
  %v284 = vld [vmem:[%s1 + $0x7f0] sm:$0xff]
  %v285 = vld [vmem:[%s1 + $0x7f8] sm:$0xff]
  %v286 = vld [vmem:[%s1 + $0x800] sm:$0xff]
  %v287 = vld [vmem:[%s1 + $0x808] sm:$0xff]
  %v288 = vld [vmem:[%s1 + $0x810] sm:$0xff]
  %v289 = vld [vmem:[%s1 + $0x818] sm:$0xff]
  %v290 = vld [vmem:[%s1 + $0x820] sm:$0xff]
  %v291 = vld [vmem:[%s1 + $0x828] sm:$0xff]
  %v292 = vld [vmem:[%s1 + $0x830] sm:$0xff]
  %v293 = vld [vmem:[%s1 + $0x838] sm:$0xff]
  %v294 = vld [vmem:[%s1 + $0x840] sm:$0xff]
  %v295 = vld [vmem:[%s1 + $0x848] sm:$0xff]
  %v296 = vld [vmem:[%s1 + $0x850] sm:$0xff]
  %v297 = vld [vmem:[%s1 + $0x858] sm:$0xff]
  %v298 = vld [vmem:[%s1 + $0x860] sm:$0xff]
  %v299 = vld [vmem:[%s1 + $0x868] sm:$0xff]
  %v300 = vld [vmem:[%s1 + $0x870] sm:$0xff]
  %v301 = vld [vmem:[%s1 + $0x878] sm:$0xff]
  %v302 = vld [vmem:[%s1 + $0x880] sm:$0xff]
  %v303 = vld [vmem:[%s1 + $0x888] sm:$0xff]
  %v304 = vld [vmem:[%s1 + $0x890] sm:$0xff]
  %v305 = vld [vmem:[%s1 + $0x898] sm:$0xff]
  %v306 = vld [vmem:[%s1 + $0x8a0] sm:$0xff]
  %v307 = vld [vmem:[%s1 + $0x8a8] sm:$0xff]
  %v308 = vld [vmem:[%s1 + $0x8b0] sm:$0xff]
  %v309 = vld [vmem:[%s1 + $0x8b8] sm:$0xff]
  %v310 = vld [vmem:[%s1 + $0x8c0] sm:$0xff]
  %v311 = vld [vmem:[%s1 + $0x8c8] sm:$0xff]
  %v312 = vld [vmem:[%s1 + $0x8d0] sm:$0xff]
  %v313 = vld [vmem:[%s1 + $0x8d8] sm:$0xff]
  %v314 = vld [vmem:[%s1 + $0x8e0] sm:$0xff]
  %v315 = vld [vmem:[%s1 + $0x8e8] sm:$0xff]
  %v316 = vld [vmem:[%s1 + $0x8f0] sm:$0xff]
  %v317 = vld [vmem:[%s1 + $0x8f8] sm:$0xff]
  %v318 = vld [vmem:[%s1 + $0x900] sm:$0xff]
  %v319 = vld [vmem:[%s1 + $0x908] sm:$0xff]
  %v320 = vld [vmem:[%s1 + $0x910] sm:$0xff]
  %v321 = vld [vmem:[%s1 + $0x918] sm:$0xff]
  %v322 = vld [vmem:[%s1 + $0x920] sm:$0xff]
  %v323 = vld [vmem:[%s1 + $0x928] sm:$0xff]
  %v324 = vld [vmem:[%s1 + $0x930] sm:$0xff]
  %v325 = vld [vmem:[%s1 + $0x938] sm:$0xff]
  %v326 = vld [vmem:[%s1 + $0x940] sm:$0xff]
  %v327 = vld [vmem:[%s1 + $0x948] sm:$0xff]
  %v328 = vld [vmem:[%s1 + $0x950] sm:$0xff]
  %v329 = vld [vmem:[%s1 + $0x958] sm:$0xff]
  %v330 = vld [vmem:[%s1 + $0x960] sm:$0xff]
  %v331 = vld [vmem:[%s1 + $0x968] sm:$0xff]
  %v332 = vld [vmem:[%s1 + $0x970] sm:$0xff]
  %v333 = vld [vmem:[%s1 + $0x978] sm:$0xff]
  %v334 = vld [vmem:[%s1 + $0x980] sm:$0xff]
  %v335 = vld [vmem:[%s1 + $0x988] sm:$0xff]
  %v336 = vld [vmem:[%s1 + $0x990] sm:$0xff]
  %v337 = vld [vmem:[%s1 + $0x998] sm:$0xff]
  %v338 = vld [vmem:[%s1 + $0x9a0] sm:$0xff]
  %v339 = vld [vmem:[%s1 + $0x9a8] sm:$0xff]
  %v340 = vld [vmem:[%s1 + $0x9b0] sm:$0xff]
  %v341 = vld [vmem:[%s1 + $0x9b8] sm:$0xff]
  %v342 = vld [vmem:[%s1 + $0x9c0] sm:$0xff]
  %v343 = vld [vmem:[%s1 + $0x9c8] sm:$0xff]
  %v344 = vld [vmem:[%s1 + $0x9d0] sm:$0xff]
  %v345 = vld [vmem:[%s1 + $0x9d8] sm:$0xff]
  %v346 = vld [vmem:[%s1 + $0x9e0] sm:$0xff]
  %v347 = vld [vmem:[%s1 + $0x9e8] sm:$0xff]
  %v348 = vld [vmem:[%s1 + $0x9f0] sm:$0xff]
  %v349 = vld [vmem:[%s1 + $0x9f8] sm:$0xff]
  %v350 = vld [vmem:[%s1 + $0xa00] sm:$0xff]
  %v351 = vld [vmem:[%s1 + $0xa08] sm:$0xff]
  %v352 = vld [vmem:[%s1 + $0xa10] sm:$0xff]
  %v353 = vld [vmem:[%s1 + $0xa18] sm:$0xff]
  %v354 = vld [vmem:[%s1 + $0xa20] sm:$0xff]
  %v355 = vld [vmem:[%s1 + $0xa28] sm:$0xff]
  %v356 = vld [vmem:[%s1 + $0xa30] sm:$0xff]
  %v357 = vld [vmem:[%s1 + $0xa38] sm:$0xff]
  %v358 = vld [vmem:[%s1 + $0xa40] sm:$0xff]
  %v359 = vld [vmem:[%s1 + $0xa48] sm:$0xff]
  %v360 = vld [vmem:[%s1 + $0xa50] sm:$0xff]
  %v361 = vld [vmem:[%s1 + $0xa58] sm:$0xff]
  %v362 = vld [vmem:[%s1 + $0xa60] sm:$0xff]
  %v363 = vld [vmem:[%s1 + $0xa68] sm:$0xff]
  %v364 = vld [vmem:[%s1 + $0xa70] sm:$0xff]
  %v365 = vld [vmem:[%s1 + $0xa78] sm:$0xff]
  %v366 = vld [vmem:[%s1 + $0xa80] sm:$0xff]
  %v367 = vld [vmem:[%s1 + $0xa88] sm:$0xff]
  %v368 = vld [vmem:[%s1 + $0xa90] sm:$0xff]
  %v369 = vld [vmem:[%s1 + $0xa98] sm:$0xff]
  %v370 = vld [vmem:[%s1 + $0xaa0] sm:$0xff]
  %v371 = vld [vmem:[%s1 + $0xaa8] sm:$0xff]
  %v372 = vld [vmem:[%s1 + $0xab0] sm:$0xff]
  %v373 = vld [vmem:[%s1 + $0xab8] sm:$0xff]
  %v374 = vld [vmem:[%s1 + $0xac0] sm:$0xff]
  %v375 = vld [vmem:[%s1 + $0xac8] sm:$0xff]
  %v376 = vld [vmem:[%s1 + $0xad0] sm:$0xff]
  %v377 = vld [vmem:[%s1 + $0xad8] sm:$0xff]
  %v378 = vld [vmem:[%s1 + $0xae0] sm:$0xff]
  %v379 = vld [vmem:[%s1 + $0xae8] sm:$0xff]
  %v380 = vld [vmem:[%s1 + $0xaf0] sm:$0xff]
  %v381 = vld [vmem:[%s1 + $0xaf8] sm:$0xff]
  %v382 = vld [vmem:[%s1 + $0xb00] sm:$0xff]
  %v383 = vld [vmem:[%s1 + $0xb08] sm:$0xff]
  %v384 = vld [vmem:[%s1 + $0xb10] sm:$0xff]
  %v385 = vld [vmem:[%s1 + $0xb18] sm:$0xff]
  %v386 = vld [vmem:[%s1 + $0xb20] sm:$0xff]
  %v387 = vld [vmem:[%s1 + $0xb28] sm:$0xff]
  %v388 = vld [vmem:[%s1 + $0xb30] sm:$0xff]
  %v389 = vld [vmem:[%s1 + $0xb38] sm:$0xff]
  %v390 = vld [vmem:[%s1 + $0xb40] sm:$0xff]
  %v391 = vld [vmem:[%s1 + $0xb48] sm:$0xff]
  %v392 = vld [vmem:[%s1 + $0xb50] sm:$0xff]
  %v393 = vld [vmem:[%s1 + $0xb58] sm:$0xff]
  %v394 = vld [vmem:[%s1 + $0xb60] sm:$0xff]
  %v395 = vld [vmem:[%s1 + $0xb68] sm:$0xff]
  %v396 = vld [vmem:[%s1 + $0xb70] sm:$0xff]
  %v397 = vld [vmem:[%s1 + $0xb78] sm:$0xff]
  %v398 = vld [vmem:[%s1 + $0xb80] sm:$0xff]
  %v399 = vld [vmem:[%s1 + $0xb88] sm:$0xff]
  %v400 = vld [vmem:[%s1 + $0xb90] sm:$0xff]
  %v401 = vld [vmem:[%s1 + $0xb98] sm:$0xff]
  %v402 = vld [vmem:[%s1 + $0xba0] sm:$0xff]
  %v403 = vld [vmem:[%s1 + $0xba8] sm:$0xff]
  %v404 = vld [vmem:[%s1 + $0xbb0] sm:$0xff]
  %v405 = vld [vmem:[%s1 + $0xbb8] sm:$0xff]
  %v406 = vld [vmem:[%s1 + $0xbc0] sm:$0xff]
  %v407 = vld [vmem:[%s1 + $0xbc8] sm:$0xff]
  %v408 = vld [vmem:[%s1 + $0xbd0] sm:$0xff]
  %v409 = vld [vmem:[%s1 + $0xbd8] sm:$0xff]
  %v410 = vld [vmem:[%s1 + $0xbe0] sm:$0xff]
  %v411 = vld [vmem:[%s1 + $0xbe8] sm:$0xff]
  %v412 = vld [vmem:[%s1 + $0xbf0] sm:$0xff]
  %v413 = vld [vmem:[%s1 + $0xbf8] sm:$0xff]
  %v414 = vld [vmem:[%s1 + $0xc00] sm:$0xff]
  %v415 = vld [vmem:[%s1 + $0xc08] sm:$0xff]
  %v416 = vld [vmem:[%s1 + $0xc10] sm:$0xff]
  %v417 = vld [vmem:[%s1 + $0xc18] sm:$0xff]
  %v418 = vld [vmem:[%s1 + $0xc20] sm:$0xff]
  %v419 = vld [vmem:[%s1 + $0xc28] sm:$0xff]
  %v420 = vld [vmem:[%s1 + $0xc30] sm:$0xff]
  %v421 = vld [vmem:[%s1 + $0xc38] sm:$0xff]
  %v422 = vld [vmem:[%s1 + $0xc40] sm:$0xff]
  %v423 = vld [vmem:[%s1 + $0xc48] sm:$0xff]
  %v424 = vld [vmem:[%s1 + $0xc50] sm:$0xff]
  %v425 = vld [vmem:[%s1 + $0xc58] sm:$0xff]
  %v426 = vld [vmem:[%s1 + $0xc60] sm:$0xff]
  %v427 = vld [vmem:[%s1 + $0xc68] sm:$0xff]
  %v428 = vld [vmem:[%s1 + $0xc70] sm:$0xff]
  %v429 = vld [vmem:[%s1 + $0xc78] sm:$0xff]
  %v430 = vld [vmem:[%s1 + $0xc80] sm:$0xff]
  %v431 = vld [vmem:[%s1 + $0xc88] sm:$0xff]
  %v432 = vld [vmem:[%s1 + $0xc90] sm:$0xff]
  %v433 = vld [vmem:[%s1 + $0xc98] sm:$0xff]
  %v434 = vld [vmem:[%s1 + $0xca0] sm:$0xff]
  %v435 = vld [vmem:[%s1 + $0xca8] sm:$0xff]
  %v436 = vld [vmem:[%s1 + $0xcb0] sm:$0xff]
  %v437 = vld [vmem:[%s1 + $0xcb8] sm:$0xff]
  %v438 = vld [vmem:[%s1 + $0xcc0] sm:$0xff]
  %v439 = vld [vmem:[%s1 + $0xcc8] sm:$0xff]
  %v440 = vld [vmem:[%s1 + $0xcd0] sm:$0xff]
  %v441 = vld [vmem:[%s1 + $0xcd8] sm:$0xff]
  %v442 = vld [vmem:[%s1 + $0xce0] sm:$0xff]
  %v443 = vld [vmem:[%s1 + $0xce8] sm:$0xff]
  %v444 = vld [vmem:[%s1 + $0xcf0] sm:$0xff]
  %v445 = vld [vmem:[%s1 + $0xcf8] sm:$0xff]
  %v446 = vld [vmem:[%s1 + $0xd00] sm:$0xff]
  %v447 = vld [vmem:[%s1 + $0xd08] sm:$0xff]
  %v448 = vld [vmem:[%s1 + $0xd10] sm:$0xff]
  %v449 = vld [vmem:[%s1 + $0xd18] sm:$0xff]
  %v450 = vld [vmem:[%s1 + $0xd20] sm:$0xff]
  %v451 = vld [vmem:[%s1 + $0xd28] sm:$0xff]
  %v452 = vld [vmem:[%s1 + $0xd30] sm:$0xff]
  %v453 = vld [vmem:[%s1 + $0xd38] sm:$0xff]
  %v454 = vld [vmem:[%s1 + $0xd40] sm:$0xff]
  %v455 = vld [vmem:[%s1 + $0xd48] sm:$0xff]
  %v456 = vld [vmem:[%s1 + $0xd50] sm:$0xff]
  %v457 = vld [vmem:[%s1 + $0xd58] sm:$0xff]
  %v458 = vld [vmem:[%s1 + $0xd60] sm:$0xff]
  %v459 = vld [vmem:[%s1 + $0xd68] sm:$0xff]
  %v460 = vld [vmem:[%s1 + $0xd70] sm:$0xff]
  %v461 = vld [vmem:[%s1 + $0xd78] sm:$0xff]
  %v462 = vld [vmem:[%s1 + $0xd80] sm:$0xff]
  %v463 = vld [vmem:[%s1 + $0xd88] sm:$0xff]
  %v464 = vld [vmem:[%s1 + $0xd90] sm:$0xff]
  %v465 = vld [vmem:[%s1 + $0xd98] sm:$0xff]
  %v466 = vld [vmem:[%s1 + $0xda0] sm:$0xff]
  %v467 = vld [vmem:[%s1 + $0xda8] sm:$0xff]
  %v468 = vld [vmem:[%s1 + $0xdb0] sm:$0xff]
  %v469 = vld [vmem:[%s1 + $0xdb8] sm:$0xff]
  %v470 = vld [vmem:[%s1 + $0xdc0] sm:$0xff]
  %v471 = vld [vmem:[%s1 + $0xdc8] sm:$0xff]
  %v472 = vld [vmem:[%s1 + $0xdd0] sm:$0xff]
  %v473 = vld [vmem:[%s1 + $0xdd8] sm:$0xff]
  %v474 = vld [vmem:[%s1 + $0xde0] sm:$0xff]
  %v475 = vld [vmem:[%s1 + $0xde8] sm:$0xff]
  %v476 = vld [vmem:[%s1 + $0xdf0] sm:$0xff]
  %v477 = vld [vmem:[%s1 + $0xdf8] sm:$0xff]
  %v478 = vld [vmem:[%s1 + $0xe00] sm:$0xff]
  %v479 = vld [vmem:[%s1 + $0xe08] sm:$0xff]
  %v480 = vld [vmem:[%s1 + $0xe10] sm:$0xff]
  %v481 = vld [vmem:[%s1 + $0xe18] sm:$0xff]
  %v482 = vld [vmem:[%s1 + $0xe20] sm:$0xff]
  %v483 = vld [vmem:[%s1 + $0xe28] sm:$0xff]
  %v484 = vld [vmem:[%s1 + $0xe30] sm:$0xff]
  %v485 = vld [vmem:[%s1 + $0xe38] sm:$0xff]
  %v486 = vld [vmem:[%s1 + $0xe40] sm:$0xff]
  %v487 = vld [vmem:[%s1 + $0xe48] sm:$0xff]
  %v488 = vld [vmem:[%s1 + $0xe50] sm:$0xff]
  %v489 = vld [vmem:[%s1 + $0xe58] sm:$0xff]
  %v490 = vld [vmem:[%s1 + $0xe60] sm:$0xff]
  %v491 = vld [vmem:[%s1 + $0xe68] sm:$0xff]
  %v492 = vld [vmem:[%s1 + $0xe70] sm:$0xff]
  %v493 = vld [vmem:[%s1 + $0xe78] sm:$0xff]
  %v494 = vld [vmem:[%s1 + $0xe80] sm:$0xff]
  %v495 = vld [vmem:[%s1 + $0xe88] sm:$0xff]
  %v496 = vld [vmem:[%s1 + $0xe90] sm:$0xff]
  %v497 = vld [vmem:[%s1 + $0xe98] sm:$0xff]
  %v498 = vld [vmem:[%s1 + $0xea0] sm:$0xff]
  %v499 = vld [vmem:[%s1 + $0xea8] sm:$0xff]
  %v500 = vld [vmem:[%s1 + $0xeb0] sm:$0xff]
  %v501 = vld [vmem:[%s1 + $0xeb8] sm:$0xff]
  %v502 = vld [vmem:[%s1 + $0xec0] sm:$0xff]
  %v503 = vld [vmem:[%s1 + $0xec8] sm:$0xff]
  %v504 = vld [vmem:[%s1 + $0xed0] sm:$0xff]
  %v505 = vld [vmem:[%s1 + $0xed8] sm:$0xff]
  %v506 = vld [vmem:[%s1 + $0xee0] sm:$0xff]
  %v507 = vld [vmem:[%s1 + $0xee8] sm:$0xff]
  %v508 = vld [vmem:[%s1 + $0xef0] sm:$0xff]
  %v509 = vld [vmem:[%s1 + $0xef8] sm:$0xff]
  %v510 = vld [vmem:[%s1 + $0xf00] sm:$0xff]
  %v511 = vld [vmem:[%s1 + $0xf08] sm:$0xff]
  %v512 = vld [vmem:[%s1 + $0xf10] sm:$0xff]
  %v513 = vld [vmem:[%s1 + $0xf18] sm:$0xff]
  %v514 = vld [vmem:[%s1 + $0xf20] sm:$0xff]
  %v515 = vld [vmem:[%s1 + $0xf28] sm:$0xff]
  %v516 = vld [vmem:[%s1 + $0xf30] sm:$0xff]
  %v517 = vld [vmem:[%s1 + $0xf38] sm:$0xff]
  %v518 = vld [vmem:[%s1 + $0xf40] sm:$0xff]
  %v519 = vld [vmem:[%s1 + $0xf48] sm:$0xff]
  %v520 = vld [vmem:[%s1 + $0xf50] sm:$0xff]
  %v521 = vld [vmem:[%s1 + $0xf58] sm:$0xff]
  %v522 = vld [vmem:[%s1 + $0xf60] sm:$0xff]
  %v523 = vld [vmem:[%s1 + $0xf68] sm:$0xff]
  %v524 = vld [vmem:[%s1 + $0xf70] sm:$0xff]
  %v525 = vld [vmem:[%s1 + $0xf78] sm:$0xff]
  %v526 = vld [vmem:[%s1 + $0xf80] sm:$0xff]
  %v527 = vld [vmem:[%s1 + $0xf88] sm:$0xff]
  %v528 = vld [vmem:[%s1 + $0xf90] sm:$0xff]
  %v529 = vld [vmem:[%s1 + $0xf98] sm:$0xff]
  %v530 = vld [vmem:[%s1 + $0xfa0] sm:$0xff]
  %v531 = vld [vmem:[%s1 + $0xfa8] sm:$0xff]
  %v532 = vld [vmem:[%s1 + $0xfb0] sm:$0xff]
  %v533 = vld [vmem:[%s1 + $0xfb8] sm:$0xff]
  %v534 = vld [vmem:[%s1 + $0xfc0] sm:$0xff]
  %v535 = vld [vmem:[%s1 + $0xfc8] sm:$0xff]
  %v536 = vld [vmem:[%s1 + $0xfd0] sm:$0xff]
  %v537 = vld [vmem:[%s1 + $0xfd8] sm:$0xff]
  %v538 = vld [vmem:[%s1 + $0xfe0] sm:$0xff]
  %v539 = vld [vmem:[%s1 + $0xfe8] sm:$0xff]
  %v540 = vld [vmem:[%s1 + $0xff0] sm:$0xff]
  %v541 = vld [vmem:[%s1 + $0xff8] sm:$0xff]
  %v542 = vld [vmem:[%s2] sm:$0x3]
  %v544 = vperm.slane %v542, 0
  %v545 = vperm.slane %v542, 1
  %v564 = vunpack.c.l.b16 %v14
  %v565 = vunpack.c.h.b16 %v14
  %v566 = vunpack.c.l.b16 %v15
  %v567 = vunpack.c.h.b16 %v15
  %v568 = vunpack.c.l.b16 %v16
  %v569 = vunpack.c.h.b16 %v16
  %v570 = vunpack.c.l.b16 %v17
  %v571 = vunpack.c.h.b16 %v17
  %v572 = vunpack.c.l.b16 %v18
  %v573 = vunpack.c.h.b16 %v18
  %v574 = vunpack.c.l.b16 %v19
  %v575 = vunpack.c.h.b16 %v19
  %v576 = vunpack.c.l.b16 %v20
  %v577 = vunpack.c.h.b16 %v20
  %v578 = vunpack.c.l.b16 %v21
  %v579 = vunpack.c.h.b16 %v21
  %v580 = vunpack.c.l.b16 %v22
  %v581 = vunpack.c.h.b16 %v22
  %v582 = vunpack.c.l.b16 %v23
  %v583 = vunpack.c.h.b16 %v23
  %v584 = vunpack.c.l.b16 %v24
  %v585 = vunpack.c.h.b16 %v24
  %v586 = vunpack.c.l.b16 %v25
  %v587 = vunpack.c.h.b16 %v25
  %v588 = vunpack.c.l.b16 %v26
  %v589 = vunpack.c.h.b16 %v26
  %v590 = vunpack.c.l.b16 %v27
  %v591 = vunpack.c.h.b16 %v27
  %v592 = vunpack.c.l.b16 %v28
  %v593 = vunpack.c.h.b16 %v28
  %v594 = vunpack.c.l.b16 %v29
  %v595 = vunpack.c.h.b16 %v29
  %v596 = vpack.c.b16 %v564, %v564
  %v597 = vpack.c.b16 %v565, %v565
  %v598 = vpack.c.b16 %v566, %v566
  %v599 = vpack.c.b16 %v567, %v567
  %v600 = vpack.c.b16 %v568, %v568
  %v601 = vpack.c.b16 %v569, %v569
  %v602 = vpack.c.b16 %v570, %v570
  %v603 = vpack.c.b16 %v571, %v571
  %v604 = vpack.c.b16 %v572, %v572
  %v605 = vpack.c.b16 %v573, %v573
  %v606 = vpack.c.b16 %v574, %v574
  %v607 = vpack.c.b16 %v575, %v575
  %v608 = vpack.c.b16 %v576, %v576
  %v609 = vpack.c.b16 %v577, %v577
  %v610 = vpack.c.b16 %v578, %v578
  %v611 = vpack.c.b16 %v579, %v579
  %v612 = vpack.c.b16 %v580, %v580
  %v613 = vpack.c.b16 %v581, %v581
  %v614 = vpack.c.b16 %v582, %v582
  %v615 = vpack.c.b16 %v583, %v583
  %v616 = vpack.c.b16 %v584, %v584
  %v617 = vpack.c.b16 %v585, %v585
  %v618 = vpack.c.b16 %v586, %v586
  %v619 = vpack.c.b16 %v587, %v587
  %v620 = vpack.c.b16 %v588, %v588
  %v621 = vpack.c.b16 %v589, %v589
  %v622 = vpack.c.b16 %v590, %v590
  %v623 = vpack.c.b16 %v591, %v591
  %v624 = vpack.c.b16 %v592, %v592
  %v625 = vpack.c.b16 %v593, %v593
  %v626 = vpack.c.b16 %v594, %v594
  %v627 = vpack.c.b16 %v595, %v595
  %v1172 = vunpack.c.l.b16 %v30
  %v1173 = vunpack.c.h.b16 %v30
  %v1174 = vunpack.c.l.b16 %v31
  %v1175 = vunpack.c.h.b16 %v31
  %v1176 = vunpack.c.l.b16 %v32
  %v1177 = vunpack.c.h.b16 %v32
  %v1178 = vunpack.c.l.b16 %v33
  %v1179 = vunpack.c.h.b16 %v33
  %v1180 = vunpack.c.l.b16 %v34
  %v1181 = vunpack.c.h.b16 %v34
  %v1182 = vunpack.c.l.b16 %v35
  %v1183 = vunpack.c.h.b16 %v35
  %v1184 = vunpack.c.l.b16 %v36
  %v1185 = vunpack.c.h.b16 %v36
  %v1186 = vunpack.c.l.b16 %v37
  %v1187 = vunpack.c.h.b16 %v37
  %v1188 = vunpack.c.l.b16 %v38
  %v1189 = vunpack.c.h.b16 %v38
  %v1190 = vunpack.c.l.b16 %v39
  %v1191 = vunpack.c.h.b16 %v39
  %v1192 = vunpack.c.l.b16 %v40
  %v1193 = vunpack.c.h.b16 %v40
  %v1194 = vunpack.c.l.b16 %v41
  %v1195 = vunpack.c.h.b16 %v41
  %v1196 = vunpack.c.l.b16 %v42
  %v1197 = vunpack.c.h.b16 %v42
  %v1198 = vunpack.c.l.b16 %v43
  %v1199 = vunpack.c.h.b16 %v43
  %v1200 = vunpack.c.l.b16 %v44
  %v1201 = vunpack.c.h.b16 %v44
  %v1202 = vunpack.c.l.b16 %v45
  %v1203 = vunpack.c.h.b16 %v45
  %v1204 = vunpack.c.l.b16 %v46
  %v1205 = vunpack.c.h.b16 %v46
  %v1206 = vunpack.c.l.b16 %v47
  %v1207 = vunpack.c.h.b16 %v47
  %v1208 = vunpack.c.l.b16 %v48
  %v1209 = vunpack.c.h.b16 %v48
  %v1210 = vunpack.c.l.b16 %v49
  %v1211 = vunpack.c.h.b16 %v49
  %v1212 = vunpack.c.l.b16 %v50
  %v1213 = vunpack.c.h.b16 %v50
  %v1214 = vunpack.c.l.b16 %v51
  %v1215 = vunpack.c.h.b16 %v51
  %v1216 = vunpack.c.l.b16 %v52
  %v1217 = vunpack.c.h.b16 %v52
  %v1218 = vunpack.c.l.b16 %v53
  %v1219 = vunpack.c.h.b16 %v53
  %v1220 = vunpack.c.l.b16 %v54
  %v1221 = vunpack.c.h.b16 %v54
  %v1222 = vunpack.c.l.b16 %v55
  %v1223 = vunpack.c.h.b16 %v55
  %v1224 = vunpack.c.l.b16 %v56
  %v1225 = vunpack.c.h.b16 %v56
  %v1226 = vunpack.c.l.b16 %v57
  %v1227 = vunpack.c.h.b16 %v57
  %v1228 = vunpack.c.l.b16 %v58
  %v1229 = vunpack.c.h.b16 %v58
  %v1230 = vunpack.c.l.b16 %v59
  %v1231 = vunpack.c.h.b16 %v59
  %v1232 = vunpack.c.l.b16 %v60
  %v1233 = vunpack.c.h.b16 %v60
  %v1234 = vunpack.c.l.b16 %v61
  %v1235 = vunpack.c.h.b16 %v61
  %v1236 = vunpack.c.l.b16 %v62
  %v1237 = vunpack.c.h.b16 %v62
  %v1238 = vunpack.c.l.b16 %v63
  %v1239 = vunpack.c.h.b16 %v63
  %v1240 = vunpack.c.l.b16 %v64
  %v1241 = vunpack.c.h.b16 %v64
  %v1242 = vunpack.c.l.b16 %v65
  %v1243 = vunpack.c.h.b16 %v65
  %v1244 = vunpack.c.l.b16 %v66
  %v1245 = vunpack.c.h.b16 %v66
  %v1246 = vunpack.c.l.b16 %v67
  %v1247 = vunpack.c.h.b16 %v67
  %v1248 = vunpack.c.l.b16 %v68
  %v1249 = vunpack.c.h.b16 %v68
  %v1250 = vunpack.c.l.b16 %v69
  %v1251 = vunpack.c.h.b16 %v69
  %v1252 = vunpack.c.l.b16 %v70
  %v1253 = vunpack.c.h.b16 %v70
  %v1254 = vunpack.c.l.b16 %v71
  %v1255 = vunpack.c.h.b16 %v71
  %v1256 = vunpack.c.l.b16 %v72
  %v1257 = vunpack.c.h.b16 %v72
  %v1258 = vunpack.c.l.b16 %v73
  %v1259 = vunpack.c.h.b16 %v73
  %v1260 = vunpack.c.l.b16 %v74
  %v1261 = vunpack.c.h.b16 %v74
  %v1262 = vunpack.c.l.b16 %v75
  %v1263 = vunpack.c.h.b16 %v75
  %v1264 = vunpack.c.l.b16 %v76
  %v1265 = vunpack.c.h.b16 %v76
  %v1266 = vunpack.c.l.b16 %v77
  %v1267 = vunpack.c.h.b16 %v77
  %v1268 = vunpack.c.l.b16 %v78
  %v1269 = vunpack.c.h.b16 %v78
  %v1270 = vunpack.c.l.b16 %v79
  %v1271 = vunpack.c.h.b16 %v79
  %v1272 = vunpack.c.l.b16 %v80
  %v1273 = vunpack.c.h.b16 %v80
  %v1274 = vunpack.c.l.b16 %v81
  %v1275 = vunpack.c.h.b16 %v81
  %v1276 = vunpack.c.l.b16 %v82
  %v1277 = vunpack.c.h.b16 %v82
  %v1278 = vunpack.c.l.b16 %v83
  %v1279 = vunpack.c.h.b16 %v83
  %v1280 = vunpack.c.l.b16 %v84
  %v1281 = vunpack.c.h.b16 %v84
  %v1282 = vunpack.c.l.b16 %v85
  %v1283 = vunpack.c.h.b16 %v85
  %v1284 = vunpack.c.l.b16 %v86
  %v1285 = vunpack.c.h.b16 %v86
  %v1286 = vunpack.c.l.b16 %v87
  %v1287 = vunpack.c.h.b16 %v87
  %v1288 = vunpack.c.l.b16 %v88
  %v1289 = vunpack.c.h.b16 %v88
  %v1290 = vunpack.c.l.b16 %v89
  %v1291 = vunpack.c.h.b16 %v89
  %v1292 = vunpack.c.l.b16 %v90
  %v1293 = vunpack.c.h.b16 %v90
  %v1294 = vunpack.c.l.b16 %v91
  %v1295 = vunpack.c.h.b16 %v91
  %v1296 = vunpack.c.l.b16 %v92
  %v1297 = vunpack.c.h.b16 %v92
  %v1298 = vunpack.c.l.b16 %v93
  %v1299 = vunpack.c.h.b16 %v93
  %v1300 = vunpack.c.l.b16 %v94
  %v1301 = vunpack.c.h.b16 %v94
  %v1302 = vunpack.c.l.b16 %v95
  %v1303 = vunpack.c.h.b16 %v95
  %v1304 = vunpack.c.l.b16 %v96
  %v1305 = vunpack.c.h.b16 %v96
  %v1306 = vunpack.c.l.b16 %v97
  %v1307 = vunpack.c.h.b16 %v97
  %v1308 = vunpack.c.l.b16 %v98
  %v1309 = vunpack.c.h.b16 %v98
  %v1310 = vunpack.c.l.b16 %v99
  %v1311 = vunpack.c.h.b16 %v99
  %v1312 = vunpack.c.l.b16 %v100
  %v1313 = vunpack.c.h.b16 %v100
  %v1314 = vunpack.c.l.b16 %v101
  %v1315 = vunpack.c.h.b16 %v101
  %v1316 = vunpack.c.l.b16 %v102
  %v1317 = vunpack.c.h.b16 %v102
  %v1318 = vunpack.c.l.b16 %v103
  %v1319 = vunpack.c.h.b16 %v103
  %v1320 = vunpack.c.l.b16 %v104
  %v1321 = vunpack.c.h.b16 %v104
  %v1322 = vunpack.c.l.b16 %v105
  %v1323 = vunpack.c.h.b16 %v105
  %v1324 = vunpack.c.l.b16 %v106
  %v1325 = vunpack.c.h.b16 %v106
  %v1326 = vunpack.c.l.b16 %v107
  %v1327 = vunpack.c.h.b16 %v107
  %v1328 = vunpack.c.l.b16 %v108
  %v1329 = vunpack.c.h.b16 %v108
  %v1330 = vunpack.c.l.b16 %v109
  %v1331 = vunpack.c.h.b16 %v109
  %v1332 = vunpack.c.l.b16 %v110
  %v1333 = vunpack.c.h.b16 %v110
  %v1334 = vunpack.c.l.b16 %v111
  %v1335 = vunpack.c.h.b16 %v111
  %v1336 = vunpack.c.l.b16 %v112
  %v1337 = vunpack.c.h.b16 %v112
  %v1338 = vunpack.c.l.b16 %v113
  %v1339 = vunpack.c.h.b16 %v113
  %v1340 = vunpack.c.l.b16 %v114
  %v1341 = vunpack.c.h.b16 %v114
  %v1342 = vunpack.c.l.b16 %v115
  %v1343 = vunpack.c.h.b16 %v115
  %v1344 = vunpack.c.l.b16 %v116
  %v1345 = vunpack.c.h.b16 %v116
  %v1346 = vunpack.c.l.b16 %v117
  %v1347 = vunpack.c.h.b16 %v117
  %v1348 = vunpack.c.l.b16 %v118
  %v1349 = vunpack.c.h.b16 %v118
  %v1350 = vunpack.c.l.b16 %v119
  %v1351 = vunpack.c.h.b16 %v119
  %v1352 = vunpack.c.l.b16 %v120
  %v1353 = vunpack.c.h.b16 %v120
  %v1354 = vunpack.c.l.b16 %v121
  %v1355 = vunpack.c.h.b16 %v121
  %v1356 = vunpack.c.l.b16 %v122
  %v1357 = vunpack.c.h.b16 %v122
  %v1358 = vunpack.c.l.b16 %v123
  %v1359 = vunpack.c.h.b16 %v123
  %v1360 = vunpack.c.l.b16 %v124
  %v1361 = vunpack.c.h.b16 %v124
  %v1362 = vunpack.c.l.b16 %v125
  %v1363 = vunpack.c.h.b16 %v125
  %v1364 = vunpack.c.l.b16 %v126
  %v1365 = vunpack.c.h.b16 %v126
  %v1366 = vunpack.c.l.b16 %v127
  %v1367 = vunpack.c.h.b16 %v127
  %v1368 = vunpack.c.l.b16 %v128
  %v1369 = vunpack.c.h.b16 %v128
  %v1370 = vunpack.c.l.b16 %v129
  %v1371 = vunpack.c.h.b16 %v129
  %v1372 = vunpack.c.l.b16 %v130
  %v1373 = vunpack.c.h.b16 %v130
  %v1374 = vunpack.c.l.b16 %v131
  %v1375 = vunpack.c.h.b16 %v131
  %v1376 = vunpack.c.l.b16 %v132
  %v1377 = vunpack.c.h.b16 %v132
  %v1378 = vunpack.c.l.b16 %v133
  %v1379 = vunpack.c.h.b16 %v133
  %v1380 = vunpack.c.l.b16 %v134
  %v1381 = vunpack.c.h.b16 %v134
  %v1382 = vunpack.c.l.b16 %v135
  %v1383 = vunpack.c.h.b16 %v135
  %v1384 = vunpack.c.l.b16 %v136
  %v1385 = vunpack.c.h.b16 %v136
  %v1386 = vunpack.c.l.b16 %v137
  %v1387 = vunpack.c.h.b16 %v137
  %v1388 = vunpack.c.l.b16 %v138
  %v1389 = vunpack.c.h.b16 %v138
  %v1390 = vunpack.c.l.b16 %v139
  %v1391 = vunpack.c.h.b16 %v139
  %v1392 = vunpack.c.l.b16 %v140
  %v1393 = vunpack.c.h.b16 %v140
  %v1394 = vunpack.c.l.b16 %v141
  %v1395 = vunpack.c.h.b16 %v141
  %v1396 = vunpack.c.l.b16 %v142
  %v1397 = vunpack.c.h.b16 %v142
  %v1398 = vunpack.c.l.b16 %v143
  %v1399 = vunpack.c.h.b16 %v143
  %v1400 = vunpack.c.l.b16 %v144
  %v1401 = vunpack.c.h.b16 %v144
  %v1402 = vunpack.c.l.b16 %v145
  %v1403 = vunpack.c.h.b16 %v145
  %v1404 = vunpack.c.l.b16 %v146
  %v1405 = vunpack.c.h.b16 %v146
  %v1406 = vunpack.c.l.b16 %v147
  %v1407 = vunpack.c.h.b16 %v147
  %v1408 = vunpack.c.l.b16 %v148
  %v1409 = vunpack.c.h.b16 %v148
  %v1410 = vunpack.c.l.b16 %v149
  %v1411 = vunpack.c.h.b16 %v149
  %v1412 = vunpack.c.l.b16 %v150
  %v1413 = vunpack.c.h.b16 %v150
  %v1414 = vunpack.c.l.b16 %v151
  %v1415 = vunpack.c.h.b16 %v151
  %v1416 = vunpack.c.l.b16 %v152
  %v1417 = vunpack.c.h.b16 %v152
  %v1418 = vunpack.c.l.b16 %v153
  %v1419 = vunpack.c.h.b16 %v153
  %v1420 = vunpack.c.l.b16 %v154
  %v1421 = vunpack.c.h.b16 %v154
  %v1422 = vunpack.c.l.b16 %v155
  %v1423 = vunpack.c.h.b16 %v155
  %v1424 = vunpack.c.l.b16 %v156
  %v1425 = vunpack.c.h.b16 %v156
  %v1426 = vunpack.c.l.b16 %v157
  %v1427 = vunpack.c.h.b16 %v157
  %v1428 = vunpack.c.l.b16 %v158
  %v1429 = vunpack.c.h.b16 %v158
  %v1430 = vunpack.c.l.b16 %v159
  %v1431 = vunpack.c.h.b16 %v159
  %v1432 = vunpack.c.l.b16 %v160
  %v1433 = vunpack.c.h.b16 %v160
  %v1434 = vunpack.c.l.b16 %v161
  %v1435 = vunpack.c.h.b16 %v161
  %v1436 = vunpack.c.l.b16 %v162
  %v1437 = vunpack.c.h.b16 %v162
  %v1438 = vunpack.c.l.b16 %v163
  %v1439 = vunpack.c.h.b16 %v163
  %v1440 = vunpack.c.l.b16 %v164
  %v1441 = vunpack.c.h.b16 %v164
  %v1442 = vunpack.c.l.b16 %v165
  %v1443 = vunpack.c.h.b16 %v165
  %v1444 = vunpack.c.l.b16 %v166
  %v1445 = vunpack.c.h.b16 %v166
  %v1446 = vunpack.c.l.b16 %v167
  %v1447 = vunpack.c.h.b16 %v167
  %v1448 = vunpack.c.l.b16 %v168
  %v1449 = vunpack.c.h.b16 %v168
  %v1450 = vunpack.c.l.b16 %v169
  %v1451 = vunpack.c.h.b16 %v169
  %v1452 = vunpack.c.l.b16 %v170
  %v1453 = vunpack.c.h.b16 %v170
  %v1454 = vunpack.c.l.b16 %v171
  %v1455 = vunpack.c.h.b16 %v171
  %v1456 = vunpack.c.l.b16 %v172
  %v1457 = vunpack.c.h.b16 %v172
  %v1458 = vunpack.c.l.b16 %v173
  %v1459 = vunpack.c.h.b16 %v173
  %v1460 = vunpack.c.l.b16 %v174
  %v1461 = vunpack.c.h.b16 %v174
  %v1462 = vunpack.c.l.b16 %v175
  %v1463 = vunpack.c.h.b16 %v175
  %v1464 = vunpack.c.l.b16 %v176
  %v1465 = vunpack.c.h.b16 %v176
  %v1466 = vunpack.c.l.b16 %v177
  %v1467 = vunpack.c.h.b16 %v177
  %v1468 = vunpack.c.l.b16 %v178
  %v1469 = vunpack.c.h.b16 %v178
  %v1470 = vunpack.c.l.b16 %v179
  %v1471 = vunpack.c.h.b16 %v179
  %v1472 = vunpack.c.l.b16 %v180
  %v1473 = vunpack.c.h.b16 %v180
  %v1474 = vunpack.c.l.b16 %v181
  %v1475 = vunpack.c.h.b16 %v181
  %v1476 = vunpack.c.l.b16 %v182
  %v1477 = vunpack.c.h.b16 %v182
  %v1478 = vunpack.c.l.b16 %v183
  %v1479 = vunpack.c.h.b16 %v183
  %v1480 = vunpack.c.l.b16 %v184
  %v1481 = vunpack.c.h.b16 %v184
  %v1482 = vunpack.c.l.b16 %v185
  %v1483 = vunpack.c.h.b16 %v185
  %v1484 = vunpack.c.l.b16 %v186
  %v1485 = vunpack.c.h.b16 %v186
  %v1486 = vunpack.c.l.b16 %v187
  %v1487 = vunpack.c.h.b16 %v187
  %v1488 = vunpack.c.l.b16 %v188
  %v1489 = vunpack.c.h.b16 %v188
  %v1490 = vunpack.c.l.b16 %v189
  %v1491 = vunpack.c.h.b16 %v189
  %v1492 = vunpack.c.l.b16 %v190
  %v1493 = vunpack.c.h.b16 %v190
  %v1494 = vunpack.c.l.b16 %v191
  %v1495 = vunpack.c.h.b16 %v191
  %v1496 = vunpack.c.l.b16 %v192
  %v1497 = vunpack.c.h.b16 %v192
  %v1498 = vunpack.c.l.b16 %v193
  %v1499 = vunpack.c.h.b16 %v193
  %v1500 = vunpack.c.l.b16 %v194
  %v1501 = vunpack.c.h.b16 %v194
  %v1502 = vunpack.c.l.b16 %v195
  %v1503 = vunpack.c.h.b16 %v195
  %v1504 = vunpack.c.l.b16 %v196
  %v1505 = vunpack.c.h.b16 %v196
  %v1506 = vunpack.c.l.b16 %v197
  %v1507 = vunpack.c.h.b16 %v197
  %v1508 = vunpack.c.l.b16 %v198
  %v1509 = vunpack.c.h.b16 %v198
  %v1510 = vunpack.c.l.b16 %v199
  %v1511 = vunpack.c.h.b16 %v199
  %v1512 = vunpack.c.l.b16 %v200
  %v1513 = vunpack.c.h.b16 %v200
  %v1514 = vunpack.c.l.b16 %v201
  %v1515 = vunpack.c.h.b16 %v201
  %v1516 = vunpack.c.l.b16 %v202
  %v1517 = vunpack.c.h.b16 %v202
  %v1518 = vunpack.c.l.b16 %v203
  %v1519 = vunpack.c.h.b16 %v203
  %v1520 = vunpack.c.l.b16 %v204
  %v1521 = vunpack.c.h.b16 %v204
  %v1522 = vunpack.c.l.b16 %v205
  %v1523 = vunpack.c.h.b16 %v205
  %v1524 = vunpack.c.l.b16 %v206
  %v1525 = vunpack.c.h.b16 %v206
  %v1526 = vunpack.c.l.b16 %v207
  %v1527 = vunpack.c.h.b16 %v207
  %v1528 = vunpack.c.l.b16 %v208
  %v1529 = vunpack.c.h.b16 %v208
  %v1530 = vunpack.c.l.b16 %v209
  %v1531 = vunpack.c.h.b16 %v209
  %v1532 = vunpack.c.l.b16 %v210
  %v1533 = vunpack.c.h.b16 %v210
  %v1534 = vunpack.c.l.b16 %v211
  %v1535 = vunpack.c.h.b16 %v211
  %v1536 = vunpack.c.l.b16 %v212
  %v1537 = vunpack.c.h.b16 %v212
  %v1538 = vunpack.c.l.b16 %v213
  %v1539 = vunpack.c.h.b16 %v213
  %v1540 = vunpack.c.l.b16 %v214
  %v1541 = vunpack.c.h.b16 %v214
  %v1542 = vunpack.c.l.b16 %v215
  %v1543 = vunpack.c.h.b16 %v215
  %v1544 = vunpack.c.l.b16 %v216
  %v1545 = vunpack.c.h.b16 %v216
  %v1546 = vunpack.c.l.b16 %v217
  %v1547 = vunpack.c.h.b16 %v217
  %v1548 = vunpack.c.l.b16 %v218
  %v1549 = vunpack.c.h.b16 %v218
  %v1550 = vunpack.c.l.b16 %v219
  %v1551 = vunpack.c.h.b16 %v219
  %v1552 = vunpack.c.l.b16 %v220
  %v1553 = vunpack.c.h.b16 %v220
  %v1554 = vunpack.c.l.b16 %v221
  %v1555 = vunpack.c.h.b16 %v221
  %v1556 = vunpack.c.l.b16 %v222
  %v1557 = vunpack.c.h.b16 %v222
  %v1558 = vunpack.c.l.b16 %v223
  %v1559 = vunpack.c.h.b16 %v223
  %v1560 = vunpack.c.l.b16 %v224
  %v1561 = vunpack.c.h.b16 %v224
  %v1562 = vunpack.c.l.b16 %v225
  %v1563 = vunpack.c.h.b16 %v225
  %v1564 = vunpack.c.l.b16 %v226
  %v1565 = vunpack.c.h.b16 %v226
  %v1566 = vunpack.c.l.b16 %v227
  %v1567 = vunpack.c.h.b16 %v227
  %v1568 = vunpack.c.l.b16 %v228
  %v1569 = vunpack.c.h.b16 %v228
  %v1570 = vunpack.c.l.b16 %v229
  %v1571 = vunpack.c.h.b16 %v229
  %v1572 = vunpack.c.l.b16 %v230
  %v1573 = vunpack.c.h.b16 %v230
  %v1574 = vunpack.c.l.b16 %v231
  %v1575 = vunpack.c.h.b16 %v231
  %v1576 = vunpack.c.l.b16 %v232
  %v1577 = vunpack.c.h.b16 %v232
  %v1578 = vunpack.c.l.b16 %v233
  %v1579 = vunpack.c.h.b16 %v233
  %v1580 = vunpack.c.l.b16 %v234
  %v1581 = vunpack.c.h.b16 %v234
  %v1582 = vunpack.c.l.b16 %v235
  %v1583 = vunpack.c.h.b16 %v235
  %v1584 = vunpack.c.l.b16 %v236
  %v1585 = vunpack.c.h.b16 %v236
  %v1586 = vunpack.c.l.b16 %v237
  %v1587 = vunpack.c.h.b16 %v237
  %v1588 = vunpack.c.l.b16 %v238
  %v1589 = vunpack.c.h.b16 %v238
  %v1590 = vunpack.c.l.b16 %v239
  %v1591 = vunpack.c.h.b16 %v239
  %v1592 = vunpack.c.l.b16 %v240
  %v1593 = vunpack.c.h.b16 %v240
  %v1594 = vunpack.c.l.b16 %v241
  %v1595 = vunpack.c.h.b16 %v241
  %v1596 = vunpack.c.l.b16 %v242
  %v1597 = vunpack.c.h.b16 %v242
  %v1598 = vunpack.c.l.b16 %v243
  %v1599 = vunpack.c.h.b16 %v243
  %v1600 = vunpack.c.l.b16 %v244
  %v1601 = vunpack.c.h.b16 %v244
  %v1602 = vunpack.c.l.b16 %v245
  %v1603 = vunpack.c.h.b16 %v245
  %v1604 = vunpack.c.l.b16 %v246
  %v1605 = vunpack.c.h.b16 %v246
  %v1606 = vunpack.c.l.b16 %v247
  %v1607 = vunpack.c.h.b16 %v247
  %v1608 = vunpack.c.l.b16 %v248
  %v1609 = vunpack.c.h.b16 %v248
  %v1610 = vunpack.c.l.b16 %v249
  %v1611 = vunpack.c.h.b16 %v249
  %v1612 = vunpack.c.l.b16 %v250
  %v1613 = vunpack.c.h.b16 %v250
  %v1614 = vunpack.c.l.b16 %v251
  %v1615 = vunpack.c.h.b16 %v251
  %v1616 = vunpack.c.l.b16 %v252
  %v1617 = vunpack.c.h.b16 %v252
  %v1618 = vunpack.c.l.b16 %v253
  %v1619 = vunpack.c.h.b16 %v253
  %v1620 = vunpack.c.l.b16 %v254
  %v1621 = vunpack.c.h.b16 %v254
  %v1622 = vunpack.c.l.b16 %v255
  %v1623 = vunpack.c.h.b16 %v255
  %v1624 = vunpack.c.l.b16 %v256
  %v1625 = vunpack.c.h.b16 %v256
  %v1626 = vunpack.c.l.b16 %v257
  %v1627 = vunpack.c.h.b16 %v257
  %v1628 = vunpack.c.l.b16 %v258
  %v1629 = vunpack.c.h.b16 %v258
  %v1630 = vunpack.c.l.b16 %v259
  %v1631 = vunpack.c.h.b16 %v259
  %v1632 = vunpack.c.l.b16 %v260
  %v1633 = vunpack.c.h.b16 %v260
  %v1634 = vunpack.c.l.b16 %v261
  %v1635 = vunpack.c.h.b16 %v261
  %v1636 = vunpack.c.l.b16 %v262
  %v1637 = vunpack.c.h.b16 %v262
  %v1638 = vunpack.c.l.b16 %v263
  %v1639 = vunpack.c.h.b16 %v263
  %v1640 = vunpack.c.l.b16 %v264
  %v1641 = vunpack.c.h.b16 %v264
  %v1642 = vunpack.c.l.b16 %v265
  %v1643 = vunpack.c.h.b16 %v265
  %v1644 = vunpack.c.l.b16 %v266
  %v1645 = vunpack.c.h.b16 %v266
  %v1646 = vunpack.c.l.b16 %v267
  %v1647 = vunpack.c.h.b16 %v267
  %v1648 = vunpack.c.l.b16 %v268
  %v1649 = vunpack.c.h.b16 %v268
  %v1650 = vunpack.c.l.b16 %v269
  %v1651 = vunpack.c.h.b16 %v269
  %v1652 = vunpack.c.l.b16 %v270
  %v1653 = vunpack.c.h.b16 %v270
  %v1654 = vunpack.c.l.b16 %v271
  %v1655 = vunpack.c.h.b16 %v271
  %v1656 = vunpack.c.l.b16 %v272
  %v1657 = vunpack.c.h.b16 %v272
  %v1658 = vunpack.c.l.b16 %v273
  %v1659 = vunpack.c.h.b16 %v273
  %v1660 = vunpack.c.l.b16 %v274
  %v1661 = vunpack.c.h.b16 %v274
  %v1662 = vunpack.c.l.b16 %v275
  %v1663 = vunpack.c.h.b16 %v275
  %v1664 = vunpack.c.l.b16 %v276
  %v1665 = vunpack.c.h.b16 %v276
  %v1666 = vunpack.c.l.b16 %v277
  %v1667 = vunpack.c.h.b16 %v277
  %v1668 = vunpack.c.l.b16 %v278
  %v1669 = vunpack.c.h.b16 %v278
  %v1670 = vunpack.c.l.b16 %v279
  %v1671 = vunpack.c.h.b16 %v279
  %v1672 = vunpack.c.l.b16 %v280
  %v1673 = vunpack.c.h.b16 %v280
  %v1674 = vunpack.c.l.b16 %v281
  %v1675 = vunpack.c.h.b16 %v281
  %v1676 = vunpack.c.l.b16 %v282
  %v1677 = vunpack.c.h.b16 %v282
  %v1678 = vunpack.c.l.b16 %v283
  %v1679 = vunpack.c.h.b16 %v283
  %v1680 = vunpack.c.l.b16 %v284
  %v1681 = vunpack.c.h.b16 %v284
  %v1682 = vunpack.c.l.b16 %v285
  %v1683 = vunpack.c.h.b16 %v285
  %v1684 = vunpack.c.l.b16 %v286
  %v1685 = vunpack.c.h.b16 %v286
  %v1686 = vunpack.c.l.b16 %v287
  %v1687 = vunpack.c.h.b16 %v287
  %v1688 = vunpack.c.l.b16 %v288
  %v1689 = vunpack.c.h.b16 %v288
  %v1690 = vunpack.c.l.b16 %v289
  %v1691 = vunpack.c.h.b16 %v289
  %v1692 = vunpack.c.l.b16 %v290
  %v1693 = vunpack.c.h.b16 %v290
  %v1694 = vunpack.c.l.b16 %v291
  %v1695 = vunpack.c.h.b16 %v291
  %v1696 = vunpack.c.l.b16 %v292
  %v1697 = vunpack.c.h.b16 %v292
  %v1698 = vunpack.c.l.b16 %v293
  %v1699 = vunpack.c.h.b16 %v293
  %v1700 = vunpack.c.l.b16 %v294
  %v1701 = vunpack.c.h.b16 %v294
  %v1702 = vunpack.c.l.b16 %v295
  %v1703 = vunpack.c.h.b16 %v295
  %v1704 = vunpack.c.l.b16 %v296
  %v1705 = vunpack.c.h.b16 %v296
  %v1706 = vunpack.c.l.b16 %v297
  %v1707 = vunpack.c.h.b16 %v297
  %v1708 = vunpack.c.l.b16 %v298
  %v1709 = vunpack.c.h.b16 %v298
  %v1710 = vunpack.c.l.b16 %v299
  %v1711 = vunpack.c.h.b16 %v299
  %v1712 = vunpack.c.l.b16 %v300
  %v1713 = vunpack.c.h.b16 %v300
  %v1714 = vunpack.c.l.b16 %v301
  %v1715 = vunpack.c.h.b16 %v301
  %v1716 = vunpack.c.l.b16 %v302
  %v1717 = vunpack.c.h.b16 %v302
  %v1718 = vunpack.c.l.b16 %v303
  %v1719 = vunpack.c.h.b16 %v303
  %v1720 = vunpack.c.l.b16 %v304
  %v1721 = vunpack.c.h.b16 %v304
  %v1722 = vunpack.c.l.b16 %v305
  %v1723 = vunpack.c.h.b16 %v305
  %v1724 = vunpack.c.l.b16 %v306
  %v1725 = vunpack.c.h.b16 %v306
  %v1726 = vunpack.c.l.b16 %v307
  %v1727 = vunpack.c.h.b16 %v307
  %v1728 = vunpack.c.l.b16 %v308
  %v1729 = vunpack.c.h.b16 %v308
  %v1730 = vunpack.c.l.b16 %v309
  %v1731 = vunpack.c.h.b16 %v309
  %v1732 = vunpack.c.l.b16 %v310
  %v1733 = vunpack.c.h.b16 %v310
  %v1734 = vunpack.c.l.b16 %v311
  %v1735 = vunpack.c.h.b16 %v311
  %v1736 = vunpack.c.l.b16 %v312
  %v1737 = vunpack.c.h.b16 %v312
  %v1738 = vunpack.c.l.b16 %v313
  %v1739 = vunpack.c.h.b16 %v313
  %v1740 = vunpack.c.l.b16 %v314
  %v1741 = vunpack.c.h.b16 %v314
  %v1742 = vunpack.c.l.b16 %v315
  %v1743 = vunpack.c.h.b16 %v315
  %v1744 = vunpack.c.l.b16 %v316
  %v1745 = vunpack.c.h.b16 %v316
  %v1746 = vunpack.c.l.b16 %v317
  %v1747 = vunpack.c.h.b16 %v317
  %v1748 = vunpack.c.l.b16 %v318
  %v1749 = vunpack.c.h.b16 %v318
  %v1750 = vunpack.c.l.b16 %v319
  %v1751 = vunpack.c.h.b16 %v319
  %v1752 = vunpack.c.l.b16 %v320
  %v1753 = vunpack.c.h.b16 %v320
  %v1754 = vunpack.c.l.b16 %v321
  %v1755 = vunpack.c.h.b16 %v321
  %v1756 = vunpack.c.l.b16 %v322
  %v1757 = vunpack.c.h.b16 %v322
  %v1758 = vunpack.c.l.b16 %v323
  %v1759 = vunpack.c.h.b16 %v323
  %v1760 = vunpack.c.l.b16 %v324
  %v1761 = vunpack.c.h.b16 %v324
  %v1762 = vunpack.c.l.b16 %v325
  %v1763 = vunpack.c.h.b16 %v325
  %v1764 = vunpack.c.l.b16 %v326
  %v1765 = vunpack.c.h.b16 %v326
  %v1766 = vunpack.c.l.b16 %v327
  %v1767 = vunpack.c.h.b16 %v327
  %v1768 = vunpack.c.l.b16 %v328
  %v1769 = vunpack.c.h.b16 %v328
  %v1770 = vunpack.c.l.b16 %v329
  %v1771 = vunpack.c.h.b16 %v329
  %v1772 = vunpack.c.l.b16 %v330
  %v1773 = vunpack.c.h.b16 %v330
  %v1774 = vunpack.c.l.b16 %v331
  %v1775 = vunpack.c.h.b16 %v331
  %v1776 = vunpack.c.l.b16 %v332
  %v1777 = vunpack.c.h.b16 %v332
  %v1778 = vunpack.c.l.b16 %v333
  %v1779 = vunpack.c.h.b16 %v333
  %v1780 = vunpack.c.l.b16 %v334
  %v1781 = vunpack.c.h.b16 %v334
  %v1782 = vunpack.c.l.b16 %v335
  %v1783 = vunpack.c.h.b16 %v335
  %v1784 = vunpack.c.l.b16 %v336
  %v1785 = vunpack.c.h.b16 %v336
  %v1786 = vunpack.c.l.b16 %v337
  %v1787 = vunpack.c.h.b16 %v337
  %v1788 = vunpack.c.l.b16 %v338
  %v1789 = vunpack.c.h.b16 %v338
  %v1790 = vunpack.c.l.b16 %v339
  %v1791 = vunpack.c.h.b16 %v339
  %v1792 = vunpack.c.l.b16 %v340
  %v1793 = vunpack.c.h.b16 %v340
  %v1794 = vunpack.c.l.b16 %v341
  %v1795 = vunpack.c.h.b16 %v341
  %v1796 = vunpack.c.l.b16 %v342
  %v1797 = vunpack.c.h.b16 %v342
  %v1798 = vunpack.c.l.b16 %v343
  %v1799 = vunpack.c.h.b16 %v343
  %v1800 = vunpack.c.l.b16 %v344
  %v1801 = vunpack.c.h.b16 %v344
  %v1802 = vunpack.c.l.b16 %v345
  %v1803 = vunpack.c.h.b16 %v345
  %v1804 = vunpack.c.l.b16 %v346
  %v1805 = vunpack.c.h.b16 %v346
  %v1806 = vunpack.c.l.b16 %v347
  %v1807 = vunpack.c.h.b16 %v347
  %v1808 = vunpack.c.l.b16 %v348
  %v1809 = vunpack.c.h.b16 %v348
  %v1810 = vunpack.c.l.b16 %v349
  %v1811 = vunpack.c.h.b16 %v349
  %v1812 = vunpack.c.l.b16 %v350
  %v1813 = vunpack.c.h.b16 %v350
  %v1814 = vunpack.c.l.b16 %v351
  %v1815 = vunpack.c.h.b16 %v351
  %v1816 = vunpack.c.l.b16 %v352
  %v1817 = vunpack.c.h.b16 %v352
  %v1818 = vunpack.c.l.b16 %v353
  %v1819 = vunpack.c.h.b16 %v353
  %v1820 = vunpack.c.l.b16 %v354
  %v1821 = vunpack.c.h.b16 %v354
  %v1822 = vunpack.c.l.b16 %v355
  %v1823 = vunpack.c.h.b16 %v355
  %v1824 = vunpack.c.l.b16 %v356
  %v1825 = vunpack.c.h.b16 %v356
  %v1826 = vunpack.c.l.b16 %v357
  %v1827 = vunpack.c.h.b16 %v357
  %v1828 = vunpack.c.l.b16 %v358
  %v1829 = vunpack.c.h.b16 %v358
  %v1830 = vunpack.c.l.b16 %v359
  %v1831 = vunpack.c.h.b16 %v359
  %v1832 = vunpack.c.l.b16 %v360
  %v1833 = vunpack.c.h.b16 %v360
  %v1834 = vunpack.c.l.b16 %v361
  %v1835 = vunpack.c.h.b16 %v361
  %v1836 = vunpack.c.l.b16 %v362
  %v1837 = vunpack.c.h.b16 %v362
  %v1838 = vunpack.c.l.b16 %v363
  %v1839 = vunpack.c.h.b16 %v363
  %v1840 = vunpack.c.l.b16 %v364
  %v1841 = vunpack.c.h.b16 %v364
  %v1842 = vunpack.c.l.b16 %v365
  %v1843 = vunpack.c.h.b16 %v365
  %v1844 = vunpack.c.l.b16 %v366
  %v1845 = vunpack.c.h.b16 %v366
  %v1846 = vunpack.c.l.b16 %v367
  %v1847 = vunpack.c.h.b16 %v367
  %v1848 = vunpack.c.l.b16 %v368
  %v1849 = vunpack.c.h.b16 %v368
  %v1850 = vunpack.c.l.b16 %v369
  %v1851 = vunpack.c.h.b16 %v369
  %v1852 = vunpack.c.l.b16 %v370
  %v1853 = vunpack.c.h.b16 %v370
  %v1854 = vunpack.c.l.b16 %v371
  %v1855 = vunpack.c.h.b16 %v371
  %v1856 = vunpack.c.l.b16 %v372
  %v1857 = vunpack.c.h.b16 %v372
  %v1858 = vunpack.c.l.b16 %v373
  %v1859 = vunpack.c.h.b16 %v373
  %v1860 = vunpack.c.l.b16 %v374
  %v1861 = vunpack.c.h.b16 %v374
  %v1862 = vunpack.c.l.b16 %v375
  %v1863 = vunpack.c.h.b16 %v375
  %v1864 = vunpack.c.l.b16 %v376
  %v1865 = vunpack.c.h.b16 %v376
  %v1866 = vunpack.c.l.b16 %v377
  %v1867 = vunpack.c.h.b16 %v377
  %v1868 = vunpack.c.l.b16 %v378
  %v1869 = vunpack.c.h.b16 %v378
  %v1870 = vunpack.c.l.b16 %v379
  %v1871 = vunpack.c.h.b16 %v379
  %v1872 = vunpack.c.l.b16 %v380
  %v1873 = vunpack.c.h.b16 %v380
  %v1874 = vunpack.c.l.b16 %v381
  %v1875 = vunpack.c.h.b16 %v381
  %v1876 = vunpack.c.l.b16 %v382
  %v1877 = vunpack.c.h.b16 %v382
  %v1878 = vunpack.c.l.b16 %v383
  %v1879 = vunpack.c.h.b16 %v383
  %v1880 = vunpack.c.l.b16 %v384
  %v1881 = vunpack.c.h.b16 %v384
  %v1882 = vunpack.c.l.b16 %v385
  %v1883 = vunpack.c.h.b16 %v385
  %v1884 = vunpack.c.l.b16 %v386
  %v1885 = vunpack.c.h.b16 %v386
  %v1886 = vunpack.c.l.b16 %v387
  %v1887 = vunpack.c.h.b16 %v387
  %v1888 = vunpack.c.l.b16 %v388
  %v1889 = vunpack.c.h.b16 %v388
  %v1890 = vunpack.c.l.b16 %v389
  %v1891 = vunpack.c.h.b16 %v389
  %v1892 = vunpack.c.l.b16 %v390
  %v1893 = vunpack.c.h.b16 %v390
  %v1894 = vunpack.c.l.b16 %v391
  %v1895 = vunpack.c.h.b16 %v391
  %v1896 = vunpack.c.l.b16 %v392
  %v1897 = vunpack.c.h.b16 %v392
  %v1898 = vunpack.c.l.b16 %v393
  %v1899 = vunpack.c.h.b16 %v393
  %v1900 = vunpack.c.l.b16 %v394
  %v1901 = vunpack.c.h.b16 %v394
  %v1902 = vunpack.c.l.b16 %v395
  %v1903 = vunpack.c.h.b16 %v395
  %v1904 = vunpack.c.l.b16 %v396
  %v1905 = vunpack.c.h.b16 %v396
  %v1906 = vunpack.c.l.b16 %v397
  %v1907 = vunpack.c.h.b16 %v397
  %v1908 = vunpack.c.l.b16 %v398
  %v1909 = vunpack.c.h.b16 %v398
  %v1910 = vunpack.c.l.b16 %v399
  %v1911 = vunpack.c.h.b16 %v399
  %v1912 = vunpack.c.l.b16 %v400
  %v1913 = vunpack.c.h.b16 %v400
  %v1914 = vunpack.c.l.b16 %v401
  %v1915 = vunpack.c.h.b16 %v401
  %v1916 = vunpack.c.l.b16 %v402
  %v1917 = vunpack.c.h.b16 %v402
  %v1918 = vunpack.c.l.b16 %v403
  %v1919 = vunpack.c.h.b16 %v403
  %v1920 = vunpack.c.l.b16 %v404
  %v1921 = vunpack.c.h.b16 %v404
  %v1922 = vunpack.c.l.b16 %v405
  %v1923 = vunpack.c.h.b16 %v405
  %v1924 = vunpack.c.l.b16 %v406
  %v1925 = vunpack.c.h.b16 %v406
  %v1926 = vunpack.c.l.b16 %v407
  %v1927 = vunpack.c.h.b16 %v407
  %v1928 = vunpack.c.l.b16 %v408
  %v1929 = vunpack.c.h.b16 %v408
  %v1930 = vunpack.c.l.b16 %v409
  %v1931 = vunpack.c.h.b16 %v409
  %v1932 = vunpack.c.l.b16 %v410
  %v1933 = vunpack.c.h.b16 %v410
  %v1934 = vunpack.c.l.b16 %v411
  %v1935 = vunpack.c.h.b16 %v411
  %v1936 = vunpack.c.l.b16 %v412
  %v1937 = vunpack.c.h.b16 %v412
  %v1938 = vunpack.c.l.b16 %v413
  %v1939 = vunpack.c.h.b16 %v413
  %v1940 = vunpack.c.l.b16 %v414
  %v1941 = vunpack.c.h.b16 %v414
  %v1942 = vunpack.c.l.b16 %v415
  %v1943 = vunpack.c.h.b16 %v415
  %v1944 = vunpack.c.l.b16 %v416
  %v1945 = vunpack.c.h.b16 %v416
  %v1946 = vunpack.c.l.b16 %v417
  %v1947 = vunpack.c.h.b16 %v417
  %v1948 = vunpack.c.l.b16 %v418
  %v1949 = vunpack.c.h.b16 %v418
  %v1950 = vunpack.c.l.b16 %v419
  %v1951 = vunpack.c.h.b16 %v419
  %v1952 = vunpack.c.l.b16 %v420
  %v1953 = vunpack.c.h.b16 %v420
  %v1954 = vunpack.c.l.b16 %v421
  %v1955 = vunpack.c.h.b16 %v421
  %v1956 = vunpack.c.l.b16 %v422
  %v1957 = vunpack.c.h.b16 %v422
  %v1958 = vunpack.c.l.b16 %v423
  %v1959 = vunpack.c.h.b16 %v423
  %v1960 = vunpack.c.l.b16 %v424
  %v1961 = vunpack.c.h.b16 %v424
  %v1962 = vunpack.c.l.b16 %v425
  %v1963 = vunpack.c.h.b16 %v425
  %v1964 = vunpack.c.l.b16 %v426
  %v1965 = vunpack.c.h.b16 %v426
  %v1966 = vunpack.c.l.b16 %v427
  %v1967 = vunpack.c.h.b16 %v427
  %v1968 = vunpack.c.l.b16 %v428
  %v1969 = vunpack.c.h.b16 %v428
  %v1970 = vunpack.c.l.b16 %v429
  %v1971 = vunpack.c.h.b16 %v429
  %v1972 = vunpack.c.l.b16 %v430
  %v1973 = vunpack.c.h.b16 %v430
  %v1974 = vunpack.c.l.b16 %v431
  %v1975 = vunpack.c.h.b16 %v431
  %v1976 = vunpack.c.l.b16 %v432
  %v1977 = vunpack.c.h.b16 %v432
  %v1978 = vunpack.c.l.b16 %v433
  %v1979 = vunpack.c.h.b16 %v433
  %v1980 = vunpack.c.l.b16 %v434
  %v1981 = vunpack.c.h.b16 %v434
  %v1982 = vunpack.c.l.b16 %v435
  %v1983 = vunpack.c.h.b16 %v435
  %v1984 = vunpack.c.l.b16 %v436
  %v1985 = vunpack.c.h.b16 %v436
  %v1986 = vunpack.c.l.b16 %v437
  %v1987 = vunpack.c.h.b16 %v437
  %v1988 = vunpack.c.l.b16 %v438
  %v1989 = vunpack.c.h.b16 %v438
  %v1990 = vunpack.c.l.b16 %v439
  %v1991 = vunpack.c.h.b16 %v439
  %v1992 = vunpack.c.l.b16 %v440
  %v1993 = vunpack.c.h.b16 %v440
  %v1994 = vunpack.c.l.b16 %v441
  %v1995 = vunpack.c.h.b16 %v441
  %v1996 = vunpack.c.l.b16 %v442
  %v1997 = vunpack.c.h.b16 %v442
  %v1998 = vunpack.c.l.b16 %v443
  %v1999 = vunpack.c.h.b16 %v443
  %v2000 = vunpack.c.l.b16 %v444
  %v2001 = vunpack.c.h.b16 %v444
  %v2002 = vunpack.c.l.b16 %v445
  %v2003 = vunpack.c.h.b16 %v445
  %v2004 = vunpack.c.l.b16 %v446
  %v2005 = vunpack.c.h.b16 %v446
  %v2006 = vunpack.c.l.b16 %v447
  %v2007 = vunpack.c.h.b16 %v447
  %v2008 = vunpack.c.l.b16 %v448
  %v2009 = vunpack.c.h.b16 %v448
  %v2010 = vunpack.c.l.b16 %v449
  %v2011 = vunpack.c.h.b16 %v449
  %v2012 = vunpack.c.l.b16 %v450
  %v2013 = vunpack.c.h.b16 %v450
  %v2014 = vunpack.c.l.b16 %v451
  %v2015 = vunpack.c.h.b16 %v451
  %v2016 = vunpack.c.l.b16 %v452
  %v2017 = vunpack.c.h.b16 %v452
  %v2018 = vunpack.c.l.b16 %v453
  %v2019 = vunpack.c.h.b16 %v453
  %v2020 = vunpack.c.l.b16 %v454
  %v2021 = vunpack.c.h.b16 %v454
  %v2022 = vunpack.c.l.b16 %v455
  %v2023 = vunpack.c.h.b16 %v455
  %v2024 = vunpack.c.l.b16 %v456
  %v2025 = vunpack.c.h.b16 %v456
  %v2026 = vunpack.c.l.b16 %v457
  %v2027 = vunpack.c.h.b16 %v457
  %v2028 = vunpack.c.l.b16 %v458
  %v2029 = vunpack.c.h.b16 %v458
  %v2030 = vunpack.c.l.b16 %v459
  %v2031 = vunpack.c.h.b16 %v459
  %v2032 = vunpack.c.l.b16 %v460
  %v2033 = vunpack.c.h.b16 %v460
  %v2034 = vunpack.c.l.b16 %v461
  %v2035 = vunpack.c.h.b16 %v461
  %v2036 = vunpack.c.l.b16 %v462
  %v2037 = vunpack.c.h.b16 %v462
  %v2038 = vunpack.c.l.b16 %v463
  %v2039 = vunpack.c.h.b16 %v463
  %v2040 = vunpack.c.l.b16 %v464
  %v2041 = vunpack.c.h.b16 %v464
  %v2042 = vunpack.c.l.b16 %v465
  %v2043 = vunpack.c.h.b16 %v465
  %v2044 = vunpack.c.l.b16 %v466
  %v2045 = vunpack.c.h.b16 %v466
  %v2046 = vunpack.c.l.b16 %v467
  %v2047 = vunpack.c.h.b16 %v467
  %v2048 = vunpack.c.l.b16 %v468
  %v2049 = vunpack.c.h.b16 %v468
  %v2050 = vunpack.c.l.b16 %v469
  %v2051 = vunpack.c.h.b16 %v469
  %v2052 = vunpack.c.l.b16 %v470
  %v2053 = vunpack.c.h.b16 %v470
  %v2054 = vunpack.c.l.b16 %v471
  %v2055 = vunpack.c.h.b16 %v471
  %v2056 = vunpack.c.l.b16 %v472
  %v2057 = vunpack.c.h.b16 %v472
  %v2058 = vunpack.c.l.b16 %v473
  %v2059 = vunpack.c.h.b16 %v473
  %v2060 = vunpack.c.l.b16 %v474
  %v2061 = vunpack.c.h.b16 %v474
  %v2062 = vunpack.c.l.b16 %v475
  %v2063 = vunpack.c.h.b16 %v475
  %v2064 = vunpack.c.l.b16 %v476
  %v2065 = vunpack.c.h.b16 %v476
  %v2066 = vunpack.c.l.b16 %v477
  %v2067 = vunpack.c.h.b16 %v477
  %v2068 = vunpack.c.l.b16 %v478
  %v2069 = vunpack.c.h.b16 %v478
  %v2070 = vunpack.c.l.b16 %v479
  %v2071 = vunpack.c.h.b16 %v479
  %v2072 = vunpack.c.l.b16 %v480
  %v2073 = vunpack.c.h.b16 %v480
  %v2074 = vunpack.c.l.b16 %v481
  %v2075 = vunpack.c.h.b16 %v481
  %v2076 = vunpack.c.l.b16 %v482
  %v2077 = vunpack.c.h.b16 %v482
  %v2078 = vunpack.c.l.b16 %v483
  %v2079 = vunpack.c.h.b16 %v483
  %v2080 = vunpack.c.l.b16 %v484
  %v2081 = vunpack.c.h.b16 %v484
  %v2082 = vunpack.c.l.b16 %v485
  %v2083 = vunpack.c.h.b16 %v485
  %v2084 = vunpack.c.l.b16 %v486
  %v2085 = vunpack.c.h.b16 %v486
  %v2086 = vunpack.c.l.b16 %v487
  %v2087 = vunpack.c.h.b16 %v487
  %v2088 = vunpack.c.l.b16 %v488
  %v2089 = vunpack.c.h.b16 %v488
  %v2090 = vunpack.c.l.b16 %v489
  %v2091 = vunpack.c.h.b16 %v489
  %v2092 = vunpack.c.l.b16 %v490
  %v2093 = vunpack.c.h.b16 %v490
  %v2094 = vunpack.c.l.b16 %v491
  %v2095 = vunpack.c.h.b16 %v491
  %v2096 = vunpack.c.l.b16 %v492
  %v2097 = vunpack.c.h.b16 %v492
  %v2098 = vunpack.c.l.b16 %v493
  %v2099 = vunpack.c.h.b16 %v493
  %v2100 = vunpack.c.l.b16 %v494
  %v2101 = vunpack.c.h.b16 %v494
  %v2102 = vunpack.c.l.b16 %v495
  %v2103 = vunpack.c.h.b16 %v495
  %v2104 = vunpack.c.l.b16 %v496
  %v2105 = vunpack.c.h.b16 %v496
  %v2106 = vunpack.c.l.b16 %v497
  %v2107 = vunpack.c.h.b16 %v497
  %v2108 = vunpack.c.l.b16 %v498
  %v2109 = vunpack.c.h.b16 %v498
  %v2110 = vunpack.c.l.b16 %v499
  %v2111 = vunpack.c.h.b16 %v499
  %v2112 = vunpack.c.l.b16 %v500
  %v2113 = vunpack.c.h.b16 %v500
  %v2114 = vunpack.c.l.b16 %v501
  %v2115 = vunpack.c.h.b16 %v501
  %v2116 = vunpack.c.l.b16 %v502
  %v2117 = vunpack.c.h.b16 %v502
  %v2118 = vunpack.c.l.b16 %v503
  %v2119 = vunpack.c.h.b16 %v503
  %v2120 = vunpack.c.l.b16 %v504
  %v2121 = vunpack.c.h.b16 %v504
  %v2122 = vunpack.c.l.b16 %v505
  %v2123 = vunpack.c.h.b16 %v505
  %v2124 = vunpack.c.l.b16 %v506
  %v2125 = vunpack.c.h.b16 %v506
  %v2126 = vunpack.c.l.b16 %v507
  %v2127 = vunpack.c.h.b16 %v507
  %v2128 = vunpack.c.l.b16 %v508
  %v2129 = vunpack.c.h.b16 %v508
  %v2130 = vunpack.c.l.b16 %v509
  %v2131 = vunpack.c.h.b16 %v509
  %v2132 = vunpack.c.l.b16 %v510
  %v2133 = vunpack.c.h.b16 %v510
  %v2134 = vunpack.c.l.b16 %v511
  %v2135 = vunpack.c.h.b16 %v511
  %v2136 = vunpack.c.l.b16 %v512
  %v2137 = vunpack.c.h.b16 %v512
  %v2138 = vunpack.c.l.b16 %v513
  %v2139 = vunpack.c.h.b16 %v513
  %v2140 = vunpack.c.l.b16 %v514
  %v2141 = vunpack.c.h.b16 %v514
  %v2142 = vunpack.c.l.b16 %v515
  %v2143 = vunpack.c.h.b16 %v515
  %v2144 = vunpack.c.l.b16 %v516
  %v2145 = vunpack.c.h.b16 %v516
  %v2146 = vunpack.c.l.b16 %v517
  %v2147 = vunpack.c.h.b16 %v517
  %v2148 = vunpack.c.l.b16 %v518
  %v2149 = vunpack.c.h.b16 %v518
  %v2150 = vunpack.c.l.b16 %v519
  %v2151 = vunpack.c.h.b16 %v519
  %v2152 = vunpack.c.l.b16 %v520
  %v2153 = vunpack.c.h.b16 %v520
  %v2154 = vunpack.c.l.b16 %v521
  %v2155 = vunpack.c.h.b16 %v521
  %v2156 = vunpack.c.l.b16 %v522
  %v2157 = vunpack.c.h.b16 %v522
  %v2158 = vunpack.c.l.b16 %v523
  %v2159 = vunpack.c.h.b16 %v523
  %v2160 = vunpack.c.l.b16 %v524
  %v2161 = vunpack.c.h.b16 %v524
  %v2162 = vunpack.c.l.b16 %v525
  %v2163 = vunpack.c.h.b16 %v525
  %v2164 = vunpack.c.l.b16 %v526
  %v2165 = vunpack.c.h.b16 %v526
  %v2166 = vunpack.c.l.b16 %v527
  %v2167 = vunpack.c.h.b16 %v527
  %v2168 = vunpack.c.l.b16 %v528
  %v2169 = vunpack.c.h.b16 %v528
  %v2170 = vunpack.c.l.b16 %v529
  %v2171 = vunpack.c.h.b16 %v529
  %v2172 = vunpack.c.l.b16 %v530
  %v2173 = vunpack.c.h.b16 %v530
  %v2174 = vunpack.c.l.b16 %v531
  %v2175 = vunpack.c.h.b16 %v531
  %v2176 = vunpack.c.l.b16 %v532
  %v2177 = vunpack.c.h.b16 %v532
  %v2178 = vunpack.c.l.b16 %v533
  %v2179 = vunpack.c.h.b16 %v533
  %v2180 = vunpack.c.l.b16 %v534
  %v2181 = vunpack.c.h.b16 %v534
  %v2182 = vunpack.c.l.b16 %v535
  %v2183 = vunpack.c.h.b16 %v535
  %v2184 = vunpack.c.l.b16 %v536
  %v2185 = vunpack.c.h.b16 %v536
  %v2186 = vunpack.c.l.b16 %v537
  %v2187 = vunpack.c.h.b16 %v537
  %v2188 = vunpack.c.l.b16 %v538
  %v2189 = vunpack.c.h.b16 %v538
  %v2190 = vunpack.c.l.b16 %v539
  %v2191 = vunpack.c.h.b16 %v539
  %v2192 = vunpack.c.l.b16 %v540
  %v2193 = vunpack.c.h.b16 %v540
  %v2194 = vunpack.c.l.b16 %v541
  %v2195 = vunpack.c.h.b16 %v541
  %v2196 = vpack.c.b16 %v1174, %v1172
  %v2197 = vpack.c.b16 %v1175, %v1173
  %v2198 = vpack.c.b16 %v1178, %v1176
  %v2199 = vpack.c.b16 %v1179, %v1177
  %v2200 = vpack.c.b16 %v1182, %v1180
  %v2201 = vpack.c.b16 %v1183, %v1181
  %v2202 = vpack.c.b16 %v1186, %v1184
  %v2203 = vpack.c.b16 %v1187, %v1185
  %v2204 = vpack.c.b16 %v1190, %v1188
  %v2205 = vpack.c.b16 %v1191, %v1189
  %v2206 = vpack.c.b16 %v1194, %v1192
  %v2207 = vpack.c.b16 %v1195, %v1193
  %v2208 = vpack.c.b16 %v1198, %v1196
  %v2209 = vpack.c.b16 %v1199, %v1197
  %v2210 = vpack.c.b16 %v1202, %v1200
  %v2211 = vpack.c.b16 %v1203, %v1201
  %v2212 = vpack.c.b16 %v1206, %v1204
  %v2213 = vpack.c.b16 %v1207, %v1205
  %v2214 = vpack.c.b16 %v1210, %v1208
  %v2215 = vpack.c.b16 %v1211, %v1209
  %v2216 = vpack.c.b16 %v1214, %v1212
  %v2217 = vpack.c.b16 %v1215, %v1213
  %v2218 = vpack.c.b16 %v1218, %v1216
  %v2219 = vpack.c.b16 %v1219, %v1217
  %v2220 = vpack.c.b16 %v1222, %v1220
  %v2221 = vpack.c.b16 %v1223, %v1221
  %v2222 = vpack.c.b16 %v1226, %v1224
  %v2223 = vpack.c.b16 %v1227, %v1225
  %v2224 = vpack.c.b16 %v1230, %v1228
  %v2225 = vpack.c.b16 %v1231, %v1229
  %v2226 = vpack.c.b16 %v1234, %v1232
  %v2227 = vpack.c.b16 %v1235, %v1233
  %v2228 = vpack.c.b16 %v1238, %v1236
  %v2229 = vpack.c.b16 %v1239, %v1237
  %v2230 = vpack.c.b16 %v1242, %v1240
  %v2231 = vpack.c.b16 %v1243, %v1241
  %v2232 = vpack.c.b16 %v1246, %v1244
  %v2233 = vpack.c.b16 %v1247, %v1245
  %v2234 = vpack.c.b16 %v1250, %v1248
  %v2235 = vpack.c.b16 %v1251, %v1249
  %v2236 = vpack.c.b16 %v1254, %v1252
  %v2237 = vpack.c.b16 %v1255, %v1253
  %v2238 = vpack.c.b16 %v1258, %v1256
  %v2239 = vpack.c.b16 %v1259, %v1257
  %v2240 = vpack.c.b16 %v1262, %v1260
  %v2241 = vpack.c.b16 %v1263, %v1261
  %v2242 = vpack.c.b16 %v1266, %v1264
  %v2243 = vpack.c.b16 %v1267, %v1265
  %v2244 = vpack.c.b16 %v1270, %v1268
  %v2245 = vpack.c.b16 %v1271, %v1269
  %v2246 = vpack.c.b16 %v1274, %v1272
  %v2247 = vpack.c.b16 %v1275, %v1273
  %v2248 = vpack.c.b16 %v1278, %v1276
  %v2249 = vpack.c.b16 %v1279, %v1277
  %v2250 = vpack.c.b16 %v1282, %v1280
  %v2251 = vpack.c.b16 %v1283, %v1281
  %v2252 = vpack.c.b16 %v1286, %v1284
  %v2253 = vpack.c.b16 %v1287, %v1285
  %v2254 = vpack.c.b16 %v1290, %v1288
  %v2255 = vpack.c.b16 %v1291, %v1289
  %v2256 = vpack.c.b16 %v1294, %v1292
  %v2257 = vpack.c.b16 %v1295, %v1293
  %v2258 = vpack.c.b16 %v1298, %v1296
  %v2259 = vpack.c.b16 %v1299, %v1297
  %v2260 = vpack.c.b16 %v1302, %v1300
  %v2261 = vpack.c.b16 %v1303, %v1301
  %v2262 = vpack.c.b16 %v1306, %v1304
  %v2263 = vpack.c.b16 %v1307, %v1305
  %v2264 = vpack.c.b16 %v1310, %v1308
  %v2265 = vpack.c.b16 %v1311, %v1309
  %v2266 = vpack.c.b16 %v1314, %v1312
  %v2267 = vpack.c.b16 %v1315, %v1313
  %v2268 = vpack.c.b16 %v1318, %v1316
  %v2269 = vpack.c.b16 %v1319, %v1317
  %v2270 = vpack.c.b16 %v1322, %v1320
  %v2271 = vpack.c.b16 %v1323, %v1321
  %v2272 = vpack.c.b16 %v1326, %v1324
  %v2273 = vpack.c.b16 %v1327, %v1325
  %v2274 = vpack.c.b16 %v1330, %v1328
  %v2275 = vpack.c.b16 %v1331, %v1329
  %v2276 = vpack.c.b16 %v1334, %v1332
  %v2277 = vpack.c.b16 %v1335, %v1333
  %v2278 = vpack.c.b16 %v1338, %v1336
  %v2279 = vpack.c.b16 %v1339, %v1337
  %v2280 = vpack.c.b16 %v1342, %v1340
  %v2281 = vpack.c.b16 %v1343, %v1341
  %v2282 = vpack.c.b16 %v1346, %v1344
  %v2283 = vpack.c.b16 %v1347, %v1345
  %v2284 = vpack.c.b16 %v1350, %v1348
  %v2285 = vpack.c.b16 %v1351, %v1349
  %v2286 = vpack.c.b16 %v1354, %v1352
  %v2287 = vpack.c.b16 %v1355, %v1353
  %v2288 = vpack.c.b16 %v1358, %v1356
  %v2289 = vpack.c.b16 %v1359, %v1357
  %v2290 = vpack.c.b16 %v1362, %v1360
  %v2291 = vpack.c.b16 %v1363, %v1361
  %v2292 = vpack.c.b16 %v1366, %v1364
  %v2293 = vpack.c.b16 %v1367, %v1365
  %v2294 = vpack.c.b16 %v1370, %v1368
  %v2295 = vpack.c.b16 %v1371, %v1369
  %v2296 = vpack.c.b16 %v1374, %v1372
  %v2297 = vpack.c.b16 %v1375, %v1373
  %v2298 = vpack.c.b16 %v1378, %v1376
  %v2299 = vpack.c.b16 %v1379, %v1377
  %v2300 = vpack.c.b16 %v1382, %v1380
  %v2301 = vpack.c.b16 %v1383, %v1381
  %v2302 = vpack.c.b16 %v1386, %v1384
  %v2303 = vpack.c.b16 %v1387, %v1385
  %v2304 = vpack.c.b16 %v1390, %v1388
  %v2305 = vpack.c.b16 %v1391, %v1389
  %v2306 = vpack.c.b16 %v1394, %v1392
  %v2307 = vpack.c.b16 %v1395, %v1393
  %v2308 = vpack.c.b16 %v1398, %v1396
  %v2309 = vpack.c.b16 %v1399, %v1397
  %v2310 = vpack.c.b16 %v1402, %v1400
  %v2311 = vpack.c.b16 %v1403, %v1401
  %v2312 = vpack.c.b16 %v1406, %v1404
  %v2313 = vpack.c.b16 %v1407, %v1405
  %v2314 = vpack.c.b16 %v1410, %v1408
  %v2315 = vpack.c.b16 %v1411, %v1409
  %v2316 = vpack.c.b16 %v1414, %v1412
  %v2317 = vpack.c.b16 %v1415, %v1413
  %v2318 = vpack.c.b16 %v1418, %v1416
  %v2319 = vpack.c.b16 %v1419, %v1417
  %v2320 = vpack.c.b16 %v1422, %v1420
  %v2321 = vpack.c.b16 %v1423, %v1421
  %v2322 = vpack.c.b16 %v1426, %v1424
  %v2323 = vpack.c.b16 %v1427, %v1425
  %v2324 = vpack.c.b16 %v1430, %v1428
  %v2325 = vpack.c.b16 %v1431, %v1429
  %v2326 = vpack.c.b16 %v1434, %v1432
  %v2327 = vpack.c.b16 %v1435, %v1433
  %v2328 = vpack.c.b16 %v1438, %v1436
  %v2329 = vpack.c.b16 %v1439, %v1437
  %v2330 = vpack.c.b16 %v1442, %v1440
  %v2331 = vpack.c.b16 %v1443, %v1441
  %v2332 = vpack.c.b16 %v1446, %v1444
  %v2333 = vpack.c.b16 %v1447, %v1445
  %v2334 = vpack.c.b16 %v1450, %v1448
  %v2335 = vpack.c.b16 %v1451, %v1449
  %v2336 = vpack.c.b16 %v1454, %v1452
  %v2337 = vpack.c.b16 %v1455, %v1453
  %v2338 = vpack.c.b16 %v1458, %v1456
  %v2339 = vpack.c.b16 %v1459, %v1457
  %v2340 = vpack.c.b16 %v1462, %v1460
  %v2341 = vpack.c.b16 %v1463, %v1461
  %v2342 = vpack.c.b16 %v1466, %v1464
  %v2343 = vpack.c.b16 %v1467, %v1465
  %v2344 = vpack.c.b16 %v1470, %v1468
  %v2345 = vpack.c.b16 %v1471, %v1469
  %v2346 = vpack.c.b16 %v1474, %v1472
  %v2347 = vpack.c.b16 %v1475, %v1473
  %v2348 = vpack.c.b16 %v1478, %v1476
  %v2349 = vpack.c.b16 %v1479, %v1477
  %v2350 = vpack.c.b16 %v1482, %v1480
  %v2351 = vpack.c.b16 %v1483, %v1481
  %v2352 = vpack.c.b16 %v1486, %v1484
  %v2353 = vpack.c.b16 %v1487, %v1485
  %v2354 = vpack.c.b16 %v1490, %v1488
  %v2355 = vpack.c.b16 %v1491, %v1489
  %v2356 = vpack.c.b16 %v1494, %v1492
  %v2357 = vpack.c.b16 %v1495, %v1493
  %v2358 = vpack.c.b16 %v1498, %v1496
  %v2359 = vpack.c.b16 %v1499, %v1497
  %v2360 = vpack.c.b16 %v1502, %v1500
  %v2361 = vpack.c.b16 %v1503, %v1501
  %v2362 = vpack.c.b16 %v1506, %v1504
  %v2363 = vpack.c.b16 %v1507, %v1505
  %v2364 = vpack.c.b16 %v1510, %v1508
  %v2365 = vpack.c.b16 %v1511, %v1509
  %v2366 = vpack.c.b16 %v1514, %v1512
  %v2367 = vpack.c.b16 %v1515, %v1513
  %v2368 = vpack.c.b16 %v1518, %v1516
  %v2369 = vpack.c.b16 %v1519, %v1517
  %v2370 = vpack.c.b16 %v1522, %v1520
  %v2371 = vpack.c.b16 %v1523, %v1521
  %v2372 = vpack.c.b16 %v1526, %v1524
  %v2373 = vpack.c.b16 %v1527, %v1525
  %v2374 = vpack.c.b16 %v1530, %v1528
  %v2375 = vpack.c.b16 %v1531, %v1529
  %v2376 = vpack.c.b16 %v1534, %v1532
  %v2377 = vpack.c.b16 %v1535, %v1533
  %v2378 = vpack.c.b16 %v1538, %v1536
  %v2379 = vpack.c.b16 %v1539, %v1537
  %v2380 = vpack.c.b16 %v1542, %v1540
  %v2381 = vpack.c.b16 %v1543, %v1541
  %v2382 = vpack.c.b16 %v1546, %v1544
  %v2383 = vpack.c.b16 %v1547, %v1545
  %v2384 = vpack.c.b16 %v1550, %v1548
  %v2385 = vpack.c.b16 %v1551, %v1549
  %v2386 = vpack.c.b16 %v1554, %v1552
  %v2387 = vpack.c.b16 %v1555, %v1553
  %v2388 = vpack.c.b16 %v1558, %v1556
  %v2389 = vpack.c.b16 %v1559, %v1557
  %v2390 = vpack.c.b16 %v1562, %v1560
  %v2391 = vpack.c.b16 %v1563, %v1561
  %v2392 = vpack.c.b16 %v1566, %v1564
  %v2393 = vpack.c.b16 %v1567, %v1565
  %v2394 = vpack.c.b16 %v1570, %v1568
  %v2395 = vpack.c.b16 %v1571, %v1569
  %v2396 = vpack.c.b16 %v1574, %v1572
  %v2397 = vpack.c.b16 %v1575, %v1573
  %v2398 = vpack.c.b16 %v1578, %v1576
  %v2399 = vpack.c.b16 %v1579, %v1577
  %v2400 = vpack.c.b16 %v1582, %v1580
  %v2401 = vpack.c.b16 %v1583, %v1581
  %v2402 = vpack.c.b16 %v1586, %v1584
  %v2403 = vpack.c.b16 %v1587, %v1585
  %v2404 = vpack.c.b16 %v1590, %v1588
  %v2405 = vpack.c.b16 %v1591, %v1589
  %v2406 = vpack.c.b16 %v1594, %v1592
  %v2407 = vpack.c.b16 %v1595, %v1593
  %v2408 = vpack.c.b16 %v1598, %v1596
  %v2409 = vpack.c.b16 %v1599, %v1597
  %v2410 = vpack.c.b16 %v1602, %v1600
  %v2411 = vpack.c.b16 %v1603, %v1601
  %v2412 = vpack.c.b16 %v1606, %v1604
  %v2413 = vpack.c.b16 %v1607, %v1605
  %v2414 = vpack.c.b16 %v1610, %v1608
  %v2415 = vpack.c.b16 %v1611, %v1609
  %v2416 = vpack.c.b16 %v1614, %v1612
  %v2417 = vpack.c.b16 %v1615, %v1613
  %v2418 = vpack.c.b16 %v1618, %v1616
  %v2419 = vpack.c.b16 %v1619, %v1617
  %v2420 = vpack.c.b16 %v1622, %v1620
  %v2421 = vpack.c.b16 %v1623, %v1621
  %v2422 = vpack.c.b16 %v1626, %v1624
  %v2423 = vpack.c.b16 %v1627, %v1625
  %v2424 = vpack.c.b16 %v1630, %v1628
  %v2425 = vpack.c.b16 %v1631, %v1629
  %v2426 = vpack.c.b16 %v1634, %v1632
  %v2427 = vpack.c.b16 %v1635, %v1633
  %v2428 = vpack.c.b16 %v1638, %v1636
  %v2429 = vpack.c.b16 %v1639, %v1637
  %v2430 = vpack.c.b16 %v1642, %v1640
  %v2431 = vpack.c.b16 %v1643, %v1641
  %v2432 = vpack.c.b16 %v1646, %v1644
  %v2433 = vpack.c.b16 %v1647, %v1645
  %v2434 = vpack.c.b16 %v1650, %v1648
  %v2435 = vpack.c.b16 %v1651, %v1649
  %v2436 = vpack.c.b16 %v1654, %v1652
  %v2437 = vpack.c.b16 %v1655, %v1653
  %v2438 = vpack.c.b16 %v1658, %v1656
  %v2439 = vpack.c.b16 %v1659, %v1657
  %v2440 = vpack.c.b16 %v1662, %v1660
  %v2441 = vpack.c.b16 %v1663, %v1661
  %v2442 = vpack.c.b16 %v1666, %v1664
  %v2443 = vpack.c.b16 %v1667, %v1665
  %v2444 = vpack.c.b16 %v1670, %v1668
  %v2445 = vpack.c.b16 %v1671, %v1669
  %v2446 = vpack.c.b16 %v1674, %v1672
  %v2447 = vpack.c.b16 %v1675, %v1673
  %v2448 = vpack.c.b16 %v1678, %v1676
  %v2449 = vpack.c.b16 %v1679, %v1677
  %v2450 = vpack.c.b16 %v1682, %v1680
  %v2451 = vpack.c.b16 %v1683, %v1681
  %v2452 = vpack.c.b16 %v1686, %v1684
  %v2453 = vpack.c.b16 %v1687, %v1685
  %v2454 = vpack.c.b16 %v1690, %v1688
  %v2455 = vpack.c.b16 %v1691, %v1689
  %v2456 = vpack.c.b16 %v1694, %v1692
  %v2457 = vpack.c.b16 %v1695, %v1693
  %v2458 = vpack.c.b16 %v1698, %v1696
  %v2459 = vpack.c.b16 %v1699, %v1697
  %v2460 = vpack.c.b16 %v1702, %v1700
  %v2461 = vpack.c.b16 %v1703, %v1701
  %v2462 = vpack.c.b16 %v1706, %v1704
  %v2463 = vpack.c.b16 %v1707, %v1705
  %v2464 = vpack.c.b16 %v1710, %v1708
  %v2465 = vpack.c.b16 %v1711, %v1709
  %v2466 = vpack.c.b16 %v1714, %v1712
  %v2467 = vpack.c.b16 %v1715, %v1713
  %v2468 = vpack.c.b16 %v1718, %v1716
  %v2469 = vpack.c.b16 %v1719, %v1717
  %v2470 = vpack.c.b16 %v1722, %v1720
  %v2471 = vpack.c.b16 %v1723, %v1721
  %v2472 = vpack.c.b16 %v1726, %v1724
  %v2473 = vpack.c.b16 %v1727, %v1725
  %v2474 = vpack.c.b16 %v1730, %v1728
  %v2475 = vpack.c.b16 %v1731, %v1729
  %v2476 = vpack.c.b16 %v1734, %v1732
  %v2477 = vpack.c.b16 %v1735, %v1733
  %v2478 = vpack.c.b16 %v1738, %v1736
  %v2479 = vpack.c.b16 %v1739, %v1737
  %v2480 = vpack.c.b16 %v1742, %v1740
  %v2481 = vpack.c.b16 %v1743, %v1741
  %v2482 = vpack.c.b16 %v1746, %v1744
  %v2483 = vpack.c.b16 %v1747, %v1745
  %v2484 = vpack.c.b16 %v1750, %v1748
  %v2485 = vpack.c.b16 %v1751, %v1749
  %v2486 = vpack.c.b16 %v1754, %v1752
  %v2487 = vpack.c.b16 %v1755, %v1753
  %v2488 = vpack.c.b16 %v1758, %v1756
  %v2489 = vpack.c.b16 %v1759, %v1757
  %v2490 = vpack.c.b16 %v1762, %v1760
  %v2491 = vpack.c.b16 %v1763, %v1761
  %v2492 = vpack.c.b16 %v1766, %v1764
  %v2493 = vpack.c.b16 %v1767, %v1765
  %v2494 = vpack.c.b16 %v1770, %v1768
  %v2495 = vpack.c.b16 %v1771, %v1769
  %v2496 = vpack.c.b16 %v1774, %v1772
  %v2497 = vpack.c.b16 %v1775, %v1773
  %v2498 = vpack.c.b16 %v1778, %v1776
  %v2499 = vpack.c.b16 %v1779, %v1777
  %v2500 = vpack.c.b16 %v1782, %v1780
  %v2501 = vpack.c.b16 %v1783, %v1781
  %v2502 = vpack.c.b16 %v1786, %v1784
  %v2503 = vpack.c.b16 %v1787, %v1785
  %v2504 = vpack.c.b16 %v1790, %v1788
  %v2505 = vpack.c.b16 %v1791, %v1789
  %v2506 = vpack.c.b16 %v1794, %v1792
  %v2507 = vpack.c.b16 %v1795, %v1793
  %v2508 = vpack.c.b16 %v1798, %v1796
  %v2509 = vpack.c.b16 %v1799, %v1797
  %v2510 = vpack.c.b16 %v1802, %v1800
  %v2511 = vpack.c.b16 %v1803, %v1801
  %v2512 = vpack.c.b16 %v1806, %v1804
  %v2513 = vpack.c.b16 %v1807, %v1805
  %v2514 = vpack.c.b16 %v1810, %v1808
  %v2515 = vpack.c.b16 %v1811, %v1809
  %v2516 = vpack.c.b16 %v1814, %v1812
  %v2517 = vpack.c.b16 %v1815, %v1813
  %v2518 = vpack.c.b16 %v1818, %v1816
  %v2519 = vpack.c.b16 %v1819, %v1817
  %v2520 = vpack.c.b16 %v1822, %v1820
  %v2521 = vpack.c.b16 %v1823, %v1821
  %v2522 = vpack.c.b16 %v1826, %v1824
  %v2523 = vpack.c.b16 %v1827, %v1825
  %v2524 = vpack.c.b16 %v1830, %v1828
  %v2525 = vpack.c.b16 %v1831, %v1829
  %v2526 = vpack.c.b16 %v1834, %v1832
  %v2527 = vpack.c.b16 %v1835, %v1833
  %v2528 = vpack.c.b16 %v1838, %v1836
  %v2529 = vpack.c.b16 %v1839, %v1837
  %v2530 = vpack.c.b16 %v1842, %v1840
  %v2531 = vpack.c.b16 %v1843, %v1841
  %v2532 = vpack.c.b16 %v1846, %v1844
  %v2533 = vpack.c.b16 %v1847, %v1845
  %v2534 = vpack.c.b16 %v1850, %v1848
  %v2535 = vpack.c.b16 %v1851, %v1849
  %v2536 = vpack.c.b16 %v1854, %v1852
  %v2537 = vpack.c.b16 %v1855, %v1853
  %v2538 = vpack.c.b16 %v1858, %v1856
  %v2539 = vpack.c.b16 %v1859, %v1857
  %v2540 = vpack.c.b16 %v1862, %v1860
  %v2541 = vpack.c.b16 %v1863, %v1861
  %v2542 = vpack.c.b16 %v1866, %v1864
  %v2543 = vpack.c.b16 %v1867, %v1865
  %v2544 = vpack.c.b16 %v1870, %v1868
  %v2545 = vpack.c.b16 %v1871, %v1869
  %v2546 = vpack.c.b16 %v1874, %v1872
  %v2547 = vpack.c.b16 %v1875, %v1873
  %v2548 = vpack.c.b16 %v1878, %v1876
  %v2549 = vpack.c.b16 %v1879, %v1877
  %v2550 = vpack.c.b16 %v1882, %v1880
  %v2551 = vpack.c.b16 %v1883, %v1881
  %v2552 = vpack.c.b16 %v1886, %v1884
  %v2553 = vpack.c.b16 %v1887, %v1885
  %v2554 = vpack.c.b16 %v1890, %v1888
  %v2555 = vpack.c.b16 %v1891, %v1889
  %v2556 = vpack.c.b16 %v1894, %v1892
  %v2557 = vpack.c.b16 %v1895, %v1893
  %v2558 = vpack.c.b16 %v1898, %v1896
  %v2559 = vpack.c.b16 %v1899, %v1897
  %v2560 = vpack.c.b16 %v1902, %v1900
  %v2561 = vpack.c.b16 %v1903, %v1901
  %v2562 = vpack.c.b16 %v1906, %v1904
  %v2563 = vpack.c.b16 %v1907, %v1905
  %v2564 = vpack.c.b16 %v1910, %v1908
  %v2565 = vpack.c.b16 %v1911, %v1909
  %v2566 = vpack.c.b16 %v1914, %v1912
  %v2567 = vpack.c.b16 %v1915, %v1913
  %v2568 = vpack.c.b16 %v1918, %v1916
  %v2569 = vpack.c.b16 %v1919, %v1917
  %v2570 = vpack.c.b16 %v1922, %v1920
  %v2571 = vpack.c.b16 %v1923, %v1921
  %v2572 = vpack.c.b16 %v1926, %v1924
  %v2573 = vpack.c.b16 %v1927, %v1925
  %v2574 = vpack.c.b16 %v1930, %v1928
  %v2575 = vpack.c.b16 %v1931, %v1929
  %v2576 = vpack.c.b16 %v1934, %v1932
  %v2577 = vpack.c.b16 %v1935, %v1933
  %v2578 = vpack.c.b16 %v1938, %v1936
  %v2579 = vpack.c.b16 %v1939, %v1937
  %v2580 = vpack.c.b16 %v1942, %v1940
  %v2581 = vpack.c.b16 %v1943, %v1941
  %v2582 = vpack.c.b16 %v1946, %v1944
  %v2583 = vpack.c.b16 %v1947, %v1945
  %v2584 = vpack.c.b16 %v1950, %v1948
  %v2585 = vpack.c.b16 %v1951, %v1949
  %v2586 = vpack.c.b16 %v1954, %v1952
  %v2587 = vpack.c.b16 %v1955, %v1953
  %v2588 = vpack.c.b16 %v1958, %v1956
  %v2589 = vpack.c.b16 %v1959, %v1957
  %v2590 = vpack.c.b16 %v1962, %v1960
  %v2591 = vpack.c.b16 %v1963, %v1961
  %v2592 = vpack.c.b16 %v1966, %v1964
  %v2593 = vpack.c.b16 %v1967, %v1965
  %v2594 = vpack.c.b16 %v1970, %v1968
  %v2595 = vpack.c.b16 %v1971, %v1969
  %v2596 = vpack.c.b16 %v1974, %v1972
  %v2597 = vpack.c.b16 %v1975, %v1973
  %v2598 = vpack.c.b16 %v1978, %v1976
  %v2599 = vpack.c.b16 %v1979, %v1977
  %v2600 = vpack.c.b16 %v1982, %v1980
  %v2601 = vpack.c.b16 %v1983, %v1981
  %v2602 = vpack.c.b16 %v1986, %v1984
  %v2603 = vpack.c.b16 %v1987, %v1985
  %v2604 = vpack.c.b16 %v1990, %v1988
  %v2605 = vpack.c.b16 %v1991, %v1989
  %v2606 = vpack.c.b16 %v1994, %v1992
  %v2607 = vpack.c.b16 %v1995, %v1993
  %v2608 = vpack.c.b16 %v1998, %v1996
  %v2609 = vpack.c.b16 %v1999, %v1997
  %v2610 = vpack.c.b16 %v2002, %v2000
  %v2611 = vpack.c.b16 %v2003, %v2001
  %v2612 = vpack.c.b16 %v2006, %v2004
  %v2613 = vpack.c.b16 %v2007, %v2005
  %v2614 = vpack.c.b16 %v2010, %v2008
  %v2615 = vpack.c.b16 %v2011, %v2009
  %v2616 = vpack.c.b16 %v2014, %v2012
  %v2617 = vpack.c.b16 %v2015, %v2013
  %v2618 = vpack.c.b16 %v2018, %v2016
  %v2619 = vpack.c.b16 %v2019, %v2017
  %v2620 = vpack.c.b16 %v2022, %v2020
  %v2621 = vpack.c.b16 %v2023, %v2021
  %v2622 = vpack.c.b16 %v2026, %v2024
  %v2623 = vpack.c.b16 %v2027, %v2025
  %v2624 = vpack.c.b16 %v2030, %v2028
  %v2625 = vpack.c.b16 %v2031, %v2029
  %v2626 = vpack.c.b16 %v2034, %v2032
  %v2627 = vpack.c.b16 %v2035, %v2033
  %v2628 = vpack.c.b16 %v2038, %v2036
  %v2629 = vpack.c.b16 %v2039, %v2037
  %v2630 = vpack.c.b16 %v2042, %v2040
  %v2631 = vpack.c.b16 %v2043, %v2041
  %v2632 = vpack.c.b16 %v2046, %v2044
  %v2633 = vpack.c.b16 %v2047, %v2045
  %v2634 = vpack.c.b16 %v2050, %v2048
  %v2635 = vpack.c.b16 %v2051, %v2049
  %v2636 = vpack.c.b16 %v2054, %v2052
  %v2637 = vpack.c.b16 %v2055, %v2053
  %v2638 = vpack.c.b16 %v2058, %v2056
  %v2639 = vpack.c.b16 %v2059, %v2057
  %v2640 = vpack.c.b16 %v2062, %v2060
  %v2641 = vpack.c.b16 %v2063, %v2061
  %v2642 = vpack.c.b16 %v2066, %v2064
  %v2643 = vpack.c.b16 %v2067, %v2065
  %v2644 = vpack.c.b16 %v2070, %v2068
  %v2645 = vpack.c.b16 %v2071, %v2069
  %v2646 = vpack.c.b16 %v2074, %v2072
  %v2647 = vpack.c.b16 %v2075, %v2073
  %v2648 = vpack.c.b16 %v2078, %v2076
  %v2649 = vpack.c.b16 %v2079, %v2077
  %v2650 = vpack.c.b16 %v2082, %v2080
  %v2651 = vpack.c.b16 %v2083, %v2081
  %v2652 = vpack.c.b16 %v2086, %v2084
  %v2653 = vpack.c.b16 %v2087, %v2085
  %v2654 = vpack.c.b16 %v2090, %v2088
  %v2655 = vpack.c.b16 %v2091, %v2089
  %v2656 = vpack.c.b16 %v2094, %v2092
  %v2657 = vpack.c.b16 %v2095, %v2093
  %v2658 = vpack.c.b16 %v2098, %v2096
  %v2659 = vpack.c.b16 %v2099, %v2097
  %v2660 = vpack.c.b16 %v2102, %v2100
  %v2661 = vpack.c.b16 %v2103, %v2101
  %v2662 = vpack.c.b16 %v2106, %v2104
  %v2663 = vpack.c.b16 %v2107, %v2105
  %v2664 = vpack.c.b16 %v2110, %v2108
  %v2665 = vpack.c.b16 %v2111, %v2109
  %v2666 = vpack.c.b16 %v2114, %v2112
  %v2667 = vpack.c.b16 %v2115, %v2113
  %v2668 = vpack.c.b16 %v2118, %v2116
  %v2669 = vpack.c.b16 %v2119, %v2117
  %v2670 = vpack.c.b16 %v2122, %v2120
  %v2671 = vpack.c.b16 %v2123, %v2121
  %v2672 = vpack.c.b16 %v2126, %v2124
  %v2673 = vpack.c.b16 %v2127, %v2125
  %v2674 = vpack.c.b16 %v2130, %v2128
  %v2675 = vpack.c.b16 %v2131, %v2129
  %v2676 = vpack.c.b16 %v2134, %v2132
  %v2677 = vpack.c.b16 %v2135, %v2133
  %v2678 = vpack.c.b16 %v2138, %v2136
  %v2679 = vpack.c.b16 %v2139, %v2137
  %v2680 = vpack.c.b16 %v2142, %v2140
  %v2681 = vpack.c.b16 %v2143, %v2141
  %v2682 = vpack.c.b16 %v2146, %v2144
  %v2683 = vpack.c.b16 %v2147, %v2145
  %v2684 = vpack.c.b16 %v2150, %v2148
  %v2685 = vpack.c.b16 %v2151, %v2149
  %v2686 = vpack.c.b16 %v2154, %v2152
  %v2687 = vpack.c.b16 %v2155, %v2153
  %v2688 = vpack.c.b16 %v2158, %v2156
  %v2689 = vpack.c.b16 %v2159, %v2157
  %v2690 = vpack.c.b16 %v2162, %v2160
  %v2691 = vpack.c.b16 %v2163, %v2161
  %v2692 = vpack.c.b16 %v2166, %v2164
  %v2693 = vpack.c.b16 %v2167, %v2165
  %v2694 = vpack.c.b16 %v2170, %v2168
  %v2695 = vpack.c.b16 %v2171, %v2169
  %v2696 = vpack.c.b16 %v2174, %v2172
  %v2697 = vpack.c.b16 %v2175, %v2173
  %v2698 = vpack.c.b16 %v2178, %v2176
  %v2699 = vpack.c.b16 %v2179, %v2177
  %v2700 = vpack.c.b16 %v2182, %v2180
  %v2701 = vpack.c.b16 %v2183, %v2181
  %v2702 = vpack.c.b16 %v2186, %v2184
  %v2703 = vpack.c.b16 %v2187, %v2185
  %v2704 = vpack.c.b16 %v2190, %v2188
  %v2705 = vpack.c.b16 %v2191, %v2189
  %v2706 = vpack.c.b16 %v2194, %v2192
  %v2707 = vpack.c.b16 %v2195, %v2193
  %3220 = vmatpush.bf16.msra.mxu0 %v2210
  %3221 = vmatpush.bf16.msra.mxu0 %v2208
  %3222 = vmatpush.bf16.msra.mxu0 %v2206
  %3223 = vmatpush.bf16.msra.mxu0 %v2204
  %3224 = vmatpush.bf16.msra.mxu0 %v2202
  %3225 = vmatpush.bf16.msra.mxu0 %v2200
  %3226 = vmatpush.bf16.msra.mxu0 %v2198
  %3227 = vmatpush.bf16.msra.mxu0 %v2196
  %3228 = vmatmul.bf16.gmra.mxu0 %v596
  %v3229 = vpop.f32.mrf.mxu0
  %v3230 = vadd.f32 %v544, %v3229
  %v3231 = vpop.f32.mrf.mxu0
  %3232 = vdwg.mxu0
  %3233 = vmatpush.bf16.msra.mxu0 %v2226
  %3234 = vmatpush.bf16.msra.mxu0 %v2224
  %3235 = vmatpush.bf16.msra.mxu0 %v2222
  %3236 = vmatpush.bf16.msra.mxu0 %v2220
  %3237 = vmatpush.bf16.msra.mxu0 %v2218
  %3238 = vmatpush.bf16.msra.mxu0 %v2216
  %3239 = vmatpush.bf16.msra.mxu0 %v2214
  %3240 = vmatpush.bf16.msra.mxu0 %v2212
  %3241 = vmatmul.bf16.gmra.mxu0 %v597
  %v3242 = vpop.f32.mrf.mxu0
  %v3243 = vadd.f32 %v3230, %v3242
  %v3244 = vpop.f32.mrf.mxu0
  %3245 = vdwg.mxu0
  %3246 = vmatpush.bf16.msra.mxu0 %v2242
  %3247 = vmatpush.bf16.msra.mxu0 %v2240
  %3248 = vmatpush.bf16.msra.mxu0 %v2238
  %3249 = vmatpush.bf16.msra.mxu0 %v2236
  %3250 = vmatpush.bf16.msra.mxu0 %v2234
  %3251 = vmatpush.bf16.msra.mxu0 %v2232
  %3252 = vmatpush.bf16.msra.mxu0 %v2230
  %3253 = vmatpush.bf16.msra.mxu0 %v2228
  %3254 = vmatmul.bf16.gmra.mxu0 %v598
  %v3255 = vpop.f32.mrf.mxu0
  %v3256 = vadd.f32 %v3243, %v3255
  %v3257 = vpop.f32.mrf.mxu0
  %3258 = vdwg.mxu0
  %3259 = vmatpush.bf16.msra.mxu0 %v2258
  %3260 = vmatpush.bf16.msra.mxu0 %v2256
  %3261 = vmatpush.bf16.msra.mxu0 %v2254
  %3262 = vmatpush.bf16.msra.mxu0 %v2252
  %3263 = vmatpush.bf16.msra.mxu0 %v2250
  %3264 = vmatpush.bf16.msra.mxu0 %v2248
  %3265 = vmatpush.bf16.msra.mxu0 %v2246
  %3266 = vmatpush.bf16.msra.mxu0 %v2244
  %3267 = vmatmul.bf16.gmra.mxu0 %v599
  %v3268 = vpop.f32.mrf.mxu0
  %v3269 = vadd.f32 %v3256, %v3268
  %v3270 = vpop.f32.mrf.mxu0
  %3271 = vdwg.mxu0
  %3272 = vmatpush.bf16.msra.mxu0 %v2274
  %3273 = vmatpush.bf16.msra.mxu0 %v2272
  %3274 = vmatpush.bf16.msra.mxu0 %v2270
  %3275 = vmatpush.bf16.msra.mxu0 %v2268
  %3276 = vmatpush.bf16.msra.mxu0 %v2266
  %3277 = vmatpush.bf16.msra.mxu0 %v2264
  %3278 = vmatpush.bf16.msra.mxu0 %v2262
  %3279 = vmatpush.bf16.msra.mxu0 %v2260
  %3280 = vmatmul.bf16.gmra.mxu0 %v600
  %v3281 = vpop.f32.mrf.mxu0
  %v3282 = vadd.f32 %v3269, %v3281
  %v3283 = vpop.f32.mrf.mxu0
  %3284 = vdwg.mxu0
  %3285 = vmatpush.bf16.msra.mxu0 %v2290
  %3286 = vmatpush.bf16.msra.mxu0 %v2288
  %3287 = vmatpush.bf16.msra.mxu0 %v2286
  %3288 = vmatpush.bf16.msra.mxu0 %v2284
  %3289 = vmatpush.bf16.msra.mxu0 %v2282
  %3290 = vmatpush.bf16.msra.mxu0 %v2280
  %3291 = vmatpush.bf16.msra.mxu0 %v2278
  %3292 = vmatpush.bf16.msra.mxu0 %v2276
  %3293 = vmatmul.bf16.gmra.mxu0 %v601
  %v3294 = vpop.f32.mrf.mxu0
  %v3295 = vadd.f32 %v3282, %v3294
  %v3296 = vpop.f32.mrf.mxu0
  %3297 = vdwg.mxu0
  %3298 = vmatpush.bf16.msra.mxu0 %v2306
  %3299 = vmatpush.bf16.msra.mxu0 %v2304
  %3300 = vmatpush.bf16.msra.mxu0 %v2302
  %3301 = vmatpush.bf16.msra.mxu0 %v2300
  %3302 = vmatpush.bf16.msra.mxu0 %v2298
  %3303 = vmatpush.bf16.msra.mxu0 %v2296
  %3304 = vmatpush.bf16.msra.mxu0 %v2294
  %3305 = vmatpush.bf16.msra.mxu0 %v2292
  %3306 = vmatmul.bf16.gmra.mxu0 %v602
  %v3307 = vpop.f32.mrf.mxu0
  %v3308 = vadd.f32 %v3295, %v3307
  %v3309 = vpop.f32.mrf.mxu0
  %3310 = vdwg.mxu0
  %3311 = vmatpush.bf16.msra.mxu0 %v2322
  %3312 = vmatpush.bf16.msra.mxu0 %v2320
  %3313 = vmatpush.bf16.msra.mxu0 %v2318
  %3314 = vmatpush.bf16.msra.mxu0 %v2316
  %3315 = vmatpush.bf16.msra.mxu0 %v2314
  %3316 = vmatpush.bf16.msra.mxu0 %v2312
  %3317 = vmatpush.bf16.msra.mxu0 %v2310
  %3318 = vmatpush.bf16.msra.mxu0 %v2308
  %3319 = vmatmul.bf16.gmra.mxu0 %v603
  %v3320 = vpop.f32.mrf.mxu0
  %v3321 = vadd.f32 %v3308, %v3320
  %v3322 = vpop.f32.mrf.mxu0
  %3323 = vdwg.mxu0
  %3324 = vmatpush.bf16.msra.mxu0 %v2338
  %3325 = vmatpush.bf16.msra.mxu0 %v2336
  %3326 = vmatpush.bf16.msra.mxu0 %v2334
  %3327 = vmatpush.bf16.msra.mxu0 %v2332
  %3328 = vmatpush.bf16.msra.mxu0 %v2330
  %3329 = vmatpush.bf16.msra.mxu0 %v2328
  %3330 = vmatpush.bf16.msra.mxu0 %v2326
  %3331 = vmatpush.bf16.msra.mxu0 %v2324
  %3332 = vmatmul.bf16.gmra.mxu0 %v604
  %v3333 = vpop.f32.mrf.mxu0
  %v3334 = vadd.f32 %v3321, %v3333
  %v3335 = vpop.f32.mrf.mxu0
  %3336 = vdwg.mxu0
  %3337 = vmatpush.bf16.msra.mxu0 %v2354
  %3338 = vmatpush.bf16.msra.mxu0 %v2352
  %3339 = vmatpush.bf16.msra.mxu0 %v2350
  %3340 = vmatpush.bf16.msra.mxu0 %v2348
  %3341 = vmatpush.bf16.msra.mxu0 %v2346
  %3342 = vmatpush.bf16.msra.mxu0 %v2344
  %3343 = vmatpush.bf16.msra.mxu0 %v2342
  %3344 = vmatpush.bf16.msra.mxu0 %v2340
  %3345 = vmatmul.bf16.gmra.mxu0 %v605
  %v3346 = vpop.f32.mrf.mxu0
  %v3347 = vadd.f32 %v3334, %v3346
  %v3348 = vpop.f32.mrf.mxu0
  %3349 = vdwg.mxu0
  %3350 = vmatpush.bf16.msra.mxu0 %v2370
  %3351 = vmatpush.bf16.msra.mxu0 %v2368
  %3352 = vmatpush.bf16.msra.mxu0 %v2366
  %3353 = vmatpush.bf16.msra.mxu0 %v2364
  %3354 = vmatpush.bf16.msra.mxu0 %v2362
  %3355 = vmatpush.bf16.msra.mxu0 %v2360
  %3356 = vmatpush.bf16.msra.mxu0 %v2358
  %3357 = vmatpush.bf16.msra.mxu0 %v2356
  %3358 = vmatmul.bf16.gmra.mxu0 %v606
  %v3359 = vpop.f32.mrf.mxu0
  %v3360 = vadd.f32 %v3347, %v3359
  %v3361 = vpop.f32.mrf.mxu0
  %3362 = vdwg.mxu0
  %3363 = vmatpush.bf16.msra.mxu0 %v2386
  %3364 = vmatpush.bf16.msra.mxu0 %v2384
  %3365 = vmatpush.bf16.msra.mxu0 %v2382
  %3366 = vmatpush.bf16.msra.mxu0 %v2380
  %3367 = vmatpush.bf16.msra.mxu0 %v2378
  %3368 = vmatpush.bf16.msra.mxu0 %v2376
  %3369 = vmatpush.bf16.msra.mxu0 %v2374
  %3370 = vmatpush.bf16.msra.mxu0 %v2372
  %3371 = vmatmul.bf16.gmra.mxu0 %v607
  %v3372 = vpop.f32.mrf.mxu0
  %v3373 = vadd.f32 %v3360, %v3372
  %v3374 = vpop.f32.mrf.mxu0
  %3375 = vdwg.mxu0
  %3376 = vmatpush.bf16.msra.mxu0 %v2402
  %3377 = vmatpush.bf16.msra.mxu0 %v2400
  %3378 = vmatpush.bf16.msra.mxu0 %v2398
  %3379 = vmatpush.bf16.msra.mxu0 %v2396
  %3380 = vmatpush.bf16.msra.mxu0 %v2394
  %3381 = vmatpush.bf16.msra.mxu0 %v2392
  %3382 = vmatpush.bf16.msra.mxu0 %v2390
  %3383 = vmatpush.bf16.msra.mxu0 %v2388
  %3384 = vmatmul.bf16.gmra.mxu0 %v608
  %v3385 = vpop.f32.mrf.mxu0
  %v3386 = vadd.f32 %v3373, %v3385
  %v3387 = vpop.f32.mrf.mxu0
  %3388 = vdwg.mxu0
  %3389 = vmatpush.bf16.msra.mxu0 %v2418
  %3390 = vmatpush.bf16.msra.mxu0 %v2416
  %3391 = vmatpush.bf16.msra.mxu0 %v2414
  %3392 = vmatpush.bf16.msra.mxu0 %v2412
  %3393 = vmatpush.bf16.msra.mxu0 %v2410
  %3394 = vmatpush.bf16.msra.mxu0 %v2408
  %3395 = vmatpush.bf16.msra.mxu0 %v2406
  %3396 = vmatpush.bf16.msra.mxu0 %v2404
  %3397 = vmatmul.bf16.gmra.mxu0 %v609
  %v3398 = vpop.f32.mrf.mxu0
  %v3399 = vadd.f32 %v3386, %v3398
  %v3400 = vpop.f32.mrf.mxu0
  %3401 = vdwg.mxu0
  %3402 = vmatpush.bf16.msra.mxu0 %v2434
  %3403 = vmatpush.bf16.msra.mxu0 %v2432
  %3404 = vmatpush.bf16.msra.mxu0 %v2430
  %3405 = vmatpush.bf16.msra.mxu0 %v2428
  %3406 = vmatpush.bf16.msra.mxu0 %v2426
  %3407 = vmatpush.bf16.msra.mxu0 %v2424
  %3408 = vmatpush.bf16.msra.mxu0 %v2422
  %3409 = vmatpush.bf16.msra.mxu0 %v2420
  %3410 = vmatmul.bf16.gmra.mxu0 %v610
  %v3411 = vpop.f32.mrf.mxu0
  %v3412 = vadd.f32 %v3399, %v3411
  %v3413 = vpop.f32.mrf.mxu0
  %3414 = vdwg.mxu0
  %3415 = vmatpush.bf16.msra.mxu0 %v2450
  %3416 = vmatpush.bf16.msra.mxu0 %v2448
  %3417 = vmatpush.bf16.msra.mxu0 %v2446
  %3418 = vmatpush.bf16.msra.mxu0 %v2444
  %3419 = vmatpush.bf16.msra.mxu0 %v2442
  %3420 = vmatpush.bf16.msra.mxu0 %v2440
  %3421 = vmatpush.bf16.msra.mxu0 %v2438
  %3422 = vmatpush.bf16.msra.mxu0 %v2436
  %3423 = vmatmul.bf16.gmra.mxu0 %v611
  %v3424 = vpop.f32.mrf.mxu0
  %v3425 = vadd.f32 %v3412, %v3424
  %v3426 = vpop.f32.mrf.mxu0
  %3427 = vdwg.mxu0
  %3428 = vmatpush.bf16.msra.mxu0 %v2466
  %3429 = vmatpush.bf16.msra.mxu0 %v2464
  %3430 = vmatpush.bf16.msra.mxu0 %v2462
  %3431 = vmatpush.bf16.msra.mxu0 %v2460
  %3432 = vmatpush.bf16.msra.mxu0 %v2458
  %3433 = vmatpush.bf16.msra.mxu0 %v2456
  %3434 = vmatpush.bf16.msra.mxu0 %v2454
  %3435 = vmatpush.bf16.msra.mxu0 %v2452
  %3436 = vmatmul.bf16.gmra.mxu0 %v612
  %v3437 = vpop.f32.mrf.mxu0
  %v3438 = vadd.f32 %v3425, %v3437
  %v3439 = vpop.f32.mrf.mxu0
  %3440 = vdwg.mxu0
  %3441 = vmatpush.bf16.msra.mxu0 %v2482
  %3442 = vmatpush.bf16.msra.mxu0 %v2480
  %3443 = vmatpush.bf16.msra.mxu0 %v2478
  %3444 = vmatpush.bf16.msra.mxu0 %v2476
  %3445 = vmatpush.bf16.msra.mxu0 %v2474
  %3446 = vmatpush.bf16.msra.mxu0 %v2472
  %3447 = vmatpush.bf16.msra.mxu0 %v2470
  %3448 = vmatpush.bf16.msra.mxu0 %v2468
  %3449 = vmatmul.bf16.gmra.mxu0 %v613
  %v3450 = vpop.f32.mrf.mxu0
  %v3451 = vadd.f32 %v3438, %v3450
  %v3452 = vpop.f32.mrf.mxu0
  %3453 = vdwg.mxu0
  %3454 = vmatpush.bf16.msra.mxu0 %v2498
  %3455 = vmatpush.bf16.msra.mxu0 %v2496
  %3456 = vmatpush.bf16.msra.mxu0 %v2494
  %3457 = vmatpush.bf16.msra.mxu0 %v2492
  %3458 = vmatpush.bf16.msra.mxu0 %v2490
  %3459 = vmatpush.bf16.msra.mxu0 %v2488
  %3460 = vmatpush.bf16.msra.mxu0 %v2486
  %3461 = vmatpush.bf16.msra.mxu0 %v2484
  %3462 = vmatmul.bf16.gmra.mxu0 %v614
  %v3463 = vpop.f32.mrf.mxu0
  %v3464 = vadd.f32 %v3451, %v3463
  %v3465 = vpop.f32.mrf.mxu0
  %3466 = vdwg.mxu0
  %3467 = vmatpush.bf16.msra.mxu0 %v2514
  %3468 = vmatpush.bf16.msra.mxu0 %v2512
  %3469 = vmatpush.bf16.msra.mxu0 %v2510
  %3470 = vmatpush.bf16.msra.mxu0 %v2508
  %3471 = vmatpush.bf16.msra.mxu0 %v2506
  %3472 = vmatpush.bf16.msra.mxu0 %v2504
  %3473 = vmatpush.bf16.msra.mxu0 %v2502
  %3474 = vmatpush.bf16.msra.mxu0 %v2500
  %3475 = vmatmul.bf16.gmra.mxu0 %v615
  %v3476 = vpop.f32.mrf.mxu0
  %v3477 = vadd.f32 %v3464, %v3476
  %v3478 = vpop.f32.mrf.mxu0
  %3479 = vdwg.mxu0
  %3480 = vmatpush.bf16.msra.mxu0 %v2530
  %3481 = vmatpush.bf16.msra.mxu0 %v2528
  %3482 = vmatpush.bf16.msra.mxu0 %v2526
  %3483 = vmatpush.bf16.msra.mxu0 %v2524
  %3484 = vmatpush.bf16.msra.mxu0 %v2522
  %3485 = vmatpush.bf16.msra.mxu0 %v2520
  %3486 = vmatpush.bf16.msra.mxu0 %v2518
  %3487 = vmatpush.bf16.msra.mxu0 %v2516
  %3488 = vmatmul.bf16.gmra.mxu0 %v616
  %v3489 = vpop.f32.mrf.mxu0
  %v3490 = vadd.f32 %v3477, %v3489
  %v3491 = vpop.f32.mrf.mxu0
  %3492 = vdwg.mxu0
  %3493 = vmatpush.bf16.msra.mxu0 %v2546
  %3494 = vmatpush.bf16.msra.mxu0 %v2544
  %3495 = vmatpush.bf16.msra.mxu0 %v2542
  %3496 = vmatpush.bf16.msra.mxu0 %v2540
  %3497 = vmatpush.bf16.msra.mxu0 %v2538
  %3498 = vmatpush.bf16.msra.mxu0 %v2536
  %3499 = vmatpush.bf16.msra.mxu0 %v2534
  %3500 = vmatpush.bf16.msra.mxu0 %v2532
  %3501 = vmatmul.bf16.gmra.mxu0 %v617
  %v3502 = vpop.f32.mrf.mxu0
  %v3503 = vadd.f32 %v3490, %v3502
  %v3504 = vpop.f32.mrf.mxu0
  %3505 = vdwg.mxu0
  %3506 = vmatpush.bf16.msra.mxu0 %v2562
  %3507 = vmatpush.bf16.msra.mxu0 %v2560
  %3508 = vmatpush.bf16.msra.mxu0 %v2558
  %3509 = vmatpush.bf16.msra.mxu0 %v2556
  %3510 = vmatpush.bf16.msra.mxu0 %v2554
  %3511 = vmatpush.bf16.msra.mxu0 %v2552
  %3512 = vmatpush.bf16.msra.mxu0 %v2550
  %3513 = vmatpush.bf16.msra.mxu0 %v2548
  %3514 = vmatmul.bf16.gmra.mxu0 %v618
  %v3515 = vpop.f32.mrf.mxu0
  %v3516 = vadd.f32 %v3503, %v3515
  %v3517 = vpop.f32.mrf.mxu0
  %3518 = vdwg.mxu0
  %3519 = vmatpush.bf16.msra.mxu0 %v2578
  %3520 = vmatpush.bf16.msra.mxu0 %v2576
  %3521 = vmatpush.bf16.msra.mxu0 %v2574
  %3522 = vmatpush.bf16.msra.mxu0 %v2572
  %3523 = vmatpush.bf16.msra.mxu0 %v2570
  %3524 = vmatpush.bf16.msra.mxu0 %v2568
  %3525 = vmatpush.bf16.msra.mxu0 %v2566
  %3526 = vmatpush.bf16.msra.mxu0 %v2564
  %3527 = vmatmul.bf16.gmra.mxu0 %v619
  %v3528 = vpop.f32.mrf.mxu0
  %v3529 = vadd.f32 %v3516, %v3528
  %v3530 = vpop.f32.mrf.mxu0
  %3531 = vdwg.mxu0
  %3532 = vmatpush.bf16.msra.mxu0 %v2594
  %3533 = vmatpush.bf16.msra.mxu0 %v2592
  %3534 = vmatpush.bf16.msra.mxu0 %v2590
  %3535 = vmatpush.bf16.msra.mxu0 %v2588
  %3536 = vmatpush.bf16.msra.mxu0 %v2586
  %3537 = vmatpush.bf16.msra.mxu0 %v2584
  %3538 = vmatpush.bf16.msra.mxu0 %v2582
  %3539 = vmatpush.bf16.msra.mxu0 %v2580
  %3540 = vmatmul.bf16.gmra.mxu0 %v620
  %v3541 = vpop.f32.mrf.mxu0
  %v3542 = vadd.f32 %v3529, %v3541
  %v3543 = vpop.f32.mrf.mxu0
  %3544 = vdwg.mxu0
  %3545 = vmatpush.bf16.msra.mxu0 %v2610
  %3546 = vmatpush.bf16.msra.mxu0 %v2608
  %3547 = vmatpush.bf16.msra.mxu0 %v2606
  %3548 = vmatpush.bf16.msra.mxu0 %v2604
  %3549 = vmatpush.bf16.msra.mxu0 %v2602
  %3550 = vmatpush.bf16.msra.mxu0 %v2600
  %3551 = vmatpush.bf16.msra.mxu0 %v2598
  %3552 = vmatpush.bf16.msra.mxu0 %v2596
  %3553 = vmatmul.bf16.gmra.mxu0 %v621
  %v3554 = vpop.f32.mrf.mxu0
  %v3555 = vadd.f32 %v3542, %v3554
  %v3556 = vpop.f32.mrf.mxu0
  %3557 = vdwg.mxu0
  %3558 = vmatpush.bf16.msra.mxu0 %v2626
  %3559 = vmatpush.bf16.msra.mxu0 %v2624
  %3560 = vmatpush.bf16.msra.mxu0 %v2622
  %3561 = vmatpush.bf16.msra.mxu0 %v2620
  %3562 = vmatpush.bf16.msra.mxu0 %v2618
  %3563 = vmatpush.bf16.msra.mxu0 %v2616
  %3564 = vmatpush.bf16.msra.mxu0 %v2614
  %3565 = vmatpush.bf16.msra.mxu0 %v2612
  %3566 = vmatmul.bf16.gmra.mxu0 %v622
  %v3567 = vpop.f32.mrf.mxu0
  %v3568 = vadd.f32 %v3555, %v3567
  %v3569 = vpop.f32.mrf.mxu0
  %3570 = vdwg.mxu0
  %3571 = vmatpush.bf16.msra.mxu0 %v2642
  %3572 = vmatpush.bf16.msra.mxu0 %v2640
  %3573 = vmatpush.bf16.msra.mxu0 %v2638
  %3574 = vmatpush.bf16.msra.mxu0 %v2636
  %3575 = vmatpush.bf16.msra.mxu0 %v2634
  %3576 = vmatpush.bf16.msra.mxu0 %v2632
  %3577 = vmatpush.bf16.msra.mxu0 %v2630
  %3578 = vmatpush.bf16.msra.mxu0 %v2628
  %3579 = vmatmul.bf16.gmra.mxu0 %v623
  %v3580 = vpop.f32.mrf.mxu0
  %v3581 = vadd.f32 %v3568, %v3580
  %v3582 = vpop.f32.mrf.mxu0
  %3583 = vdwg.mxu0
  %3584 = vmatpush.bf16.msra.mxu0 %v2658
  %3585 = vmatpush.bf16.msra.mxu0 %v2656
  %3586 = vmatpush.bf16.msra.mxu0 %v2654
  %3587 = vmatpush.bf16.msra.mxu0 %v2652
  %3588 = vmatpush.bf16.msra.mxu0 %v2650
  %3589 = vmatpush.bf16.msra.mxu0 %v2648
  %3590 = vmatpush.bf16.msra.mxu0 %v2646
  %3591 = vmatpush.bf16.msra.mxu0 %v2644
  %3592 = vmatmul.bf16.gmra.mxu0 %v624
  %v3593 = vpop.f32.mrf.mxu0
  %v3594 = vadd.f32 %v3581, %v3593
  %v3595 = vpop.f32.mrf.mxu0
  %3596 = vdwg.mxu0
  %3597 = vmatpush.bf16.msra.mxu0 %v2674
  %3598 = vmatpush.bf16.msra.mxu0 %v2672
  %3599 = vmatpush.bf16.msra.mxu0 %v2670
  %3600 = vmatpush.bf16.msra.mxu0 %v2668
  %3601 = vmatpush.bf16.msra.mxu0 %v2666
  %3602 = vmatpush.bf16.msra.mxu0 %v2664
  %3603 = vmatpush.bf16.msra.mxu0 %v2662
  %3604 = vmatpush.bf16.msra.mxu0 %v2660
  %3605 = vmatmul.bf16.gmra.mxu0 %v625
  %v3606 = vpop.f32.mrf.mxu0
  %v3607 = vadd.f32 %v3594, %v3606
  %v3608 = vpop.f32.mrf.mxu0
  %3609 = vdwg.mxu0
  %3610 = vmatpush.bf16.msra.mxu0 %v2690
  %3611 = vmatpush.bf16.msra.mxu0 %v2688
  %3612 = vmatpush.bf16.msra.mxu0 %v2686
  %3613 = vmatpush.bf16.msra.mxu0 %v2684
  %3614 = vmatpush.bf16.msra.mxu0 %v2682
  %3615 = vmatpush.bf16.msra.mxu0 %v2680
  %3616 = vmatpush.bf16.msra.mxu0 %v2678
  %3617 = vmatpush.bf16.msra.mxu0 %v2676
  %3618 = vmatmul.bf16.gmra.mxu0 %v626
  %v3619 = vpop.f32.mrf.mxu0
  %v3620 = vadd.f32 %v3607, %v3619
  %v3621 = vpop.f32.mrf.mxu0
  %3622 = vdwg.mxu0
  %3623 = vmatpush.bf16.msra.mxu0 %v2706
  %3624 = vmatpush.bf16.msra.mxu0 %v2704
  %3625 = vmatpush.bf16.msra.mxu0 %v2702
  %3626 = vmatpush.bf16.msra.mxu0 %v2700
  %3627 = vmatpush.bf16.msra.mxu0 %v2698
  %3628 = vmatpush.bf16.msra.mxu0 %v2696
  %3629 = vmatpush.bf16.msra.mxu0 %v2694
  %3630 = vmatpush.bf16.msra.mxu0 %v2692
  %3631 = vmatmul.bf16.gmra.mxu0 %v627
  %v3632 = vpop.f32.mrf.mxu0
  %v3633 = vadd.f32 %v3620, %v3632
  %v3634 = vpop.f32.mrf.mxu0
  %3635 = vdwg.mxu0
  %3636 = vmatpush.bf16.msra.mxu0 %v2211
  %3637 = vmatpush.bf16.msra.mxu0 %v2209
  %3638 = vmatpush.bf16.msra.mxu0 %v2207
  %3639 = vmatpush.bf16.msra.mxu0 %v2205
  %3640 = vmatpush.bf16.msra.mxu0 %v2203
  %3641 = vmatpush.bf16.msra.mxu0 %v2201
  %3642 = vmatpush.bf16.msra.mxu0 %v2199
  %3643 = vmatpush.bf16.msra.mxu0 %v2197
  %3644 = vmatmul.bf16.gmra.mxu0 %v596
  %v3645 = vpop.f32.mrf.mxu0
  %v3646 = vadd.f32 %v545, %v3645
  %v3647 = vpop.f32.mrf.mxu0
  %3648 = vdwg.mxu0
  %3649 = vmatpush.bf16.msra.mxu0 %v2227
  %3650 = vmatpush.bf16.msra.mxu0 %v2225
  %3651 = vmatpush.bf16.msra.mxu0 %v2223
  %3652 = vmatpush.bf16.msra.mxu0 %v2221
  %3653 = vmatpush.bf16.msra.mxu0 %v2219
  %3654 = vmatpush.bf16.msra.mxu0 %v2217
  %3655 = vmatpush.bf16.msra.mxu0 %v2215
  %3656 = vmatpush.bf16.msra.mxu0 %v2213
  %3657 = vmatmul.bf16.gmra.mxu0 %v597
  %v3658 = vpop.f32.mrf.mxu0
  %v3659 = vadd.f32 %v3646, %v3658
  %v3660 = vpop.f32.mrf.mxu0
  %3661 = vdwg.mxu0
  %3662 = vmatpush.bf16.msra.mxu0 %v2243
  %3663 = vmatpush.bf16.msra.mxu0 %v2241
  %3664 = vmatpush.bf16.msra.mxu0 %v2239
  %3665 = vmatpush.bf16.msra.mxu0 %v2237
  %3666 = vmatpush.bf16.msra.mxu0 %v2235
  %3667 = vmatpush.bf16.msra.mxu0 %v2233
  %3668 = vmatpush.bf16.msra.mxu0 %v2231
  %3669 = vmatpush.bf16.msra.mxu0 %v2229
  %3670 = vmatmul.bf16.gmra.mxu0 %v598
  %v3671 = vpop.f32.mrf.mxu0
  %v3672 = vadd.f32 %v3659, %v3671
  %v3673 = vpop.f32.mrf.mxu0
  %3674 = vdwg.mxu0
  %3675 = vmatpush.bf16.msra.mxu0 %v2259
  %3676 = vmatpush.bf16.msra.mxu0 %v2257
  %3677 = vmatpush.bf16.msra.mxu0 %v2255
  %3678 = vmatpush.bf16.msra.mxu0 %v2253
  %3679 = vmatpush.bf16.msra.mxu0 %v2251
  %3680 = vmatpush.bf16.msra.mxu0 %v2249
  %3681 = vmatpush.bf16.msra.mxu0 %v2247
  %3682 = vmatpush.bf16.msra.mxu0 %v2245
  %3683 = vmatmul.bf16.gmra.mxu0 %v599
  %v3684 = vpop.f32.mrf.mxu0
  %v3685 = vadd.f32 %v3672, %v3684
  %v3686 = vpop.f32.mrf.mxu0
  %3687 = vdwg.mxu0
  %3688 = vmatpush.bf16.msra.mxu0 %v2275
  %3689 = vmatpush.bf16.msra.mxu0 %v2273
  %3690 = vmatpush.bf16.msra.mxu0 %v2271
  %3691 = vmatpush.bf16.msra.mxu0 %v2269
  %3692 = vmatpush.bf16.msra.mxu0 %v2267
  %3693 = vmatpush.bf16.msra.mxu0 %v2265
  %3694 = vmatpush.bf16.msra.mxu0 %v2263
  %3695 = vmatpush.bf16.msra.mxu0 %v2261
  %3696 = vmatmul.bf16.gmra.mxu0 %v600
  %v3697 = vpop.f32.mrf.mxu0
  %v3698 = vadd.f32 %v3685, %v3697
  %v3699 = vpop.f32.mrf.mxu0
  %3700 = vdwg.mxu0
  %3701 = vmatpush.bf16.msra.mxu0 %v2291
  %3702 = vmatpush.bf16.msra.mxu0 %v2289
  %3703 = vmatpush.bf16.msra.mxu0 %v2287
  %3704 = vmatpush.bf16.msra.mxu0 %v2285
  %3705 = vmatpush.bf16.msra.mxu0 %v2283
  %3706 = vmatpush.bf16.msra.mxu0 %v2281
  %3707 = vmatpush.bf16.msra.mxu0 %v2279
  %3708 = vmatpush.bf16.msra.mxu0 %v2277
  %3709 = vmatmul.bf16.gmra.mxu0 %v601
  %v3710 = vpop.f32.mrf.mxu0
  %v3711 = vadd.f32 %v3698, %v3710
  %v3712 = vpop.f32.mrf.mxu0
  %3713 = vdwg.mxu0
  %3714 = vmatpush.bf16.msra.mxu0 %v2307
  %3715 = vmatpush.bf16.msra.mxu0 %v2305
  %3716 = vmatpush.bf16.msra.mxu0 %v2303
  %3717 = vmatpush.bf16.msra.mxu0 %v2301
  %3718 = vmatpush.bf16.msra.mxu0 %v2299
  %3719 = vmatpush.bf16.msra.mxu0 %v2297
  %3720 = vmatpush.bf16.msra.mxu0 %v2295
  %3721 = vmatpush.bf16.msra.mxu0 %v2293
  %3722 = vmatmul.bf16.gmra.mxu0 %v602
  %v3723 = vpop.f32.mrf.mxu0
  %v3724 = vadd.f32 %v3711, %v3723
  %v3725 = vpop.f32.mrf.mxu0
  %3726 = vdwg.mxu0
  %3727 = vmatpush.bf16.msra.mxu0 %v2323
  %3728 = vmatpush.bf16.msra.mxu0 %v2321
  %3729 = vmatpush.bf16.msra.mxu0 %v2319
  %3730 = vmatpush.bf16.msra.mxu0 %v2317
  %3731 = vmatpush.bf16.msra.mxu0 %v2315
  %3732 = vmatpush.bf16.msra.mxu0 %v2313
  %3733 = vmatpush.bf16.msra.mxu0 %v2311
  %3734 = vmatpush.bf16.msra.mxu0 %v2309
  %3735 = vmatmul.bf16.gmra.mxu0 %v603
  %v3736 = vpop.f32.mrf.mxu0
  %v3737 = vadd.f32 %v3724, %v3736
  %v3738 = vpop.f32.mrf.mxu0
  %3739 = vdwg.mxu0
  %3740 = vmatpush.bf16.msra.mxu0 %v2339
  %3741 = vmatpush.bf16.msra.mxu0 %v2337
  %3742 = vmatpush.bf16.msra.mxu0 %v2335
  %3743 = vmatpush.bf16.msra.mxu0 %v2333
  %3744 = vmatpush.bf16.msra.mxu0 %v2331
  %3745 = vmatpush.bf16.msra.mxu0 %v2329
  %3746 = vmatpush.bf16.msra.mxu0 %v2327
  %3747 = vmatpush.bf16.msra.mxu0 %v2325
  %3748 = vmatmul.bf16.gmra.mxu0 %v604
  %v3749 = vpop.f32.mrf.mxu0
  %v3750 = vadd.f32 %v3737, %v3749
  %v3751 = vpop.f32.mrf.mxu0
  %3752 = vdwg.mxu0
  %3753 = vmatpush.bf16.msra.mxu0 %v2355
  %3754 = vmatpush.bf16.msra.mxu0 %v2353
  %3755 = vmatpush.bf16.msra.mxu0 %v2351
  %3756 = vmatpush.bf16.msra.mxu0 %v2349
  %3757 = vmatpush.bf16.msra.mxu0 %v2347
  %3758 = vmatpush.bf16.msra.mxu0 %v2345
  %3759 = vmatpush.bf16.msra.mxu0 %v2343
  %3760 = vmatpush.bf16.msra.mxu0 %v2341
  %3761 = vmatmul.bf16.gmra.mxu0 %v605
  %v3762 = vpop.f32.mrf.mxu0
  %v3763 = vadd.f32 %v3750, %v3762
  %v3764 = vpop.f32.mrf.mxu0
  %3765 = vdwg.mxu0
  %3766 = vmatpush.bf16.msra.mxu0 %v2371
  %3767 = vmatpush.bf16.msra.mxu0 %v2369
  %3768 = vmatpush.bf16.msra.mxu0 %v2367
  %3769 = vmatpush.bf16.msra.mxu0 %v2365
  %3770 = vmatpush.bf16.msra.mxu0 %v2363
  %3771 = vmatpush.bf16.msra.mxu0 %v2361
  %3772 = vmatpush.bf16.msra.mxu0 %v2359
  %3773 = vmatpush.bf16.msra.mxu0 %v2357
  %3774 = vmatmul.bf16.gmra.mxu0 %v606
  %v3775 = vpop.f32.mrf.mxu0
  %v3776 = vadd.f32 %v3763, %v3775
  %v3777 = vpop.f32.mrf.mxu0
  %3778 = vdwg.mxu0
  %3779 = vmatpush.bf16.msra.mxu0 %v2387
  %3780 = vmatpush.bf16.msra.mxu0 %v2385
  %3781 = vmatpush.bf16.msra.mxu0 %v2383
  %3782 = vmatpush.bf16.msra.mxu0 %v2381
  %3783 = vmatpush.bf16.msra.mxu0 %v2379
  %3784 = vmatpush.bf16.msra.mxu0 %v2377
  %3785 = vmatpush.bf16.msra.mxu0 %v2375
  %3786 = vmatpush.bf16.msra.mxu0 %v2373
  %3787 = vmatmul.bf16.gmra.mxu0 %v607
  %v3788 = vpop.f32.mrf.mxu0
  %v3789 = vadd.f32 %v3776, %v3788
  %v3790 = vpop.f32.mrf.mxu0
  %3791 = vdwg.mxu0
  %3792 = vmatpush.bf16.msra.mxu0 %v2403
  %3793 = vmatpush.bf16.msra.mxu0 %v2401
  %3794 = vmatpush.bf16.msra.mxu0 %v2399
  %3795 = vmatpush.bf16.msra.mxu0 %v2397
  %3796 = vmatpush.bf16.msra.mxu0 %v2395
  %3797 = vmatpush.bf16.msra.mxu0 %v2393
  %3798 = vmatpush.bf16.msra.mxu0 %v2391
  %3799 = vmatpush.bf16.msra.mxu0 %v2389
  %3800 = vmatmul.bf16.gmra.mxu0 %v608
  %v3801 = vpop.f32.mrf.mxu0
  %v3802 = vadd.f32 %v3789, %v3801
  %v3803 = vpop.f32.mrf.mxu0
  %3804 = vdwg.mxu0
  %3805 = vmatpush.bf16.msra.mxu0 %v2419
  %3806 = vmatpush.bf16.msra.mxu0 %v2417
  %3807 = vmatpush.bf16.msra.mxu0 %v2415
  %3808 = vmatpush.bf16.msra.mxu0 %v2413
  %3809 = vmatpush.bf16.msra.mxu0 %v2411
  %3810 = vmatpush.bf16.msra.mxu0 %v2409
  %3811 = vmatpush.bf16.msra.mxu0 %v2407
  %3812 = vmatpush.bf16.msra.mxu0 %v2405
  %3813 = vmatmul.bf16.gmra.mxu0 %v609
  %v3814 = vpop.f32.mrf.mxu0
  %v3815 = vadd.f32 %v3802, %v3814
  %v3816 = vpop.f32.mrf.mxu0
  %3817 = vdwg.mxu0
  %3818 = vmatpush.bf16.msra.mxu0 %v2435
  %3819 = vmatpush.bf16.msra.mxu0 %v2433
  %3820 = vmatpush.bf16.msra.mxu0 %v2431
  %3821 = vmatpush.bf16.msra.mxu0 %v2429
  %3822 = vmatpush.bf16.msra.mxu0 %v2427
  %3823 = vmatpush.bf16.msra.mxu0 %v2425
  %3824 = vmatpush.bf16.msra.mxu0 %v2423
  %3825 = vmatpush.bf16.msra.mxu0 %v2421
  %3826 = vmatmul.bf16.gmra.mxu0 %v610
  %v3827 = vpop.f32.mrf.mxu0
  %v3828 = vadd.f32 %v3815, %v3827
  %v3829 = vpop.f32.mrf.mxu0
  %3830 = vdwg.mxu0
  %3831 = vmatpush.bf16.msra.mxu0 %v2451
  %3832 = vmatpush.bf16.msra.mxu0 %v2449
  %3833 = vmatpush.bf16.msra.mxu0 %v2447
  %3834 = vmatpush.bf16.msra.mxu0 %v2445
  %3835 = vmatpush.bf16.msra.mxu0 %v2443
  %3836 = vmatpush.bf16.msra.mxu0 %v2441
  %3837 = vmatpush.bf16.msra.mxu0 %v2439
  %3838 = vmatpush.bf16.msra.mxu0 %v2437
  %3839 = vmatmul.bf16.gmra.mxu0 %v611
  %v3840 = vpop.f32.mrf.mxu0
  %v3841 = vadd.f32 %v3828, %v3840
  %v3842 = vpop.f32.mrf.mxu0
  %3843 = vdwg.mxu0
  %3844 = vmatpush.bf16.msra.mxu0 %v2467
  %3845 = vmatpush.bf16.msra.mxu0 %v2465
  %3846 = vmatpush.bf16.msra.mxu0 %v2463
  %3847 = vmatpush.bf16.msra.mxu0 %v2461
  %3848 = vmatpush.bf16.msra.mxu0 %v2459
  %3849 = vmatpush.bf16.msra.mxu0 %v2457
  %3850 = vmatpush.bf16.msra.mxu0 %v2455
  %3851 = vmatpush.bf16.msra.mxu0 %v2453
  %3852 = vmatmul.bf16.gmra.mxu0 %v612
  %v3853 = vpop.f32.mrf.mxu0
  %v3854 = vadd.f32 %v3841, %v3853
  %v3855 = vpop.f32.mrf.mxu0
  %3856 = vdwg.mxu0
  %3857 = vmatpush.bf16.msra.mxu0 %v2483
  %3858 = vmatpush.bf16.msra.mxu0 %v2481
  %3859 = vmatpush.bf16.msra.mxu0 %v2479
  %3860 = vmatpush.bf16.msra.mxu0 %v2477
  %3861 = vmatpush.bf16.msra.mxu0 %v2475
  %3862 = vmatpush.bf16.msra.mxu0 %v2473
  %3863 = vmatpush.bf16.msra.mxu0 %v2471
  %3864 = vmatpush.bf16.msra.mxu0 %v2469
  %3865 = vmatmul.bf16.gmra.mxu0 %v613
  %v3866 = vpop.f32.mrf.mxu0
  %v3867 = vadd.f32 %v3854, %v3866
  %v3868 = vpop.f32.mrf.mxu0
  %3869 = vdwg.mxu0
  %3870 = vmatpush.bf16.msra.mxu0 %v2499
  %3871 = vmatpush.bf16.msra.mxu0 %v2497
  %3872 = vmatpush.bf16.msra.mxu0 %v2495
  %3873 = vmatpush.bf16.msra.mxu0 %v2493
  %3874 = vmatpush.bf16.msra.mxu0 %v2491
  %3875 = vmatpush.bf16.msra.mxu0 %v2489
  %3876 = vmatpush.bf16.msra.mxu0 %v2487
  %3877 = vmatpush.bf16.msra.mxu0 %v2485
  %3878 = vmatmul.bf16.gmra.mxu0 %v614
  %v3879 = vpop.f32.mrf.mxu0
  %v3880 = vadd.f32 %v3867, %v3879
  %v3881 = vpop.f32.mrf.mxu0
  %3882 = vdwg.mxu0
  %3883 = vmatpush.bf16.msra.mxu0 %v2515
  %3884 = vmatpush.bf16.msra.mxu0 %v2513
  %3885 = vmatpush.bf16.msra.mxu0 %v2511
  %3886 = vmatpush.bf16.msra.mxu0 %v2509
  %3887 = vmatpush.bf16.msra.mxu0 %v2507
  %3888 = vmatpush.bf16.msra.mxu0 %v2505
  %3889 = vmatpush.bf16.msra.mxu0 %v2503
  %3890 = vmatpush.bf16.msra.mxu0 %v2501
  %3891 = vmatmul.bf16.gmra.mxu0 %v615
  %v3892 = vpop.f32.mrf.mxu0
  %v3893 = vadd.f32 %v3880, %v3892
  %v3894 = vpop.f32.mrf.mxu0
  %3895 = vdwg.mxu0
  %3896 = vmatpush.bf16.msra.mxu0 %v2531
  %3897 = vmatpush.bf16.msra.mxu0 %v2529
  %3898 = vmatpush.bf16.msra.mxu0 %v2527
  %3899 = vmatpush.bf16.msra.mxu0 %v2525
  %3900 = vmatpush.bf16.msra.mxu0 %v2523
  %3901 = vmatpush.bf16.msra.mxu0 %v2521
  %3902 = vmatpush.bf16.msra.mxu0 %v2519
  %3903 = vmatpush.bf16.msra.mxu0 %v2517
  %3904 = vmatmul.bf16.gmra.mxu0 %v616
  %v3905 = vpop.f32.mrf.mxu0
  %v3906 = vadd.f32 %v3893, %v3905
  %v3907 = vpop.f32.mrf.mxu0
  %3908 = vdwg.mxu0
  %3909 = vmatpush.bf16.msra.mxu0 %v2547
  %3910 = vmatpush.bf16.msra.mxu0 %v2545
  %3911 = vmatpush.bf16.msra.mxu0 %v2543
  %3912 = vmatpush.bf16.msra.mxu0 %v2541
  %3913 = vmatpush.bf16.msra.mxu0 %v2539
  %3914 = vmatpush.bf16.msra.mxu0 %v2537
  %3915 = vmatpush.bf16.msra.mxu0 %v2535
  %3916 = vmatpush.bf16.msra.mxu0 %v2533
  %3917 = vmatmul.bf16.gmra.mxu0 %v617
  %v3918 = vpop.f32.mrf.mxu0
  %v3919 = vadd.f32 %v3906, %v3918
  %v3920 = vpop.f32.mrf.mxu0
  %3921 = vdwg.mxu0
  %3922 = vmatpush.bf16.msra.mxu0 %v2563
  %3923 = vmatpush.bf16.msra.mxu0 %v2561
  %3924 = vmatpush.bf16.msra.mxu0 %v2559
  %3925 = vmatpush.bf16.msra.mxu0 %v2557
  %3926 = vmatpush.bf16.msra.mxu0 %v2555
  %3927 = vmatpush.bf16.msra.mxu0 %v2553
  %3928 = vmatpush.bf16.msra.mxu0 %v2551
  %3929 = vmatpush.bf16.msra.mxu0 %v2549
  %3930 = vmatmul.bf16.gmra.mxu0 %v618
  %v3931 = vpop.f32.mrf.mxu0
  %v3932 = vadd.f32 %v3919, %v3931
  %v3933 = vpop.f32.mrf.mxu0
  %3934 = vdwg.mxu0
  %3935 = vmatpush.bf16.msra.mxu0 %v2579
  %3936 = vmatpush.bf16.msra.mxu0 %v2577
  %3937 = vmatpush.bf16.msra.mxu0 %v2575
  %3938 = vmatpush.bf16.msra.mxu0 %v2573
  %3939 = vmatpush.bf16.msra.mxu0 %v2571
  %3940 = vmatpush.bf16.msra.mxu0 %v2569
  %3941 = vmatpush.bf16.msra.mxu0 %v2567
  %3942 = vmatpush.bf16.msra.mxu0 %v2565
  %3943 = vmatmul.bf16.gmra.mxu0 %v619
  %v3944 = vpop.f32.mrf.mxu0
  %v3945 = vadd.f32 %v3932, %v3944
  %v3946 = vpop.f32.mrf.mxu0
  %3947 = vdwg.mxu0
  %3948 = vmatpush.bf16.msra.mxu0 %v2595
  %3949 = vmatpush.bf16.msra.mxu0 %v2593
  %3950 = vmatpush.bf16.msra.mxu0 %v2591
  %3951 = vmatpush.bf16.msra.mxu0 %v2589
  %3952 = vmatpush.bf16.msra.mxu0 %v2587
  %3953 = vmatpush.bf16.msra.mxu0 %v2585
  %3954 = vmatpush.bf16.msra.mxu0 %v2583
  %3955 = vmatpush.bf16.msra.mxu0 %v2581
  %3956 = vmatmul.bf16.gmra.mxu0 %v620
  %v3957 = vpop.f32.mrf.mxu0
  %v3958 = vadd.f32 %v3945, %v3957
  %v3959 = vpop.f32.mrf.mxu0
  %3960 = vdwg.mxu0
  %3961 = vmatpush.bf16.msra.mxu0 %v2611
  %3962 = vmatpush.bf16.msra.mxu0 %v2609
  %3963 = vmatpush.bf16.msra.mxu0 %v2607
  %3964 = vmatpush.bf16.msra.mxu0 %v2605
  %3965 = vmatpush.bf16.msra.mxu0 %v2603
  %3966 = vmatpush.bf16.msra.mxu0 %v2601
  %3967 = vmatpush.bf16.msra.mxu0 %v2599
  %3968 = vmatpush.bf16.msra.mxu0 %v2597
  %3969 = vmatmul.bf16.gmra.mxu0 %v621
  %v3970 = vpop.f32.mrf.mxu0
  %v3971 = vadd.f32 %v3958, %v3970
  %v3972 = vpop.f32.mrf.mxu0
  %3973 = vdwg.mxu0
  %3974 = vmatpush.bf16.msra.mxu0 %v2627
  %3975 = vmatpush.bf16.msra.mxu0 %v2625
  %3976 = vmatpush.bf16.msra.mxu0 %v2623
  %3977 = vmatpush.bf16.msra.mxu0 %v2621
  %3978 = vmatpush.bf16.msra.mxu0 %v2619
  %3979 = vmatpush.bf16.msra.mxu0 %v2617
  %3980 = vmatpush.bf16.msra.mxu0 %v2615
  %3981 = vmatpush.bf16.msra.mxu0 %v2613
  %3982 = vmatmul.bf16.gmra.mxu0 %v622
  %v3983 = vpop.f32.mrf.mxu0
  %v3984 = vadd.f32 %v3971, %v3983
  %v3985 = vpop.f32.mrf.mxu0
  %3986 = vdwg.mxu0
  %3987 = vmatpush.bf16.msra.mxu0 %v2643
  %3988 = vmatpush.bf16.msra.mxu0 %v2641
  %3989 = vmatpush.bf16.msra.mxu0 %v2639
  %3990 = vmatpush.bf16.msra.mxu0 %v2637
  %3991 = vmatpush.bf16.msra.mxu0 %v2635
  %3992 = vmatpush.bf16.msra.mxu0 %v2633
  %3993 = vmatpush.bf16.msra.mxu0 %v2631
  %3994 = vmatpush.bf16.msra.mxu0 %v2629
  %3995 = vmatmul.bf16.gmra.mxu0 %v623
  %v3996 = vpop.f32.mrf.mxu0
  %v3997 = vadd.f32 %v3984, %v3996
  %v3998 = vpop.f32.mrf.mxu0
  %3999 = vdwg.mxu0
  %4000 = vmatpush.bf16.msra.mxu0 %v2659
  %4001 = vmatpush.bf16.msra.mxu0 %v2657
  %4002 = vmatpush.bf16.msra.mxu0 %v2655
  %4003 = vmatpush.bf16.msra.mxu0 %v2653
  %4004 = vmatpush.bf16.msra.mxu0 %v2651
  %4005 = vmatpush.bf16.msra.mxu0 %v2649
  %4006 = vmatpush.bf16.msra.mxu0 %v2647
  %4007 = vmatpush.bf16.msra.mxu0 %v2645
  %4008 = vmatmul.bf16.gmra.mxu0 %v624
  %v4009 = vpop.f32.mrf.mxu0
  %v4010 = vadd.f32 %v3997, %v4009
  %v4011 = vpop.f32.mrf.mxu0
  %4012 = vdwg.mxu0
  %4013 = vmatpush.bf16.msra.mxu0 %v2675
  %4014 = vmatpush.bf16.msra.mxu0 %v2673
  %4015 = vmatpush.bf16.msra.mxu0 %v2671
  %4016 = vmatpush.bf16.msra.mxu0 %v2669
  %4017 = vmatpush.bf16.msra.mxu0 %v2667
  %4018 = vmatpush.bf16.msra.mxu0 %v2665
  %4019 = vmatpush.bf16.msra.mxu0 %v2663
  %4020 = vmatpush.bf16.msra.mxu0 %v2661
  %4021 = vmatmul.bf16.gmra.mxu0 %v625
  %v4022 = vpop.f32.mrf.mxu0
  %v4023 = vadd.f32 %v4010, %v4022
  %v4024 = vpop.f32.mrf.mxu0
  %4025 = vdwg.mxu0
  %4026 = vmatpush.bf16.msra.mxu0 %v2691
  %4027 = vmatpush.bf16.msra.mxu0 %v2689
  %4028 = vmatpush.bf16.msra.mxu0 %v2687
  %4029 = vmatpush.bf16.msra.mxu0 %v2685
  %4030 = vmatpush.bf16.msra.mxu0 %v2683
  %4031 = vmatpush.bf16.msra.mxu0 %v2681
  %4032 = vmatpush.bf16.msra.mxu0 %v2679
  %4033 = vmatpush.bf16.msra.mxu0 %v2677
  %4034 = vmatmul.bf16.gmra.mxu0 %v626
  %v4035 = vpop.f32.mrf.mxu0
  %v4036 = vadd.f32 %v4023, %v4035
  %v4037 = vpop.f32.mrf.mxu0
  %4038 = vdwg.mxu0
  %4039 = vmatpush.bf16.msra.mxu0 %v2707
  %4040 = vmatpush.bf16.msra.mxu0 %v2705
  %4041 = vmatpush.bf16.msra.mxu0 %v2703
  %4042 = vmatpush.bf16.msra.mxu0 %v2701
  %4043 = vmatpush.bf16.msra.mxu0 %v2699
  %4044 = vmatpush.bf16.msra.mxu0 %v2697
  %4045 = vmatpush.bf16.msra.mxu0 %v2695
  %4046 = vmatpush.bf16.msra.mxu0 %v2693
  %4047 = vmatmul.bf16.gmra.mxu0 %v627
  %v4048 = vpop.f32.mrf.mxu0
  %v4049 = vadd.f32 %v4036, %v4048
  %v4050 = vpop.f32.mrf.mxu0
  %4051 = vdwg.mxu0
  %v4052 = vmax.f32 %v3633, 0.0
  %v4053 = vmax.f32 %v4049, 0.0
  %v4054 = vpack.c.bf16 %v4053, %v4052
  %4055 = vst [vmem:[%s3] sm:$0xff] %v4054
  // Predicated region
  $region14: #{style_encoder_forward.18} parent=0 // pred_check
    _
  $region15: #{style_encoder_forward.18} parent=0 // pred_check_branch
    %4057 = sbr.rel (0) target = $region17
  $region16: #{style_encoder_forward.18} parent=0 // pred_region
    _
  $region17: #{style_encoder_forward.18} parent=0 // pred_fallthru
    _
  // Predicated region
  $region18: #{style_encoder_forward.18} parent=0 // pred_check
    _
  $region19: #{style_encoder_forward.18} parent=0 // pred_check_branch
    %4059 = sbr.rel (0) target = $region21
  $region20: #{style_encoder_forward.18} parent=0 // pred_region
    _
  $region21: #{style_encoder_forward.18} parent=0 // pred_fallthru
    _

// kernel: style_encoder_forward.19
$region0: #{style_encoder_forward.19}
  #allocation0 [shape = 'u32[]', space=smem, size = 0x4, offset = 0x4, fixed_abs, tag = 'smem constant byte address 0x4 - core index']
  #allocation1 [shape = 'u32[72,128]{1,0:T(1,128)}', space=vmem, size = 0x9000, scoped, tag = 'internal scratch']
  #allocation2 [shape = 'f32[1,256]{1,0:T(1,128)}', space=vmem, size = 0x400, scoped, tag = 'scratch operand']
  %s0 = inlined_call_operand.vmem [shape: bf16[2,8,4096], index: 0, kind: input, shape index: {}]
  %s1 = inlined_call_operand.vmem [shape: bf16[4096,256], index: 1, kind: input, shape index: {}]
  %s2 = inlined_call_operand.vmem [shape: f32[1,256], index: 2, kind: input, shape index: {}]
  %s3 = inlined_call_operand.vmem [shape: f32[256,8], index: 3, kind: input, shape index: {}]
  %s4 = inlined_call_operand.vmem [shape: f32[1,8], index: 4, kind: input, shape index: {}]
  %s5 = inlined_call_operand.hbm [shape: f32[2,1,8], index: 5, kind: output, shape index: {}]
  %s6 = sld [smem:[#allocation0]]
  $region61: #{style_encoder_forward.19} parent=0
    _
  %s8 = ssub.s32 1, %s6
  %s9 = scalar_select 0, %s8, %s6
  $region1: #{style_encoder_forward.19} parent=0
    #allocation3 [shape = 'u8[1024]{0}', space=vmem, size = 0x400, scoped, tag = 'output window, operand 0']
    #allocation4 [shape = 's32[2]{0}', space=sflag, size = 0x8, scoped, tag = 'scoped memory for style_encoder_forward.19']
    %10 = vsyncpa [#allocation4], 0
    %s11 = scalar_lea.sflag [#allocation4], 1
    %12 = vsyncpa %s11, 0
    loop: start=0, step=1, limit=4
    $region2: #{style_encoder_forward.19} parent=1 // loop_pre_header
      _
    $region3: #{style_encoder_forward.19} parent=1 // loop_header
      %s14 = sphi 0, %s18
      %p15 = scmp.ge.s32.totalorder %s14, 4
      %s21 = sphi 0, %s33
      %s22 = sphi 0, %s29
      %s23 = sphi 0, %s21
      %s24 = sphi 0, %s22
      %s25 = sphi 0, %s23
      %s26 = sphi 0, %s24
      %s38 = sphi 0, %s40
      %s41 = sphi 0, %s38
      %s42 = sphi 0, %s41
      %s58 = sphi 0, %s42
      %s62 = sphi 0, %s62
      %s64 = sphi 0, %s62
      %s65 = sphi 0, %s64
      %s79 = sphi 0, %s65
      %s83 = sphi 0, %s83
      %s85 = sphi 0, %s83
      %s86 = sphi 0, %s85
      %s100 = sphi 0, %s86
      %s104 = sphi 0, %s104
      %s106 = sphi 0, %s104
      %s107 = sphi 0, %s106
      %s121 = sphi 0, %s107
      %s125 = sphi 0, %s125
      %s127 = sphi 0, %s125
      %s128 = sphi 0, %s127
      %s142 = sphi 0, %s128
      %s148 = sphi 0, %s150
      %s151 = sphi 0, %s148
      %s152 = sphi 0, %s151
      %s168 = sphi 0, %s152
    $region4: #{style_encoder_forward.19} parent=1 // loop_header_branch
      %17 = sbr.rel (%p15) target = $region8
    $region5: #{style_encoder_forward.19} parent=1 // loop_body
      %s19 = ssub.s32 %s14, 1
      %s20 = ssub.s32 %s14, 2
      %s27 = sadd.s32 1, %s22
      %p28 = scmp.ge.s32.totalorder %s27, 1
      %s29 = scalar_select %p28, 0, %s27
      %s30 = sadd.s32 1, %s21
      %s31 = scalar_select %p28, %s30, %s21
      %p32 = scmp.ge.s32.totalorder %s31, 2
      %s33 = scalar_select %p32, 0, %s31
      %s34 = ssub.s32 %s21, %s33
      %s35 = ssub.s32 %s22, %s29
      %s36 = sor.u32 %s34, %s35
      %p37 = scmp.eq.s32.totalorder %s36, 0
      %s39 = sadd.s32 %s38, 1
      %s40 = scalar_select %p37, %s38, %s39
      %p43 = pneg %p37
      %p44 = scmp.eq.s32.totalorder %s14, 1
      %p45 = por %p43, %p44
      %p46 = scmp.ne.s32.totalorder %s38, %s41
      %p47 = scmp.eq.s32.totalorder %s14, 0
      %p48 = por %p46, %p47
      %p49 = scmp.ne.s32.totalorder %s38, %s41
      %p50 = scmp.eq.s32.totalorder %s19, 1
      %p51 = por %p49, %p50
      %p52 = scmp.ne.s32.totalorder %s41, %s42
      %p53 = scmp.eq.s32.totalorder %s19, 0
      %p54 = por %p52, %p53
      %p55 = scmp.ne.s32.totalorder %s41, %s42
      %p56 = scmp.eq.s32.totalorder %s20, 1
      %p57 = por %p55, %p56
      %p59 = scmp.ne.s32.totalorder %s42, %s58
      %p60 = scmp.eq.s32.totalorder %s20, 0
      %p61 = por %p59, %p60
      %s63 = sadd.s32 %s62, 1
      %p66 = scmp.eq.s32.totalorder %s14, 1
      %p67 = scmp.ne.s32.totalorder %s62, %s64
      %p68 = scmp.eq.s32.totalorder %s14, 0
      %p69 = por %p67, %p68
      %p70 = scmp.ne.s32.totalorder %s62, %s64
      %p71 = scmp.eq.s32.totalorder %s19, 1
      %p72 = por %p70, %p71
      %p73 = scmp.ne.s32.totalorder %s64, %s65
      %p74 = scmp.eq.s32.totalorder %s19, 0
      %p75 = por %p73, %p74
      %p76 = scmp.ne.s32.totalorder %s64, %s65
      %p77 = scmp.eq.s32.totalorder %s20, 1
      %p78 = por %p76, %p77
      %p80 = scmp.ne.s32.totalorder %s65, %s79
      %p81 = scmp.eq.s32.totalorder %s20, 0
      %p82 = por %p80, %p81
      %s84 = sadd.s32 %s83, 1
      %p87 = scmp.eq.s32.totalorder %s14, 1
      %p88 = scmp.ne.s32.totalorder %s83, %s85
      %p89 = scmp.eq.s32.totalorder %s14, 0
      %p90 = por %p88, %p89
      %p91 = scmp.ne.s32.totalorder %s83, %s85
      %p92 = scmp.eq.s32.totalorder %s19, 1
      %p93 = por %p91, %p92
      %p94 = scmp.ne.s32.totalorder %s85, %s86
      %p95 = scmp.eq.s32.totalorder %s19, 0
      %p96 = por %p94, %p95
      %p97 = scmp.ne.s32.totalorder %s85, %s86
      %p98 = scmp.eq.s32.totalorder %s20, 1
      %p99 = por %p97, %p98
      %p101 = scmp.ne.s32.totalorder %s86, %s100
      %p102 = scmp.eq.s32.totalorder %s20, 0
      %p103 = por %p101, %p102
      %s105 = sadd.s32 %s104, 1
      %p108 = scmp.eq.s32.totalorder %s14, 1
      %p109 = scmp.ne.s32.totalorder %s104, %s106
      %p110 = scmp.eq.s32.totalorder %s14, 0
      %p111 = por %p109, %p110
      %p112 = scmp.ne.s32.totalorder %s104, %s106
      %p113 = scmp.eq.s32.totalorder %s19, 1
      %p114 = por %p112, %p113
      %p115 = scmp.ne.s32.totalorder %s106, %s107
      %p116 = scmp.eq.s32.totalorder %s19, 0
      %p117 = por %p115, %p116
      %p118 = scmp.ne.s32.totalorder %s106, %s107
      %p119 = scmp.eq.s32.totalorder %s20, 1
      %p120 = por %p118, %p119
      %p122 = scmp.ne.s32.totalorder %s107, %s121
      %p123 = scmp.eq.s32.totalorder %s20, 0
      %p124 = por %p122, %p123
      %s126 = sadd.s32 %s125, 1
      %p129 = scmp.eq.s32.totalorder %s14, 1
      %p130 = scmp.ne.s32.totalorder %s125, %s127
      %p131 = scmp.eq.s32.totalorder %s14, 0
      %p132 = por %p130, %p131
      %p133 = scmp.ne.s32.totalorder %s125, %s127
      %p134 = scmp.eq.s32.totalorder %s19, 1
      %p135 = por %p133, %p134
      %p136 = scmp.ne.s32.totalorder %s127, %s128
      %p137 = scmp.eq.s32.totalorder %s19, 0
      %p138 = por %p136, %p137
      %p139 = scmp.ne.s32.totalorder %s127, %s128
      %p140 = scmp.eq.s32.totalorder %s20, 1
      %p141 = por %p139, %p140
      %p143 = scmp.ne.s32.totalorder %s128, %s142
      %p144 = scmp.eq.s32.totalorder %s20, 0
      %p145 = por %p143, %p144
      %s146 = ssub.s32 %s21, %s33
      %p147 = scmp.eq.s32.totalorder %s146, 0
      %s149 = sadd.s32 %s148, 1
      %s150 = scalar_select %p147, %s148, %s149
      %p153 = pneg %p147
      %p154 = scmp.eq.s32.totalorder %s14, 1
      %p155 = por %p153, %p154
      %p156 = scmp.ne.s32.totalorder %s148, %s151
      %p157 = scmp.eq.s32.totalorder %s14, 0
      %p158 = por %p156, %p157
      %p159 = scmp.ne.s32.totalorder %s148, %s151
      %p160 = scmp.eq.s32.totalorder %s19, 1
      %p161 = por %p159, %p160
      %p162 = scmp.ne.s32.totalorder %s151, %s152
      %p163 = scmp.eq.s32.totalorder %s19, 0
      %p164 = por %p162, %p163
      %p165 = scmp.ne.s32.totalorder %s151, %s152
      %p166 = scmp.eq.s32.totalorder %s20, 1
      %p167 = por %p165, %p166
      %p169 = scmp.ne.s32.totalorder %s152, %s168
      %p170 = scmp.eq.s32.totalorder %s20, 0
      %p171 = por %p169, %p170
      %p172 = scmp.le.s32.totalorder 1, %s14
      %p173 = scmp.lt.s32.totalorder %s14, 3
      %p174 = pnand %p172, %p173
      %p175 = pneg %p174
      // Predicated region
      $region9: #{style_encoder_forward.19} parent=5 // pred_check
        _
      $region10: #{style_encoder_forward.19} parent=5 // pred_check_branch
        %177 = sbr.rel (%p174) target = $region12
      $region11: #{style_encoder_forward.19} parent=5 // pred_region
        %s178 = ssub.s32 %s14, 1
        // Predicated region
        $region13: #{style_encoder_forward.19} parent=11 // pred_check
          %p179 = pneg %p75
        $region14: #{style_encoder_forward.19} parent=11 // pred_check_branch
          %181 = sbr.rel (%p179) target = $region16
        $region15: #{style_encoder_forward.19} parent=11 // pred_region
          _
        $region16: #{style_encoder_forward.19} parent=11 // pred_fallthru
          _
        // Predicated region
        $region17: #{style_encoder_forward.19} parent=11 // pred_check
          %p182 = pneg %p96
        $region18: #{style_encoder_forward.19} parent=11 // pred_check_branch
          %184 = sbr.rel (%p182) target = $region20
        $region19: #{style_encoder_forward.19} parent=11 // pred_region
          _
        $region20: #{style_encoder_forward.19} parent=11 // pred_fallthru
          _
        // Predicated region
        $region21: #{style_encoder_forward.19} parent=11 // pred_check
          %p185 = pneg %p117
        $region22: #{style_encoder_forward.19} parent=11 // pred_check_branch
          %187 = sbr.rel (%p185) target = $region24
        $region23: #{style_encoder_forward.19} parent=11 // pred_region
          _
        $region24: #{style_encoder_forward.19} parent=11 // pred_fallthru
          _
        // Predicated region
        $region25: #{style_encoder_forward.19} parent=11 // pred_check
          %p188 = pneg %p138
        $region26: #{style_encoder_forward.19} parent=11 // pred_check_branch
          %190 = sbr.rel (%p188) target = $region28
        $region27: #{style_encoder_forward.19} parent=11 // pred_region
          _
        $region28: #{style_encoder_forward.19} parent=11 // pred_fallthru
          _
      $region12: #{style_encoder_forward.19} parent=5 // pred_fallthru
        _
      %p191 = scmp.lt.s32.totalorder %s14, 2
      // Predicated region
      $region29: #{style_encoder_forward.19} parent=5 // pred_check
        %p192 = pneg %p191
      $region30: #{style_encoder_forward.19} parent=5 // pred_check_branch
        %194 = sbr.rel (%p192) target = $region32
      $region31: #{style_encoder_forward.19} parent=5 // pred_region
        // Predicated region
        $region33: #{style_encoder_forward.19} parent=31 // pred_check
          %p195 = pneg %p48
        $region34: #{style_encoder_forward.19} parent=31 // pred_check_branch
          %197 = sbr.rel (%p195) target = $region36
        $region35: #{style_encoder_forward.19} parent=31 // pred_region
          %p198 = scmp.lt.s32.totalorder %s21, 1
          %s199 = scalar_select %p198, %s21, 1
          %p200 = scmp.lt.s32.totalorder %s22, 0
          %s201 = scalar_select %p200, %s22, 0
          %s202 = smul.addr %s201, 32
          %s203 = smul.addr %s199, 32
          %s204 = sadd.s32 %s202, %s203
          %s205 = smul.addr %s204, 4
          %s206 = scalar_lea.vmem %s0, %s205
        $region36: #{style_encoder_forward.19} parent=31 // pred_fallthru
          _
      $region32: #{style_encoder_forward.19} parent=5 // pred_fallthru
        _
      %p207 = scmp.le.s32.totalorder 1, %s14
      %p208 = scmp.lt.s32.totalorder %s14, 3
      %p209 = pnand %p207, %p208
      %p210 = pneg %p209
      // Predicated region
      $region37: #{style_encoder_forward.19} parent=5 // pred_check
        _
      $region38: #{style_encoder_forward.19} parent=5 // pred_check_branch
        %212 = sbr.rel (%p209) target = $region40
      $region39: #{style_encoder_forward.19} parent=5 // pred_region
        %s213 = ssub.s32 %s14, 1
        %p214 = scmp.lt.s32.totalorder %s23, 1
        %s215 = scalar_select %p214, %s23, 1
        %p216 = scmp.lt.s32.totalorder %s24, 0
        %s217 = scalar_select %p216, %s24, 0
        %s218 = smul.addr %s217, 32
        %s219 = smul.addr %s215, 32
        %s220 = sadd.s32 %s218, %s219
        %s221 = smul.addr %s220, 4
        %s222 = scalar_lea.vmem %s0, %s221
        %p223 = pneg %p54
        %p224 = pneg %p51
        %p225 = pneg %p75
        %p226 = pneg %p72
        %p227 = pneg %p96
        %p228 = pneg %p93
        %p229 = pneg %p117
        %p230 = pneg %p114
        %p231 = pneg %p138
        %p232 = pneg %p135
        %p233 = pneg %p164
        %p234 = pneg %p161
        %s235 = sand.u32 %s151, 1
        %s236 = scalar_lea.sflag [#allocation4], %s235
        %s237 = sand.u32 %s151, 1
        %s238 = scalar_lea.vmem [#allocation3], %s237
        %p239 = scmp.lt.s32.totalorder %s23, 1
        %s240 = scalar_select %p239, %s23, 1
        %p241 = scmp.lt.s32.totalorder %s24, 0
        %s242 = scalar_select %p241, %s24, 0
        %s243 = smul.addr %s242, 32
        %s244 = smul.addr %s240, 32
        %s245 = sadd.s32 %s243, %s244
        %s246 = smul.addr %s245, 4
        %s247 = scalar_lea.vmem %s0, %s246
        %p248 = scmp.eq.s32.totalorder %s24, 0
        // Predicated region
        $region41: #{style_encoder_forward.19} parent=39 // pred_check
          %p249 = pneg %p248
        $region42: #{style_encoder_forward.19} parent=39 // pred_check_branch
          %251 = sbr.rel (%p249) target = $region44
        $region43: #{style_encoder_forward.19} parent=39 // pred_region
          %v252 = vlaneseq
          %vm253 = vcmp.ge.s32.totalorder %v252, 0
          %vm254 = vcmp.lt.s32.totalorder %v252, 256
          %vm255 = vmand %vm253, %vm254
          %256 = vst.msk [vmem:[#allocation2] sm:$0x3] %vm255, 0.0
        $region44: #{style_encoder_forward.19} parent=39 // pred_fallthru
          _
        %v257 = vld [vmem:[%s247] sm:$0xff]
        %v258 = vld [vmem:[%s247 + $0x8] sm:$0xff]
        %v259 = vld [vmem:[%s247 + $0x10] sm:$0xff]
        %v260 = vld [vmem:[%s247 + $0x18] sm:$0xff]
        %v261 = vld [vmem:[%s247 + $0x20] sm:$0xff]
        %v262 = vld [vmem:[%s247 + $0x28] sm:$0xff]
        %v263 = vld [vmem:[%s247 + $0x30] sm:$0xff]
        %v264 = vld [vmem:[%s247 + $0x38] sm:$0xff]
        %v265 = vld [vmem:[%s247 + $0x40] sm:$0xff]
        %v266 = vld [vmem:[%s247 + $0x48] sm:$0xff]
        %v267 = vld [vmem:[%s247 + $0x50] sm:$0xff]
        %v268 = vld [vmem:[%s247 + $0x58] sm:$0xff]
        %v269 = vld [vmem:[%s247 + $0x60] sm:$0xff]
        %v270 = vld [vmem:[%s247 + $0x68] sm:$0xff]
        %v271 = vld [vmem:[%s247 + $0x70] sm:$0xff]
        %v272 = vld [vmem:[%s247 + $0x78] sm:$0xff]
        %v273 = vld [vmem:[%s1] sm:$0xff]
        %v274 = vld [vmem:[%s1 + $0x8] sm:$0xff]
        %v275 = vld [vmem:[%s1 + $0x10] sm:$0xff]
        %v276 = vld [vmem:[%s1 + $0x18] sm:$0xff]
        %v277 = vld [vmem:[%s1 + $0x20] sm:$0xff]
        %v278 = vld [vmem:[%s1 + $0x28] sm:$0xff]
        %v279 = vld [vmem:[%s1 + $0x30] sm:$0xff]
        %v280 = vld [vmem:[%s1 + $0x38] sm:$0xff]
        %v281 = vld [vmem:[%s1 + $0x40] sm:$0xff]
        %v282 = vld [vmem:[%s1 + $0x48] sm:$0xff]
        %v283 = vld [vmem:[%s1 + $0x50] sm:$0xff]
        %v284 = vld [vmem:[%s1 + $0x58] sm:$0xff]
        %v285 = vld [vmem:[%s1 + $0x60] sm:$0xff]
        %v286 = vld [vmem:[%s1 + $0x68] sm:$0xff]
        %v287 = vld [vmem:[%s1 + $0x70] sm:$0xff]
        %v288 = vld [vmem:[%s1 + $0x78] sm:$0xff]
        %v289 = vld [vmem:[%s1 + $0x80] sm:$0xff]
        %v290 = vld [vmem:[%s1 + $0x88] sm:$0xff]
        %v291 = vld [vmem:[%s1 + $0x90] sm:$0xff]
        %v292 = vld [vmem:[%s1 + $0x98] sm:$0xff]
        %v293 = vld [vmem:[%s1 + $0xa0] sm:$0xff]
        %v294 = vld [vmem:[%s1 + $0xa8] sm:$0xff]
        %v295 = vld [vmem:[%s1 + $0xb0] sm:$0xff]
        %v296 = vld [vmem:[%s1 + $0xb8] sm:$0xff]
        %v297 = vld [vmem:[%s1 + $0xc0] sm:$0xff]
        %v298 = vld [vmem:[%s1 + $0xc8] sm:$0xff]
        %v299 = vld [vmem:[%s1 + $0xd0] sm:$0xff]
        %v300 = vld [vmem:[%s1 + $0xd8] sm:$0xff]
        %v301 = vld [vmem:[%s1 + $0xe0] sm:$0xff]
        %v302 = vld [vmem:[%s1 + $0xe8] sm:$0xff]
        %v303 = vld [vmem:[%s1 + $0xf0] sm:$0xff]
        %v304 = vld [vmem:[%s1 + $0xf8] sm:$0xff]
        %v305 = vld [vmem:[%s1 + $0x100] sm:$0xff]
        %v306 = vld [vmem:[%s1 + $0x108] sm:$0xff]
        %v307 = vld [vmem:[%s1 + $0x110] sm:$0xff]
        %v308 = vld [vmem:[%s1 + $0x118] sm:$0xff]
        %v309 = vld [vmem:[%s1 + $0x120] sm:$0xff]
        %v310 = vld [vmem:[%s1 + $0x128] sm:$0xff]
        %v311 = vld [vmem:[%s1 + $0x130] sm:$0xff]
        %v312 = vld [vmem:[%s1 + $0x138] sm:$0xff]
        %v313 = vld [vmem:[%s1 + $0x140] sm:$0xff]
        %v314 = vld [vmem:[%s1 + $0x148] sm:$0xff]
        %v315 = vld [vmem:[%s1 + $0x150] sm:$0xff]
        %v316 = vld [vmem:[%s1 + $0x158] sm:$0xff]
        %v317 = vld [vmem:[%s1 + $0x160] sm:$0xff]
        %v318 = vld [vmem:[%s1 + $0x168] sm:$0xff]
        %v319 = vld [vmem:[%s1 + $0x170] sm:$0xff]
        %v320 = vld [vmem:[%s1 + $0x178] sm:$0xff]
        %v321 = vld [vmem:[%s1 + $0x180] sm:$0xff]
        %v322 = vld [vmem:[%s1 + $0x188] sm:$0xff]
        %v323 = vld [vmem:[%s1 + $0x190] sm:$0xff]
        %v324 = vld [vmem:[%s1 + $0x198] sm:$0xff]
        %v325 = vld [vmem:[%s1 + $0x1a0] sm:$0xff]
        %v326 = vld [vmem:[%s1 + $0x1a8] sm:$0xff]
        %v327 = vld [vmem:[%s1 + $0x1b0] sm:$0xff]
        %v328 = vld [vmem:[%s1 + $0x1b8] sm:$0xff]
        %v329 = vld [vmem:[%s1 + $0x1c0] sm:$0xff]
        %v330 = vld [vmem:[%s1 + $0x1c8] sm:$0xff]
        %v331 = vld [vmem:[%s1 + $0x1d0] sm:$0xff]
        %v332 = vld [vmem:[%s1 + $0x1d8] sm:$0xff]
        %v333 = vld [vmem:[%s1 + $0x1e0] sm:$0xff]
        %v334 = vld [vmem:[%s1 + $0x1e8] sm:$0xff]
        %v335 = vld [vmem:[%s1 + $0x1f0] sm:$0xff]
        %v336 = vld [vmem:[%s1 + $0x1f8] sm:$0xff]
        %v337 = vld [vmem:[%s1 + $0x200] sm:$0xff]
        %v338 = vld [vmem:[%s1 + $0x208] sm:$0xff]
        %v339 = vld [vmem:[%s1 + $0x210] sm:$0xff]
        %v340 = vld [vmem:[%s1 + $0x218] sm:$0xff]
        %v341 = vld [vmem:[%s1 + $0x220] sm:$0xff]
        %v342 = vld [vmem:[%s1 + $0x228] sm:$0xff]
        %v343 = vld [vmem:[%s1 + $0x230] sm:$0xff]
        %v344 = vld [vmem:[%s1 + $0x238] sm:$0xff]
        %v345 = vld [vmem:[%s1 + $0x240] sm:$0xff]
        %v346 = vld [vmem:[%s1 + $0x248] sm:$0xff]
        %v347 = vld [vmem:[%s1 + $0x250] sm:$0xff]
        %v348 = vld [vmem:[%s1 + $0x258] sm:$0xff]
        %v349 = vld [vmem:[%s1 + $0x260] sm:$0xff]
        %v350 = vld [vmem:[%s1 + $0x268] sm:$0xff]
        %v351 = vld [vmem:[%s1 + $0x270] sm:$0xff]
        %v352 = vld [vmem:[%s1 + $0x278] sm:$0xff]
        %v353 = vld [vmem:[%s1 + $0x280] sm:$0xff]
        %v354 = vld [vmem:[%s1 + $0x288] sm:$0xff]
        %v355 = vld [vmem:[%s1 + $0x290] sm:$0xff]
        %v356 = vld [vmem:[%s1 + $0x298] sm:$0xff]
        %v357 = vld [vmem:[%s1 + $0x2a0] sm:$0xff]
        %v358 = vld [vmem:[%s1 + $0x2a8] sm:$0xff]
        %v359 = vld [vmem:[%s1 + $0x2b0] sm:$0xff]
        %v360 = vld [vmem:[%s1 + $0x2b8] sm:$0xff]
        %v361 = vld [vmem:[%s1 + $0x2c0] sm:$0xff]
        %v362 = vld [vmem:[%s1 + $0x2c8] sm:$0xff]
        %v363 = vld [vmem:[%s1 + $0x2d0] sm:$0xff]
        %v364 = vld [vmem:[%s1 + $0x2d8] sm:$0xff]
        %v365 = vld [vmem:[%s1 + $0x2e0] sm:$0xff]
        %v366 = vld [vmem:[%s1 + $0x2e8] sm:$0xff]
        %v367 = vld [vmem:[%s1 + $0x2f0] sm:$0xff]
        %v368 = vld [vmem:[%s1 + $0x2f8] sm:$0xff]
        %v369 = vld [vmem:[%s1 + $0x300] sm:$0xff]
        %v370 = vld [vmem:[%s1 + $0x308] sm:$0xff]
        %v371 = vld [vmem:[%s1 + $0x310] sm:$0xff]
        %v372 = vld [vmem:[%s1 + $0x318] sm:$0xff]
        %v373 = vld [vmem:[%s1 + $0x320] sm:$0xff]
        %v374 = vld [vmem:[%s1 + $0x328] sm:$0xff]
        %v375 = vld [vmem:[%s1 + $0x330] sm:$0xff]
        %v376 = vld [vmem:[%s1 + $0x338] sm:$0xff]
        %v377 = vld [vmem:[%s1 + $0x340] sm:$0xff]
        %v378 = vld [vmem:[%s1 + $0x348] sm:$0xff]
        %v379 = vld [vmem:[%s1 + $0x350] sm:$0xff]
        %v380 = vld [vmem:[%s1 + $0x358] sm:$0xff]
        %v381 = vld [vmem:[%s1 + $0x360] sm:$0xff]
        %v382 = vld [vmem:[%s1 + $0x368] sm:$0xff]
        %v383 = vld [vmem:[%s1 + $0x370] sm:$0xff]
        %v384 = vld [vmem:[%s1 + $0x378] sm:$0xff]
        %v385 = vld [vmem:[%s1 + $0x380] sm:$0xff]
        %v386 = vld [vmem:[%s1 + $0x388] sm:$0xff]
        %v387 = vld [vmem:[%s1 + $0x390] sm:$0xff]
        %v388 = vld [vmem:[%s1 + $0x398] sm:$0xff]
        %v389 = vld [vmem:[%s1 + $0x3a0] sm:$0xff]
        %v390 = vld [vmem:[%s1 + $0x3a8] sm:$0xff]
        %v391 = vld [vmem:[%s1 + $0x3b0] sm:$0xff]
        %v392 = vld [vmem:[%s1 + $0x3b8] sm:$0xff]
        %v393 = vld [vmem:[%s1 + $0x3c0] sm:$0xff]
        %v394 = vld [vmem:[%s1 + $0x3c8] sm:$0xff]
        %v395 = vld [vmem:[%s1 + $0x3d0] sm:$0xff]
        %v396 = vld [vmem:[%s1 + $0x3d8] sm:$0xff]
        %v397 = vld [vmem:[%s1 + $0x3e0] sm:$0xff]
        %v398 = vld [vmem:[%s1 + $0x3e8] sm:$0xff]
        %v399 = vld [vmem:[%s1 + $0x3f0] sm:$0xff]
        %v400 = vld [vmem:[%s1 + $0x3f8] sm:$0xff]
        %v401 = vld [vmem:[%s1 + $0x400] sm:$0xff]
        %v402 = vld [vmem:[%s1 + $0x408] sm:$0xff]
        %v403 = vld [vmem:[%s1 + $0x410] sm:$0xff]
        %v404 = vld [vmem:[%s1 + $0x418] sm:$0xff]
        %v405 = vld [vmem:[%s1 + $0x420] sm:$0xff]
        %v406 = vld [vmem:[%s1 + $0x428] sm:$0xff]
        %v407 = vld [vmem:[%s1 + $0x430] sm:$0xff]
        %v408 = vld [vmem:[%s1 + $0x438] sm:$0xff]
        %v409 = vld [vmem:[%s1 + $0x440] sm:$0xff]
        %v410 = vld [vmem:[%s1 + $0x448] sm:$0xff]
        %v411 = vld [vmem:[%s1 + $0x450] sm:$0xff]
        %v412 = vld [vmem:[%s1 + $0x458] sm:$0xff]
        %v413 = vld [vmem:[%s1 + $0x460] sm:$0xff]
        %v414 = vld [vmem:[%s1 + $0x468] sm:$0xff]
        %v415 = vld [vmem:[%s1 + $0x470] sm:$0xff]
        %v416 = vld [vmem:[%s1 + $0x478] sm:$0xff]
        %v417 = vld [vmem:[%s1 + $0x480] sm:$0xff]
        %v418 = vld [vmem:[%s1 + $0x488] sm:$0xff]
        %v419 = vld [vmem:[%s1 + $0x490] sm:$0xff]
        %v420 = vld [vmem:[%s1 + $0x498] sm:$0xff]
        %v421 = vld [vmem:[%s1 + $0x4a0] sm:$0xff]
        %v422 = vld [vmem:[%s1 + $0x4a8] sm:$0xff]
        %v423 = vld [vmem:[%s1 + $0x4b0] sm:$0xff]
        %v424 = vld [vmem:[%s1 + $0x4b8] sm:$0xff]
        %v425 = vld [vmem:[%s1 + $0x4c0] sm:$0xff]
        %v426 = vld [vmem:[%s1 + $0x4c8] sm:$0xff]
        %v427 = vld [vmem:[%s1 + $0x4d0] sm:$0xff]
        %v428 = vld [vmem:[%s1 + $0x4d8] sm:$0xff]
        %v429 = vld [vmem:[%s1 + $0x4e0] sm:$0xff]
        %v430 = vld [vmem:[%s1 + $0x4e8] sm:$0xff]
        %v431 = vld [vmem:[%s1 + $0x4f0] sm:$0xff]
        %v432 = vld [vmem:[%s1 + $0x4f8] sm:$0xff]
        %v433 = vld [vmem:[%s1 + $0x500] sm:$0xff]
        %v434 = vld [vmem:[%s1 + $0x508] sm:$0xff]
        %v435 = vld [vmem:[%s1 + $0x510] sm:$0xff]
        %v436 = vld [vmem:[%s1 + $0x518] sm:$0xff]
        %v437 = vld [vmem:[%s1 + $0x520] sm:$0xff]
        %v438 = vld [vmem:[%s1 + $0x528] sm:$0xff]
        %v439 = vld [vmem:[%s1 + $0x530] sm:$0xff]
        %v440 = vld [vmem:[%s1 + $0x538] sm:$0xff]
        %v441 = vld [vmem:[%s1 + $0x540] sm:$0xff]
        %v442 = vld [vmem:[%s1 + $0x548] sm:$0xff]
        %v443 = vld [vmem:[%s1 + $0x550] sm:$0xff]
        %v444 = vld [vmem:[%s1 + $0x558] sm:$0xff]
        %v445 = vld [vmem:[%s1 + $0x560] sm:$0xff]
        %v446 = vld [vmem:[%s1 + $0x568] sm:$0xff]
        %v447 = vld [vmem:[%s1 + $0x570] sm:$0xff]
        %v448 = vld [vmem:[%s1 + $0x578] sm:$0xff]
        %v449 = vld [vmem:[%s1 + $0x580] sm:$0xff]
        %v450 = vld [vmem:[%s1 + $0x588] sm:$0xff]
        %v451 = vld [vmem:[%s1 + $0x590] sm:$0xff]
        %v452 = vld [vmem:[%s1 + $0x598] sm:$0xff]
        %v453 = vld [vmem:[%s1 + $0x5a0] sm:$0xff]
        %v454 = vld [vmem:[%s1 + $0x5a8] sm:$0xff]
        %v455 = vld [vmem:[%s1 + $0x5b0] sm:$0xff]
        %v456 = vld [vmem:[%s1 + $0x5b8] sm:$0xff]
        %v457 = vld [vmem:[%s1 + $0x5c0] sm:$0xff]
        %v458 = vld [vmem:[%s1 + $0x5c8] sm:$0xff]
        %v459 = vld [vmem:[%s1 + $0x5d0] sm:$0xff]
        %v460 = vld [vmem:[%s1 + $0x5d8] sm:$0xff]
        %v461 = vld [vmem:[%s1 + $0x5e0] sm:$0xff]
        %v462 = vld [vmem:[%s1 + $0x5e8] sm:$0xff]
        %v463 = vld [vmem:[%s1 + $0x5f0] sm:$0xff]
        %v464 = vld [vmem:[%s1 + $0x5f8] sm:$0xff]
        %v465 = vld [vmem:[%s1 + $0x600] sm:$0xff]
        %v466 = vld [vmem:[%s1 + $0x608] sm:$0xff]
        %v467 = vld [vmem:[%s1 + $0x610] sm:$0xff]
        %v468 = vld [vmem:[%s1 + $0x618] sm:$0xff]
        %v469 = vld [vmem:[%s1 + $0x620] sm:$0xff]
        %v470 = vld [vmem:[%s1 + $0x628] sm:$0xff]
        %v471 = vld [vmem:[%s1 + $0x630] sm:$0xff]
        %v472 = vld [vmem:[%s1 + $0x638] sm:$0xff]
        %v473 = vld [vmem:[%s1 + $0x640] sm:$0xff]
        %v474 = vld [vmem:[%s1 + $0x648] sm:$0xff]
        %v475 = vld [vmem:[%s1 + $0x650] sm:$0xff]
        %v476 = vld [vmem:[%s1 + $0x658] sm:$0xff]
        %v477 = vld [vmem:[%s1 + $0x660] sm:$0xff]
        %v478 = vld [vmem:[%s1 + $0x668] sm:$0xff]
        %v479 = vld [vmem:[%s1 + $0x670] sm:$0xff]
        %v480 = vld [vmem:[%s1 + $0x678] sm:$0xff]
        %v481 = vld [vmem:[%s1 + $0x680] sm:$0xff]
        %v482 = vld [vmem:[%s1 + $0x688] sm:$0xff]
        %v483 = vld [vmem:[%s1 + $0x690] sm:$0xff]
        %v484 = vld [vmem:[%s1 + $0x698] sm:$0xff]
        %v485 = vld [vmem:[%s1 + $0x6a0] sm:$0xff]
        %v486 = vld [vmem:[%s1 + $0x6a8] sm:$0xff]
        %v487 = vld [vmem:[%s1 + $0x6b0] sm:$0xff]
        %v488 = vld [vmem:[%s1 + $0x6b8] sm:$0xff]
        %v489 = vld [vmem:[%s1 + $0x6c0] sm:$0xff]
        %v490 = vld [vmem:[%s1 + $0x6c8] sm:$0xff]
        %v491 = vld [vmem:[%s1 + $0x6d0] sm:$0xff]
        %v492 = vld [vmem:[%s1 + $0x6d8] sm:$0xff]
        %v493 = vld [vmem:[%s1 + $0x6e0] sm:$0xff]
        %v494 = vld [vmem:[%s1 + $0x6e8] sm:$0xff]
        %v495 = vld [vmem:[%s1 + $0x6f0] sm:$0xff]
        %v496 = vld [vmem:[%s1 + $0x6f8] sm:$0xff]
        %v497 = vld [vmem:[%s1 + $0x700] sm:$0xff]
        %v498 = vld [vmem:[%s1 + $0x708] sm:$0xff]
        %v499 = vld [vmem:[%s1 + $0x710] sm:$0xff]
        %v500 = vld [vmem:[%s1 + $0x718] sm:$0xff]
        %v501 = vld [vmem:[%s1 + $0x720] sm:$0xff]
        %v502 = vld [vmem:[%s1 + $0x728] sm:$0xff]
        %v503 = vld [vmem:[%s1 + $0x730] sm:$0xff]
        %v504 = vld [vmem:[%s1 + $0x738] sm:$0xff]
        %v505 = vld [vmem:[%s1 + $0x740] sm:$0xff]
        %v506 = vld [vmem:[%s1 + $0x748] sm:$0xff]
        %v507 = vld [vmem:[%s1 + $0x750] sm:$0xff]
        %v508 = vld [vmem:[%s1 + $0x758] sm:$0xff]
        %v509 = vld [vmem:[%s1 + $0x760] sm:$0xff]
        %v510 = vld [vmem:[%s1 + $0x768] sm:$0xff]
        %v511 = vld [vmem:[%s1 + $0x770] sm:$0xff]
        %v512 = vld [vmem:[%s1 + $0x778] sm:$0xff]
        %v513 = vld [vmem:[%s1 + $0x780] sm:$0xff]
        %v514 = vld [vmem:[%s1 + $0x788] sm:$0xff]
        %v515 = vld [vmem:[%s1 + $0x790] sm:$0xff]
        %v516 = vld [vmem:[%s1 + $0x798] sm:$0xff]
        %v517 = vld [vmem:[%s1 + $0x7a0] sm:$0xff]
        %v518 = vld [vmem:[%s1 + $0x7a8] sm:$0xff]
        %v519 = vld [vmem:[%s1 + $0x7b0] sm:$0xff]
        %v520 = vld [vmem:[%s1 + $0x7b8] sm:$0xff]
        %v521 = vld [vmem:[%s1 + $0x7c0] sm:$0xff]
        %v522 = vld [vmem:[%s1 + $0x7c8] sm:$0xff]
        %v523 = vld [vmem:[%s1 + $0x7d0] sm:$0xff]
        %v524 = vld [vmem:[%s1 + $0x7d8] sm:$0xff]
        %v525 = vld [vmem:[%s1 + $0x7e0] sm:$0xff]
        %v526 = vld [vmem:[%s1 + $0x7e8] sm:$0xff]
        %v527 = vld [vmem:[%s1 + $0x7f0] sm:$0xff]
        %v528 = vld [vmem:[%s1 + $0x7f8] sm:$0xff]
        %v529 = vld [vmem:[%s1 + $0x800] sm:$0xff]
        %v530 = vld [vmem:[%s1 + $0x808] sm:$0xff]
        %v531 = vld [vmem:[%s1 + $0x810] sm:$0xff]
        %v532 = vld [vmem:[%s1 + $0x818] sm:$0xff]
        %v533 = vld [vmem:[%s1 + $0x820] sm:$0xff]
        %v534 = vld [vmem:[%s1 + $0x828] sm:$0xff]
        %v535 = vld [vmem:[%s1 + $0x830] sm:$0xff]
        %v536 = vld [vmem:[%s1 + $0x838] sm:$0xff]
        %v537 = vld [vmem:[%s1 + $0x840] sm:$0xff]
        %v538 = vld [vmem:[%s1 + $0x848] sm:$0xff]
        %v539 = vld [vmem:[%s1 + $0x850] sm:$0xff]
        %v540 = vld [vmem:[%s1 + $0x858] sm:$0xff]
        %v541 = vld [vmem:[%s1 + $0x860] sm:$0xff]
        %v542 = vld [vmem:[%s1 + $0x868] sm:$0xff]
        %v543 = vld [vmem:[%s1 + $0x870] sm:$0xff]
        %v544 = vld [vmem:[%s1 + $0x878] sm:$0xff]
        %v545 = vld [vmem:[%s1 + $0x880] sm:$0xff]
        %v546 = vld [vmem:[%s1 + $0x888] sm:$0xff]
        %v547 = vld [vmem:[%s1 + $0x890] sm:$0xff]
        %v548 = vld [vmem:[%s1 + $0x898] sm:$0xff]
        %v549 = vld [vmem:[%s1 + $0x8a0] sm:$0xff]
        %v550 = vld [vmem:[%s1 + $0x8a8] sm:$0xff]
        %v551 = vld [vmem:[%s1 + $0x8b0] sm:$0xff]
        %v552 = vld [vmem:[%s1 + $0x8b8] sm:$0xff]
        %v553 = vld [vmem:[%s1 + $0x8c0] sm:$0xff]
        %v554 = vld [vmem:[%s1 + $0x8c8] sm:$0xff]
        %v555 = vld [vmem:[%s1 + $0x8d0] sm:$0xff]
        %v556 = vld [vmem:[%s1 + $0x8d8] sm:$0xff]
        %v557 = vld [vmem:[%s1 + $0x8e0] sm:$0xff]
        %v558 = vld [vmem:[%s1 + $0x8e8] sm:$0xff]
        %v559 = vld [vmem:[%s1 + $0x8f0] sm:$0xff]
        %v560 = vld [vmem:[%s1 + $0x8f8] sm:$0xff]
        %v561 = vld [vmem:[%s1 + $0x900] sm:$0xff]
        %v562 = vld [vmem:[%s1 + $0x908] sm:$0xff]
        %v563 = vld [vmem:[%s1 + $0x910] sm:$0xff]
        %v564 = vld [vmem:[%s1 + $0x918] sm:$0xff]
        %v565 = vld [vmem:[%s1 + $0x920] sm:$0xff]
        %v566 = vld [vmem:[%s1 + $0x928] sm:$0xff]
        %v567 = vld [vmem:[%s1 + $0x930] sm:$0xff]
        %v568 = vld [vmem:[%s1 + $0x938] sm:$0xff]
        %v569 = vld [vmem:[%s1 + $0x940] sm:$0xff]
        %v570 = vld [vmem:[%s1 + $0x948] sm:$0xff]
        %v571 = vld [vmem:[%s1 + $0x950] sm:$0xff]
        %v572 = vld [vmem:[%s1 + $0x958] sm:$0xff]
        %v573 = vld [vmem:[%s1 + $0x960] sm:$0xff]
        %v574 = vld [vmem:[%s1 + $0x968] sm:$0xff]
        %v575 = vld [vmem:[%s1 + $0x970] sm:$0xff]
        %v576 = vld [vmem:[%s1 + $0x978] sm:$0xff]
        %v577 = vld [vmem:[%s1 + $0x980] sm:$0xff]
        %v578 = vld [vmem:[%s1 + $0x988] sm:$0xff]
        %v579 = vld [vmem:[%s1 + $0x990] sm:$0xff]
        %v580 = vld [vmem:[%s1 + $0x998] sm:$0xff]
        %v581 = vld [vmem:[%s1 + $0x9a0] sm:$0xff]
        %v582 = vld [vmem:[%s1 + $0x9a8] sm:$0xff]
        %v583 = vld [vmem:[%s1 + $0x9b0] sm:$0xff]
        %v584 = vld [vmem:[%s1 + $0x9b8] sm:$0xff]
        %v585 = vld [vmem:[%s1 + $0x9c0] sm:$0xff]
        %v586 = vld [vmem:[%s1 + $0x9c8] sm:$0xff]
        %v587 = vld [vmem:[%s1 + $0x9d0] sm:$0xff]
        %v588 = vld [vmem:[%s1 + $0x9d8] sm:$0xff]
        %v589 = vld [vmem:[%s1 + $0x9e0] sm:$0xff]
        %v590 = vld [vmem:[%s1 + $0x9e8] sm:$0xff]
        %v591 = vld [vmem:[%s1 + $0x9f0] sm:$0xff]
        %v592 = vld [vmem:[%s1 + $0x9f8] sm:$0xff]
        %v593 = vld [vmem:[%s1 + $0xa00] sm:$0xff]
        %v594 = vld [vmem:[%s1 + $0xa08] sm:$0xff]
        %v595 = vld [vmem:[%s1 + $0xa10] sm:$0xff]
        %v596 = vld [vmem:[%s1 + $0xa18] sm:$0xff]
        %v597 = vld [vmem:[%s1 + $0xa20] sm:$0xff]
        %v598 = vld [vmem:[%s1 + $0xa28] sm:$0xff]
        %v599 = vld [vmem:[%s1 + $0xa30] sm:$0xff]
        %v600 = vld [vmem:[%s1 + $0xa38] sm:$0xff]
        %v601 = vld [vmem:[%s1 + $0xa40] sm:$0xff]
        %v602 = vld [vmem:[%s1 + $0xa48] sm:$0xff]
        %v603 = vld [vmem:[%s1 + $0xa50] sm:$0xff]
        %v604 = vld [vmem:[%s1 + $0xa58] sm:$0xff]
        %v605 = vld [vmem:[%s1 + $0xa60] sm:$0xff]
        %v606 = vld [vmem:[%s1 + $0xa68] sm:$0xff]
        %v607 = vld [vmem:[%s1 + $0xa70] sm:$0xff]
        %v608 = vld [vmem:[%s1 + $0xa78] sm:$0xff]
        %v609 = vld [vmem:[%s1 + $0xa80] sm:$0xff]
        %v610 = vld [vmem:[%s1 + $0xa88] sm:$0xff]
        %v611 = vld [vmem:[%s1 + $0xa90] sm:$0xff]
        %v612 = vld [vmem:[%s1 + $0xa98] sm:$0xff]
        %v613 = vld [vmem:[%s1 + $0xaa0] sm:$0xff]
        %v614 = vld [vmem:[%s1 + $0xaa8] sm:$0xff]
        %v615 = vld [vmem:[%s1 + $0xab0] sm:$0xff]
        %v616 = vld [vmem:[%s1 + $0xab8] sm:$0xff]
        %v617 = vld [vmem:[%s1 + $0xac0] sm:$0xff]
        %v618 = vld [vmem:[%s1 + $0xac8] sm:$0xff]
        %v619 = vld [vmem:[%s1 + $0xad0] sm:$0xff]
        %v620 = vld [vmem:[%s1 + $0xad8] sm:$0xff]
        %v621 = vld [vmem:[%s1 + $0xae0] sm:$0xff]
        %v622 = vld [vmem:[%s1 + $0xae8] sm:$0xff]
        %v623 = vld [vmem:[%s1 + $0xaf0] sm:$0xff]
        %v624 = vld [vmem:[%s1 + $0xaf8] sm:$0xff]
        %v625 = vld [vmem:[%s1 + $0xb00] sm:$0xff]
        %v626 = vld [vmem:[%s1 + $0xb08] sm:$0xff]
        %v627 = vld [vmem:[%s1 + $0xb10] sm:$0xff]
        %v628 = vld [vmem:[%s1 + $0xb18] sm:$0xff]
        %v629 = vld [vmem:[%s1 + $0xb20] sm:$0xff]
        %v630 = vld [vmem:[%s1 + $0xb28] sm:$0xff]
        %v631 = vld [vmem:[%s1 + $0xb30] sm:$0xff]
        %v632 = vld [vmem:[%s1 + $0xb38] sm:$0xff]
        %v633 = vld [vmem:[%s1 + $0xb40] sm:$0xff]
        %v634 = vld [vmem:[%s1 + $0xb48] sm:$0xff]
        %v635 = vld [vmem:[%s1 + $0xb50] sm:$0xff]
        %v636 = vld [vmem:[%s1 + $0xb58] sm:$0xff]
        %v637 = vld [vmem:[%s1 + $0xb60] sm:$0xff]
        %v638 = vld [vmem:[%s1 + $0xb68] sm:$0xff]
        %v639 = vld [vmem:[%s1 + $0xb70] sm:$0xff]
        %v640 = vld [vmem:[%s1 + $0xb78] sm:$0xff]
        %v641 = vld [vmem:[%s1 + $0xb80] sm:$0xff]
        %v642 = vld [vmem:[%s1 + $0xb88] sm:$0xff]
        %v643 = vld [vmem:[%s1 + $0xb90] sm:$0xff]
        %v644 = vld [vmem:[%s1 + $0xb98] sm:$0xff]
        %v645 = vld [vmem:[%s1 + $0xba0] sm:$0xff]
        %v646 = vld [vmem:[%s1 + $0xba8] sm:$0xff]
        %v647 = vld [vmem:[%s1 + $0xbb0] sm:$0xff]
        %v648 = vld [vmem:[%s1 + $0xbb8] sm:$0xff]
        %v649 = vld [vmem:[%s1 + $0xbc0] sm:$0xff]
        %v650 = vld [vmem:[%s1 + $0xbc8] sm:$0xff]
        %v651 = vld [vmem:[%s1 + $0xbd0] sm:$0xff]
        %v652 = vld [vmem:[%s1 + $0xbd8] sm:$0xff]
        %v653 = vld [vmem:[%s1 + $0xbe0] sm:$0xff]
        %v654 = vld [vmem:[%s1 + $0xbe8] sm:$0xff]
        %v655 = vld [vmem:[%s1 + $0xbf0] sm:$0xff]
        %v656 = vld [vmem:[%s1 + $0xbf8] sm:$0xff]
        %v657 = vld [vmem:[%s1 + $0xc00] sm:$0xff]
        %v658 = vld [vmem:[%s1 + $0xc08] sm:$0xff]
        %v659 = vld [vmem:[%s1 + $0xc10] sm:$0xff]
        %v660 = vld [vmem:[%s1 + $0xc18] sm:$0xff]
        %v661 = vld [vmem:[%s1 + $0xc20] sm:$0xff]
        %v662 = vld [vmem:[%s1 + $0xc28] sm:$0xff]
        %v663 = vld [vmem:[%s1 + $0xc30] sm:$0xff]
        %v664 = vld [vmem:[%s1 + $0xc38] sm:$0xff]
        %v665 = vld [vmem:[%s1 + $0xc40] sm:$0xff]
        %v666 = vld [vmem:[%s1 + $0xc48] sm:$0xff]
        %v667 = vld [vmem:[%s1 + $0xc50] sm:$0xff]
        %v668 = vld [vmem:[%s1 + $0xc58] sm:$0xff]
        %v669 = vld [vmem:[%s1 + $0xc60] sm:$0xff]
        %v670 = vld [vmem:[%s1 + $0xc68] sm:$0xff]
        %v671 = vld [vmem:[%s1 + $0xc70] sm:$0xff]
        %v672 = vld [vmem:[%s1 + $0xc78] sm:$0xff]
        %v673 = vld [vmem:[%s1 + $0xc80] sm:$0xff]
        %v674 = vld [vmem:[%s1 + $0xc88] sm:$0xff]
        %v675 = vld [vmem:[%s1 + $0xc90] sm:$0xff]
        %v676 = vld [vmem:[%s1 + $0xc98] sm:$0xff]
        %v677 = vld [vmem:[%s1 + $0xca0] sm:$0xff]
        %v678 = vld [vmem:[%s1 + $0xca8] sm:$0xff]
        %v679 = vld [vmem:[%s1 + $0xcb0] sm:$0xff]
        %v680 = vld [vmem:[%s1 + $0xcb8] sm:$0xff]
        %v681 = vld [vmem:[%s1 + $0xcc0] sm:$0xff]
        %v682 = vld [vmem:[%s1 + $0xcc8] sm:$0xff]
        %v683 = vld [vmem:[%s1 + $0xcd0] sm:$0xff]
        %v684 = vld [vmem:[%s1 + $0xcd8] sm:$0xff]
        %v685 = vld [vmem:[%s1 + $0xce0] sm:$0xff]
        %v686 = vld [vmem:[%s1 + $0xce8] sm:$0xff]
        %v687 = vld [vmem:[%s1 + $0xcf0] sm:$0xff]
        %v688 = vld [vmem:[%s1 + $0xcf8] sm:$0xff]
        %v689 = vld [vmem:[%s1 + $0xd00] sm:$0xff]
        %v690 = vld [vmem:[%s1 + $0xd08] sm:$0xff]
        %v691 = vld [vmem:[%s1 + $0xd10] sm:$0xff]
        %v692 = vld [vmem:[%s1 + $0xd18] sm:$0xff]
        %v693 = vld [vmem:[%s1 + $0xd20] sm:$0xff]
        %v694 = vld [vmem:[%s1 + $0xd28] sm:$0xff]
        %v695 = vld [vmem:[%s1 + $0xd30] sm:$0xff]
        %v696 = vld [vmem:[%s1 + $0xd38] sm:$0xff]
        %v697 = vld [vmem:[%s1 + $0xd40] sm:$0xff]
        %v698 = vld [vmem:[%s1 + $0xd48] sm:$0xff]
        %v699 = vld [vmem:[%s1 + $0xd50] sm:$0xff]
        %v700 = vld [vmem:[%s1 + $0xd58] sm:$0xff]
        %v701 = vld [vmem:[%s1 + $0xd60] sm:$0xff]
        %v702 = vld [vmem:[%s1 + $0xd68] sm:$0xff]
        %v703 = vld [vmem:[%s1 + $0xd70] sm:$0xff]
        %v704 = vld [vmem:[%s1 + $0xd78] sm:$0xff]
        %v705 = vld [vmem:[%s1 + $0xd80] sm:$0xff]
        %v706 = vld [vmem:[%s1 + $0xd88] sm:$0xff]
        %v707 = vld [vmem:[%s1 + $0xd90] sm:$0xff]
        %v708 = vld [vmem:[%s1 + $0xd98] sm:$0xff]
        %v709 = vld [vmem:[%s1 + $0xda0] sm:$0xff]
        %v710 = vld [vmem:[%s1 + $0xda8] sm:$0xff]
        %v711 = vld [vmem:[%s1 + $0xdb0] sm:$0xff]
        %v712 = vld [vmem:[%s1 + $0xdb8] sm:$0xff]
        %v713 = vld [vmem:[%s1 + $0xdc0] sm:$0xff]
        %v714 = vld [vmem:[%s1 + $0xdc8] sm:$0xff]
        %v715 = vld [vmem:[%s1 + $0xdd0] sm:$0xff]
        %v716 = vld [vmem:[%s1 + $0xdd8] sm:$0xff]
        %v717 = vld [vmem:[%s1 + $0xde0] sm:$0xff]
        %v718 = vld [vmem:[%s1 + $0xde8] sm:$0xff]
        %v719 = vld [vmem:[%s1 + $0xdf0] sm:$0xff]
        %v720 = vld [vmem:[%s1 + $0xdf8] sm:$0xff]
        %v721 = vld [vmem:[%s1 + $0xe00] sm:$0xff]
        %v722 = vld [vmem:[%s1 + $0xe08] sm:$0xff]
        %v723 = vld [vmem:[%s1 + $0xe10] sm:$0xff]
        %v724 = vld [vmem:[%s1 + $0xe18] sm:$0xff]
        %v725 = vld [vmem:[%s1 + $0xe20] sm:$0xff]
        %v726 = vld [vmem:[%s1 + $0xe28] sm:$0xff]
        %v727 = vld [vmem:[%s1 + $0xe30] sm:$0xff]
        %v728 = vld [vmem:[%s1 + $0xe38] sm:$0xff]
        %v729 = vld [vmem:[%s1 + $0xe40] sm:$0xff]
        %v730 = vld [vmem:[%s1 + $0xe48] sm:$0xff]
        %v731 = vld [vmem:[%s1 + $0xe50] sm:$0xff]
        %v732 = vld [vmem:[%s1 + $0xe58] sm:$0xff]
        %v733 = vld [vmem:[%s1 + $0xe60] sm:$0xff]
        %v734 = vld [vmem:[%s1 + $0xe68] sm:$0xff]
        %v735 = vld [vmem:[%s1 + $0xe70] sm:$0xff]
        %v736 = vld [vmem:[%s1 + $0xe78] sm:$0xff]
        %v737 = vld [vmem:[%s1 + $0xe80] sm:$0xff]
        %v738 = vld [vmem:[%s1 + $0xe88] sm:$0xff]
        %v739 = vld [vmem:[%s1 + $0xe90] sm:$0xff]
        %v740 = vld [vmem:[%s1 + $0xe98] sm:$0xff]
        %v741 = vld [vmem:[%s1 + $0xea0] sm:$0xff]
        %v742 = vld [vmem:[%s1 + $0xea8] sm:$0xff]
        %v743 = vld [vmem:[%s1 + $0xeb0] sm:$0xff]
        %v744 = vld [vmem:[%s1 + $0xeb8] sm:$0xff]
        %v745 = vld [vmem:[%s1 + $0xec0] sm:$0xff]
        %v746 = vld [vmem:[%s1 + $0xec8] sm:$0xff]
        %v747 = vld [vmem:[%s1 + $0xed0] sm:$0xff]
        %v748 = vld [vmem:[%s1 + $0xed8] sm:$0xff]
        %v749 = vld [vmem:[%s1 + $0xee0] sm:$0xff]
        %v750 = vld [vmem:[%s1 + $0xee8] sm:$0xff]
        %v751 = vld [vmem:[%s1 + $0xef0] sm:$0xff]
        %v752 = vld [vmem:[%s1 + $0xef8] sm:$0xff]
        %v753 = vld [vmem:[%s1 + $0xf00] sm:$0xff]
        %v754 = vld [vmem:[%s1 + $0xf08] sm:$0xff]
        %v755 = vld [vmem:[%s1 + $0xf10] sm:$0xff]
        %v756 = vld [vmem:[%s1 + $0xf18] sm:$0xff]
        %v757 = vld [vmem:[%s1 + $0xf20] sm:$0xff]
        %v758 = vld [vmem:[%s1 + $0xf28] sm:$0xff]
        %v759 = vld [vmem:[%s1 + $0xf30] sm:$0xff]
        %v760 = vld [vmem:[%s1 + $0xf38] sm:$0xff]
        %v761 = vld [vmem:[%s1 + $0xf40] sm:$0xff]
        %v762 = vld [vmem:[%s1 + $0xf48] sm:$0xff]
        %v763 = vld [vmem:[%s1 + $0xf50] sm:$0xff]
        %v764 = vld [vmem:[%s1 + $0xf58] sm:$0xff]
        %v765 = vld [vmem:[%s1 + $0xf60] sm:$0xff]
        %v766 = vld [vmem:[%s1 + $0xf68] sm:$0xff]
        %v767 = vld [vmem:[%s1 + $0xf70] sm:$0xff]
        %v768 = vld [vmem:[%s1 + $0xf78] sm:$0xff]
        %v769 = vld [vmem:[%s1 + $0xf80] sm:$0xff]
        %v770 = vld [vmem:[%s1 + $0xf88] sm:$0xff]
        %v771 = vld [vmem:[%s1 + $0xf90] sm:$0xff]
        %v772 = vld [vmem:[%s1 + $0xf98] sm:$0xff]
        %v773 = vld [vmem:[%s1 + $0xfa0] sm:$0xff]
        %v774 = vld [vmem:[%s1 + $0xfa8] sm:$0xff]
        %v775 = vld [vmem:[%s1 + $0xfb0] sm:$0xff]
        %v776 = vld [vmem:[%s1 + $0xfb8] sm:$0xff]
        %v777 = vld [vmem:[%s1 + $0xfc0] sm:$0xff]
        %v778 = vld [vmem:[%s1 + $0xfc8] sm:$0xff]
        %v779 = vld [vmem:[%s1 + $0xfd0] sm:$0xff]
        %v780 = vld [vmem:[%s1 + $0xfd8] sm:$0xff]
        %v781 = vld [vmem:[%s1 + $0xfe0] sm:$0xff]
        %v782 = vld [vmem:[%s1 + $0xfe8] sm:$0xff]
        %v783 = vld [vmem:[%s1 + $0xff0] sm:$0xff]
        %v784 = vld [vmem:[%s1 + $0xff8] sm:$0xff]
        %v785 = vld [vmem:[%s2] sm:$0x3]
        %v787 = vperm.slane %v785, 0
        %v788 = vperm.slane %v785, 1
        %v807 = vunpack.c.l.b16 %v257
        %v808 = vunpack.c.h.b16 %v257
        %v809 = vunpack.c.l.b16 %v258
        %v810 = vunpack.c.h.b16 %v258
        %v811 = vunpack.c.l.b16 %v259
        %v812 = vunpack.c.h.b16 %v259
        %v813 = vunpack.c.l.b16 %v260
        %v814 = vunpack.c.h.b16 %v260
        %v815 = vunpack.c.l.b16 %v261
        %v816 = vunpack.c.h.b16 %v261
        %v817 = vunpack.c.l.b16 %v262
        %v818 = vunpack.c.h.b16 %v262
        %v819 = vunpack.c.l.b16 %v263
        %v820 = vunpack.c.h.b16 %v263
        %v821 = vunpack.c.l.b16 %v264
        %v822 = vunpack.c.h.b16 %v264
        %v823 = vunpack.c.l.b16 %v265
        %v824 = vunpack.c.h.b16 %v265
        %v825 = vunpack.c.l.b16 %v266
        %v826 = vunpack.c.h.b16 %v266
        %v827 = vunpack.c.l.b16 %v267
        %v828 = vunpack.c.h.b16 %v267
        %v829 = vunpack.c.l.b16 %v268
        %v830 = vunpack.c.h.b16 %v268
        %v831 = vunpack.c.l.b16 %v269
        %v832 = vunpack.c.h.b16 %v269
        %v833 = vunpack.c.l.b16 %v270
        %v834 = vunpack.c.h.b16 %v270
        %v835 = vunpack.c.l.b16 %v271
        %v836 = vunpack.c.h.b16 %v271
        %v837 = vunpack.c.l.b16 %v272
        %v838 = vunpack.c.h.b16 %v272
        %v839 = vpack.c.b16 %v807, %v807
        %v840 = vpack.c.b16 %v808, %v808
        %v841 = vpack.c.b16 %v809, %v809
        %v842 = vpack.c.b16 %v810, %v810
        %v843 = vpack.c.b16 %v811, %v811
        %v844 = vpack.c.b16 %v812, %v812
        %v845 = vpack.c.b16 %v813, %v813
        %v846 = vpack.c.b16 %v814, %v814
        %v847 = vpack.c.b16 %v815, %v815
        %v848 = vpack.c.b16 %v816, %v816
        %v849 = vpack.c.b16 %v817, %v817
        %v850 = vpack.c.b16 %v818, %v818
        %v851 = vpack.c.b16 %v819, %v819
        %v852 = vpack.c.b16 %v820, %v820
        %v853 = vpack.c.b16 %v821, %v821
        %v854 = vpack.c.b16 %v822, %v822
        %v855 = vpack.c.b16 %v823, %v823
        %v856 = vpack.c.b16 %v824, %v824
        %v857 = vpack.c.b16 %v825, %v825
        %v858 = vpack.c.b16 %v826, %v826
        %v859 = vpack.c.b16 %v827, %v827
        %v860 = vpack.c.b16 %v828, %v828
        %v861 = vpack.c.b16 %v829, %v829
        %v862 = vpack.c.b16 %v830, %v830
        %v863 = vpack.c.b16 %v831, %v831
        %v864 = vpack.c.b16 %v832, %v832
        %v865 = vpack.c.b16 %v833, %v833
        %v866 = vpack.c.b16 %v834, %v834
        %v867 = vpack.c.b16 %v835, %v835
        %v868 = vpack.c.b16 %v836, %v836
        %v869 = vpack.c.b16 %v837, %v837
        %v870 = vpack.c.b16 %v838, %v838
        %v1415 = vunpack.c.l.b16 %v273
        %v1416 = vunpack.c.h.b16 %v273
        %v1417 = vunpack.c.l.b16 %v274
        %v1418 = vunpack.c.h.b16 %v274
        %v1419 = vunpack.c.l.b16 %v275
        %v1420 = vunpack.c.h.b16 %v275
        %v1421 = vunpack.c.l.b16 %v276
        %v1422 = vunpack.c.h.b16 %v276
        %v1423 = vunpack.c.l.b16 %v277
        %v1424 = vunpack.c.h.b16 %v277
        %v1425 = vunpack.c.l.b16 %v278
        %v1426 = vunpack.c.h.b16 %v278
        %v1427 = vunpack.c.l.b16 %v279
        %v1428 = vunpack.c.h.b16 %v279
        %v1429 = vunpack.c.l.b16 %v280
        %v1430 = vunpack.c.h.b16 %v280
        %v1431 = vunpack.c.l.b16 %v281
        %v1432 = vunpack.c.h.b16 %v281
        %v1433 = vunpack.c.l.b16 %v282
        %v1434 = vunpack.c.h.b16 %v282
        %v1435 = vunpack.c.l.b16 %v283
        %v1436 = vunpack.c.h.b16 %v283
        %v1437 = vunpack.c.l.b16 %v284
        %v1438 = vunpack.c.h.b16 %v284
        %v1439 = vunpack.c.l.b16 %v285
        %v1440 = vunpack.c.h.b16 %v285
        %v1441 = vunpack.c.l.b16 %v286
        %v1442 = vunpack.c.h.b16 %v286
        %v1443 = vunpack.c.l.b16 %v287
        %v1444 = vunpack.c.h.b16 %v287
        %v1445 = vunpack.c.l.b16 %v288
        %v1446 = vunpack.c.h.b16 %v288
        %v1447 = vunpack.c.l.b16 %v289
        %v1448 = vunpack.c.h.b16 %v289
        %v1449 = vunpack.c.l.b16 %v290
        %v1450 = vunpack.c.h.b16 %v290
        %v1451 = vunpack.c.l.b16 %v291
        %v1452 = vunpack.c.h.b16 %v291
        %v1453 = vunpack.c.l.b16 %v292
        %v1454 = vunpack.c.h.b16 %v292
        %v1455 = vunpack.c.l.b16 %v293
        %v1456 = vunpack.c.h.b16 %v293
        %v1457 = vunpack.c.l.b16 %v294
        %v1458 = vunpack.c.h.b16 %v294
        %v1459 = vunpack.c.l.b16 %v295
        %v1460 = vunpack.c.h.b16 %v295
        %v1461 = vunpack.c.l.b16 %v296
        %v1462 = vunpack.c.h.b16 %v296
        %v1463 = vunpack.c.l.b16 %v297
        %v1464 = vunpack.c.h.b16 %v297
        %v1465 = vunpack.c.l.b16 %v298
        %v1466 = vunpack.c.h.b16 %v298
        %v1467 = vunpack.c.l.b16 %v299
        %v1468 = vunpack.c.h.b16 %v299
        %v1469 = vunpack.c.l.b16 %v300
        %v1470 = vunpack.c.h.b16 %v300
        %v1471 = vunpack.c.l.b16 %v301
        %v1472 = vunpack.c.h.b16 %v301
        %v1473 = vunpack.c.l.b16 %v302
        %v1474 = vunpack.c.h.b16 %v302
        %v1475 = vunpack.c.l.b16 %v303
        %v1476 = vunpack.c.h.b16 %v303
        %v1477 = vunpack.c.l.b16 %v304
        %v1478 = vunpack.c.h.b16 %v304
        %v1479 = vunpack.c.l.b16 %v305
        %v1480 = vunpack.c.h.b16 %v305
        %v1481 = vunpack.c.l.b16 %v306
        %v1482 = vunpack.c.h.b16 %v306
        %v1483 = vunpack.c.l.b16 %v307
        %v1484 = vunpack.c.h.b16 %v307
        %v1485 = vunpack.c.l.b16 %v308
        %v1486 = vunpack.c.h.b16 %v308
        %v1487 = vunpack.c.l.b16 %v309
        %v1488 = vunpack.c.h.b16 %v309
        %v1489 = vunpack.c.l.b16 %v310
        %v1490 = vunpack.c.h.b16 %v310
        %v1491 = vunpack.c.l.b16 %v311
        %v1492 = vunpack.c.h.b16 %v311
        %v1493 = vunpack.c.l.b16 %v312
        %v1494 = vunpack.c.h.b16 %v312
        %v1495 = vunpack.c.l.b16 %v313
        %v1496 = vunpack.c.h.b16 %v313
        %v1497 = vunpack.c.l.b16 %v314
        %v1498 = vunpack.c.h.b16 %v314
        %v1499 = vunpack.c.l.b16 %v315
        %v1500 = vunpack.c.h.b16 %v315
        %v1501 = vunpack.c.l.b16 %v316
        %v1502 = vunpack.c.h.b16 %v316
        %v1503 = vunpack.c.l.b16 %v317
        %v1504 = vunpack.c.h.b16 %v317
        %v1505 = vunpack.c.l.b16 %v318
        %v1506 = vunpack.c.h.b16 %v318
        %v1507 = vunpack.c.l.b16 %v319
        %v1508 = vunpack.c.h.b16 %v319
        %v1509 = vunpack.c.l.b16 %v320
        %v1510 = vunpack.c.h.b16 %v320
        %v1511 = vunpack.c.l.b16 %v321
        %v1512 = vunpack.c.h.b16 %v321
        %v1513 = vunpack.c.l.b16 %v322
        %v1514 = vunpack.c.h.b16 %v322
        %v1515 = vunpack.c.l.b16 %v323
        %v1516 = vunpack.c.h.b16 %v323
        %v1517 = vunpack.c.l.b16 %v324
        %v1518 = vunpack.c.h.b16 %v324
        %v1519 = vunpack.c.l.b16 %v325
        %v1520 = vunpack.c.h.b16 %v325
        %v1521 = vunpack.c.l.b16 %v326
        %v1522 = vunpack.c.h.b16 %v326
        %v1523 = vunpack.c.l.b16 %v327
        %v1524 = vunpack.c.h.b16 %v327
        %v1525 = vunpack.c.l.b16 %v328
        %v1526 = vunpack.c.h.b16 %v328
        %v1527 = vunpack.c.l.b16 %v329
        %v1528 = vunpack.c.h.b16 %v329
        %v1529 = vunpack.c.l.b16 %v330
        %v1530 = vunpack.c.h.b16 %v330
        %v1531 = vunpack.c.l.b16 %v331
        %v1532 = vunpack.c.h.b16 %v331
        %v1533 = vunpack.c.l.b16 %v332
        %v1534 = vunpack.c.h.b16 %v332
        %v1535 = vunpack.c.l.b16 %v333
        %v1536 = vunpack.c.h.b16 %v333
        %v1537 = vunpack.c.l.b16 %v334
        %v1538 = vunpack.c.h.b16 %v334
        %v1539 = vunpack.c.l.b16 %v335
        %v1540 = vunpack.c.h.b16 %v335
        %v1541 = vunpack.c.l.b16 %v336
        %v1542 = vunpack.c.h.b16 %v336
        %v1543 = vunpack.c.l.b16 %v337
        %v1544 = vunpack.c.h.b16 %v337
        %v1545 = vunpack.c.l.b16 %v338
        %v1546 = vunpack.c.h.b16 %v338
        %v1547 = vunpack.c.l.b16 %v339
        %v1548 = vunpack.c.h.b16 %v339
        %v1549 = vunpack.c.l.b16 %v340
        %v1550 = vunpack.c.h.b16 %v340
        %v1551 = vunpack.c.l.b16 %v341
        %v1552 = vunpack.c.h.b16 %v341
        %v1553 = vunpack.c.l.b16 %v342
        %v1554 = vunpack.c.h.b16 %v342
        %v1555 = vunpack.c.l.b16 %v343
        %v1556 = vunpack.c.h.b16 %v343
        %v1557 = vunpack.c.l.b16 %v344
        %v1558 = vunpack.c.h.b16 %v344
        %v1559 = vunpack.c.l.b16 %v345
        %v1560 = vunpack.c.h.b16 %v345
        %v1561 = vunpack.c.l.b16 %v346
        %v1562 = vunpack.c.h.b16 %v346
        %v1563 = vunpack.c.l.b16 %v347
        %v1564 = vunpack.c.h.b16 %v347
        %v1565 = vunpack.c.l.b16 %v348
        %v1566 = vunpack.c.h.b16 %v348
        %v1567 = vunpack.c.l.b16 %v349
        %v1568 = vunpack.c.h.b16 %v349
        %v1569 = vunpack.c.l.b16 %v350
        %v1570 = vunpack.c.h.b16 %v350
        %v1571 = vunpack.c.l.b16 %v351
        %v1572 = vunpack.c.h.b16 %v351
        %v1573 = vunpack.c.l.b16 %v352
        %v1574 = vunpack.c.h.b16 %v352
        %v1575 = vunpack.c.l.b16 %v353
        %v1576 = vunpack.c.h.b16 %v353
        %v1577 = vunpack.c.l.b16 %v354
        %v1578 = vunpack.c.h.b16 %v354
        %v1579 = vunpack.c.l.b16 %v355
        %v1580 = vunpack.c.h.b16 %v355
        %v1581 = vunpack.c.l.b16 %v356
        %v1582 = vunpack.c.h.b16 %v356
        %v1583 = vunpack.c.l.b16 %v357
        %v1584 = vunpack.c.h.b16 %v357
        %v1585 = vunpack.c.l.b16 %v358
        %v1586 = vunpack.c.h.b16 %v358
        %v1587 = vunpack.c.l.b16 %v359
        %v1588 = vunpack.c.h.b16 %v359
        %v1589 = vunpack.c.l.b16 %v360
        %v1590 = vunpack.c.h.b16 %v360
        %v1591 = vunpack.c.l.b16 %v361
        %v1592 = vunpack.c.h.b16 %v361
        %v1593 = vunpack.c.l.b16 %v362
        %v1594 = vunpack.c.h.b16 %v362
        %v1595 = vunpack.c.l.b16 %v363
        %v1596 = vunpack.c.h.b16 %v363
        %v1597 = vunpack.c.l.b16 %v364
        %v1598 = vunpack.c.h.b16 %v364
        %v1599 = vunpack.c.l.b16 %v365
        %v1600 = vunpack.c.h.b16 %v365
        %v1601 = vunpack.c.l.b16 %v366
        %v1602 = vunpack.c.h.b16 %v366
        %v1603 = vunpack.c.l.b16 %v367
        %v1604 = vunpack.c.h.b16 %v367
        %v1605 = vunpack.c.l.b16 %v368
        %v1606 = vunpack.c.h.b16 %v368
        %v1607 = vunpack.c.l.b16 %v369
        %v1608 = vunpack.c.h.b16 %v369
        %v1609 = vunpack.c.l.b16 %v370
        %v1610 = vunpack.c.h.b16 %v370
        %v1611 = vunpack.c.l.b16 %v371
        %v1612 = vunpack.c.h.b16 %v371
        %v1613 = vunpack.c.l.b16 %v372
        %v1614 = vunpack.c.h.b16 %v372
        %v1615 = vunpack.c.l.b16 %v373
        %v1616 = vunpack.c.h.b16 %v373
        %v1617 = vunpack.c.l.b16 %v374
        %v1618 = vunpack.c.h.b16 %v374
        %v1619 = vunpack.c.l.b16 %v375
        %v1620 = vunpack.c.h.b16 %v375
        %v1621 = vunpack.c.l.b16 %v376
        %v1622 = vunpack.c.h.b16 %v376
        %v1623 = vunpack.c.l.b16 %v377
        %v1624 = vunpack.c.h.b16 %v377
        %v1625 = vunpack.c.l.b16 %v378
        %v1626 = vunpack.c.h.b16 %v378
        %v1627 = vunpack.c.l.b16 %v379
        %v1628 = vunpack.c.h.b16 %v379
        %v1629 = vunpack.c.l.b16 %v380
        %v1630 = vunpack.c.h.b16 %v380
        %v1631 = vunpack.c.l.b16 %v381
        %v1632 = vunpack.c.h.b16 %v381
        %v1633 = vunpack.c.l.b16 %v382
        %v1634 = vunpack.c.h.b16 %v382
        %v1635 = vunpack.c.l.b16 %v383
        %v1636 = vunpack.c.h.b16 %v383
        %v1637 = vunpack.c.l.b16 %v384
        %v1638 = vunpack.c.h.b16 %v384
        %v1639 = vunpack.c.l.b16 %v385
        %v1640 = vunpack.c.h.b16 %v385
        %v1641 = vunpack.c.l.b16 %v386
        %v1642 = vunpack.c.h.b16 %v386
        %v1643 = vunpack.c.l.b16 %v387
        %v1644 = vunpack.c.h.b16 %v387
        %v1645 = vunpack.c.l.b16 %v388
        %v1646 = vunpack.c.h.b16 %v388
        %v1647 = vunpack.c.l.b16 %v389
        %v1648 = vunpack.c.h.b16 %v389
        %v1649 = vunpack.c.l.b16 %v390
        %v1650 = vunpack.c.h.b16 %v390
        %v1651 = vunpack.c.l.b16 %v391
        %v1652 = vunpack.c.h.b16 %v391
        %v1653 = vunpack.c.l.b16 %v392
        %v1654 = vunpack.c.h.b16 %v392
        %v1655 = vunpack.c.l.b16 %v393
        %v1656 = vunpack.c.h.b16 %v393
        %v1657 = vunpack.c.l.b16 %v394
        %v1658 = vunpack.c.h.b16 %v394
        %v1659 = vunpack.c.l.b16 %v395
        %v1660 = vunpack.c.h.b16 %v395
        %v1661 = vunpack.c.l.b16 %v396
        %v1662 = vunpack.c.h.b16 %v396
        %v1663 = vunpack.c.l.b16 %v397
        %v1664 = vunpack.c.h.b16 %v397
        %v1665 = vunpack.c.l.b16 %v398
        %v1666 = vunpack.c.h.b16 %v398
        %v1667 = vunpack.c.l.b16 %v399
        %v1668 = vunpack.c.h.b16 %v399
        %v1669 = vunpack.c.l.b16 %v400
        %v1670 = vunpack.c.h.b16 %v400
        %v1671 = vunpack.c.l.b16 %v401
        %v1672 = vunpack.c.h.b16 %v401
        %v1673 = vunpack.c.l.b16 %v402
        %v1674 = vunpack.c.h.b16 %v402
        %v1675 = vunpack.c.l.b16 %v403
        %v1676 = vunpack.c.h.b16 %v403
        %v1677 = vunpack.c.l.b16 %v404
        %v1678 = vunpack.c.h.b16 %v404
        %v1679 = vunpack.c.l.b16 %v405
        %v1680 = vunpack.c.h.b16 %v405
        %v1681 = vunpack.c.l.b16 %v406
        %v1682 = vunpack.c.h.b16 %v406
        %v1683 = vunpack.c.l.b16 %v407
        %v1684 = vunpack.c.h.b16 %v407
        %v1685 = vunpack.c.l.b16 %v408
        %v1686 = vunpack.c.h.b16 %v408
        %v1687 = vunpack.c.l.b16 %v409
        %v1688 = vunpack.c.h.b16 %v409
        %v1689 = vunpack.c.l.b16 %v410
        %v1690 = vunpack.c.h.b16 %v410
        %v1691 = vunpack.c.l.b16 %v411
        %v1692 = vunpack.c.h.b16 %v411
        %v1693 = vunpack.c.l.b16 %v412
        %v1694 = vunpack.c.h.b16 %v412
        %v1695 = vunpack.c.l.b16 %v413
        %v1696 = vunpack.c.h.b16 %v413
        %v1697 = vunpack.c.l.b16 %v414
        %v1698 = vunpack.c.h.b16 %v414
        %v1699 = vunpack.c.l.b16 %v415
        %v1700 = vunpack.c.h.b16 %v415
        %v1701 = vunpack.c.l.b16 %v416
        %v1702 = vunpack.c.h.b16 %v416
        %v1703 = vunpack.c.l.b16 %v417
        %v1704 = vunpack.c.h.b16 %v417
        %v1705 = vunpack.c.l.b16 %v418
        %v1706 = vunpack.c.h.b16 %v418
        %v1707 = vunpack.c.l.b16 %v419
        %v1708 = vunpack.c.h.b16 %v419
        %v1709 = vunpack.c.l.b16 %v420
        %v1710 = vunpack.c.h.b16 %v420
        %v1711 = vunpack.c.l.b16 %v421
        %v1712 = vunpack.c.h.b16 %v421
        %v1713 = vunpack.c.l.b16 %v422
        %v1714 = vunpack.c.h.b16 %v422
        %v1715 = vunpack.c.l.b16 %v423
        %v1716 = vunpack.c.h.b16 %v423
        %v1717 = vunpack.c.l.b16 %v424
        %v1718 = vunpack.c.h.b16 %v424
        %v1719 = vunpack.c.l.b16 %v425
        %v1720 = vunpack.c.h.b16 %v425
        %v1721 = vunpack.c.l.b16 %v426
        %v1722 = vunpack.c.h.b16 %v426
        %v1723 = vunpack.c.l.b16 %v427
        %v1724 = vunpack.c.h.b16 %v427
        %v1725 = vunpack.c.l.b16 %v428
        %v1726 = vunpack.c.h.b16 %v428
        %v1727 = vunpack.c.l.b16 %v429
        %v1728 = vunpack.c.h.b16 %v429
        %v1729 = vunpack.c.l.b16 %v430
        %v1730 = vunpack.c.h.b16 %v430
        %v1731 = vunpack.c.l.b16 %v431
        %v1732 = vunpack.c.h.b16 %v431
        %v1733 = vunpack.c.l.b16 %v432
        %v1734 = vunpack.c.h.b16 %v432
        %v1735 = vunpack.c.l.b16 %v433
        %v1736 = vunpack.c.h.b16 %v433
        %v1737 = vunpack.c.l.b16 %v434
        %v1738 = vunpack.c.h.b16 %v434
        %v1739 = vunpack.c.l.b16 %v435
        %v1740 = vunpack.c.h.b16 %v435
        %v1741 = vunpack.c.l.b16 %v436
        %v1742 = vunpack.c.h.b16 %v436
        %v1743 = vunpack.c.l.b16 %v437
        %v1744 = vunpack.c.h.b16 %v437
        %v1745 = vunpack.c.l.b16 %v438
        %v1746 = vunpack.c.h.b16 %v438
        %v1747 = vunpack.c.l.b16 %v439
        %v1748 = vunpack.c.h.b16 %v439
        %v1749 = vunpack.c.l.b16 %v440
        %v1750 = vunpack.c.h.b16 %v440
        %v1751 = vunpack.c.l.b16 %v441
        %v1752 = vunpack.c.h.b16 %v441
        %v1753 = vunpack.c.l.b16 %v442
        %v1754 = vunpack.c.h.b16 %v442
        %v1755 = vunpack.c.l.b16 %v443
        %v1756 = vunpack.c.h.b16 %v443
        %v1757 = vunpack.c.l.b16 %v444
        %v1758 = vunpack.c.h.b16 %v444
        %v1759 = vunpack.c.l.b16 %v445
        %v1760 = vunpack.c.h.b16 %v445
        %v1761 = vunpack.c.l.b16 %v446
        %v1762 = vunpack.c.h.b16 %v446
        %v1763 = vunpack.c.l.b16 %v447
        %v1764 = vunpack.c.h.b16 %v447
        %v1765 = vunpack.c.l.b16 %v448
        %v1766 = vunpack.c.h.b16 %v448
        %v1767 = vunpack.c.l.b16 %v449
        %v1768 = vunpack.c.h.b16 %v449
        %v1769 = vunpack.c.l.b16 %v450
        %v1770 = vunpack.c.h.b16 %v450
        %v1771 = vunpack.c.l.b16 %v451
        %v1772 = vunpack.c.h.b16 %v451
        %v1773 = vunpack.c.l.b16 %v452
        %v1774 = vunpack.c.h.b16 %v452
        %v1775 = vunpack.c.l.b16 %v453
        %v1776 = vunpack.c.h.b16 %v453
        %v1777 = vunpack.c.l.b16 %v454
        %v1778 = vunpack.c.h.b16 %v454
        %v1779 = vunpack.c.l.b16 %v455
        %v1780 = vunpack.c.h.b16 %v455
        %v1781 = vunpack.c.l.b16 %v456
        %v1782 = vunpack.c.h.b16 %v456
        %v1783 = vunpack.c.l.b16 %v457
        %v1784 = vunpack.c.h.b16 %v457
        %v1785 = vunpack.c.l.b16 %v458
        %v1786 = vunpack.c.h.b16 %v458
        %v1787 = vunpack.c.l.b16 %v459
        %v1788 = vunpack.c.h.b16 %v459
        %v1789 = vunpack.c.l.b16 %v460
        %v1790 = vunpack.c.h.b16 %v460
        %v1791 = vunpack.c.l.b16 %v461
        %v1792 = vunpack.c.h.b16 %v461
        %v1793 = vunpack.c.l.b16 %v462
        %v1794 = vunpack.c.h.b16 %v462
        %v1795 = vunpack.c.l.b16 %v463
        %v1796 = vunpack.c.h.b16 %v463
        %v1797 = vunpack.c.l.b16 %v464
        %v1798 = vunpack.c.h.b16 %v464
        %v1799 = vunpack.c.l.b16 %v465
        %v1800 = vunpack.c.h.b16 %v465
        %v1801 = vunpack.c.l.b16 %v466
        %v1802 = vunpack.c.h.b16 %v466
        %v1803 = vunpack.c.l.b16 %v467
        %v1804 = vunpack.c.h.b16 %v467
        %v1805 = vunpack.c.l.b16 %v468
        %v1806 = vunpack.c.h.b16 %v468
        %v1807 = vunpack.c.l.b16 %v469
        %v1808 = vunpack.c.h.b16 %v469
        %v1809 = vunpack.c.l.b16 %v470
        %v1810 = vunpack.c.h.b16 %v470
        %v1811 = vunpack.c.l.b16 %v471
        %v1812 = vunpack.c.h.b16 %v471
        %v1813 = vunpack.c.l.b16 %v472
        %v1814 = vunpack.c.h.b16 %v472
        %v1815 = vunpack.c.l.b16 %v473
        %v1816 = vunpack.c.h.b16 %v473
        %v1817 = vunpack.c.l.b16 %v474
        %v1818 = vunpack.c.h.b16 %v474
        %v1819 = vunpack.c.l.b16 %v475
        %v1820 = vunpack.c.h.b16 %v475
        %v1821 = vunpack.c.l.b16 %v476
        %v1822 = vunpack.c.h.b16 %v476
        %v1823 = vunpack.c.l.b16 %v477
        %v1824 = vunpack.c.h.b16 %v477
        %v1825 = vunpack.c.l.b16 %v478
        %v1826 = vunpack.c.h.b16 %v478
        %v1827 = vunpack.c.l.b16 %v479
        %v1828 = vunpack.c.h.b16 %v479
        %v1829 = vunpack.c.l.b16 %v480
        %v1830 = vunpack.c.h.b16 %v480
        %v1831 = vunpack.c.l.b16 %v481
        %v1832 = vunpack.c.h.b16 %v481
        %v1833 = vunpack.c.l.b16 %v482
        %v1834 = vunpack.c.h.b16 %v482
        %v1835 = vunpack.c.l.b16 %v483
        %v1836 = vunpack.c.h.b16 %v483
        %v1837 = vunpack.c.l.b16 %v484
        %v1838 = vunpack.c.h.b16 %v484
        %v1839 = vunpack.c.l.b16 %v485
        %v1840 = vunpack.c.h.b16 %v485
        %v1841 = vunpack.c.l.b16 %v486
        %v1842 = vunpack.c.h.b16 %v486
        %v1843 = vunpack.c.l.b16 %v487
        %v1844 = vunpack.c.h.b16 %v487
        %v1845 = vunpack.c.l.b16 %v488
        %v1846 = vunpack.c.h.b16 %v488
        %v1847 = vunpack.c.l.b16 %v489
        %v1848 = vunpack.c.h.b16 %v489
        %v1849 = vunpack.c.l.b16 %v490
        %v1850 = vunpack.c.h.b16 %v490
        %v1851 = vunpack.c.l.b16 %v491
        %v1852 = vunpack.c.h.b16 %v491
        %v1853 = vunpack.c.l.b16 %v492
        %v1854 = vunpack.c.h.b16 %v492
        %v1855 = vunpack.c.l.b16 %v493
        %v1856 = vunpack.c.h.b16 %v493
        %v1857 = vunpack.c.l.b16 %v494
        %v1858 = vunpack.c.h.b16 %v494
        %v1859 = vunpack.c.l.b16 %v495
        %v1860 = vunpack.c.h.b16 %v495
        %v1861 = vunpack.c.l.b16 %v496
        %v1862 = vunpack.c.h.b16 %v496
        %v1863 = vunpack.c.l.b16 %v497
        %v1864 = vunpack.c.h.b16 %v497
        %v1865 = vunpack.c.l.b16 %v498
        %v1866 = vunpack.c.h.b16 %v498
        %v1867 = vunpack.c.l.b16 %v499
        %v1868 = vunpack.c.h.b16 %v499
        %v1869 = vunpack.c.l.b16 %v500
        %v1870 = vunpack.c.h.b16 %v500
        %v1871 = vunpack.c.l.b16 %v501
        %v1872 = vunpack.c.h.b16 %v501
        %v1873 = vunpack.c.l.b16 %v502
        %v1874 = vunpack.c.h.b16 %v502
        %v1875 = vunpack.c.l.b16 %v503
        %v1876 = vunpack.c.h.b16 %v503
        %v1877 = vunpack.c.l.b16 %v504
        %v1878 = vunpack.c.h.b16 %v504
        %v1879 = vunpack.c.l.b16 %v505
        %v1880 = vunpack.c.h.b16 %v505
        %v1881 = vunpack.c.l.b16 %v506
        %v1882 = vunpack.c.h.b16 %v506
        %v1883 = vunpack.c.l.b16 %v507
        %v1884 = vunpack.c.h.b16 %v507
        %v1885 = vunpack.c.l.b16 %v508
        %v1886 = vunpack.c.h.b16 %v508
        %v1887 = vunpack.c.l.b16 %v509
        %v1888 = vunpack.c.h.b16 %v509
        %v1889 = vunpack.c.l.b16 %v510
        %v1890 = vunpack.c.h.b16 %v510
        %v1891 = vunpack.c.l.b16 %v511
        %v1892 = vunpack.c.h.b16 %v511
        %v1893 = vunpack.c.l.b16 %v512
        %v1894 = vunpack.c.h.b16 %v512
        %v1895 = vunpack.c.l.b16 %v513
        %v1896 = vunpack.c.h.b16 %v513
        %v1897 = vunpack.c.l.b16 %v514
        %v1898 = vunpack.c.h.b16 %v514
        %v1899 = vunpack.c.l.b16 %v515
        %v1900 = vunpack.c.h.b16 %v515
        %v1901 = vunpack.c.l.b16 %v516
        %v1902 = vunpack.c.h.b16 %v516
        %v1903 = vunpack.c.l.b16 %v517
        %v1904 = vunpack.c.h.b16 %v517
        %v1905 = vunpack.c.l.b16 %v518
        %v1906 = vunpack.c.h.b16 %v518
        %v1907 = vunpack.c.l.b16 %v519
        %v1908 = vunpack.c.h.b16 %v519
        %v1909 = vunpack.c.l.b16 %v520
        %v1910 = vunpack.c.h.b16 %v520
        %v1911 = vunpack.c.l.b16 %v521
        %v1912 = vunpack.c.h.b16 %v521
        %v1913 = vunpack.c.l.b16 %v522
        %v1914 = vunpack.c.h.b16 %v522
        %v1915 = vunpack.c.l.b16 %v523
        %v1916 = vunpack.c.h.b16 %v523
        %v1917 = vunpack.c.l.b16 %v524
        %v1918 = vunpack.c.h.b16 %v524
        %v1919 = vunpack.c.l.b16 %v525
        %v1920 = vunpack.c.h.b16 %v525
        %v1921 = vunpack.c.l.b16 %v526
        %v1922 = vunpack.c.h.b16 %v526
        %v1923 = vunpack.c.l.b16 %v527
        %v1924 = vunpack.c.h.b16 %v527
        %v1925 = vunpack.c.l.b16 %v528
        %v1926 = vunpack.c.h.b16 %v528
        %v1927 = vunpack.c.l.b16 %v529
        %v1928 = vunpack.c.h.b16 %v529
        %v1929 = vunpack.c.l.b16 %v530
        %v1930 = vunpack.c.h.b16 %v530
        %v1931 = vunpack.c.l.b16 %v531
        %v1932 = vunpack.c.h.b16 %v531
        %v1933 = vunpack.c.l.b16 %v532
        %v1934 = vunpack.c.h.b16 %v532
        %v1935 = vunpack.c.l.b16 %v533
        %v1936 = vunpack.c.h.b16 %v533
        %v1937 = vunpack.c.l.b16 %v534
        %v1938 = vunpack.c.h.b16 %v534
        %v1939 = vunpack.c.l.b16 %v535
        %v1940 = vunpack.c.h.b16 %v535
        %v1941 = vunpack.c.l.b16 %v536
        %v1942 = vunpack.c.h.b16 %v536
        %v1943 = vunpack.c.l.b16 %v537
        %v1944 = vunpack.c.h.b16 %v537
        %v1945 = vunpack.c.l.b16 %v538
        %v1946 = vunpack.c.h.b16 %v538
        %v1947 = vunpack.c.l.b16 %v539
        %v1948 = vunpack.c.h.b16 %v539
        %v1949 = vunpack.c.l.b16 %v540
        %v1950 = vunpack.c.h.b16 %v540
        %v1951 = vunpack.c.l.b16 %v541
        %v1952 = vunpack.c.h.b16 %v541
        %v1953 = vunpack.c.l.b16 %v542
        %v1954 = vunpack.c.h.b16 %v542
        %v1955 = vunpack.c.l.b16 %v543
        %v1956 = vunpack.c.h.b16 %v543
        %v1957 = vunpack.c.l.b16 %v544
        %v1958 = vunpack.c.h.b16 %v544
        %v1959 = vunpack.c.l.b16 %v545
        %v1960 = vunpack.c.h.b16 %v545
        %v1961 = vunpack.c.l.b16 %v546
        %v1962 = vunpack.c.h.b16 %v546
        %v1963 = vunpack.c.l.b16 %v547
        %v1964 = vunpack.c.h.b16 %v547
        %v1965 = vunpack.c.l.b16 %v548
        %v1966 = vunpack.c.h.b16 %v548
        %v1967 = vunpack.c.l.b16 %v549
        %v1968 = vunpack.c.h.b16 %v549
        %v1969 = vunpack.c.l.b16 %v550
        %v1970 = vunpack.c.h.b16 %v550
        %v1971 = vunpack.c.l.b16 %v551
        %v1972 = vunpack.c.h.b16 %v551
        %v1973 = vunpack.c.l.b16 %v552
        %v1974 = vunpack.c.h.b16 %v552
        %v1975 = vunpack.c.l.b16 %v553
        %v1976 = vunpack.c.h.b16 %v553
        %v1977 = vunpack.c.l.b16 %v554
        %v1978 = vunpack.c.h.b16 %v554
        %v1979 = vunpack.c.l.b16 %v555
        %v1980 = vunpack.c.h.b16 %v555
        %v1981 = vunpack.c.l.b16 %v556
        %v1982 = vunpack.c.h.b16 %v556
        %v1983 = vunpack.c.l.b16 %v557
        %v1984 = vunpack.c.h.b16 %v557
        %v1985 = vunpack.c.l.b16 %v558
        %v1986 = vunpack.c.h.b16 %v558
        %v1987 = vunpack.c.l.b16 %v559
        %v1988 = vunpack.c.h.b16 %v559
        %v1989 = vunpack.c.l.b16 %v560
        %v1990 = vunpack.c.h.b16 %v560
        %v1991 = vunpack.c.l.b16 %v561
        %v1992 = vunpack.c.h.b16 %v561
        %v1993 = vunpack.c.l.b16 %v562
        %v1994 = vunpack.c.h.b16 %v562
        %v1995 = vunpack.c.l.b16 %v563
        %v1996 = vunpack.c.h.b16 %v563
        %v1997 = vunpack.c.l.b16 %v564
        %v1998 = vunpack.c.h.b16 %v564
        %v1999 = vunpack.c.l.b16 %v565
        %v2000 = vunpack.c.h.b16 %v565
        %v2001 = vunpack.c.l.b16 %v566
        %v2002 = vunpack.c.h.b16 %v566
        %v2003 = vunpack.c.l.b16 %v567
        %v2004 = vunpack.c.h.b16 %v567
        %v2005 = vunpack.c.l.b16 %v568
        %v2006 = vunpack.c.h.b16 %v568
        %v2007 = vunpack.c.l.b16 %v569
        %v2008 = vunpack.c.h.b16 %v569
        %v2009 = vunpack.c.l.b16 %v570
        %v2010 = vunpack.c.h.b16 %v570
        %v2011 = vunpack.c.l.b16 %v571
        %v2012 = vunpack.c.h.b16 %v571
        %v2013 = vunpack.c.l.b16 %v572
        %v2014 = vunpack.c.h.b16 %v572
        %v2015 = vunpack.c.l.b16 %v573
        %v2016 = vunpack.c.h.b16 %v573
        %v2017 = vunpack.c.l.b16 %v574
        %v2018 = vunpack.c.h.b16 %v574
        %v2019 = vunpack.c.l.b16 %v575
        %v2020 = vunpack.c.h.b16 %v575
        %v2021 = vunpack.c.l.b16 %v576
        %v2022 = vunpack.c.h.b16 %v576
        %v2023 = vunpack.c.l.b16 %v577
        %v2024 = vunpack.c.h.b16 %v577
        %v2025 = vunpack.c.l.b16 %v578
        %v2026 = vunpack.c.h.b16 %v578
        %v2027 = vunpack.c.l.b16 %v579
        %v2028 = vunpack.c.h.b16 %v579
        %v2029 = vunpack.c.l.b16 %v580
        %v2030 = vunpack.c.h.b16 %v580
        %v2031 = vunpack.c.l.b16 %v581
        %v2032 = vunpack.c.h.b16 %v581
        %v2033 = vunpack.c.l.b16 %v582
        %v2034 = vunpack.c.h.b16 %v582
        %v2035 = vunpack.c.l.b16 %v583
        %v2036 = vunpack.c.h.b16 %v583
        %v2037 = vunpack.c.l.b16 %v584
        %v2038 = vunpack.c.h.b16 %v584
        %v2039 = vunpack.c.l.b16 %v585
        %v2040 = vunpack.c.h.b16 %v585
        %v2041 = vunpack.c.l.b16 %v586
        %v2042 = vunpack.c.h.b16 %v586
        %v2043 = vunpack.c.l.b16 %v587
        %v2044 = vunpack.c.h.b16 %v587
        %v2045 = vunpack.c.l.b16 %v588
        %v2046 = vunpack.c.h.b16 %v588
        %v2047 = vunpack.c.l.b16 %v589
        %v2048 = vunpack.c.h.b16 %v589
        %v2049 = vunpack.c.l.b16 %v590
        %v2050 = vunpack.c.h.b16 %v590
        %v2051 = vunpack.c.l.b16 %v591
        %v2052 = vunpack.c.h.b16 %v591
        %v2053 = vunpack.c.l.b16 %v592
        %v2054 = vunpack.c.h.b16 %v592
        %v2055 = vunpack.c.l.b16 %v593
        %v2056 = vunpack.c.h.b16 %v593
        %v2057 = vunpack.c.l.b16 %v594
        %v2058 = vunpack.c.h.b16 %v594
        %v2059 = vunpack.c.l.b16 %v595
        %v2060 = vunpack.c.h.b16 %v595
        %v2061 = vunpack.c.l.b16 %v596
        %v2062 = vunpack.c.h.b16 %v596
        %v2063 = vunpack.c.l.b16 %v597
        %v2064 = vunpack.c.h.b16 %v597
        %v2065 = vunpack.c.l.b16 %v598
        %v2066 = vunpack.c.h.b16 %v598
        %v2067 = vunpack.c.l.b16 %v599
        %v2068 = vunpack.c.h.b16 %v599
        %v2069 = vunpack.c.l.b16 %v600
        %v2070 = vunpack.c.h.b16 %v600
        %v2071 = vunpack.c.l.b16 %v601
        %v2072 = vunpack.c.h.b16 %v601
        %v2073 = vunpack.c.l.b16 %v602
        %v2074 = vunpack.c.h.b16 %v602
        %v2075 = vunpack.c.l.b16 %v603
        %v2076 = vunpack.c.h.b16 %v603
        %v2077 = vunpack.c.l.b16 %v604
        %v2078 = vunpack.c.h.b16 %v604
        %v2079 = vunpack.c.l.b16 %v605
        %v2080 = vunpack.c.h.b16 %v605
        %v2081 = vunpack.c.l.b16 %v606
        %v2082 = vunpack.c.h.b16 %v606
        %v2083 = vunpack.c.l.b16 %v607
        %v2084 = vunpack.c.h.b16 %v607
        %v2085 = vunpack.c.l.b16 %v608
        %v2086 = vunpack.c.h.b16 %v608
        %v2087 = vunpack.c.l.b16 %v609
        %v2088 = vunpack.c.h.b16 %v609
        %v2089 = vunpack.c.l.b16 %v610
        %v2090 = vunpack.c.h.b16 %v610
        %v2091 = vunpack.c.l.b16 %v611
        %v2092 = vunpack.c.h.b16 %v611
        %v2093 = vunpack.c.l.b16 %v612
        %v2094 = vunpack.c.h.b16 %v612
        %v2095 = vunpack.c.l.b16 %v613
        %v2096 = vunpack.c.h.b16 %v613
        %v2097 = vunpack.c.l.b16 %v614
        %v2098 = vunpack.c.h.b16 %v614
        %v2099 = vunpack.c.l.b16 %v615
        %v2100 = vunpack.c.h.b16 %v615
        %v2101 = vunpack.c.l.b16 %v616
        %v2102 = vunpack.c.h.b16 %v616
        %v2103 = vunpack.c.l.b16 %v617
        %v2104 = vunpack.c.h.b16 %v617
        %v2105 = vunpack.c.l.b16 %v618
        %v2106 = vunpack.c.h.b16 %v618
        %v2107 = vunpack.c.l.b16 %v619
        %v2108 = vunpack.c.h.b16 %v619
        %v2109 = vunpack.c.l.b16 %v620
        %v2110 = vunpack.c.h.b16 %v620
        %v2111 = vunpack.c.l.b16 %v621
        %v2112 = vunpack.c.h.b16 %v621
        %v2113 = vunpack.c.l.b16 %v622
        %v2114 = vunpack.c.h.b16 %v622
        %v2115 = vunpack.c.l.b16 %v623
        %v2116 = vunpack.c.h.b16 %v623
        %v2117 = vunpack.c.l.b16 %v624
        %v2118 = vunpack.c.h.b16 %v624
        %v2119 = vunpack.c.l.b16 %v625
        %v2120 = vunpack.c.h.b16 %v625
        %v2121 = vunpack.c.l.b16 %v626
        %v2122 = vunpack.c.h.b16 %v626
        %v2123 = vunpack.c.l.b16 %v627
        %v2124 = vunpack.c.h.b16 %v627
        %v2125 = vunpack.c.l.b16 %v628
        %v2126 = vunpack.c.h.b16 %v628
        %v2127 = vunpack.c.l.b16 %v629
        %v2128 = vunpack.c.h.b16 %v629
        %v2129 = vunpack.c.l.b16 %v630
        %v2130 = vunpack.c.h.b16 %v630
        %v2131 = vunpack.c.l.b16 %v631
        %v2132 = vunpack.c.h.b16 %v631
        %v2133 = vunpack.c.l.b16 %v632
        %v2134 = vunpack.c.h.b16 %v632
        %v2135 = vunpack.c.l.b16 %v633
        %v2136 = vunpack.c.h.b16 %v633
        %v2137 = vunpack.c.l.b16 %v634
        %v2138 = vunpack.c.h.b16 %v634
        %v2139 = vunpack.c.l.b16 %v635
        %v2140 = vunpack.c.h.b16 %v635
        %v2141 = vunpack.c.l.b16 %v636
        %v2142 = vunpack.c.h.b16 %v636
        %v2143 = vunpack.c.l.b16 %v637
        %v2144 = vunpack.c.h.b16 %v637
        %v2145 = vunpack.c.l.b16 %v638
        %v2146 = vunpack.c.h.b16 %v638
        %v2147 = vunpack.c.l.b16 %v639
        %v2148 = vunpack.c.h.b16 %v639
        %v2149 = vunpack.c.l.b16 %v640
        %v2150 = vunpack.c.h.b16 %v640
        %v2151 = vunpack.c.l.b16 %v641
        %v2152 = vunpack.c.h.b16 %v641
        %v2153 = vunpack.c.l.b16 %v642
        %v2154 = vunpack.c.h.b16 %v642
        %v2155 = vunpack.c.l.b16 %v643
        %v2156 = vunpack.c.h.b16 %v643
        %v2157 = vunpack.c.l.b16 %v644
        %v2158 = vunpack.c.h.b16 %v644
        %v2159 = vunpack.c.l.b16 %v645
        %v2160 = vunpack.c.h.b16 %v645
        %v2161 = vunpack.c.l.b16 %v646
        %v2162 = vunpack.c.h.b16 %v646
        %v2163 = vunpack.c.l.b16 %v647
        %v2164 = vunpack.c.h.b16 %v647
        %v2165 = vunpack.c.l.b16 %v648
        %v2166 = vunpack.c.h.b16 %v648
        %v2167 = vunpack.c.l.b16 %v649
        %v2168 = vunpack.c.h.b16 %v649
        %v2169 = vunpack.c.l.b16 %v650
        %v2170 = vunpack.c.h.b16 %v650
        %v2171 = vunpack.c.l.b16 %v651
        %v2172 = vunpack.c.h.b16 %v651
        %v2173 = vunpack.c.l.b16 %v652
        %v2174 = vunpack.c.h.b16 %v652
        %v2175 = vunpack.c.l.b16 %v653
        %v2176 = vunpack.c.h.b16 %v653
        %v2177 = vunpack.c.l.b16 %v654
        %v2178 = vunpack.c.h.b16 %v654
        %v2179 = vunpack.c.l.b16 %v655
        %v2180 = vunpack.c.h.b16 %v655
        %v2181 = vunpack.c.l.b16 %v656
        %v2182 = vunpack.c.h.b16 %v656
        %v2183 = vunpack.c.l.b16 %v657
        %v2184 = vunpack.c.h.b16 %v657
        %v2185 = vunpack.c.l.b16 %v658
        %v2186 = vunpack.c.h.b16 %v658
        %v2187 = vunpack.c.l.b16 %v659
        %v2188 = vunpack.c.h.b16 %v659
        %v2189 = vunpack.c.l.b16 %v660
        %v2190 = vunpack.c.h.b16 %v660
        %v2191 = vunpack.c.l.b16 %v661
        %v2192 = vunpack.c.h.b16 %v661
        %v2193 = vunpack.c.l.b16 %v662
        %v2194 = vunpack.c.h.b16 %v662
        %v2195 = vunpack.c.l.b16 %v663
        %v2196 = vunpack.c.h.b16 %v663
        %v2197 = vunpack.c.l.b16 %v664
        %v2198 = vunpack.c.h.b16 %v664
        %v2199 = vunpack.c.l.b16 %v665
        %v2200 = vunpack.c.h.b16 %v665
        %v2201 = vunpack.c.l.b16 %v666
        %v2202 = vunpack.c.h.b16 %v666
        %v2203 = vunpack.c.l.b16 %v667
        %v2204 = vunpack.c.h.b16 %v667
        %v2205 = vunpack.c.l.b16 %v668
        %v2206 = vunpack.c.h.b16 %v668
        %v2207 = vunpack.c.l.b16 %v669
        %v2208 = vunpack.c.h.b16 %v669
        %v2209 = vunpack.c.l.b16 %v670
        %v2210 = vunpack.c.h.b16 %v670
        %v2211 = vunpack.c.l.b16 %v671
        %v2212 = vunpack.c.h.b16 %v671
        %v2213 = vunpack.c.l.b16 %v672
        %v2214 = vunpack.c.h.b16 %v672
        %v2215 = vunpack.c.l.b16 %v673
        %v2216 = vunpack.c.h.b16 %v673
        %v2217 = vunpack.c.l.b16 %v674
        %v2218 = vunpack.c.h.b16 %v674
        %v2219 = vunpack.c.l.b16 %v675
        %v2220 = vunpack.c.h.b16 %v675
        %v2221 = vunpack.c.l.b16 %v676
        %v2222 = vunpack.c.h.b16 %v676
        %v2223 = vunpack.c.l.b16 %v677
        %v2224 = vunpack.c.h.b16 %v677
        %v2225 = vunpack.c.l.b16 %v678
        %v2226 = vunpack.c.h.b16 %v678
        %v2227 = vunpack.c.l.b16 %v679
        %v2228 = vunpack.c.h.b16 %v679
        %v2229 = vunpack.c.l.b16 %v680
        %v2230 = vunpack.c.h.b16 %v680
        %v2231 = vunpack.c.l.b16 %v681
        %v2232 = vunpack.c.h.b16 %v681
        %v2233 = vunpack.c.l.b16 %v682
        %v2234 = vunpack.c.h.b16 %v682
        %v2235 = vunpack.c.l.b16 %v683
        %v2236 = vunpack.c.h.b16 %v683
        %v2237 = vunpack.c.l.b16 %v684
        %v2238 = vunpack.c.h.b16 %v684
        %v2239 = vunpack.c.l.b16 %v685
        %v2240 = vunpack.c.h.b16 %v685
        %v2241 = vunpack.c.l.b16 %v686
        %v2242 = vunpack.c.h.b16 %v686
        %v2243 = vunpack.c.l.b16 %v687
        %v2244 = vunpack.c.h.b16 %v687
        %v2245 = vunpack.c.l.b16 %v688
        %v2246 = vunpack.c.h.b16 %v688
        %v2247 = vunpack.c.l.b16 %v689
        %v2248 = vunpack.c.h.b16 %v689
        %v2249 = vunpack.c.l.b16 %v690
        %v2250 = vunpack.c.h.b16 %v690
        %v2251 = vunpack.c.l.b16 %v691
        %v2252 = vunpack.c.h.b16 %v691
        %v2253 = vunpack.c.l.b16 %v692
        %v2254 = vunpack.c.h.b16 %v692
        %v2255 = vunpack.c.l.b16 %v693
        %v2256 = vunpack.c.h.b16 %v693
        %v2257 = vunpack.c.l.b16 %v694
        %v2258 = vunpack.c.h.b16 %v694
        %v2259 = vunpack.c.l.b16 %v695
        %v2260 = vunpack.c.h.b16 %v695
        %v2261 = vunpack.c.l.b16 %v696
        %v2262 = vunpack.c.h.b16 %v696
        %v2263 = vunpack.c.l.b16 %v697
        %v2264 = vunpack.c.h.b16 %v697
        %v2265 = vunpack.c.l.b16 %v698
        %v2266 = vunpack.c.h.b16 %v698
        %v2267 = vunpack.c.l.b16 %v699
        %v2268 = vunpack.c.h.b16 %v699
        %v2269 = vunpack.c.l.b16 %v700
        %v2270 = vunpack.c.h.b16 %v700
        %v2271 = vunpack.c.l.b16 %v701
        %v2272 = vunpack.c.h.b16 %v701
        %v2273 = vunpack.c.l.b16 %v702
        %v2274 = vunpack.c.h.b16 %v702
        %v2275 = vunpack.c.l.b16 %v703
        %v2276 = vunpack.c.h.b16 %v703
        %v2277 = vunpack.c.l.b16 %v704
        %v2278 = vunpack.c.h.b16 %v704
        %v2279 = vunpack.c.l.b16 %v705
        %v2280 = vunpack.c.h.b16 %v705
        %v2281 = vunpack.c.l.b16 %v706
        %v2282 = vunpack.c.h.b16 %v706
        %v2283 = vunpack.c.l.b16 %v707
        %v2284 = vunpack.c.h.b16 %v707
        %v2285 = vunpack.c.l.b16 %v708
        %v2286 = vunpack.c.h.b16 %v708
        %v2287 = vunpack.c.l.b16 %v709
        %v2288 = vunpack.c.h.b16 %v709
        %v2289 = vunpack.c.l.b16 %v710
        %v2290 = vunpack.c.h.b16 %v710
        %v2291 = vunpack.c.l.b16 %v711
        %v2292 = vunpack.c.h.b16 %v711
        %v2293 = vunpack.c.l.b16 %v712
        %v2294 = vunpack.c.h.b16 %v712
        %v2295 = vunpack.c.l.b16 %v713
        %v2296 = vunpack.c.h.b16 %v713
        %v2297 = vunpack.c.l.b16 %v714
        %v2298 = vunpack.c.h.b16 %v714
        %v2299 = vunpack.c.l.b16 %v715
        %v2300 = vunpack.c.h.b16 %v715
        %v2301 = vunpack.c.l.b16 %v716
        %v2302 = vunpack.c.h.b16 %v716
        %v2303 = vunpack.c.l.b16 %v717
        %v2304 = vunpack.c.h.b16 %v717
        %v2305 = vunpack.c.l.b16 %v718
        %v2306 = vunpack.c.h.b16 %v718
        %v2307 = vunpack.c.l.b16 %v719
        %v2308 = vunpack.c.h.b16 %v719
        %v2309 = vunpack.c.l.b16 %v720
        %v2310 = vunpack.c.h.b16 %v720
        %v2311 = vunpack.c.l.b16 %v721
        %v2312 = vunpack.c.h.b16 %v721
        %v2313 = vunpack.c.l.b16 %v722
        %v2314 = vunpack.c.h.b16 %v722
        %v2315 = vunpack.c.l.b16 %v723
        %v2316 = vunpack.c.h.b16 %v723
        %v2317 = vunpack.c.l.b16 %v724
        %v2318 = vunpack.c.h.b16 %v724
        %v2319 = vunpack.c.l.b16 %v725
        %v2320 = vunpack.c.h.b16 %v725
        %v2321 = vunpack.c.l.b16 %v726
        %v2322 = vunpack.c.h.b16 %v726
        %v2323 = vunpack.c.l.b16 %v727
        %v2324 = vunpack.c.h.b16 %v727
        %v2325 = vunpack.c.l.b16 %v728
        %v2326 = vunpack.c.h.b16 %v728
        %v2327 = vunpack.c.l.b16 %v729
        %v2328 = vunpack.c.h.b16 %v729
        %v2329 = vunpack.c.l.b16 %v730
        %v2330 = vunpack.c.h.b16 %v730
        %v2331 = vunpack.c.l.b16 %v731
        %v2332 = vunpack.c.h.b16 %v731
        %v2333 = vunpack.c.l.b16 %v732
        %v2334 = vunpack.c.h.b16 %v732
        %v2335 = vunpack.c.l.b16 %v733
        %v2336 = vunpack.c.h.b16 %v733
        %v2337 = vunpack.c.l.b16 %v734
        %v2338 = vunpack.c.h.b16 %v734
        %v2339 = vunpack.c.l.b16 %v735
        %v2340 = vunpack.c.h.b16 %v735
        %v2341 = vunpack.c.l.b16 %v736
        %v2342 = vunpack.c.h.b16 %v736
        %v2343 = vunpack.c.l.b16 %v737
        %v2344 = vunpack.c.h.b16 %v737
        %v2345 = vunpack.c.l.b16 %v738
        %v2346 = vunpack.c.h.b16 %v738
        %v2347 = vunpack.c.l.b16 %v739
        %v2348 = vunpack.c.h.b16 %v739
        %v2349 = vunpack.c.l.b16 %v740
        %v2350 = vunpack.c.h.b16 %v740
        %v2351 = vunpack.c.l.b16 %v741
        %v2352 = vunpack.c.h.b16 %v741
        %v2353 = vunpack.c.l.b16 %v742
        %v2354 = vunpack.c.h.b16 %v742
        %v2355 = vunpack.c.l.b16 %v743
        %v2356 = vunpack.c.h.b16 %v743
        %v2357 = vunpack.c.l.b16 %v744
        %v2358 = vunpack.c.h.b16 %v744
        %v2359 = vunpack.c.l.b16 %v745
        %v2360 = vunpack.c.h.b16 %v745
        %v2361 = vunpack.c.l.b16 %v746
        %v2362 = vunpack.c.h.b16 %v746
        %v2363 = vunpack.c.l.b16 %v747
        %v2364 = vunpack.c.h.b16 %v747
        %v2365 = vunpack.c.l.b16 %v748
        %v2366 = vunpack.c.h.b16 %v748
        %v2367 = vunpack.c.l.b16 %v749
        %v2368 = vunpack.c.h.b16 %v749
        %v2369 = vunpack.c.l.b16 %v750
        %v2370 = vunpack.c.h.b16 %v750
        %v2371 = vunpack.c.l.b16 %v751
        %v2372 = vunpack.c.h.b16 %v751
        %v2373 = vunpack.c.l.b16 %v752
        %v2374 = vunpack.c.h.b16 %v752
        %v2375 = vunpack.c.l.b16 %v753
        %v2376 = vunpack.c.h.b16 %v753
        %v2377 = vunpack.c.l.b16 %v754
        %v2378 = vunpack.c.h.b16 %v754
        %v2379 = vunpack.c.l.b16 %v755
        %v2380 = vunpack.c.h.b16 %v755
        %v2381 = vunpack.c.l.b16 %v756
        %v2382 = vunpack.c.h.b16 %v756
        %v2383 = vunpack.c.l.b16 %v757
        %v2384 = vunpack.c.h.b16 %v757
        %v2385 = vunpack.c.l.b16 %v758
        %v2386 = vunpack.c.h.b16 %v758
        %v2387 = vunpack.c.l.b16 %v759
        %v2388 = vunpack.c.h.b16 %v759
        %v2389 = vunpack.c.l.b16 %v760
        %v2390 = vunpack.c.h.b16 %v760
        %v2391 = vunpack.c.l.b16 %v761
        %v2392 = vunpack.c.h.b16 %v761
        %v2393 = vunpack.c.l.b16 %v762
        %v2394 = vunpack.c.h.b16 %v762
        %v2395 = vunpack.c.l.b16 %v763
        %v2396 = vunpack.c.h.b16 %v763
        %v2397 = vunpack.c.l.b16 %v764
        %v2398 = vunpack.c.h.b16 %v764
        %v2399 = vunpack.c.l.b16 %v765
        %v2400 = vunpack.c.h.b16 %v765
        %v2401 = vunpack.c.l.b16 %v766
        %v2402 = vunpack.c.h.b16 %v766
        %v2403 = vunpack.c.l.b16 %v767
        %v2404 = vunpack.c.h.b16 %v767
        %v2405 = vunpack.c.l.b16 %v768
        %v2406 = vunpack.c.h.b16 %v768
        %v2407 = vunpack.c.l.b16 %v769
        %v2408 = vunpack.c.h.b16 %v769
        %v2409 = vunpack.c.l.b16 %v770
        %v2410 = vunpack.c.h.b16 %v770
        %v2411 = vunpack.c.l.b16 %v771
        %v2412 = vunpack.c.h.b16 %v771
        %v2413 = vunpack.c.l.b16 %v772
        %v2414 = vunpack.c.h.b16 %v772
        %v2415 = vunpack.c.l.b16 %v773
        %v2416 = vunpack.c.h.b16 %v773
        %v2417 = vunpack.c.l.b16 %v774
        %v2418 = vunpack.c.h.b16 %v774
        %v2419 = vunpack.c.l.b16 %v775
        %v2420 = vunpack.c.h.b16 %v775
        %v2421 = vunpack.c.l.b16 %v776
        %v2422 = vunpack.c.h.b16 %v776
        %v2423 = vunpack.c.l.b16 %v777
        %v2424 = vunpack.c.h.b16 %v777
        %v2425 = vunpack.c.l.b16 %v778
        %v2426 = vunpack.c.h.b16 %v778
        %v2427 = vunpack.c.l.b16 %v779
        %v2428 = vunpack.c.h.b16 %v779
        %v2429 = vunpack.c.l.b16 %v780
        %v2430 = vunpack.c.h.b16 %v780
        %v2431 = vunpack.c.l.b16 %v781
        %v2432 = vunpack.c.h.b16 %v781
        %v2433 = vunpack.c.l.b16 %v782
        %v2434 = vunpack.c.h.b16 %v782
        %v2435 = vunpack.c.l.b16 %v783
        %v2436 = vunpack.c.h.b16 %v783
        %v2437 = vunpack.c.l.b16 %v784
        %v2438 = vunpack.c.h.b16 %v784
        %v2439 = vpack.c.b16 %v1417, %v1415
        %v2440 = vpack.c.b16 %v1418, %v1416
        %v2441 = vpack.c.b16 %v1421, %v1419
        %v2442 = vpack.c.b16 %v1422, %v1420
        %v2443 = vpack.c.b16 %v1425, %v1423
        %v2444 = vpack.c.b16 %v1426, %v1424
        %v2445 = vpack.c.b16 %v1429, %v1427
        %v2446 = vpack.c.b16 %v1430, %v1428
        %v2447 = vpack.c.b16 %v1433, %v1431
        %v2448 = vpack.c.b16 %v1434, %v1432
        %v2449 = vpack.c.b16 %v1437, %v1435
        %v2450 = vpack.c.b16 %v1438, %v1436
        %v2451 = vpack.c.b16 %v1441, %v1439
        %v2452 = vpack.c.b16 %v1442, %v1440
        %v2453 = vpack.c.b16 %v1445, %v1443
        %v2454 = vpack.c.b16 %v1446, %v1444
        %v2455 = vpack.c.b16 %v1449, %v1447
        %v2456 = vpack.c.b16 %v1450, %v1448
        %v2457 = vpack.c.b16 %v1453, %v1451
        %v2458 = vpack.c.b16 %v1454, %v1452
        %v2459 = vpack.c.b16 %v1457, %v1455
        %v2460 = vpack.c.b16 %v1458, %v1456
        %v2461 = vpack.c.b16 %v1461, %v1459
        %v2462 = vpack.c.b16 %v1462, %v1460
        %v2463 = vpack.c.b16 %v1465, %v1463
        %v2464 = vpack.c.b16 %v1466, %v1464
        %v2465 = vpack.c.b16 %v1469, %v1467
        %v2466 = vpack.c.b16 %v1470, %v1468
        %v2467 = vpack.c.b16 %v1473, %v1471
        %v2468 = vpack.c.b16 %v1474, %v1472
        %v2469 = vpack.c.b16 %v1477, %v1475
        %v2470 = vpack.c.b16 %v1478, %v1476
        %v2471 = vpack.c.b16 %v1481, %v1479
        %v2472 = vpack.c.b16 %v1482, %v1480
        %v2473 = vpack.c.b16 %v1485, %v1483
        %v2474 = vpack.c.b16 %v1486, %v1484
        %v2475 = vpack.c.b16 %v1489, %v1487
        %v2476 = vpack.c.b16 %v1490, %v1488
        %v2477 = vpack.c.b16 %v1493, %v1491
        %v2478 = vpack.c.b16 %v1494, %v1492
        %v2479 = vpack.c.b16 %v1497, %v1495
        %v2480 = vpack.c.b16 %v1498, %v1496
        %v2481 = vpack.c.b16 %v1501, %v1499
        %v2482 = vpack.c.b16 %v1502, %v1500
        %v2483 = vpack.c.b16 %v1505, %v1503
        %v2484 = vpack.c.b16 %v1506, %v1504
        %v2485 = vpack.c.b16 %v1509, %v1507
        %v2486 = vpack.c.b16 %v1510, %v1508
        %v2487 = vpack.c.b16 %v1513, %v1511
        %v2488 = vpack.c.b16 %v1514, %v1512
        %v2489 = vpack.c.b16 %v1517, %v1515
        %v2490 = vpack.c.b16 %v1518, %v1516
        %v2491 = vpack.c.b16 %v1521, %v1519
        %v2492 = vpack.c.b16 %v1522, %v1520
        %v2493 = vpack.c.b16 %v1525, %v1523
        %v2494 = vpack.c.b16 %v1526, %v1524
        %v2495 = vpack.c.b16 %v1529, %v1527
        %v2496 = vpack.c.b16 %v1530, %v1528
        %v2497 = vpack.c.b16 %v1533, %v1531
        %v2498 = vpack.c.b16 %v1534, %v1532
        %v2499 = vpack.c.b16 %v1537, %v1535
        %v2500 = vpack.c.b16 %v1538, %v1536
        %v2501 = vpack.c.b16 %v1541, %v1539
        %v2502 = vpack.c.b16 %v1542, %v1540
        %v2503 = vpack.c.b16 %v1545, %v1543
        %v2504 = vpack.c.b16 %v1546, %v1544
        %v2505 = vpack.c.b16 %v1549, %v1547
        %v2506 = vpack.c.b16 %v1550, %v1548
        %v2507 = vpack.c.b16 %v1553, %v1551
        %v2508 = vpack.c.b16 %v1554, %v1552
        %v2509 = vpack.c.b16 %v1557, %v1555
        %v2510 = vpack.c.b16 %v1558, %v1556
        %v2511 = vpack.c.b16 %v1561, %v1559
        %v2512 = vpack.c.b16 %v1562, %v1560
        %v2513 = vpack.c.b16 %v1565, %v1563
        %v2514 = vpack.c.b16 %v1566, %v1564
        %v2515 = vpack.c.b16 %v1569, %v1567
        %v2516 = vpack.c.b16 %v1570, %v1568
        %v2517 = vpack.c.b16 %v1573, %v1571
        %v2518 = vpack.c.b16 %v1574, %v1572
        %v2519 = vpack.c.b16 %v1577, %v1575
        %v2520 = vpack.c.b16 %v1578, %v1576
        %v2521 = vpack.c.b16 %v1581, %v1579
        %v2522 = vpack.c.b16 %v1582, %v1580
        %v2523 = vpack.c.b16 %v1585, %v1583
        %v2524 = vpack.c.b16 %v1586, %v1584
        %v2525 = vpack.c.b16 %v1589, %v1587
        %v2526 = vpack.c.b16 %v1590, %v1588
        %v2527 = vpack.c.b16 %v1593, %v1591
        %v2528 = vpack.c.b16 %v1594, %v1592
        %v2529 = vpack.c.b16 %v1597, %v1595
        %v2530 = vpack.c.b16 %v1598, %v1596
        %v2531 = vpack.c.b16 %v1601, %v1599
        %v2532 = vpack.c.b16 %v1602, %v1600
        %v2533 = vpack.c.b16 %v1605, %v1603
        %v2534 = vpack.c.b16 %v1606, %v1604
        %v2535 = vpack.c.b16 %v1609, %v1607
        %v2536 = vpack.c.b16 %v1610, %v1608
        %v2537 = vpack.c.b16 %v1613, %v1611
        %v2538 = vpack.c.b16 %v1614, %v1612
        %v2539 = vpack.c.b16 %v1617, %v1615
        %v2540 = vpack.c.b16 %v1618, %v1616
        %v2541 = vpack.c.b16 %v1621, %v1619
        %v2542 = vpack.c.b16 %v1622, %v1620
        %v2543 = vpack.c.b16 %v1625, %v1623
        %v2544 = vpack.c.b16 %v1626, %v1624
        %v2545 = vpack.c.b16 %v1629, %v1627
        %v2546 = vpack.c.b16 %v1630, %v1628
        %v2547 = vpack.c.b16 %v1633, %v1631
        %v2548 = vpack.c.b16 %v1634, %v1632
        %v2549 = vpack.c.b16 %v1637, %v1635
        %v2550 = vpack.c.b16 %v1638, %v1636
        %v2551 = vpack.c.b16 %v1641, %v1639
        %v2552 = vpack.c.b16 %v1642, %v1640
        %v2553 = vpack.c.b16 %v1645, %v1643
        %v2554 = vpack.c.b16 %v1646, %v1644
        %v2555 = vpack.c.b16 %v1649, %v1647
        %v2556 = vpack.c.b16 %v1650, %v1648
        %v2557 = vpack.c.b16 %v1653, %v1651
        %v2558 = vpack.c.b16 %v1654, %v1652
        %v2559 = vpack.c.b16 %v1657, %v1655
        %v2560 = vpack.c.b16 %v1658, %v1656
        %v2561 = vpack.c.b16 %v1661, %v1659
        %v2562 = vpack.c.b16 %v1662, %v1660
        %v2563 = vpack.c.b16 %v1665, %v1663
        %v2564 = vpack.c.b16 %v1666, %v1664
        %v2565 = vpack.c.b16 %v1669, %v1667
        %v2566 = vpack.c.b16 %v1670, %v1668
        %v2567 = vpack.c.b16 %v1673, %v1671
        %v2568 = vpack.c.b16 %v1674, %v1672
        %v2569 = vpack.c.b16 %v1677, %v1675
        %v2570 = vpack.c.b16 %v1678, %v1676
        %v2571 = vpack.c.b16 %v1681, %v1679
        %v2572 = vpack.c.b16 %v1682, %v1680
        %v2573 = vpack.c.b16 %v1685, %v1683
        %v2574 = vpack.c.b16 %v1686, %v1684
        %v2575 = vpack.c.b16 %v1689, %v1687
        %v2576 = vpack.c.b16 %v1690, %v1688
        %v2577 = vpack.c.b16 %v1693, %v1691
        %v2578 = vpack.c.b16 %v1694, %v1692
        %v2579 = vpack.c.b16 %v1697, %v1695
        %v2580 = vpack.c.b16 %v1698, %v1696
        %v2581 = vpack.c.b16 %v1701, %v1699
        %v2582 = vpack.c.b16 %v1702, %v1700
        %v2583 = vpack.c.b16 %v1705, %v1703
        %v2584 = vpack.c.b16 %v1706, %v1704
        %v2585 = vpack.c.b16 %v1709, %v1707
        %v2586 = vpack.c.b16 %v1710, %v1708
        %v2587 = vpack.c.b16 %v1713, %v1711
        %v2588 = vpack.c.b16 %v1714, %v1712
        %v2589 = vpack.c.b16 %v1717, %v1715
        %v2590 = vpack.c.b16 %v1718, %v1716
        %v2591 = vpack.c.b16 %v1721, %v1719
        %v2592 = vpack.c.b16 %v1722, %v1720
        %v2593 = vpack.c.b16 %v1725, %v1723
        %v2594 = vpack.c.b16 %v1726, %v1724
        %v2595 = vpack.c.b16 %v1729, %v1727
        %v2596 = vpack.c.b16 %v1730, %v1728
        %v2597 = vpack.c.b16 %v1733, %v1731
        %v2598 = vpack.c.b16 %v1734, %v1732
        %v2599 = vpack.c.b16 %v1737, %v1735
        %v2600 = vpack.c.b16 %v1738, %v1736
        %v2601 = vpack.c.b16 %v1741, %v1739
        %v2602 = vpack.c.b16 %v1742, %v1740
        %v2603 = vpack.c.b16 %v1745, %v1743
        %v2604 = vpack.c.b16 %v1746, %v1744
        %v2605 = vpack.c.b16 %v1749, %v1747
        %v2606 = vpack.c.b16 %v1750, %v1748
        %v2607 = vpack.c.b16 %v1753, %v1751
        %v2608 = vpack.c.b16 %v1754, %v1752
        %v2609 = vpack.c.b16 %v1757, %v1755
        %v2610 = vpack.c.b16 %v1758, %v1756
        %v2611 = vpack.c.b16 %v1761, %v1759
        %v2612 = vpack.c.b16 %v1762, %v1760
        %v2613 = vpack.c.b16 %v1765, %v1763
        %v2614 = vpack.c.b16 %v1766, %v1764
        %v2615 = vpack.c.b16 %v1769, %v1767
        %v2616 = vpack.c.b16 %v1770, %v1768
        %v2617 = vpack.c.b16 %v1773, %v1771
        %v2618 = vpack.c.b16 %v1774, %v1772
        %v2619 = vpack.c.b16 %v1777, %v1775
        %v2620 = vpack.c.b16 %v1778, %v1776
        %v2621 = vpack.c.b16 %v1781, %v1779
        %v2622 = vpack.c.b16 %v1782, %v1780
        %v2623 = vpack.c.b16 %v1785, %v1783
        %v2624 = vpack.c.b16 %v1786, %v1784
        %v2625 = vpack.c.b16 %v1789, %v1787
        %v2626 = vpack.c.b16 %v1790, %v1788
        %v2627 = vpack.c.b16 %v1793, %v1791
        %v2628 = vpack.c.b16 %v1794, %v1792
        %v2629 = vpack.c.b16 %v1797, %v1795
        %v2630 = vpack.c.b16 %v1798, %v1796
        %v2631 = vpack.c.b16 %v1801, %v1799
        %v2632 = vpack.c.b16 %v1802, %v1800
        %v2633 = vpack.c.b16 %v1805, %v1803
        %v2634 = vpack.c.b16 %v1806, %v1804
        %v2635 = vpack.c.b16 %v1809, %v1807
        %v2636 = vpack.c.b16 %v1810, %v1808
        %v2637 = vpack.c.b16 %v1813, %v1811
        %v2638 = vpack.c.b16 %v1814, %v1812
        %v2639 = vpack.c.b16 %v1817, %v1815
        %v2640 = vpack.c.b16 %v1818, %v1816
        %v2641 = vpack.c.b16 %v1821, %v1819
        %v2642 = vpack.c.b16 %v1822, %v1820
        %v2643 = vpack.c.b16 %v1825, %v1823
        %v2644 = vpack.c.b16 %v1826, %v1824
        %v2645 = vpack.c.b16 %v1829, %v1827
        %v2646 = vpack.c.b16 %v1830, %v1828
        %v2647 = vpack.c.b16 %v1833, %v1831
        %v2648 = vpack.c.b16 %v1834, %v1832
        %v2649 = vpack.c.b16 %v1837, %v1835
        %v2650 = vpack.c.b16 %v1838, %v1836
        %v2651 = vpack.c.b16 %v1841, %v1839
        %v2652 = vpack.c.b16 %v1842, %v1840
        %v2653 = vpack.c.b16 %v1845, %v1843
        %v2654 = vpack.c.b16 %v1846, %v1844
        %v2655 = vpack.c.b16 %v1849, %v1847
        %v2656 = vpack.c.b16 %v1850, %v1848
        %v2657 = vpack.c.b16 %v1853, %v1851
        %v2658 = vpack.c.b16 %v1854, %v1852
        %v2659 = vpack.c.b16 %v1857, %v1855
        %v2660 = vpack.c.b16 %v1858, %v1856
        %v2661 = vpack.c.b16 %v1861, %v1859
        %v2662 = vpack.c.b16 %v1862, %v1860
        %v2663 = vpack.c.b16 %v1865, %v1863
        %v2664 = vpack.c.b16 %v1866, %v1864
        %v2665 = vpack.c.b16 %v1869, %v1867
        %v2666 = vpack.c.b16 %v1870, %v1868
        %v2667 = vpack.c.b16 %v1873, %v1871
        %v2668 = vpack.c.b16 %v1874, %v1872
        %v2669 = vpack.c.b16 %v1877, %v1875
        %v2670 = vpack.c.b16 %v1878, %v1876
        %v2671 = vpack.c.b16 %v1881, %v1879
        %v2672 = vpack.c.b16 %v1882, %v1880
        %v2673 = vpack.c.b16 %v1885, %v1883
        %v2674 = vpack.c.b16 %v1886, %v1884
        %v2675 = vpack.c.b16 %v1889, %v1887
        %v2676 = vpack.c.b16 %v1890, %v1888
        %v2677 = vpack.c.b16 %v1893, %v1891
        %v2678 = vpack.c.b16 %v1894, %v1892
        %v2679 = vpack.c.b16 %v1897, %v1895
        %v2680 = vpack.c.b16 %v1898, %v1896
        %v2681 = vpack.c.b16 %v1901, %v1899
        %v2682 = vpack.c.b16 %v1902, %v1900
        %v2683 = vpack.c.b16 %v1905, %v1903
        %v2684 = vpack.c.b16 %v1906, %v1904
        %v2685 = vpack.c.b16 %v1909, %v1907
        %v2686 = vpack.c.b16 %v1910, %v1908
        %v2687 = vpack.c.b16 %v1913, %v1911
        %v2688 = vpack.c.b16 %v1914, %v1912
        %v2689 = vpack.c.b16 %v1917, %v1915
        %v2690 = vpack.c.b16 %v1918, %v1916
        %v2691 = vpack.c.b16 %v1921, %v1919
        %v2692 = vpack.c.b16 %v1922, %v1920
        %v2693 = vpack.c.b16 %v1925, %v1923
        %v2694 = vpack.c.b16 %v1926, %v1924
        %v2695 = vpack.c.b16 %v1929, %v1927
        %v2696 = vpack.c.b16 %v1930, %v1928
        %v2697 = vpack.c.b16 %v1933, %v1931
        %v2698 = vpack.c.b16 %v1934, %v1932
        %v2699 = vpack.c.b16 %v1937, %v1935
        %v2700 = vpack.c.b16 %v1938, %v1936
        %v2701 = vpack.c.b16 %v1941, %v1939
        %v2702 = vpack.c.b16 %v1942, %v1940
        %v2703 = vpack.c.b16 %v1945, %v1943
        %v2704 = vpack.c.b16 %v1946, %v1944
        %v2705 = vpack.c.b16 %v1949, %v1947
        %v2706 = vpack.c.b16 %v1950, %v1948
        %v2707 = vpack.c.b16 %v1953, %v1951
        %v2708 = vpack.c.b16 %v1954, %v1952
        %v2709 = vpack.c.b16 %v1957, %v1955
        %v2710 = vpack.c.b16 %v1958, %v1956
        %v2711 = vpack.c.b16 %v1961, %v1959
        %v2712 = vpack.c.b16 %v1962, %v1960
        %v2713 = vpack.c.b16 %v1965, %v1963
        %v2714 = vpack.c.b16 %v1966, %v1964
        %v2715 = vpack.c.b16 %v1969, %v1967
        %v2716 = vpack.c.b16 %v1970, %v1968
        %v2717 = vpack.c.b16 %v1973, %v1971
        %v2718 = vpack.c.b16 %v1974, %v1972
        %v2719 = vpack.c.b16 %v1977, %v1975
        %v2720 = vpack.c.b16 %v1978, %v1976
        %v2721 = vpack.c.b16 %v1981, %v1979
        %v2722 = vpack.c.b16 %v1982, %v1980
        %v2723 = vpack.c.b16 %v1985, %v1983
        %v2724 = vpack.c.b16 %v1986, %v1984
        %v2725 = vpack.c.b16 %v1989, %v1987
        %v2726 = vpack.c.b16 %v1990, %v1988
        %v2727 = vpack.c.b16 %v1993, %v1991
        %v2728 = vpack.c.b16 %v1994, %v1992
        %v2729 = vpack.c.b16 %v1997, %v1995
        %v2730 = vpack.c.b16 %v1998, %v1996
        %v2731 = vpack.c.b16 %v2001, %v1999
        %v2732 = vpack.c.b16 %v2002, %v2000
        %v2733 = vpack.c.b16 %v2005, %v2003
        %v2734 = vpack.c.b16 %v2006, %v2004
        %v2735 = vpack.c.b16 %v2009, %v2007
        %v2736 = vpack.c.b16 %v2010, %v2008
        %v2737 = vpack.c.b16 %v2013, %v2011
        %v2738 = vpack.c.b16 %v2014, %v2012
        %v2739 = vpack.c.b16 %v2017, %v2015
        %v2740 = vpack.c.b16 %v2018, %v2016
        %v2741 = vpack.c.b16 %v2021, %v2019
        %v2742 = vpack.c.b16 %v2022, %v2020
        %v2743 = vpack.c.b16 %v2025, %v2023
        %v2744 = vpack.c.b16 %v2026, %v2024
        %v2745 = vpack.c.b16 %v2029, %v2027
        %v2746 = vpack.c.b16 %v2030, %v2028
        %v2747 = vpack.c.b16 %v2033, %v2031
        %v2748 = vpack.c.b16 %v2034, %v2032
        %v2749 = vpack.c.b16 %v2037, %v2035
        %v2750 = vpack.c.b16 %v2038, %v2036
        %v2751 = vpack.c.b16 %v2041, %v2039
        %v2752 = vpack.c.b16 %v2042, %v2040
        %v2753 = vpack.c.b16 %v2045, %v2043
        %v2754 = vpack.c.b16 %v2046, %v2044
        %v2755 = vpack.c.b16 %v2049, %v2047
        %v2756 = vpack.c.b16 %v2050, %v2048
        %v2757 = vpack.c.b16 %v2053, %v2051
        %v2758 = vpack.c.b16 %v2054, %v2052
        %v2759 = vpack.c.b16 %v2057, %v2055
        %v2760 = vpack.c.b16 %v2058, %v2056
        %v2761 = vpack.c.b16 %v2061, %v2059
        %v2762 = vpack.c.b16 %v2062, %v2060
        %v2763 = vpack.c.b16 %v2065, %v2063
        %v2764 = vpack.c.b16 %v2066, %v2064
        %v2765 = vpack.c.b16 %v2069, %v2067
        %v2766 = vpack.c.b16 %v2070, %v2068
        %v2767 = vpack.c.b16 %v2073, %v2071
        %v2768 = vpack.c.b16 %v2074, %v2072
        %v2769 = vpack.c.b16 %v2077, %v2075
        %v2770 = vpack.c.b16 %v2078, %v2076
        %v2771 = vpack.c.b16 %v2081, %v2079
        %v2772 = vpack.c.b16 %v2082, %v2080
        %v2773 = vpack.c.b16 %v2085, %v2083
        %v2774 = vpack.c.b16 %v2086, %v2084
        %v2775 = vpack.c.b16 %v2089, %v2087
        %v2776 = vpack.c.b16 %v2090, %v2088
        %v2777 = vpack.c.b16 %v2093, %v2091
        %v2778 = vpack.c.b16 %v2094, %v2092
        %v2779 = vpack.c.b16 %v2097, %v2095
        %v2780 = vpack.c.b16 %v2098, %v2096
        %v2781 = vpack.c.b16 %v2101, %v2099
        %v2782 = vpack.c.b16 %v2102, %v2100
        %v2783 = vpack.c.b16 %v2105, %v2103
        %v2784 = vpack.c.b16 %v2106, %v2104
        %v2785 = vpack.c.b16 %v2109, %v2107
        %v2786 = vpack.c.b16 %v2110, %v2108
        %v2787 = vpack.c.b16 %v2113, %v2111
        %v2788 = vpack.c.b16 %v2114, %v2112
        %v2789 = vpack.c.b16 %v2117, %v2115
        %v2790 = vpack.c.b16 %v2118, %v2116
        %v2791 = vpack.c.b16 %v2121, %v2119
        %v2792 = vpack.c.b16 %v2122, %v2120
        %v2793 = vpack.c.b16 %v2125, %v2123
        %v2794 = vpack.c.b16 %v2126, %v2124
        %v2795 = vpack.c.b16 %v2129, %v2127
        %v2796 = vpack.c.b16 %v2130, %v2128
        %v2797 = vpack.c.b16 %v2133, %v2131
        %v2798 = vpack.c.b16 %v2134, %v2132
        %v2799 = vpack.c.b16 %v2137, %v2135
        %v2800 = vpack.c.b16 %v2138, %v2136
        %v2801 = vpack.c.b16 %v2141, %v2139
        %v2802 = vpack.c.b16 %v2142, %v2140
        %v2803 = vpack.c.b16 %v2145, %v2143
        %v2804 = vpack.c.b16 %v2146, %v2144
        %v2805 = vpack.c.b16 %v2149, %v2147
        %v2806 = vpack.c.b16 %v2150, %v2148
        %v2807 = vpack.c.b16 %v2153, %v2151
        %v2808 = vpack.c.b16 %v2154, %v2152
        %v2809 = vpack.c.b16 %v2157, %v2155
        %v2810 = vpack.c.b16 %v2158, %v2156
        %v2811 = vpack.c.b16 %v2161, %v2159
        %v2812 = vpack.c.b16 %v2162, %v2160
        %v2813 = vpack.c.b16 %v2165, %v2163
        %v2814 = vpack.c.b16 %v2166, %v2164
        %v2815 = vpack.c.b16 %v2169, %v2167
        %v2816 = vpack.c.b16 %v2170, %v2168
        %v2817 = vpack.c.b16 %v2173, %v2171
        %v2818 = vpack.c.b16 %v2174, %v2172
        %v2819 = vpack.c.b16 %v2177, %v2175
        %v2820 = vpack.c.b16 %v2178, %v2176
        %v2821 = vpack.c.b16 %v2181, %v2179
        %v2822 = vpack.c.b16 %v2182, %v2180
        %v2823 = vpack.c.b16 %v2185, %v2183
        %v2824 = vpack.c.b16 %v2186, %v2184
        %v2825 = vpack.c.b16 %v2189, %v2187
        %v2826 = vpack.c.b16 %v2190, %v2188
        %v2827 = vpack.c.b16 %v2193, %v2191
        %v2828 = vpack.c.b16 %v2194, %v2192
        %v2829 = vpack.c.b16 %v2197, %v2195
        %v2830 = vpack.c.b16 %v2198, %v2196
        %v2831 = vpack.c.b16 %v2201, %v2199
        %v2832 = vpack.c.b16 %v2202, %v2200
        %v2833 = vpack.c.b16 %v2205, %v2203
        %v2834 = vpack.c.b16 %v2206, %v2204
        %v2835 = vpack.c.b16 %v2209, %v2207
        %v2836 = vpack.c.b16 %v2210, %v2208
        %v2837 = vpack.c.b16 %v2213, %v2211
        %v2838 = vpack.c.b16 %v2214, %v2212
        %v2839 = vpack.c.b16 %v2217, %v2215
        %v2840 = vpack.c.b16 %v2218, %v2216
        %v2841 = vpack.c.b16 %v2221, %v2219
        %v2842 = vpack.c.b16 %v2222, %v2220
        %v2843 = vpack.c.b16 %v2225, %v2223
        %v2844 = vpack.c.b16 %v2226, %v2224
        %v2845 = vpack.c.b16 %v2229, %v2227
        %v2846 = vpack.c.b16 %v2230, %v2228
        %v2847 = vpack.c.b16 %v2233, %v2231
        %v2848 = vpack.c.b16 %v2234, %v2232
        %v2849 = vpack.c.b16 %v2237, %v2235
        %v2850 = vpack.c.b16 %v2238, %v2236
        %v2851 = vpack.c.b16 %v2241, %v2239
        %v2852 = vpack.c.b16 %v2242, %v2240
        %v2853 = vpack.c.b16 %v2245, %v2243
        %v2854 = vpack.c.b16 %v2246, %v2244
        %v2855 = vpack.c.b16 %v2249, %v2247
        %v2856 = vpack.c.b16 %v2250, %v2248
        %v2857 = vpack.c.b16 %v2253, %v2251
        %v2858 = vpack.c.b16 %v2254, %v2252
        %v2859 = vpack.c.b16 %v2257, %v2255
        %v2860 = vpack.c.b16 %v2258, %v2256
        %v2861 = vpack.c.b16 %v2261, %v2259
        %v2862 = vpack.c.b16 %v2262, %v2260
        %v2863 = vpack.c.b16 %v2265, %v2263
        %v2864 = vpack.c.b16 %v2266, %v2264
        %v2865 = vpack.c.b16 %v2269, %v2267
        %v2866 = vpack.c.b16 %v2270, %v2268
        %v2867 = vpack.c.b16 %v2273, %v2271
        %v2868 = vpack.c.b16 %v2274, %v2272
        %v2869 = vpack.c.b16 %v2277, %v2275
        %v2870 = vpack.c.b16 %v2278, %v2276
        %v2871 = vpack.c.b16 %v2281, %v2279
        %v2872 = vpack.c.b16 %v2282, %v2280
        %v2873 = vpack.c.b16 %v2285, %v2283
        %v2874 = vpack.c.b16 %v2286, %v2284
        %v2875 = vpack.c.b16 %v2289, %v2287
        %v2876 = vpack.c.b16 %v2290, %v2288
        %v2877 = vpack.c.b16 %v2293, %v2291
        %v2878 = vpack.c.b16 %v2294, %v2292
        %v2879 = vpack.c.b16 %v2297, %v2295
        %v2880 = vpack.c.b16 %v2298, %v2296
        %v2881 = vpack.c.b16 %v2301, %v2299
        %v2882 = vpack.c.b16 %v2302, %v2300
        %v2883 = vpack.c.b16 %v2305, %v2303
        %v2884 = vpack.c.b16 %v2306, %v2304
        %v2885 = vpack.c.b16 %v2309, %v2307
        %v2886 = vpack.c.b16 %v2310, %v2308
        %v2887 = vpack.c.b16 %v2313, %v2311
        %v2888 = vpack.c.b16 %v2314, %v2312
        %v2889 = vpack.c.b16 %v2317, %v2315
        %v2890 = vpack.c.b16 %v2318, %v2316
        %v2891 = vpack.c.b16 %v2321, %v2319
        %v2892 = vpack.c.b16 %v2322, %v2320
        %v2893 = vpack.c.b16 %v2325, %v2323
        %v2894 = vpack.c.b16 %v2326, %v2324
        %v2895 = vpack.c.b16 %v2329, %v2327
        %v2896 = vpack.c.b16 %v2330, %v2328
        %v2897 = vpack.c.b16 %v2333, %v2331
        %v2898 = vpack.c.b16 %v2334, %v2332
        %v2899 = vpack.c.b16 %v2337, %v2335
        %v2900 = vpack.c.b16 %v2338, %v2336
        %v2901 = vpack.c.b16 %v2341, %v2339
        %v2902 = vpack.c.b16 %v2342, %v2340
        %v2903 = vpack.c.b16 %v2345, %v2343
        %v2904 = vpack.c.b16 %v2346, %v2344
        %v2905 = vpack.c.b16 %v2349, %v2347
        %v2906 = vpack.c.b16 %v2350, %v2348
        %v2907 = vpack.c.b16 %v2353, %v2351
        %v2908 = vpack.c.b16 %v2354, %v2352
        %v2909 = vpack.c.b16 %v2357, %v2355
        %v2910 = vpack.c.b16 %v2358, %v2356
        %v2911 = vpack.c.b16 %v2361, %v2359
        %v2912 = vpack.c.b16 %v2362, %v2360
        %v2913 = vpack.c.b16 %v2365, %v2363
        %v2914 = vpack.c.b16 %v2366, %v2364
        %v2915 = vpack.c.b16 %v2369, %v2367
        %v2916 = vpack.c.b16 %v2370, %v2368
        %v2917 = vpack.c.b16 %v2373, %v2371
        %v2918 = vpack.c.b16 %v2374, %v2372
        %v2919 = vpack.c.b16 %v2377, %v2375
        %v2920 = vpack.c.b16 %v2378, %v2376
        %v2921 = vpack.c.b16 %v2381, %v2379
        %v2922 = vpack.c.b16 %v2382, %v2380
        %v2923 = vpack.c.b16 %v2385, %v2383
        %v2924 = vpack.c.b16 %v2386, %v2384
        %v2925 = vpack.c.b16 %v2389, %v2387
        %v2926 = vpack.c.b16 %v2390, %v2388
        %v2927 = vpack.c.b16 %v2393, %v2391
        %v2928 = vpack.c.b16 %v2394, %v2392
        %v2929 = vpack.c.b16 %v2397, %v2395
        %v2930 = vpack.c.b16 %v2398, %v2396
        %v2931 = vpack.c.b16 %v2401, %v2399
        %v2932 = vpack.c.b16 %v2402, %v2400
        %v2933 = vpack.c.b16 %v2405, %v2403
        %v2934 = vpack.c.b16 %v2406, %v2404
        %v2935 = vpack.c.b16 %v2409, %v2407
        %v2936 = vpack.c.b16 %v2410, %v2408
        %v2937 = vpack.c.b16 %v2413, %v2411
        %v2938 = vpack.c.b16 %v2414, %v2412
        %v2939 = vpack.c.b16 %v2417, %v2415
        %v2940 = vpack.c.b16 %v2418, %v2416
        %v2941 = vpack.c.b16 %v2421, %v2419
        %v2942 = vpack.c.b16 %v2422, %v2420
        %v2943 = vpack.c.b16 %v2425, %v2423
        %v2944 = vpack.c.b16 %v2426, %v2424
        %v2945 = vpack.c.b16 %v2429, %v2427
        %v2946 = vpack.c.b16 %v2430, %v2428
        %v2947 = vpack.c.b16 %v2433, %v2431
        %v2948 = vpack.c.b16 %v2434, %v2432
        %v2949 = vpack.c.b16 %v2437, %v2435
        %v2950 = vpack.c.b16 %v2438, %v2436
        %3463 = vmatpush.bf16.msra.mxu0 %v2453
        %3464 = vmatpush.bf16.msra.mxu0 %v2451
        %3465 = vmatpush.bf16.msra.mxu0 %v2449
        %3466 = vmatpush.bf16.msra.mxu0 %v2447
        %3467 = vmatpush.bf16.msra.mxu0 %v2445
        %3468 = vmatpush.bf16.msra.mxu0 %v2443
        %3469 = vmatpush.bf16.msra.mxu0 %v2441
        %3470 = vmatpush.bf16.msra.mxu0 %v2439
        %3471 = vmatmul.bf16.gmra.mxu0 %v839
        %v3472 = vpop.f32.mrf.mxu0
        %v3473 = vadd.f32 %v787, %v3472
        %v3474 = vpop.f32.mrf.mxu0
        %3475 = vdwg.mxu0
        %3476 = vmatpush.bf16.msra.mxu0 %v2469
        %3477 = vmatpush.bf16.msra.mxu0 %v2467
        %3478 = vmatpush.bf16.msra.mxu0 %v2465
        %3479 = vmatpush.bf16.msra.mxu0 %v2463
        %3480 = vmatpush.bf16.msra.mxu0 %v2461
        %3481 = vmatpush.bf16.msra.mxu0 %v2459
        %3482 = vmatpush.bf16.msra.mxu0 %v2457
        %3483 = vmatpush.bf16.msra.mxu0 %v2455
        %3484 = vmatmul.bf16.gmra.mxu0 %v840
        %v3485 = vpop.f32.mrf.mxu0
        %v3486 = vadd.f32 %v3473, %v3485
        %v3487 = vpop.f32.mrf.mxu0
        %3488 = vdwg.mxu0
        %3489 = vmatpush.bf16.msra.mxu0 %v2485
        %3490 = vmatpush.bf16.msra.mxu0 %v2483
        %3491 = vmatpush.bf16.msra.mxu0 %v2481
        %3492 = vmatpush.bf16.msra.mxu0 %v2479
        %3493 = vmatpush.bf16.msra.mxu0 %v2477
        %3494 = vmatpush.bf16.msra.mxu0 %v2475
        %3495 = vmatpush.bf16.msra.mxu0 %v2473
        %3496 = vmatpush.bf16.msra.mxu0 %v2471
        %3497 = vmatmul.bf16.gmra.mxu0 %v841
        %v3498 = vpop.f32.mrf.mxu0
        %v3499 = vadd.f32 %v3486, %v3498
        %v3500 = vpop.f32.mrf.mxu0
        %3501 = vdwg.mxu0
        %3502 = vmatpush.bf16.msra.mxu0 %v2501
        %3503 = vmatpush.bf16.msra.mxu0 %v2499
        %3504 = vmatpush.bf16.msra.mxu0 %v2497
        %3505 = vmatpush.bf16.msra.mxu0 %v2495
        %3506 = vmatpush.bf16.msra.mxu0 %v2493
        %3507 = vmatpush.bf16.msra.mxu0 %v2491
        %3508 = vmatpush.bf16.msra.mxu0 %v2489
        %3509 = vmatpush.bf16.msra.mxu0 %v2487
        %3510 = vmatmul.bf16.gmra.mxu0 %v842
        %v3511 = vpop.f32.mrf.mxu0
        %v3512 = vadd.f32 %v3499, %v3511
        %v3513 = vpop.f32.mrf.mxu0
        %3514 = vdwg.mxu0
        %3515 = vmatpush.bf16.msra.mxu0 %v2517
        %3516 = vmatpush.bf16.msra.mxu0 %v2515
        %3517 = vmatpush.bf16.msra.mxu0 %v2513
        %3518 = vmatpush.bf16.msra.mxu0 %v2511
        %3519 = vmatpush.bf16.msra.mxu0 %v2509
        %3520 = vmatpush.bf16.msra.mxu0 %v2507
        %3521 = vmatpush.bf16.msra.mxu0 %v2505
        %3522 = vmatpush.bf16.msra.mxu0 %v2503
        %3523 = vmatmul.bf16.gmra.mxu0 %v843
        %v3524 = vpop.f32.mrf.mxu0
        %v3525 = vadd.f32 %v3512, %v3524
        %v3526 = vpop.f32.mrf.mxu0
        %3527 = vdwg.mxu0
        %3528 = vmatpush.bf16.msra.mxu0 %v2533
        %3529 = vmatpush.bf16.msra.mxu0 %v2531
        %3530 = vmatpush.bf16.msra.mxu0 %v2529
        %3531 = vmatpush.bf16.msra.mxu0 %v2527
        %3532 = vmatpush.bf16.msra.mxu0 %v2525
        %3533 = vmatpush.bf16.msra.mxu0 %v2523
        %3534 = vmatpush.bf16.msra.mxu0 %v2521
        %3535 = vmatpush.bf16.msra.mxu0 %v2519
        %3536 = vmatmul.bf16.gmra.mxu0 %v844
        %v3537 = vpop.f32.mrf.mxu0
        %v3538 = vadd.f32 %v3525, %v3537
        %v3539 = vpop.f32.mrf.mxu0
        %3540 = vdwg.mxu0
        %3541 = vmatpush.bf16.msra.mxu0 %v2549
        %3542 = vmatpush.bf16.msra.mxu0 %v2547
        %3543 = vmatpush.bf16.msra.mxu0 %v2545
        %3544 = vmatpush.bf16.msra.mxu0 %v2543
        %3545 = vmatpush.bf16.msra.mxu0 %v2541
        %3546 = vmatpush.bf16.msra.mxu0 %v2539
        %3547 = vmatpush.bf16.msra.mxu0 %v2537
        %3548 = vmatpush.bf16.msra.mxu0 %v2535
        %3549 = vmatmul.bf16.gmra.mxu0 %v845
        %v3550 = vpop.f32.mrf.mxu0
        %v3551 = vadd.f32 %v3538, %v3550
        %v3552 = vpop.f32.mrf.mxu0
        %3553 = vdwg.mxu0
        %3554 = vmatpush.bf16.msra.mxu0 %v2565
        %3555 = vmatpush.bf16.msra.mxu0 %v2563
        %3556 = vmatpush.bf16.msra.mxu0 %v2561
        %3557 = vmatpush.bf16.msra.mxu0 %v2559
        %3558 = vmatpush.bf16.msra.mxu0 %v2557
        %3559 = vmatpush.bf16.msra.mxu0 %v2555
        %3560 = vmatpush.bf16.msra.mxu0 %v2553
        %3561 = vmatpush.bf16.msra.mxu0 %v2551
        %3562 = vmatmul.bf16.gmra.mxu0 %v846
        %v3563 = vpop.f32.mrf.mxu0
        %v3564 = vadd.f32 %v3551, %v3563
        %v3565 = vpop.f32.mrf.mxu0
        %3566 = vdwg.mxu0
        %3567 = vmatpush.bf16.msra.mxu0 %v2581
        %3568 = vmatpush.bf16.msra.mxu0 %v2579
        %3569 = vmatpush.bf16.msra.mxu0 %v2577
        %3570 = vmatpush.bf16.msra.mxu0 %v2575
        %3571 = vmatpush.bf16.msra.mxu0 %v2573
        %3572 = vmatpush.bf16.msra.mxu0 %v2571
        %3573 = vmatpush.bf16.msra.mxu0 %v2569
        %3574 = vmatpush.bf16.msra.mxu0 %v2567
        %3575 = vmatmul.bf16.gmra.mxu0 %v847
        %v3576 = vpop.f32.mrf.mxu0
        %v3577 = vadd.f32 %v3564, %v3576
        %v3578 = vpop.f32.mrf.mxu0
        %3579 = vdwg.mxu0
        %3580 = vmatpush.bf16.msra.mxu0 %v2597
        %3581 = vmatpush.bf16.msra.mxu0 %v2595
        %3582 = vmatpush.bf16.msra.mxu0 %v2593
        %3583 = vmatpush.bf16.msra.mxu0 %v2591
        %3584 = vmatpush.bf16.msra.mxu0 %v2589
        %3585 = vmatpush.bf16.msra.mxu0 %v2587
        %3586 = vmatpush.bf16.msra.mxu0 %v2585
        %3587 = vmatpush.bf16.msra.mxu0 %v2583
        %3588 = vmatmul.bf16.gmra.mxu0 %v848
        %v3589 = vpop.f32.mrf.mxu0
        %v3590 = vadd.f32 %v3577, %v3589
        %v3591 = vpop.f32.mrf.mxu0
        %3592 = vdwg.mxu0
        %3593 = vmatpush.bf16.msra.mxu0 %v2613
        %3594 = vmatpush.bf16.msra.mxu0 %v2611
        %3595 = vmatpush.bf16.msra.mxu0 %v2609
        %3596 = vmatpush.bf16.msra.mxu0 %v2607
        %3597 = vmatpush.bf16.msra.mxu0 %v2605
        %3598 = vmatpush.bf16.msra.mxu0 %v2603
        %3599 = vmatpush.bf16.msra.mxu0 %v2601
        %3600 = vmatpush.bf16.msra.mxu0 %v2599
        %3601 = vmatmul.bf16.gmra.mxu0 %v849
        %v3602 = vpop.f32.mrf.mxu0
        %v3603 = vadd.f32 %v3590, %v3602
        %v3604 = vpop.f32.mrf.mxu0
        %3605 = vdwg.mxu0
        %3606 = vmatpush.bf16.msra.mxu0 %v2629
        %3607 = vmatpush.bf16.msra.mxu0 %v2627
        %3608 = vmatpush.bf16.msra.mxu0 %v2625
        %3609 = vmatpush.bf16.msra.mxu0 %v2623
        %3610 = vmatpush.bf16.msra.mxu0 %v2621
        %3611 = vmatpush.bf16.msra.mxu0 %v2619
        %3612 = vmatpush.bf16.msra.mxu0 %v2617
        %3613 = vmatpush.bf16.msra.mxu0 %v2615
        %3614 = vmatmul.bf16.gmra.mxu0 %v850
        %v3615 = vpop.f32.mrf.mxu0
        %v3616 = vadd.f32 %v3603, %v3615
        %v3617 = vpop.f32.mrf.mxu0
        %3618 = vdwg.mxu0
        %3619 = vmatpush.bf16.msra.mxu0 %v2645
        %3620 = vmatpush.bf16.msra.mxu0 %v2643
        %3621 = vmatpush.bf16.msra.mxu0 %v2641
        %3622 = vmatpush.bf16.msra.mxu0 %v2639
        %3623 = vmatpush.bf16.msra.mxu0 %v2637
        %3624 = vmatpush.bf16.msra.mxu0 %v2635
        %3625 = vmatpush.bf16.msra.mxu0 %v2633
        %3626 = vmatpush.bf16.msra.mxu0 %v2631
        %3627 = vmatmul.bf16.gmra.mxu0 %v851
        %v3628 = vpop.f32.mrf.mxu0
        %v3629 = vadd.f32 %v3616, %v3628
        %v3630 = vpop.f32.mrf.mxu0
        %3631 = vdwg.mxu0
        %3632 = vmatpush.bf16.msra.mxu0 %v2661
        %3633 = vmatpush.bf16.msra.mxu0 %v2659
        %3634 = vmatpush.bf16.msra.mxu0 %v2657
        %3635 = vmatpush.bf16.msra.mxu0 %v2655
        %3636 = vmatpush.bf16.msra.mxu0 %v2653
        %3637 = vmatpush.bf16.msra.mxu0 %v2651
        %3638 = vmatpush.bf16.msra.mxu0 %v2649
        %3639 = vmatpush.bf16.msra.mxu0 %v2647
        %3640 = vmatmul.bf16.gmra.mxu0 %v852
        %v3641 = vpop.f32.mrf.mxu0
        %v3642 = vadd.f32 %v3629, %v3641
        %v3643 = vpop.f32.mrf.mxu0
        %3644 = vdwg.mxu0
        %3645 = vmatpush.bf16.msra.mxu0 %v2677
        %3646 = vmatpush.bf16.msra.mxu0 %v2675
        %3647 = vmatpush.bf16.msra.mxu0 %v2673
        %3648 = vmatpush.bf16.msra.mxu0 %v2671
        %3649 = vmatpush.bf16.msra.mxu0 %v2669
        %3650 = vmatpush.bf16.msra.mxu0 %v2667
        %3651 = vmatpush.bf16.msra.mxu0 %v2665
        %3652 = vmatpush.bf16.msra.mxu0 %v2663
        %3653 = vmatmul.bf16.gmra.mxu0 %v853
        %v3654 = vpop.f32.mrf.mxu0
        %v3655 = vadd.f32 %v3642, %v3654
        %v3656 = vpop.f32.mrf.mxu0
        %3657 = vdwg.mxu0
        %3658 = vmatpush.bf16.msra.mxu0 %v2693
        %3659 = vmatpush.bf16.msra.mxu0 %v2691
        %3660 = vmatpush.bf16.msra.mxu0 %v2689
        %3661 = vmatpush.bf16.msra.mxu0 %v2687
        %3662 = vmatpush.bf16.msra.mxu0 %v2685
        %3663 = vmatpush.bf16.msra.mxu0 %v2683
        %3664 = vmatpush.bf16.msra.mxu0 %v2681
        %3665 = vmatpush.bf16.msra.mxu0 %v2679
        %3666 = vmatmul.bf16.gmra.mxu0 %v854
        %v3667 = vpop.f32.mrf.mxu0
        %v3668 = vadd.f32 %v3655, %v3667
        %v3669 = vpop.f32.mrf.mxu0
        %3670 = vdwg.mxu0
        %3671 = vmatpush.bf16.msra.mxu0 %v2709
        %3672 = vmatpush.bf16.msra.mxu0 %v2707
        %3673 = vmatpush.bf16.msra.mxu0 %v2705
        %3674 = vmatpush.bf16.msra.mxu0 %v2703
        %3675 = vmatpush.bf16.msra.mxu0 %v2701
        %3676 = vmatpush.bf16.msra.mxu0 %v2699
        %3677 = vmatpush.bf16.msra.mxu0 %v2697
        %3678 = vmatpush.bf16.msra.mxu0 %v2695
        %3679 = vmatmul.bf16.gmra.mxu0 %v855
        %v3680 = vpop.f32.mrf.mxu0
        %v3681 = vadd.f32 %v3668, %v3680
        %v3682 = vpop.f32.mrf.mxu0
        %3683 = vdwg.mxu0
        %3684 = vmatpush.bf16.msra.mxu0 %v2725
        %3685 = vmatpush.bf16.msra.mxu0 %v2723
        %3686 = vmatpush.bf16.msra.mxu0 %v2721
        %3687 = vmatpush.bf16.msra.mxu0 %v2719
        %3688 = vmatpush.bf16.msra.mxu0 %v2717
        %3689 = vmatpush.bf16.msra.mxu0 %v2715
        %3690 = vmatpush.bf16.msra.mxu0 %v2713
        %3691 = vmatpush.bf16.msra.mxu0 %v2711
        %3692 = vmatmul.bf16.gmra.mxu0 %v856
        %v3693 = vpop.f32.mrf.mxu0
        %v3694 = vadd.f32 %v3681, %v3693
        %v3695 = vpop.f32.mrf.mxu0
        %3696 = vdwg.mxu0
        %3697 = vmatpush.bf16.msra.mxu0 %v2741
        %3698 = vmatpush.bf16.msra.mxu0 %v2739
        %3699 = vmatpush.bf16.msra.mxu0 %v2737
        %3700 = vmatpush.bf16.msra.mxu0 %v2735
        %3701 = vmatpush.bf16.msra.mxu0 %v2733
        %3702 = vmatpush.bf16.msra.mxu0 %v2731
        %3703 = vmatpush.bf16.msra.mxu0 %v2729
        %3704 = vmatpush.bf16.msra.mxu0 %v2727
        %3705 = vmatmul.bf16.gmra.mxu0 %v857
        %v3706 = vpop.f32.mrf.mxu0
        %v3707 = vadd.f32 %v3694, %v3706
        %v3708 = vpop.f32.mrf.mxu0
        %3709 = vdwg.mxu0
        %3710 = vmatpush.bf16.msra.mxu0 %v2757
        %3711 = vmatpush.bf16.msra.mxu0 %v2755
        %3712 = vmatpush.bf16.msra.mxu0 %v2753
        %3713 = vmatpush.bf16.msra.mxu0 %v2751
        %3714 = vmatpush.bf16.msra.mxu0 %v2749
        %3715 = vmatpush.bf16.msra.mxu0 %v2747
        %3716 = vmatpush.bf16.msra.mxu0 %v2745
        %3717 = vmatpush.bf16.msra.mxu0 %v2743
        %3718 = vmatmul.bf16.gmra.mxu0 %v858
        %v3719 = vpop.f32.mrf.mxu0
        %v3720 = vadd.f32 %v3707, %v3719
        %v3721 = vpop.f32.mrf.mxu0
        %3722 = vdwg.mxu0
        %3723 = vmatpush.bf16.msra.mxu0 %v2773
        %3724 = vmatpush.bf16.msra.mxu0 %v2771
        %3725 = vmatpush.bf16.msra.mxu0 %v2769
        %3726 = vmatpush.bf16.msra.mxu0 %v2767
        %3727 = vmatpush.bf16.msra.mxu0 %v2765
        %3728 = vmatpush.bf16.msra.mxu0 %v2763
        %3729 = vmatpush.bf16.msra.mxu0 %v2761
        %3730 = vmatpush.bf16.msra.mxu0 %v2759
        %3731 = vmatmul.bf16.gmra.mxu0 %v859
        %v3732 = vpop.f32.mrf.mxu0
        %v3733 = vadd.f32 %v3720, %v3732
        %v3734 = vpop.f32.mrf.mxu0
        %3735 = vdwg.mxu0
        %3736 = vmatpush.bf16.msra.mxu0 %v2789
        %3737 = vmatpush.bf16.msra.mxu0 %v2787
        %3738 = vmatpush.bf16.msra.mxu0 %v2785
        %3739 = vmatpush.bf16.msra.mxu0 %v2783
        %3740 = vmatpush.bf16.msra.mxu0 %v2781
        %3741 = vmatpush.bf16.msra.mxu0 %v2779
        %3742 = vmatpush.bf16.msra.mxu0 %v2777
        %3743 = vmatpush.bf16.msra.mxu0 %v2775
        %3744 = vmatmul.bf16.gmra.mxu0 %v860
        %v3745 = vpop.f32.mrf.mxu0
        %v3746 = vadd.f32 %v3733, %v3745
        %v3747 = vpop.f32.mrf.mxu0
        %3748 = vdwg.mxu0
        %3749 = vmatpush.bf16.msra.mxu0 %v2805
        %3750 = vmatpush.bf16.msra.mxu0 %v2803
        %3751 = vmatpush.bf16.msra.mxu0 %v2801
        %3752 = vmatpush.bf16.msra.mxu0 %v2799
        %3753 = vmatpush.bf16.msra.mxu0 %v2797
        %3754 = vmatpush.bf16.msra.mxu0 %v2795
        %3755 = vmatpush.bf16.msra.mxu0 %v2793
        %3756 = vmatpush.bf16.msra.mxu0 %v2791
        %3757 = vmatmul.bf16.gmra.mxu0 %v861
        %v3758 = vpop.f32.mrf.mxu0
        %v3759 = vadd.f32 %v3746, %v3758
        %v3760 = vpop.f32.mrf.mxu0
        %3761 = vdwg.mxu0
        %3762 = vmatpush.bf16.msra.mxu0 %v2821
        %3763 = vmatpush.bf16.msra.mxu0 %v2819
        %3764 = vmatpush.bf16.msra.mxu0 %v2817
        %3765 = vmatpush.bf16.msra.mxu0 %v2815
        %3766 = vmatpush.bf16.msra.mxu0 %v2813
        %3767 = vmatpush.bf16.msra.mxu0 %v2811
        %3768 = vmatpush.bf16.msra.mxu0 %v2809
        %3769 = vmatpush.bf16.msra.mxu0 %v2807
        %3770 = vmatmul.bf16.gmra.mxu0 %v862
        %v3771 = vpop.f32.mrf.mxu0
        %v3772 = vadd.f32 %v3759, %v3771
        %v3773 = vpop.f32.mrf.mxu0
        %3774 = vdwg.mxu0
        %3775 = vmatpush.bf16.msra.mxu0 %v2837
        %3776 = vmatpush.bf16.msra.mxu0 %v2835
        %3777 = vmatpush.bf16.msra.mxu0 %v2833
        %3778 = vmatpush.bf16.msra.mxu0 %v2831
        %3779 = vmatpush.bf16.msra.mxu0 %v2829
        %3780 = vmatpush.bf16.msra.mxu0 %v2827
        %3781 = vmatpush.bf16.msra.mxu0 %v2825
        %3782 = vmatpush.bf16.msra.mxu0 %v2823
        %3783 = vmatmul.bf16.gmra.mxu0 %v863
        %v3784 = vpop.f32.mrf.mxu0
        %v3785 = vadd.f32 %v3772, %v3784
        %v3786 = vpop.f32.mrf.mxu0
        %3787 = vdwg.mxu0
        %3788 = vmatpush.bf16.msra.mxu0 %v2853
        %3789 = vmatpush.bf16.msra.mxu0 %v2851
        %3790 = vmatpush.bf16.msra.mxu0 %v2849
        %3791 = vmatpush.bf16.msra.mxu0 %v2847
        %3792 = vmatpush.bf16.msra.mxu0 %v2845
        %3793 = vmatpush.bf16.msra.mxu0 %v2843
        %3794 = vmatpush.bf16.msra.mxu0 %v2841
        %3795 = vmatpush.bf16.msra.mxu0 %v2839
        %3796 = vmatmul.bf16.gmra.mxu0 %v864
        %v3797 = vpop.f32.mrf.mxu0
        %v3798 = vadd.f32 %v3785, %v3797
        %v3799 = vpop.f32.mrf.mxu0
        %3800 = vdwg.mxu0
        %3801 = vmatpush.bf16.msra.mxu0 %v2869
        %3802 = vmatpush.bf16.msra.mxu0 %v2867
        %3803 = vmatpush.bf16.msra.mxu0 %v2865
        %3804 = vmatpush.bf16.msra.mxu0 %v2863
        %3805 = vmatpush.bf16.msra.mxu0 %v2861
        %3806 = vmatpush.bf16.msra.mxu0 %v2859
        %3807 = vmatpush.bf16.msra.mxu0 %v2857
        %3808 = vmatpush.bf16.msra.mxu0 %v2855
        %3809 = vmatmul.bf16.gmra.mxu0 %v865
        %v3810 = vpop.f32.mrf.mxu0
        %v3811 = vadd.f32 %v3798, %v3810
        %v3812 = vpop.f32.mrf.mxu0
        %3813 = vdwg.mxu0
        %3814 = vmatpush.bf16.msra.mxu0 %v2885
        %3815 = vmatpush.bf16.msra.mxu0 %v2883
        %3816 = vmatpush.bf16.msra.mxu0 %v2881
        %3817 = vmatpush.bf16.msra.mxu0 %v2879
        %3818 = vmatpush.bf16.msra.mxu0 %v2877
        %3819 = vmatpush.bf16.msra.mxu0 %v2875
        %3820 = vmatpush.bf16.msra.mxu0 %v2873
        %3821 = vmatpush.bf16.msra.mxu0 %v2871
        %3822 = vmatmul.bf16.gmra.mxu0 %v866
        %v3823 = vpop.f32.mrf.mxu0
        %v3824 = vadd.f32 %v3811, %v3823
        %v3825 = vpop.f32.mrf.mxu0
        %3826 = vdwg.mxu0
        %3827 = vmatpush.bf16.msra.mxu0 %v2901
        %3828 = vmatpush.bf16.msra.mxu0 %v2899
        %3829 = vmatpush.bf16.msra.mxu0 %v2897
        %3830 = vmatpush.bf16.msra.mxu0 %v2895
        %3831 = vmatpush.bf16.msra.mxu0 %v2893
        %3832 = vmatpush.bf16.msra.mxu0 %v2891
        %3833 = vmatpush.bf16.msra.mxu0 %v2889
        %3834 = vmatpush.bf16.msra.mxu0 %v2887
        %3835 = vmatmul.bf16.gmra.mxu0 %v867
        %v3836 = vpop.f32.mrf.mxu0
        %v3837 = vadd.f32 %v3824, %v3836
        %v3838 = vpop.f32.mrf.mxu0
        %3839 = vdwg.mxu0
        %3840 = vmatpush.bf16.msra.mxu0 %v2917
        %3841 = vmatpush.bf16.msra.mxu0 %v2915
        %3842 = vmatpush.bf16.msra.mxu0 %v2913
        %3843 = vmatpush.bf16.msra.mxu0 %v2911
        %3844 = vmatpush.bf16.msra.mxu0 %v2909
        %3845 = vmatpush.bf16.msra.mxu0 %v2907
        %3846 = vmatpush.bf16.msra.mxu0 %v2905
        %3847 = vmatpush.bf16.msra.mxu0 %v2903
        %3848 = vmatmul.bf16.gmra.mxu0 %v868
        %v3849 = vpop.f32.mrf.mxu0
        %v3850 = vadd.f32 %v3837, %v3849
        %v3851 = vpop.f32.mrf.mxu0
        %3852 = vdwg.mxu0
        %3853 = vmatpush.bf16.msra.mxu0 %v2933
        %3854 = vmatpush.bf16.msra.mxu0 %v2931
        %3855 = vmatpush.bf16.msra.mxu0 %v2929
        %3856 = vmatpush.bf16.msra.mxu0 %v2927
        %3857 = vmatpush.bf16.msra.mxu0 %v2925
        %3858 = vmatpush.bf16.msra.mxu0 %v2923
        %3859 = vmatpush.bf16.msra.mxu0 %v2921
        %3860 = vmatpush.bf16.msra.mxu0 %v2919
        %3861 = vmatmul.bf16.gmra.mxu0 %v869
        %v3862 = vpop.f32.mrf.mxu0
        %v3863 = vadd.f32 %v3850, %v3862
        %v3864 = vpop.f32.mrf.mxu0
        %3865 = vdwg.mxu0
        %3866 = vmatpush.bf16.msra.mxu0 %v2949
        %3867 = vmatpush.bf16.msra.mxu0 %v2947
        %3868 = vmatpush.bf16.msra.mxu0 %v2945
        %3869 = vmatpush.bf16.msra.mxu0 %v2943
        %3870 = vmatpush.bf16.msra.mxu0 %v2941
        %3871 = vmatpush.bf16.msra.mxu0 %v2939
        %3872 = vmatpush.bf16.msra.mxu0 %v2937
        %3873 = vmatpush.bf16.msra.mxu0 %v2935
        %3874 = vmatmul.bf16.gmra.mxu0 %v870
        %v3875 = vpop.f32.mrf.mxu0
        %v3876 = vadd.f32 %v3863, %v3875
        %v3877 = vpop.f32.mrf.mxu0
        %3878 = vdwg.mxu0
        %3879 = vmatpush.bf16.msra.mxu0 %v2454
        %3880 = vmatpush.bf16.msra.mxu0 %v2452
        %3881 = vmatpush.bf16.msra.mxu0 %v2450
        %3882 = vmatpush.bf16.msra.mxu0 %v2448
        %3883 = vmatpush.bf16.msra.mxu0 %v2446
        %3884 = vmatpush.bf16.msra.mxu0 %v2444
        %3885 = vmatpush.bf16.msra.mxu0 %v2442
        %3886 = vmatpush.bf16.msra.mxu0 %v2440
        %3887 = vmatmul.bf16.gmra.mxu0 %v839
        %v3888 = vpop.f32.mrf.mxu0
        %v3889 = vadd.f32 %v788, %v3888
        %v3890 = vpop.f32.mrf.mxu0
        %3891 = vdwg.mxu0
        %3892 = vmatpush.bf16.msra.mxu0 %v2470
        %3893 = vmatpush.bf16.msra.mxu0 %v2468
        %3894 = vmatpush.bf16.msra.mxu0 %v2466
        %3895 = vmatpush.bf16.msra.mxu0 %v2464
        %3896 = vmatpush.bf16.msra.mxu0 %v2462
        %3897 = vmatpush.bf16.msra.mxu0 %v2460
        %3898 = vmatpush.bf16.msra.mxu0 %v2458
        %3899 = vmatpush.bf16.msra.mxu0 %v2456
        %3900 = vmatmul.bf16.gmra.mxu0 %v840
        %v3901 = vpop.f32.mrf.mxu0
        %v3902 = vadd.f32 %v3889, %v3901
        %v3903 = vpop.f32.mrf.mxu0
        %3904 = vdwg.mxu0
        %3905 = vmatpush.bf16.msra.mxu0 %v2486
        %3906 = vmatpush.bf16.msra.mxu0 %v2484
        %3907 = vmatpush.bf16.msra.mxu0 %v2482
        %3908 = vmatpush.bf16.msra.mxu0 %v2480
        %3909 = vmatpush.bf16.msra.mxu0 %v2478
        %3910 = vmatpush.bf16.msra.mxu0 %v2476
        %3911 = vmatpush.bf16.msra.mxu0 %v2474
        %3912 = vmatpush.bf16.msra.mxu0 %v2472
        %3913 = vmatmul.bf16.gmra.mxu0 %v841
        %v3914 = vpop.f32.mrf.mxu0
        %v3915 = vadd.f32 %v3902, %v3914
        %v3916 = vpop.f32.mrf.mxu0
        %3917 = vdwg.mxu0
        %3918 = vmatpush.bf16.msra.mxu0 %v2502
        %3919 = vmatpush.bf16.msra.mxu0 %v2500
        %3920 = vmatpush.bf16.msra.mxu0 %v2498
        %3921 = vmatpush.bf16.msra.mxu0 %v2496
        %3922 = vmatpush.bf16.msra.mxu0 %v2494
        %3923 = vmatpush.bf16.msra.mxu0 %v2492
        %3924 = vmatpush.bf16.msra.mxu0 %v2490
        %3925 = vmatpush.bf16.msra.mxu0 %v2488
        %3926 = vmatmul.bf16.gmra.mxu0 %v842
        %v3927 = vpop.f32.mrf.mxu0
        %v3928 = vadd.f32 %v3915, %v3927
        %v3929 = vpop.f32.mrf.mxu0
        %3930 = vdwg.mxu0
        %3931 = vmatpush.bf16.msra.mxu0 %v2518
        %3932 = vmatpush.bf16.msra.mxu0 %v2516
        %3933 = vmatpush.bf16.msra.mxu0 %v2514
        %3934 = vmatpush.bf16.msra.mxu0 %v2512
        %3935 = vmatpush.bf16.msra.mxu0 %v2510
        %3936 = vmatpush.bf16.msra.mxu0 %v2508
        %3937 = vmatpush.bf16.msra.mxu0 %v2506
        %3938 = vmatpush.bf16.msra.mxu0 %v2504
        %3939 = vmatmul.bf16.gmra.mxu0 %v843
        %v3940 = vpop.f32.mrf.mxu0
        %v3941 = vadd.f32 %v3928, %v3940
        %v3942 = vpop.f32.mrf.mxu0
        %3943 = vdwg.mxu0
        %3944 = vmatpush.bf16.msra.mxu0 %v2534
        %3945 = vmatpush.bf16.msra.mxu0 %v2532
        %3946 = vmatpush.bf16.msra.mxu0 %v2530
        %3947 = vmatpush.bf16.msra.mxu0 %v2528
        %3948 = vmatpush.bf16.msra.mxu0 %v2526
        %3949 = vmatpush.bf16.msra.mxu0 %v2524
        %3950 = vmatpush.bf16.msra.mxu0 %v2522
        %3951 = vmatpush.bf16.msra.mxu0 %v2520
        %3952 = vmatmul.bf16.gmra.mxu0 %v844
        %v3953 = vpop.f32.mrf.mxu0
        %v3954 = vadd.f32 %v3941, %v3953
        %v3955 = vpop.f32.mrf.mxu0
        %3956 = vdwg.mxu0
        %3957 = vmatpush.bf16.msra.mxu0 %v2550
        %3958 = vmatpush.bf16.msra.mxu0 %v2548
        %3959 = vmatpush.bf16.msra.mxu0 %v2546
        %3960 = vmatpush.bf16.msra.mxu0 %v2544
        %3961 = vmatpush.bf16.msra.mxu0 %v2542
        %3962 = vmatpush.bf16.msra.mxu0 %v2540
        %3963 = vmatpush.bf16.msra.mxu0 %v2538
        %3964 = vmatpush.bf16.msra.mxu0 %v2536
        %3965 = vmatmul.bf16.gmra.mxu0 %v845
        %v3966 = vpop.f32.mrf.mxu0
        %v3967 = vadd.f32 %v3954, %v3966
        %v3968 = vpop.f32.mrf.mxu0
        %3969 = vdwg.mxu0
        %3970 = vmatpush.bf16.msra.mxu0 %v2566
        %3971 = vmatpush.bf16.msra.mxu0 %v2564
        %3972 = vmatpush.bf16.msra.mxu0 %v2562
        %3973 = vmatpush.bf16.msra.mxu0 %v2560
        %3974 = vmatpush.bf16.msra.mxu0 %v2558
        %3975 = vmatpush.bf16.msra.mxu0 %v2556
        %3976 = vmatpush.bf16.msra.mxu0 %v2554
        %3977 = vmatpush.bf16.msra.mxu0 %v2552
        %3978 = vmatmul.bf16.gmra.mxu0 %v846
        %v3979 = vpop.f32.mrf.mxu0
        %v3980 = vadd.f32 %v3967, %v3979
        %v3981 = vpop.f32.mrf.mxu0
        %3982 = vdwg.mxu0
        %3983 = vmatpush.bf16.msra.mxu0 %v2582
        %3984 = vmatpush.bf16.msra.mxu0 %v2580
        %3985 = vmatpush.bf16.msra.mxu0 %v2578
        %3986 = vmatpush.bf16.msra.mxu0 %v2576
        %3987 = vmatpush.bf16.msra.mxu0 %v2574
        %3988 = vmatpush.bf16.msra.mxu0 %v2572
        %3989 = vmatpush.bf16.msra.mxu0 %v2570
        %3990 = vmatpush.bf16.msra.mxu0 %v2568
        %3991 = vmatmul.bf16.gmra.mxu0 %v847
        %v3992 = vpop.f32.mrf.mxu0
        %v3993 = vadd.f32 %v3980, %v3992
        %v3994 = vpop.f32.mrf.mxu0
        %3995 = vdwg.mxu0
        %3996 = vmatpush.bf16.msra.mxu0 %v2598
        %3997 = vmatpush.bf16.msra.mxu0 %v2596
        %3998 = vmatpush.bf16.msra.mxu0 %v2594
        %3999 = vmatpush.bf16.msra.mxu0 %v2592
        %4000 = vmatpush.bf16.msra.mxu0 %v2590
        %4001 = vmatpush.bf16.msra.mxu0 %v2588
        %4002 = vmatpush.bf16.msra.mxu0 %v2586
        %4003 = vmatpush.bf16.msra.mxu0 %v2584
        %4004 = vmatmul.bf16.gmra.mxu0 %v848
        %v4005 = vpop.f32.mrf.mxu0
        %v4006 = vadd.f32 %v3993, %v4005
        %v4007 = vpop.f32.mrf.mxu0
        %4008 = vdwg.mxu0
        %4009 = vmatpush.bf16.msra.mxu0 %v2614
        %4010 = vmatpush.bf16.msra.mxu0 %v2612
        %4011 = vmatpush.bf16.msra.mxu0 %v2610
        %4012 = vmatpush.bf16.msra.mxu0 %v2608
        %4013 = vmatpush.bf16.msra.mxu0 %v2606
        %4014 = vmatpush.bf16.msra.mxu0 %v2604
        %4015 = vmatpush.bf16.msra.mxu0 %v2602
        %4016 = vmatpush.bf16.msra.mxu0 %v2600
        %4017 = vmatmul.bf16.gmra.mxu0 %v849
        %v4018 = vpop.f32.mrf.mxu0
        %v4019 = vadd.f32 %v4006, %v4018
        %v4020 = vpop.f32.mrf.mxu0
        %4021 = vdwg.mxu0
        %4022 = vmatpush.bf16.msra.mxu0 %v2630
        %4023 = vmatpush.bf16.msra.mxu0 %v2628
        %4024 = vmatpush.bf16.msra.mxu0 %v2626
        %4025 = vmatpush.bf16.msra.mxu0 %v2624
        %4026 = vmatpush.bf16.msra.mxu0 %v2622
        %4027 = vmatpush.bf16.msra.mxu0 %v2620
        %4028 = vmatpush.bf16.msra.mxu0 %v2618
        %4029 = vmatpush.bf16.msra.mxu0 %v2616
        %4030 = vmatmul.bf16.gmra.mxu0 %v850
        %v4031 = vpop.f32.mrf.mxu0
        %v4032 = vadd.f32 %v4019, %v4031
        %v4033 = vpop.f32.mrf.mxu0
        %4034 = vdwg.mxu0
        %4035 = vmatpush.bf16.msra.mxu0 %v2646
        %4036 = vmatpush.bf16.msra.mxu0 %v2644
        %4037 = vmatpush.bf16.msra.mxu0 %v2642
        %4038 = vmatpush.bf16.msra.mxu0 %v2640
        %4039 = vmatpush.bf16.msra.mxu0 %v2638
        %4040 = vmatpush.bf16.msra.mxu0 %v2636
        %4041 = vmatpush.bf16.msra.mxu0 %v2634
        %4042 = vmatpush.bf16.msra.mxu0 %v2632
        %4043 = vmatmul.bf16.gmra.mxu0 %v851
        %v4044 = vpop.f32.mrf.mxu0
        %v4045 = vadd.f32 %v4032, %v4044
        %v4046 = vpop.f32.mrf.mxu0
        %4047 = vdwg.mxu0
        %4048 = vmatpush.bf16.msra.mxu0 %v2662
        %4049 = vmatpush.bf16.msra.mxu0 %v2660
        %4050 = vmatpush.bf16.msra.mxu0 %v2658
        %4051 = vmatpush.bf16.msra.mxu0 %v2656
        %4052 = vmatpush.bf16.msra.mxu0 %v2654
        %4053 = vmatpush.bf16.msra.mxu0 %v2652
        %4054 = vmatpush.bf16.msra.mxu0 %v2650
        %4055 = vmatpush.bf16.msra.mxu0 %v2648
        %4056 = vmatmul.bf16.gmra.mxu0 %v852
        %v4057 = vpop.f32.mrf.mxu0
        %v4058 = vadd.f32 %v4045, %v4057
        %v4059 = vpop.f32.mrf.mxu0
        %4060 = vdwg.mxu0
        %4061 = vmatpush.bf16.msra.mxu0 %v2678
        %4062 = vmatpush.bf16.msra.mxu0 %v2676
        %4063 = vmatpush.bf16.msra.mxu0 %v2674
        %4064 = vmatpush.bf16.msra.mxu0 %v2672
        %4065 = vmatpush.bf16.msra.mxu0 %v2670
        %4066 = vmatpush.bf16.msra.mxu0 %v2668
        %4067 = vmatpush.bf16.msra.mxu0 %v2666
        %4068 = vmatpush.bf16.msra.mxu0 %v2664
        %4069 = vmatmul.bf16.gmra.mxu0 %v853
        %v4070 = vpop.f32.mrf.mxu0
        %v4071 = vadd.f32 %v4058, %v4070
        %v4072 = vpop.f32.mrf.mxu0
        %4073 = vdwg.mxu0
        %4074 = vmatpush.bf16.msra.mxu0 %v2694
        %4075 = vmatpush.bf16.msra.mxu0 %v2692
        %4076 = vmatpush.bf16.msra.mxu0 %v2690
        %4077 = vmatpush.bf16.msra.mxu0 %v2688
        %4078 = vmatpush.bf16.msra.mxu0 %v2686
        %4079 = vmatpush.bf16.msra.mxu0 %v2684
        %4080 = vmatpush.bf16.msra.mxu0 %v2682
        %4081 = vmatpush.bf16.msra.mxu0 %v2680
        %4082 = vmatmul.bf16.gmra.mxu0 %v854
        %v4083 = vpop.f32.mrf.mxu0
        %v4084 = vadd.f32 %v4071, %v4083
        %v4085 = vpop.f32.mrf.mxu0
        %4086 = vdwg.mxu0
        %4087 = vmatpush.bf16.msra.mxu0 %v2710
        %4088 = vmatpush.bf16.msra.mxu0 %v2708
        %4089 = vmatpush.bf16.msra.mxu0 %v2706
        %4090 = vmatpush.bf16.msra.mxu0 %v2704
        %4091 = vmatpush.bf16.msra.mxu0 %v2702
        %4092 = vmatpush.bf16.msra.mxu0 %v2700
        %4093 = vmatpush.bf16.msra.mxu0 %v2698
        %4094 = vmatpush.bf16.msra.mxu0 %v2696
        %4095 = vmatmul.bf16.gmra.mxu0 %v855
        %v4096 = vpop.f32.mrf.mxu0
        %v4097 = vadd.f32 %v4084, %v4096
        %v4098 = vpop.f32.mrf.mxu0
        %4099 = vdwg.mxu0
        %4100 = vmatpush.bf16.msra.mxu0 %v2726
        %4101 = vmatpush.bf16.msra.mxu0 %v2724
        %4102 = vmatpush.bf16.msra.mxu0 %v2722
        %4103 = vmatpush.bf16.msra.mxu0 %v2720
        %4104 = vmatpush.bf16.msra.mxu0 %v2718
        %4105 = vmatpush.bf16.msra.mxu0 %v2716
        %4106 = vmatpush.bf16.msra.mxu0 %v2714
        %4107 = vmatpush.bf16.msra.mxu0 %v2712
        %4108 = vmatmul.bf16.gmra.mxu0 %v856
        %v4109 = vpop.f32.mrf.mxu0
        %v4110 = vadd.f32 %v4097, %v4109
        %v4111 = vpop.f32.mrf.mxu0
        %4112 = vdwg.mxu0
        %4113 = vmatpush.bf16.msra.mxu0 %v2742
        %4114 = vmatpush.bf16.msra.mxu0 %v2740
        %4115 = vmatpush.bf16.msra.mxu0 %v2738
        %4116 = vmatpush.bf16.msra.mxu0 %v2736
        %4117 = vmatpush.bf16.msra.mxu0 %v2734
        %4118 = vmatpush.bf16.msra.mxu0 %v2732
        %4119 = vmatpush.bf16.msra.mxu0 %v2730
        %4120 = vmatpush.bf16.msra.mxu0 %v2728
        %4121 = vmatmul.bf16.gmra.mxu0 %v857
        %v4122 = vpop.f32.mrf.mxu0
        %v4123 = vadd.f32 %v4110, %v4122
        %v4124 = vpop.f32.mrf.mxu0
        %4125 = vdwg.mxu0
        %4126 = vmatpush.bf16.msra.mxu0 %v2758
        %4127 = vmatpush.bf16.msra.mxu0 %v2756
        %4128 = vmatpush.bf16.msra.mxu0 %v2754
        %4129 = vmatpush.bf16.msra.mxu0 %v2752
        %4130 = vmatpush.bf16.msra.mxu0 %v2750
        %4131 = vmatpush.bf16.msra.mxu0 %v2748
        %4132 = vmatpush.bf16.msra.mxu0 %v2746
        %4133 = vmatpush.bf16.msra.mxu0 %v2744
        %4134 = vmatmul.bf16.gmra.mxu0 %v858
        %v4135 = vpop.f32.mrf.mxu0
        %v4136 = vadd.f32 %v4123, %v4135
        %v4137 = vpop.f32.mrf.mxu0
        %4138 = vdwg.mxu0
        %4139 = vmatpush.bf16.msra.mxu0 %v2774
        %4140 = vmatpush.bf16.msra.mxu0 %v2772
        %4141 = vmatpush.bf16.msra.mxu0 %v2770
        %4142 = vmatpush.bf16.msra.mxu0 %v2768
        %4143 = vmatpush.bf16.msra.mxu0 %v2766
        %4144 = vmatpush.bf16.msra.mxu0 %v2764
        %4145 = vmatpush.bf16.msra.mxu0 %v2762
        %4146 = vmatpush.bf16.msra.mxu0 %v2760
        %4147 = vmatmul.bf16.gmra.mxu0 %v859
        %v4148 = vpop.f32.mrf.mxu0
        %v4149 = vadd.f32 %v4136, %v4148
        %v4150 = vpop.f32.mrf.mxu0
        %4151 = vdwg.mxu0
        %4152 = vmatpush.bf16.msra.mxu0 %v2790
        %4153 = vmatpush.bf16.msra.mxu0 %v2788
        %4154 = vmatpush.bf16.msra.mxu0 %v2786
        %4155 = vmatpush.bf16.msra.mxu0 %v2784
        %4156 = vmatpush.bf16.msra.mxu0 %v2782
        %4157 = vmatpush.bf16.msra.mxu0 %v2780
        %4158 = vmatpush.bf16.msra.mxu0 %v2778
        %4159 = vmatpush.bf16.msra.mxu0 %v2776
        %4160 = vmatmul.bf16.gmra.mxu0 %v860
        %v4161 = vpop.f32.mrf.mxu0
        %v4162 = vadd.f32 %v4149, %v4161
        %v4163 = vpop.f32.mrf.mxu0
        %4164 = vdwg.mxu0
        %4165 = vmatpush.bf16.msra.mxu0 %v2806
        %4166 = vmatpush.bf16.msra.mxu0 %v2804
        %4167 = vmatpush.bf16.msra.mxu0 %v2802
        %4168 = vmatpush.bf16.msra.mxu0 %v2800
        %4169 = vmatpush.bf16.msra.mxu0 %v2798
        %4170 = vmatpush.bf16.msra.mxu0 %v2796
        %4171 = vmatpush.bf16.msra.mxu0 %v2794
        %4172 = vmatpush.bf16.msra.mxu0 %v2792
        %4173 = vmatmul.bf16.gmra.mxu0 %v861
        %v4174 = vpop.f32.mrf.mxu0
        %v4175 = vadd.f32 %v4162, %v4174
        %v4176 = vpop.f32.mrf.mxu0
        %4177 = vdwg.mxu0
        %4178 = vmatpush.bf16.msra.mxu0 %v2822
        %4179 = vmatpush.bf16.msra.mxu0 %v2820
        %4180 = vmatpush.bf16.msra.mxu0 %v2818
        %4181 = vmatpush.bf16.msra.mxu0 %v2816
        %4182 = vmatpush.bf16.msra.mxu0 %v2814
        %4183 = vmatpush.bf16.msra.mxu0 %v2812
        %4184 = vmatpush.bf16.msra.mxu0 %v2810
        %4185 = vmatpush.bf16.msra.mxu0 %v2808
        %4186 = vmatmul.bf16.gmra.mxu0 %v862
        %v4187 = vpop.f32.mrf.mxu0
        %v4188 = vadd.f32 %v4175, %v4187
        %v4189 = vpop.f32.mrf.mxu0
        %4190 = vdwg.mxu0
        %4191 = vmatpush.bf16.msra.mxu0 %v2838
        %4192 = vmatpush.bf16.msra.mxu0 %v2836
        %4193 = vmatpush.bf16.msra.mxu0 %v2834
        %4194 = vmatpush.bf16.msra.mxu0 %v2832
        %4195 = vmatpush.bf16.msra.mxu0 %v2830
        %4196 = vmatpush.bf16.msra.mxu0 %v2828
        %4197 = vmatpush.bf16.msra.mxu0 %v2826
        %4198 = vmatpush.bf16.msra.mxu0 %v2824
        %4199 = vmatmul.bf16.gmra.mxu0 %v863
        %v4200 = vpop.f32.mrf.mxu0
        %v4201 = vadd.f32 %v4188, %v4200
        %v4202 = vpop.f32.mrf.mxu0
        %4203 = vdwg.mxu0
        %4204 = vmatpush.bf16.msra.mxu0 %v2854
        %4205 = vmatpush.bf16.msra.mxu0 %v2852
        %4206 = vmatpush.bf16.msra.mxu0 %v2850
        %4207 = vmatpush.bf16.msra.mxu0 %v2848
        %4208 = vmatpush.bf16.msra.mxu0 %v2846
        %4209 = vmatpush.bf16.msra.mxu0 %v2844
        %4210 = vmatpush.bf16.msra.mxu0 %v2842
        %4211 = vmatpush.bf16.msra.mxu0 %v2840
        %4212 = vmatmul.bf16.gmra.mxu0 %v864
        %v4213 = vpop.f32.mrf.mxu0
        %v4214 = vadd.f32 %v4201, %v4213
        %v4215 = vpop.f32.mrf.mxu0
        %4216 = vdwg.mxu0
        %4217 = vmatpush.bf16.msra.mxu0 %v2870
        %4218 = vmatpush.bf16.msra.mxu0 %v2868
        %4219 = vmatpush.bf16.msra.mxu0 %v2866
        %4220 = vmatpush.bf16.msra.mxu0 %v2864
        %4221 = vmatpush.bf16.msra.mxu0 %v2862
        %4222 = vmatpush.bf16.msra.mxu0 %v2860
        %4223 = vmatpush.bf16.msra.mxu0 %v2858
        %4224 = vmatpush.bf16.msra.mxu0 %v2856
        %4225 = vmatmul.bf16.gmra.mxu0 %v865
        %v4226 = vpop.f32.mrf.mxu0
        %v4227 = vadd.f32 %v4214, %v4226
        %v4228 = vpop.f32.mrf.mxu0
        %4229 = vdwg.mxu0
        %4230 = vmatpush.bf16.msra.mxu0 %v2886
        %4231 = vmatpush.bf16.msra.mxu0 %v2884
        %4232 = vmatpush.bf16.msra.mxu0 %v2882
        %4233 = vmatpush.bf16.msra.mxu0 %v2880
        %4234 = vmatpush.bf16.msra.mxu0 %v2878
        %4235 = vmatpush.bf16.msra.mxu0 %v2876
        %4236 = vmatpush.bf16.msra.mxu0 %v2874
        %4237 = vmatpush.bf16.msra.mxu0 %v2872
        %4238 = vmatmul.bf16.gmra.mxu0 %v866
        %v4239 = vpop.f32.mrf.mxu0
        %v4240 = vadd.f32 %v4227, %v4239
        %v4241 = vpop.f32.mrf.mxu0
        %4242 = vdwg.mxu0
        %4243 = vmatpush.bf16.msra.mxu0 %v2902
        %4244 = vmatpush.bf16.msra.mxu0 %v2900
        %4245 = vmatpush.bf16.msra.mxu0 %v2898
        %4246 = vmatpush.bf16.msra.mxu0 %v2896
        %4247 = vmatpush.bf16.msra.mxu0 %v2894
        %4248 = vmatpush.bf16.msra.mxu0 %v2892
        %4249 = vmatpush.bf16.msra.mxu0 %v2890
        %4250 = vmatpush.bf16.msra.mxu0 %v2888
        %4251 = vmatmul.bf16.gmra.mxu0 %v867
        %v4252 = vpop.f32.mrf.mxu0
        %v4253 = vadd.f32 %v4240, %v4252
        %v4254 = vpop.f32.mrf.mxu0
        %4255 = vdwg.mxu0
        %4256 = vmatpush.bf16.msra.mxu0 %v2918
        %4257 = vmatpush.bf16.msra.mxu0 %v2916
        %4258 = vmatpush.bf16.msra.mxu0 %v2914
        %4259 = vmatpush.bf16.msra.mxu0 %v2912
        %4260 = vmatpush.bf16.msra.mxu0 %v2910
        %4261 = vmatpush.bf16.msra.mxu0 %v2908
        %4262 = vmatpush.bf16.msra.mxu0 %v2906
        %4263 = vmatpush.bf16.msra.mxu0 %v2904
        %4264 = vmatmul.bf16.gmra.mxu0 %v868
        %v4265 = vpop.f32.mrf.mxu0
        %v4266 = vadd.f32 %v4253, %v4265
        %v4267 = vpop.f32.mrf.mxu0
        %4268 = vdwg.mxu0
        %4269 = vmatpush.bf16.msra.mxu0 %v2934
        %4270 = vmatpush.bf16.msra.mxu0 %v2932
        %4271 = vmatpush.bf16.msra.mxu0 %v2930
        %4272 = vmatpush.bf16.msra.mxu0 %v2928
        %4273 = vmatpush.bf16.msra.mxu0 %v2926
        %4274 = vmatpush.bf16.msra.mxu0 %v2924
        %4275 = vmatpush.bf16.msra.mxu0 %v2922
        %4276 = vmatpush.bf16.msra.mxu0 %v2920
        %4277 = vmatmul.bf16.gmra.mxu0 %v869
        %v4278 = vpop.f32.mrf.mxu0
        %v4279 = vadd.f32 %v4266, %v4278
        %v4280 = vpop.f32.mrf.mxu0
        %4281 = vdwg.mxu0
        %4282 = vmatpush.bf16.msra.mxu0 %v2950
        %4283 = vmatpush.bf16.msra.mxu0 %v2948
        %4284 = vmatpush.bf16.msra.mxu0 %v2946
        %4285 = vmatpush.bf16.msra.mxu0 %v2944
        %4286 = vmatpush.bf16.msra.mxu0 %v2942
        %4287 = vmatpush.bf16.msra.mxu0 %v2940
        %4288 = vmatpush.bf16.msra.mxu0 %v2938
        %4289 = vmatpush.bf16.msra.mxu0 %v2936
        %4290 = vmatmul.bf16.gmra.mxu0 %v870
        %v4291 = vpop.f32.mrf.mxu0
        %v4292 = vadd.f32 %v4279, %v4291
        %v4293 = vpop.f32.mrf.mxu0
        %4294 = vdwg.mxu0
        %v4295 = vmax.f32 %v3876, 0.0
        %v4296 = vmax.f32 %v4292, 0.0
        %s4297 = smul.u32 %s24, 8
        %v4298 = vlaneseq
        %v4299 = vshrl.u32 %v4298, 7
        %v4300 = vstv %s4297
        %v4301 = vadd.s32 %v4300, %v4299
        %vm4302 = vcmp.lt.s32.totalorder %v4301, 1
        %v4303 = vsel %vm4302, 1, 0
        %vm4304 = vcmp.eq.s32.totalorder %v4303, 1
        %v4305 = vsel %vm4304, %v4295, 0.0
        %v4306 = vsel %vm4304, %v4296, 0.0
        %v4307 = vld [vmem:[#allocation2] sm:$0x3]
        %v4308 = vrot.slane %v4305, 4
        %v4309 = vadd.f32 %v4305, %v4308
        %v4310 = vrot.slane %v4309, 2
        %v4311 = vadd.f32 %v4309, %v4310
        %v4312 = vrot.slane %v4311, 1
        %v4313 = vadd.f32 %v4311, %v4312
        %v4314 = vrot.slane %v4306, 4
        %v4315 = vadd.f32 %v4306, %v4314
        %v4316 = vrot.slane %v4315, 2
        %v4317 = vadd.f32 %v4315, %v4316
        %v4318 = vrot.slane %v4317, 1
        %v4319 = vadd.f32 %v4317, %v4318
        %v4322 = vrot.slane %v4319, 7
        %vm4323 = vcmask 1040384
        %v4324 = vsel %vm4323, %v4313, %v4322
        %v4326 = vadd.f32 %v4307, %v4324
        %v4327 = vlaneseq
        %vm4328 = vcmp.ge.s32.totalorder %v4327, 0
        %vm4329 = vcmp.lt.s32.totalorder %v4327, 256
        %vm4330 = vmand %vm4328, %vm4329
        %4331 = vst.msk [vmem:[#allocation2] sm:$0x3] %vm4330, %v4326
        // Predicated region
        $region45: #{style_encoder_forward.19} parent=39 // pred_check
          %p4332 = pneg %p248
        $region46: #{style_encoder_forward.19} parent=39 // pred_check_branch
          %4334 = sbr.rel (%p4332) target = $region48
        $region47: #{style_encoder_forward.19} parent=39 // pred_region
          %v4335 = vld [vmem:[#allocation2] sm:$0x3]
          %v4336 = vld [vmem:[%s3] sm:$0xff]
          %v4337 = vld [vmem:[%s3 + $0x8] sm:$0xff]
          %v4338 = vld [vmem:[%s3 + $0x10] sm:$0xff]
          %v4339 = vld [vmem:[%s3 + $0x18] sm:$0xff]
          %v4340 = vld [vmem:[%s3 + $0x20] sm:$0xff]
          %v4341 = vld [vmem:[%s3 + $0x28] sm:$0xff]
          %v4342 = vld [vmem:[%s3 + $0x30] sm:$0xff]
          %v4343 = vld [vmem:[%s3 + $0x38] sm:$0xff]
          %v4344 = vld [vmem:[%s3 + $0x40] sm:$0xff]
          %v4345 = vld [vmem:[%s3 + $0x48] sm:$0xff]
          %v4346 = vld [vmem:[%s3 + $0x50] sm:$0xff]
          %v4347 = vld [vmem:[%s3 + $0x58] sm:$0xff]
          %v4348 = vld [vmem:[%s3 + $0x60] sm:$0xff]
          %v4349 = vld [vmem:[%s3 + $0x68] sm:$0xff]
          %v4350 = vld [vmem:[%s3 + $0x70] sm:$0xff]
          %v4351 = vld [vmem:[%s3 + $0x78] sm:$0xff]
          %v4352 = vld [vmem:[%s3 + $0x80] sm:$0xff]
          %v4353 = vld [vmem:[%s3 + $0x88] sm:$0xff]
          %v4354 = vld [vmem:[%s3 + $0x90] sm:$0xff]
          %v4355 = vld [vmem:[%s3 + $0x98] sm:$0xff]
          %v4356 = vld [vmem:[%s3 + $0xa0] sm:$0xff]
          %v4357 = vld [vmem:[%s3 + $0xa8] sm:$0xff]
          %v4358 = vld [vmem:[%s3 + $0xb0] sm:$0xff]
          %v4359 = vld [vmem:[%s3 + $0xb8] sm:$0xff]
          %v4360 = vld [vmem:[%s3 + $0xc0] sm:$0xff]
          %v4361 = vld [vmem:[%s3 + $0xc8] sm:$0xff]
          %v4362 = vld [vmem:[%s3 + $0xd0] sm:$0xff]
          %v4363 = vld [vmem:[%s3 + $0xd8] sm:$0xff]
          %v4364 = vld [vmem:[%s3 + $0xe0] sm:$0xff]
          %v4365 = vld [vmem:[%s3 + $0xe8] sm:$0xff]
          %v4366 = vld [vmem:[%s3 + $0xf0] sm:$0xff]
          %v4367 = vld [vmem:[%s3 + $0xf8] sm:$0xff]
          %v4368 = vld [vmem:[%s4] sm:$0x1]
          %v4370 = vperm.slane %v4335, 0
          %v4371 = vperm.slane %v4335, 1
          %4374 = vmatpush.msra.mxu0 %v4351
          %4375 = vmatpush.msra.mxu0 %v4350
          %4376 = vmatpush.msra.mxu0 %v4349
          %4377 = vmatpush.msra.mxu0 %v4348
          %4378 = vmatpush.msra.mxu0 %v4347
          %4379 = vmatpush.msra.mxu0 %v4346
          %4380 = vmatpush.msra.mxu0 %v4345
          %4381 = vmatpush.msra.mxu0 %v4344
          %4382 = vmatpush.msra.mxu0 %v4343
          %4383 = vmatpush.msra.mxu0 %v4342
          %4384 = vmatpush.msra.mxu0 %v4341
          %4385 = vmatpush.msra.mxu0 %v4340
          %4386 = vmatpush.msra.mxu0 %v4339
          %4387 = vmatpush.msra.mxu0 %v4338
          %4388 = vmatpush.msra.mxu0 %v4337
          %4389 = vmatpush.msra.mxu0 %v4336
          %4390 = vmatmul.f32.gmra.mxu0 %v4370
          %v4391 = vpop.f32.mrf.mxu0
          %v4392 = vadd.f32 %v4368, %v4391
          %4393 = vdwg.mxu0
          %4394 = vmatpush.msra.mxu0 %v4367
          %4395 = vmatpush.msra.mxu0 %v4366
          %4396 = vmatpush.msra.mxu0 %v4365
          %4397 = vmatpush.msra.mxu0 %v4364
          %4398 = vmatpush.msra.mxu0 %v4363
          %4399 = vmatpush.msra.mxu0 %v4362
          %4400 = vmatpush.msra.mxu0 %v4361
          %4401 = vmatpush.msra.mxu0 %v4360
          %4402 = vmatpush.msra.mxu0 %v4359
          %4403 = vmatpush.msra.mxu0 %v4358
          %4404 = vmatpush.msra.mxu0 %v4357
          %4405 = vmatpush.msra.mxu0 %v4356
          %4406 = vmatpush.msra.mxu0 %v4355
          %4407 = vmatpush.msra.mxu0 %v4354
          %4408 = vmatpush.msra.mxu0 %v4353
          %4409 = vmatpush.msra.mxu0 %v4352
          %4410 = vmatmul.f32.gmra.mxu0 %v4371
          %v4411 = vpop.f32.mrf.mxu0
          %v4412 = vadd.f32 %v4392, %v4411
          %4413 = vdwg.mxu0
          %vm4414 = vcmask 57344
          %4415 = vst.msk [vmem:[%s238] sm:$0x1] %vm4414, %v4412
        $region48: #{style_encoder_forward.19} parent=39 // pred_fallthru
          _
        %s4416 = sand.u32 %s151, 1
        %s4417 = scalar_lea.sflag [#allocation4], %s4416
        %s4418 = sand.u32 %s151, 1
        %s4419 = scalar_lea.vmem [#allocation3], %s4418
        // Predicated region
        $region49: #{style_encoder_forward.19} parent=39 // pred_check
          %p4420 = pneg %p161
        $region50: #{style_encoder_forward.19} parent=39 // pred_check_branch
          %4422 = sbr.rel (%p4420) target = $region52
        $region51: #{style_encoder_forward.19} parent=39 // pred_region
          %4424 = vsyncadd %s4417, 0
          %s4425 = scalar_lea.hbm %s5, %s23
          %s4427 = sshll.u32 %s4419, 4
          %s4428 = int_to_ptr.vmem [resolvable:$true] %s4427
          %s4429 = sshll.u32 %s4425, 4
          %s4430 = int_to_ptr.hbm [resolvable:$true] %s4429
          %4432 = dma.vmem_to_hbm [thread:$0]  %s4428, 16, %s4430, %s4417
        $region52: #{style_encoder_forward.19} parent=39 // pred_fallthru
          _
      $region40: #{style_encoder_forward.19} parent=5 // pred_fallthru
        _
      %p4433 = scmp.le.s32.totalorder 2, %s14
      // Predicated region
      $region53: #{style_encoder_forward.19} parent=5 // pred_check
        %p4434 = pneg %p4433
      $region54: #{style_encoder_forward.19} parent=5 // pred_check_branch
        %4436 = sbr.rel (%p4434) target = $region56
      $region55: #{style_encoder_forward.19} parent=5 // pred_region
        %s4437 = ssub.s32 %s14, 2
        // Predicated region
        $region57: #{style_encoder_forward.19} parent=55 // pred_check
          %p4438 = pneg %p167
        $region58: #{style_encoder_forward.19} parent=55 // pred_check_branch
          %4440 = sbr.rel (%p4438) target = $region60
        $region59: #{style_encoder_forward.19} parent=55 // pred_region
          %s4441 = sand.u32 %s152, 1
          %s4442 = scalar_lea.sflag [#allocation4], %s4441
          %s4443 = sand.u32 %s152, 1
          %s4444 = scalar_lea.vmem [#allocation3], %s4443
          %4446 = dma.done %s4442, 16
        $region60: #{style_encoder_forward.19} parent=55 // pred_fallthru
          _
      $region56: #{style_encoder_forward.19} parent=5 // pred_fallthru
        _
    $region6: #{style_encoder_forward.19} parent=1 // loop_footer
      %s18 = sadd.s32 1, %s14
    $region7: #{style_encoder_forward.19} parent=1 // loop_footer_branch
      %13 = sbr.rel target = $region3
    $region8: #{style_encoder_forward.19} parent=1 // loop_exit
      _
    %4447 = vsyncpa [#allocation4], 1
    %s4448 = scalar_lea.sflag [#allocation4], 1
    %4449 = vsyncpa %s4448, 1

// kernel: style_encoder_forward.10
$region0: #{style_encoder_forward.10}
  #allocation0 [shape = 'u32[]', space=smem, size = 0x4, offset = 0x4, fixed_abs, tag = 'smem constant byte address 0x4 - core index']
  #allocation1 [shape = 'u32[72,128]{1,0:T(1,128)}', space=vmem, size = 0x9000, scoped, tag = 'internal scratch']
  %s0 = inlined_call_operand.vmem [shape: bf16[512,256], index: 0, kind: input, shape index: {}]
  %s1 = inlined_call_operand.vmem [shape: bf16[256,128], index: 1, kind: input, shape index: {}]
  %s2 = inlined_call_operand.vmem [shape: f32[1,128], index: 2, kind: input, shape index: {}]
  %s3 = inlined_call_operand.vmem [shape: bf16[512,128], index: 3, kind: output, shape index: {}]
  %s4 = sld [smem:[#allocation0]]
  $region22: #{style_encoder_forward.10} parent=0
    _
  %s6 = ssub.s32 1, %s4
  %s7 = scalar_select 0, %s6, %s4
  // Predicated region
  $region2: #{style_encoder_forward.10} parent=0 // pred_check
    _
  $region3: #{style_encoder_forward.10} parent=0 // pred_check_branch
    %9 = sbr.rel (0) target = $region5
  $region4: #{style_encoder_forward.10} parent=0 // pred_region
    _
  $region5: #{style_encoder_forward.10} parent=0 // pred_fallthru
    _
  // Predicated region
  $region6: #{style_encoder_forward.10} parent=0 // pred_check
    _
  $region7: #{style_encoder_forward.10} parent=0 // pred_check_branch
    %11 = sbr.rel (0) target = $region9
  $region8: #{style_encoder_forward.10} parent=0 // pred_region
    _
  $region9: #{style_encoder_forward.10} parent=0 // pred_fallthru
    _
  // Predicated region
  $region10: #{style_encoder_forward.10} parent=0 // pred_check
    _
  $region11: #{style_encoder_forward.10} parent=0 // pred_check_branch
    %13 = sbr.rel (0) target = $region13
  $region12: #{style_encoder_forward.10} parent=0 // pred_region
    _
  $region13: #{style_encoder_forward.10} parent=0 // pred_fallthru
    _
  %v14 = vld [vmem:[%s0] sm:$0xff]
  %v15 = vld [vmem:[%s0 + $0x8] sm:$0xff]
  %v16 = vld [vmem:[%s0 + $0x10] sm:$0xff]
  %v17 = vld [vmem:[%s0 + $0x18] sm:$0xff]
  %v18 = vld [vmem:[%s0 + $0x20] sm:$0xff]
  %v19 = vld [vmem:[%s0 + $0x28] sm:$0xff]
  %v20 = vld [vmem:[%s0 + $0x30] sm:$0xff]
  %v21 = vld [vmem:[%s0 + $0x38] sm:$0xff]
  %v22 = vld [vmem:[%s0 + $0x40] sm:$0xff]
  %v23 = vld [vmem:[%s0 + $0x48] sm:$0xff]
  %v24 = vld [vmem:[%s0 + $0x50] sm:$0xff]
  %v25 = vld [vmem:[%s0 + $0x58] sm:$0xff]
  %v26 = vld [vmem:[%s0 + $0x60] sm:$0xff]
  %v27 = vld [vmem:[%s0 + $0x68] sm:$0xff]
  %v28 = vld [vmem:[%s0 + $0x70] sm:$0xff]
  %v29 = vld [vmem:[%s0 + $0x78] sm:$0xff]
  %v30 = vld [vmem:[%s0 + $0x80] sm:$0xff]
  %v31 = vld [vmem:[%s0 + $0x88] sm:$0xff]
  %v32 = vld [vmem:[%s0 + $0x90] sm:$0xff]
  %v33 = vld [vmem:[%s0 + $0x98] sm:$0xff]
  %v34 = vld [vmem:[%s0 + $0xa0] sm:$0xff]
  %v35 = vld [vmem:[%s0 + $0xa8] sm:$0xff]
  %v36 = vld [vmem:[%s0 + $0xb0] sm:$0xff]
  %v37 = vld [vmem:[%s0 + $0xb8] sm:$0xff]
  %v38 = vld [vmem:[%s0 + $0xc0] sm:$0xff]
  %v39 = vld [vmem:[%s0 + $0xc8] sm:$0xff]
  %v40 = vld [vmem:[%s0 + $0xd0] sm:$0xff]
  %v41 = vld [vmem:[%s0 + $0xd8] sm:$0xff]
  %v42 = vld [vmem:[%s0 + $0xe0] sm:$0xff]
  %v43 = vld [vmem:[%s0 + $0xe8] sm:$0xff]
  %v44 = vld [vmem:[%s0 + $0xf0] sm:$0xff]
  %v45 = vld [vmem:[%s0 + $0xf8] sm:$0xff]
  %v46 = vld [vmem:[%s0 + $0x100] sm:$0xff]
  %v47 = vld [vmem:[%s0 + $0x108] sm:$0xff]
  %v48 = vld [vmem:[%s0 + $0x110] sm:$0xff]
  %v49 = vld [vmem:[%s0 + $0x118] sm:$0xff]
  %v50 = vld [vmem:[%s0 + $0x120] sm:$0xff]
  %v51 = vld [vmem:[%s0 + $0x128] sm:$0xff]
  %v52 = vld [vmem:[%s0 + $0x130] sm:$0xff]
  %v53 = vld [vmem:[%s0 + $0x138] sm:$0xff]
  %v54 = vld [vmem:[%s0 + $0x140] sm:$0xff]
  %v55 = vld [vmem:[%s0 + $0x148] sm:$0xff]
  %v56 = vld [vmem:[%s0 + $0x150] sm:$0xff]
  %v57 = vld [vmem:[%s0 + $0x158] sm:$0xff]
  %v58 = vld [vmem:[%s0 + $0x160] sm:$0xff]
  %v59 = vld [vmem:[%s0 + $0x168] sm:$0xff]
  %v60 = vld [vmem:[%s0 + $0x170] sm:$0xff]
  %v61 = vld [vmem:[%s0 + $0x178] sm:$0xff]
  %v62 = vld [vmem:[%s0 + $0x180] sm:$0xff]
  %v63 = vld [vmem:[%s0 + $0x188] sm:$0xff]
  %v64 = vld [vmem:[%s0 + $0x190] sm:$0xff]
  %v65 = vld [vmem:[%s0 + $0x198] sm:$0xff]
  %v66 = vld [vmem:[%s0 + $0x1a0] sm:$0xff]
  %v67 = vld [vmem:[%s0 + $0x1a8] sm:$0xff]
  %v68 = vld [vmem:[%s0 + $0x1b0] sm:$0xff]
  %v69 = vld [vmem:[%s0 + $0x1b8] sm:$0xff]
  %v70 = vld [vmem:[%s0 + $0x1c0] sm:$0xff]
  %v71 = vld [vmem:[%s0 + $0x1c8] sm:$0xff]
  %v72 = vld [vmem:[%s0 + $0x1d0] sm:$0xff]
  %v73 = vld [vmem:[%s0 + $0x1d8] sm:$0xff]
  %v74 = vld [vmem:[%s0 + $0x1e0] sm:$0xff]
  %v75 = vld [vmem:[%s0 + $0x1e8] sm:$0xff]
  %v76 = vld [vmem:[%s0 + $0x1f0] sm:$0xff]
  %v77 = vld [vmem:[%s0 + $0x1f8] sm:$0xff]
  %v78 = vld [vmem:[%s1] sm:$0xf]
  %v79 = vld [vmem:[%s1 + $0x4] sm:$0xf]
  %v80 = vld [vmem:[%s1 + $0x8] sm:$0xf]
  %v81 = vld [vmem:[%s1 + $0xc] sm:$0xf]
  %v82 = vld [vmem:[%s1 + $0x10] sm:$0xf]
  %v83 = vld [vmem:[%s1 + $0x14] sm:$0xf]
  %v84 = vld [vmem:[%s1 + $0x18] sm:$0xf]
  %v85 = vld [vmem:[%s1 + $0x1c] sm:$0xf]
  %v86 = vld [vmem:[%s1 + $0x20] sm:$0xf]
  %v87 = vld [vmem:[%s1 + $0x24] sm:$0xf]
  %v88 = vld [vmem:[%s1 + $0x28] sm:$0xf]
  %v89 = vld [vmem:[%s1 + $0x2c] sm:$0xf]
  %v90 = vld [vmem:[%s1 + $0x30] sm:$0xf]
  %v91 = vld [vmem:[%s1 + $0x34] sm:$0xf]
  %v92 = vld [vmem:[%s1 + $0x38] sm:$0xf]
  %v93 = vld [vmem:[%s1 + $0x3c] sm:$0xf]
  %v94 = vld [vmem:[%s1 + $0x40] sm:$0xf]
  %v95 = vld [vmem:[%s1 + $0x44] sm:$0xf]
  %v96 = vld [vmem:[%s1 + $0x48] sm:$0xf]
  %v97 = vld [vmem:[%s1 + $0x4c] sm:$0xf]
  %v98 = vld [vmem:[%s1 + $0x50] sm:$0xf]
  %v99 = vld [vmem:[%s1 + $0x54] sm:$0xf]
  %v100 = vld [vmem:[%s1 + $0x58] sm:$0xf]
  %v101 = vld [vmem:[%s1 + $0x5c] sm:$0xf]
  %v102 = vld [vmem:[%s1 + $0x60] sm:$0xf]
  %v103 = vld [vmem:[%s1 + $0x64] sm:$0xf]
  %v104 = vld [vmem:[%s1 + $0x68] sm:$0xf]
  %v105 = vld [vmem:[%s1 + $0x6c] sm:$0xf]
  %v106 = vld [vmem:[%s1 + $0x70] sm:$0xf]
  %v107 = vld [vmem:[%s1 + $0x74] sm:$0xf]
  %v108 = vld [vmem:[%s1 + $0x78] sm:$0xf]
  %v109 = vld [vmem:[%s1 + $0x7c] sm:$0xf]
  %v110 = vld [vmem:[%s2] sm:$0x1]
  %v112 = vperm.slane %v110, 0
  %v178 = vunpack.c.l.b16 %v14
  %v179 = vunpack.c.h.b16 %v14
  %v180 = vunpack.c.l.b16 %v15
  %v181 = vunpack.c.h.b16 %v15
  %v182 = vunpack.c.l.b16 %v16
  %v183 = vunpack.c.h.b16 %v16
  %v184 = vunpack.c.l.b16 %v17
  %v185 = vunpack.c.h.b16 %v17
  %v186 = vunpack.c.l.b16 %v18
  %v187 = vunpack.c.h.b16 %v18
  %v188 = vunpack.c.l.b16 %v19
  %v189 = vunpack.c.h.b16 %v19
  %v190 = vunpack.c.l.b16 %v20
  %v191 = vunpack.c.h.b16 %v20
  %v192 = vunpack.c.l.b16 %v21
  %v193 = vunpack.c.h.b16 %v21
  %v194 = vunpack.c.l.b16 %v22
  %v195 = vunpack.c.h.b16 %v22
  %v196 = vunpack.c.l.b16 %v23
  %v197 = vunpack.c.h.b16 %v23
  %v198 = vunpack.c.l.b16 %v24
  %v199 = vunpack.c.h.b16 %v24
  %v200 = vunpack.c.l.b16 %v25
  %v201 = vunpack.c.h.b16 %v25
  %v202 = vunpack.c.l.b16 %v26
  %v203 = vunpack.c.h.b16 %v26
  %v204 = vunpack.c.l.b16 %v27
  %v205 = vunpack.c.h.b16 %v27
  %v206 = vunpack.c.l.b16 %v28
  %v207 = vunpack.c.h.b16 %v28
  %v208 = vunpack.c.l.b16 %v29
  %v209 = vunpack.c.h.b16 %v29
  %v210 = vunpack.c.l.b16 %v30
  %v211 = vunpack.c.h.b16 %v30
  %v212 = vunpack.c.l.b16 %v31
  %v213 = vunpack.c.h.b16 %v31
  %v214 = vunpack.c.l.b16 %v32
  %v215 = vunpack.c.h.b16 %v32
  %v216 = vunpack.c.l.b16 %v33
  %v217 = vunpack.c.h.b16 %v33
  %v218 = vunpack.c.l.b16 %v34
  %v219 = vunpack.c.h.b16 %v34
  %v220 = vunpack.c.l.b16 %v35
  %v221 = vunpack.c.h.b16 %v35
  %v222 = vunpack.c.l.b16 %v36
  %v223 = vunpack.c.h.b16 %v36
  %v224 = vunpack.c.l.b16 %v37
  %v225 = vunpack.c.h.b16 %v37
  %v226 = vunpack.c.l.b16 %v38
  %v227 = vunpack.c.h.b16 %v38
  %v228 = vunpack.c.l.b16 %v39
  %v229 = vunpack.c.h.b16 %v39
  %v230 = vunpack.c.l.b16 %v40
  %v231 = vunpack.c.h.b16 %v40
  %v232 = vunpack.c.l.b16 %v41
  %v233 = vunpack.c.h.b16 %v41
  %v234 = vunpack.c.l.b16 %v42
  %v235 = vunpack.c.h.b16 %v42
  %v236 = vunpack.c.l.b16 %v43
  %v237 = vunpack.c.h.b16 %v43
  %v238 = vunpack.c.l.b16 %v44
  %v239 = vunpack.c.h.b16 %v44
  %v240 = vunpack.c.l.b16 %v45
  %v241 = vunpack.c.h.b16 %v45
  %v242 = vunpack.c.l.b16 %v46
  %v243 = vunpack.c.h.b16 %v46
  %v244 = vunpack.c.l.b16 %v47
  %v245 = vunpack.c.h.b16 %v47
  %v246 = vunpack.c.l.b16 %v48
  %v247 = vunpack.c.h.b16 %v48
  %v248 = vunpack.c.l.b16 %v49
  %v249 = vunpack.c.h.b16 %v49
  %v250 = vunpack.c.l.b16 %v50
  %v251 = vunpack.c.h.b16 %v50
  %v252 = vunpack.c.l.b16 %v51
  %v253 = vunpack.c.h.b16 %v51
  %v254 = vunpack.c.l.b16 %v52
  %v255 = vunpack.c.h.b16 %v52
  %v256 = vunpack.c.l.b16 %v53
  %v257 = vunpack.c.h.b16 %v53
  %v258 = vunpack.c.l.b16 %v54
  %v259 = vunpack.c.h.b16 %v54
  %v260 = vunpack.c.l.b16 %v55
  %v261 = vunpack.c.h.b16 %v55
  %v262 = vunpack.c.l.b16 %v56
  %v263 = vunpack.c.h.b16 %v56
  %v264 = vunpack.c.l.b16 %v57
  %v265 = vunpack.c.h.b16 %v57
  %v266 = vunpack.c.l.b16 %v58
  %v267 = vunpack.c.h.b16 %v58
  %v268 = vunpack.c.l.b16 %v59
  %v269 = vunpack.c.h.b16 %v59
  %v270 = vunpack.c.l.b16 %v60
  %v271 = vunpack.c.h.b16 %v60
  %v272 = vunpack.c.l.b16 %v61
  %v273 = vunpack.c.h.b16 %v61
  %v274 = vunpack.c.l.b16 %v62
  %v275 = vunpack.c.h.b16 %v62
  %v276 = vunpack.c.l.b16 %v63
  %v277 = vunpack.c.h.b16 %v63
  %v278 = vunpack.c.l.b16 %v64
  %v279 = vunpack.c.h.b16 %v64
  %v280 = vunpack.c.l.b16 %v65
  %v281 = vunpack.c.h.b16 %v65
  %v282 = vunpack.c.l.b16 %v66
  %v283 = vunpack.c.h.b16 %v66
  %v284 = vunpack.c.l.b16 %v67
  %v285 = vunpack.c.h.b16 %v67
  %v286 = vunpack.c.l.b16 %v68
  %v287 = vunpack.c.h.b16 %v68
  %v288 = vunpack.c.l.b16 %v69
  %v289 = vunpack.c.h.b16 %v69
  %v290 = vunpack.c.l.b16 %v70
  %v291 = vunpack.c.h.b16 %v70
  %v292 = vunpack.c.l.b16 %v71
  %v293 = vunpack.c.h.b16 %v71
  %v294 = vunpack.c.l.b16 %v72
  %v295 = vunpack.c.h.b16 %v72
  %v296 = vunpack.c.l.b16 %v73
  %v297 = vunpack.c.h.b16 %v73
  %v298 = vunpack.c.l.b16 %v74
  %v299 = vunpack.c.h.b16 %v74
  %v300 = vunpack.c.l.b16 %v75
  %v301 = vunpack.c.h.b16 %v75
  %v302 = vunpack.c.l.b16 %v76
  %v303 = vunpack.c.h.b16 %v76
  %v304 = vunpack.c.l.b16 %v77
  %v305 = vunpack.c.h.b16 %v77
  %v306 = vpack.c.b16 %v180, %v178
  %v307 = vpack.c.b16 %v181, %v179
  %v308 = vpack.c.b16 %v184, %v182
  %v309 = vpack.c.b16 %v185, %v183
  %v310 = vpack.c.b16 %v188, %v186
  %v311 = vpack.c.b16 %v189, %v187
  %v312 = vpack.c.b16 %v192, %v190
  %v313 = vpack.c.b16 %v193, %v191
  %v314 = vpack.c.b16 %v196, %v194
  %v315 = vpack.c.b16 %v197, %v195
  %v316 = vpack.c.b16 %v200, %v198
  %v317 = vpack.c.b16 %v201, %v199
  %v318 = vpack.c.b16 %v204, %v202
  %v319 = vpack.c.b16 %v205, %v203
  %v320 = vpack.c.b16 %v208, %v206
  %v321 = vpack.c.b16 %v209, %v207
  %v322 = vpack.c.b16 %v212, %v210
  %v323 = vpack.c.b16 %v213, %v211
  %v324 = vpack.c.b16 %v216, %v214
  %v325 = vpack.c.b16 %v217, %v215
  %v326 = vpack.c.b16 %v220, %v218
  %v327 = vpack.c.b16 %v221, %v219
  %v328 = vpack.c.b16 %v224, %v222
  %v329 = vpack.c.b16 %v225, %v223
  %v330 = vpack.c.b16 %v228, %v226
  %v331 = vpack.c.b16 %v229, %v227
  %v332 = vpack.c.b16 %v232, %v230
  %v333 = vpack.c.b16 %v233, %v231
  %v334 = vpack.c.b16 %v236, %v234
  %v335 = vpack.c.b16 %v237, %v235
  %v336 = vpack.c.b16 %v240, %v238
  %v337 = vpack.c.b16 %v241, %v239
  %v338 = vpack.c.b16 %v244, %v242
  %v339 = vpack.c.b16 %v245, %v243
  %v340 = vpack.c.b16 %v248, %v246
  %v341 = vpack.c.b16 %v249, %v247
  %v342 = vpack.c.b16 %v252, %v250
  %v343 = vpack.c.b16 %v253, %v251
  %v344 = vpack.c.b16 %v256, %v254
  %v345 = vpack.c.b16 %v257, %v255
  %v346 = vpack.c.b16 %v260, %v258
  %v347 = vpack.c.b16 %v261, %v259
  %v348 = vpack.c.b16 %v264, %v262
  %v349 = vpack.c.b16 %v265, %v263
  %v350 = vpack.c.b16 %v268, %v266
  %v351 = vpack.c.b16 %v269, %v267
  %v352 = vpack.c.b16 %v272, %v270
  %v353 = vpack.c.b16 %v273, %v271
  %v354 = vpack.c.b16 %v276, %v274
  %v355 = vpack.c.b16 %v277, %v275
  %v356 = vpack.c.b16 %v280, %v278
  %v357 = vpack.c.b16 %v281, %v279
  %v358 = vpack.c.b16 %v284, %v282
  %v359 = vpack.c.b16 %v285, %v283
  %v360 = vpack.c.b16 %v288, %v286
  %v361 = vpack.c.b16 %v289, %v287
  %v362 = vpack.c.b16 %v292, %v290
  %v363 = vpack.c.b16 %v293, %v291
  %v364 = vpack.c.b16 %v296, %v294
  %v365 = vpack.c.b16 %v297, %v295
  %v366 = vpack.c.b16 %v300, %v298
  %v367 = vpack.c.b16 %v301, %v299
  %v368 = vpack.c.b16 %v304, %v302
  %v369 = vpack.c.b16 %v305, %v303
  %v466 = vunpack.c.l.b16 %v78
  %v467 = vunpack.c.l.b16 %v79
  %v468 = vunpack.c.l.b16 %v80
  %v469 = vunpack.c.l.b16 %v81
  %v470 = vunpack.c.l.b16 %v82
  %v471 = vunpack.c.l.b16 %v83
  %v472 = vunpack.c.l.b16 %v84
  %v473 = vunpack.c.l.b16 %v85
  %v474 = vunpack.c.l.b16 %v86
  %v475 = vunpack.c.l.b16 %v87
  %v476 = vunpack.c.l.b16 %v88
  %v477 = vunpack.c.l.b16 %v89
  %v478 = vunpack.c.l.b16 %v90
  %v479 = vunpack.c.l.b16 %v91
  %v480 = vunpack.c.l.b16 %v92
  %v481 = vunpack.c.l.b16 %v93
  %v482 = vunpack.c.l.b16 %v94
  %v483 = vunpack.c.l.b16 %v95
  %v484 = vunpack.c.l.b16 %v96
  %v485 = vunpack.c.l.b16 %v97
  %v486 = vunpack.c.l.b16 %v98
  %v487 = vunpack.c.l.b16 %v99
  %v488 = vunpack.c.l.b16 %v100
  %v489 = vunpack.c.l.b16 %v101
  %v490 = vunpack.c.l.b16 %v102
  %v491 = vunpack.c.l.b16 %v103
  %v492 = vunpack.c.l.b16 %v104
  %v493 = vunpack.c.l.b16 %v105
  %v494 = vunpack.c.l.b16 %v106
  %v495 = vunpack.c.l.b16 %v107
  %v496 = vunpack.c.l.b16 %v108
  %v497 = vunpack.c.l.b16 %v109
  %v498 = vpack.c.b16 %v467, %v466
  %v499 = vpack.c.b16 %v469, %v468
  %v500 = vpack.c.b16 %v471, %v470
  %v501 = vpack.c.b16 %v473, %v472
  %v502 = vpack.c.b16 %v475, %v474
  %v503 = vpack.c.b16 %v477, %v476
  %v504 = vpack.c.b16 %v479, %v478
  %v505 = vpack.c.b16 %v481, %v480
  %v506 = vpack.c.b16 %v483, %v482
  %v507 = vpack.c.b16 %v485, %v484
  %v508 = vpack.c.b16 %v487, %v486
  %v509 = vpack.c.b16 %v489, %v488
  %v510 = vpack.c.b16 %v491, %v490
  %v511 = vpack.c.b16 %v493, %v492
  %v512 = vpack.c.b16 %v495, %v494
  %v513 = vpack.c.b16 %v497, %v496
  %530 = vmatpush.bf16.msra.mxu0 %v505
  %531 = vmatpush.bf16.msra.mxu0 %v504
  %532 = vmatpush.bf16.msra.mxu0 %v503
  %533 = vmatpush.bf16.msra.mxu0 %v502
  %534 = vmatpush.bf16.msra.mxu0 %v501
  %535 = vmatpush.bf16.msra.mxu0 %v500
  %536 = vmatpush.bf16.msra.mxu0 %v499
  %537 = vmatpush.bf16.msra.mxu0 %v498
  %538 = vmatmul.bf16.gmra.mxu0 %v306
  %v539 = vpop.f32.mrf.mxu0
  %v540 = vadd.f32 %v112, %v539
  %v541 = vpop.f32.mrf.mxu0
  %v542 = vadd.f32 %v112, %v541
  %543 = vmatmul.bf16.gmra.mxu0 %v308
  %v544 = vpop.f32.mrf.mxu0
  %v545 = vadd.f32 %v112, %v544
  %v546 = vpop.f32.mrf.mxu0
  %v547 = vadd.f32 %v112, %v546
  %548 = vmatmul.bf16.gmra.mxu0 %v310
  %v549 = vpop.f32.mrf.mxu0
  %v550 = vadd.f32 %v112, %v549
  %v551 = vpop.f32.mrf.mxu0
  %v552 = vadd.f32 %v112, %v551
  %553 = vmatmul.bf16.gmra.mxu0 %v312
  %v554 = vpop.f32.mrf.mxu0
  %v555 = vadd.f32 %v112, %v554
  %v556 = vpop.f32.mrf.mxu0
  %v557 = vadd.f32 %v112, %v556
  %558 = vmatmul.bf16.gmra.mxu0 %v314
  %v559 = vpop.f32.mrf.mxu0
  %v560 = vadd.f32 %v112, %v559
  %v561 = vpop.f32.mrf.mxu0
  %v562 = vadd.f32 %v112, %v561
  %563 = vmatmul.bf16.gmra.mxu0 %v316
  %v564 = vpop.f32.mrf.mxu0
  %v565 = vadd.f32 %v112, %v564
  %v566 = vpop.f32.mrf.mxu0
  %v567 = vadd.f32 %v112, %v566
  %568 = vmatmul.bf16.gmra.mxu0 %v318
  %v569 = vpop.f32.mrf.mxu0
  %v570 = vadd.f32 %v112, %v569
  %v571 = vpop.f32.mrf.mxu0
  %v572 = vadd.f32 %v112, %v571
  %573 = vmatmul.bf16.gmra.mxu0 %v320
  %v574 = vpop.f32.mrf.mxu0
  %v575 = vadd.f32 %v112, %v574
  %v576 = vpop.f32.mrf.mxu0
  %v577 = vadd.f32 %v112, %v576
  %578 = vmatmul.bf16.gmra.mxu0 %v322
  %v579 = vpop.f32.mrf.mxu0
  %v580 = vadd.f32 %v112, %v579
  %v581 = vpop.f32.mrf.mxu0
  %v582 = vadd.f32 %v112, %v581
  %583 = vmatmul.bf16.gmra.mxu0 %v324
  %v584 = vpop.f32.mrf.mxu0
  %v585 = vadd.f32 %v112, %v584
  %v586 = vpop.f32.mrf.mxu0
  %v587 = vadd.f32 %v112, %v586
  %588 = vmatmul.bf16.gmra.mxu0 %v326
  %v589 = vpop.f32.mrf.mxu0
  %v590 = vadd.f32 %v112, %v589
  %v591 = vpop.f32.mrf.mxu0
  %v592 = vadd.f32 %v112, %v591
  %593 = vmatmul.bf16.gmra.mxu0 %v328
  %v594 = vpop.f32.mrf.mxu0
  %v595 = vadd.f32 %v112, %v594
  %v596 = vpop.f32.mrf.mxu0
  %v597 = vadd.f32 %v112, %v596
  %598 = vmatmul.bf16.gmra.mxu0 %v330
  %v599 = vpop.f32.mrf.mxu0
  %v600 = vadd.f32 %v112, %v599
  %v601 = vpop.f32.mrf.mxu0
  %v602 = vadd.f32 %v112, %v601
  %603 = vmatmul.bf16.gmra.mxu0 %v332
  %v604 = vpop.f32.mrf.mxu0
  %v605 = vadd.f32 %v112, %v604
  %v606 = vpop.f32.mrf.mxu0
  %v607 = vadd.f32 %v112, %v606
  %608 = vmatmul.bf16.gmra.mxu0 %v334
  %v609 = vpop.f32.mrf.mxu0
  %v610 = vadd.f32 %v112, %v609
  %v611 = vpop.f32.mrf.mxu0
  %v612 = vadd.f32 %v112, %v611
  %613 = vmatmul.bf16.gmra.mxu0 %v336
  %v614 = vpop.f32.mrf.mxu0
  %v615 = vadd.f32 %v112, %v614
  %v616 = vpop.f32.mrf.mxu0
  %v617 = vadd.f32 %v112, %v616
  %618 = vmatmul.bf16.gmra.mxu0 %v338
  %v619 = vpop.f32.mrf.mxu0
  %v620 = vadd.f32 %v112, %v619
  %v621 = vpop.f32.mrf.mxu0
  %v622 = vadd.f32 %v112, %v621
  %623 = vmatmul.bf16.gmra.mxu0 %v340
  %v624 = vpop.f32.mrf.mxu0
  %v625 = vadd.f32 %v112, %v624
  %v626 = vpop.f32.mrf.mxu0
  %v627 = vadd.f32 %v112, %v626
  %628 = vmatmul.bf16.gmra.mxu0 %v342
  %v629 = vpop.f32.mrf.mxu0
  %v630 = vadd.f32 %v112, %v629
  %v631 = vpop.f32.mrf.mxu0
  %v632 = vadd.f32 %v112, %v631
  %633 = vmatmul.bf16.gmra.mxu0 %v344
  %v634 = vpop.f32.mrf.mxu0
  %v635 = vadd.f32 %v112, %v634
  %v636 = vpop.f32.mrf.mxu0
  %v637 = vadd.f32 %v112, %v636
  %638 = vmatmul.bf16.gmra.mxu0 %v346
  %v639 = vpop.f32.mrf.mxu0
  %v640 = vadd.f32 %v112, %v639
  %v641 = vpop.f32.mrf.mxu0
  %v642 = vadd.f32 %v112, %v641
  %643 = vmatmul.bf16.gmra.mxu0 %v348
  %v644 = vpop.f32.mrf.mxu0
  %v645 = vadd.f32 %v112, %v644
  %v646 = vpop.f32.mrf.mxu0
  %v647 = vadd.f32 %v112, %v646
  %648 = vmatmul.bf16.gmra.mxu0 %v350
  %v649 = vpop.f32.mrf.mxu0
  %v650 = vadd.f32 %v112, %v649
  %v651 = vpop.f32.mrf.mxu0
  %v652 = vadd.f32 %v112, %v651
  %653 = vmatmul.bf16.gmra.mxu0 %v352
  %v654 = vpop.f32.mrf.mxu0
  %v655 = vadd.f32 %v112, %v654
  %v656 = vpop.f32.mrf.mxu0
  %v657 = vadd.f32 %v112, %v656
  %658 = vmatmul.bf16.gmra.mxu0 %v354
  %v659 = vpop.f32.mrf.mxu0
  %v660 = vadd.f32 %v112, %v659
  %v661 = vpop.f32.mrf.mxu0
  %v662 = vadd.f32 %v112, %v661
  %663 = vmatmul.bf16.gmra.mxu0 %v356
  %v664 = vpop.f32.mrf.mxu0
  %v665 = vadd.f32 %v112, %v664
  %v666 = vpop.f32.mrf.mxu0
  %v667 = vadd.f32 %v112, %v666
  %668 = vmatmul.bf16.gmra.mxu0 %v358
  %v669 = vpop.f32.mrf.mxu0
  %v670 = vadd.f32 %v112, %v669
  %v671 = vpop.f32.mrf.mxu0
  %v672 = vadd.f32 %v112, %v671
  %673 = vmatmul.bf16.gmra.mxu0 %v360
  %v674 = vpop.f32.mrf.mxu0
  %v675 = vadd.f32 %v112, %v674
  %v676 = vpop.f32.mrf.mxu0
  %v677 = vadd.f32 %v112, %v676
  %678 = vmatmul.bf16.gmra.mxu0 %v362
  %v679 = vpop.f32.mrf.mxu0
  %v680 = vadd.f32 %v112, %v679
  %v681 = vpop.f32.mrf.mxu0
  %v682 = vadd.f32 %v112, %v681
  %683 = vmatmul.bf16.gmra.mxu0 %v364
  %v684 = vpop.f32.mrf.mxu0
  %v685 = vadd.f32 %v112, %v684
  %v686 = vpop.f32.mrf.mxu0
  %v687 = vadd.f32 %v112, %v686
  %688 = vmatmul.bf16.gmra.mxu0 %v366
  %v689 = vpop.f32.mrf.mxu0
  %v690 = vadd.f32 %v112, %v689
  %v691 = vpop.f32.mrf.mxu0
  %v692 = vadd.f32 %v112, %v691
  %693 = vmatmul.bf16.gmra.mxu0 %v368
  %v694 = vpop.f32.mrf.mxu0
  %v695 = vadd.f32 %v112, %v694
  %v696 = vpop.f32.mrf.mxu0
  %v697 = vadd.f32 %v112, %v696
  %698 = vdwg.mxu0
  %699 = vmatpush.bf16.msra.mxu0 %v513
  %700 = vmatpush.bf16.msra.mxu0 %v512
  %701 = vmatpush.bf16.msra.mxu0 %v511
  %702 = vmatpush.bf16.msra.mxu0 %v510
  %703 = vmatpush.bf16.msra.mxu0 %v509
  %704 = vmatpush.bf16.msra.mxu0 %v508
  %705 = vmatpush.bf16.msra.mxu0 %v507
  %706 = vmatpush.bf16.msra.mxu0 %v506
  %707 = vmatmul.bf16.gmra.mxu0 %v307
  %v708 = vpop.f32.mrf.mxu0
  %v709 = vadd.f32 %v540, %v708
  %v710 = vpop.f32.mrf.mxu0
  %v711 = vadd.f32 %v542, %v710
  %712 = vmatmul.bf16.gmra.mxu0 %v309
  %v713 = vpop.f32.mrf.mxu0
  %v714 = vadd.f32 %v545, %v713
  %v715 = vpop.f32.mrf.mxu0
  %v716 = vadd.f32 %v547, %v715
  %717 = vmatmul.bf16.gmra.mxu0 %v311
  %v718 = vpop.f32.mrf.mxu0
  %v719 = vadd.f32 %v550, %v718
  %v720 = vpop.f32.mrf.mxu0
  %v721 = vadd.f32 %v552, %v720
  %722 = vmatmul.bf16.gmra.mxu0 %v313
  %v723 = vpop.f32.mrf.mxu0
  %v724 = vadd.f32 %v555, %v723
  %v725 = vpop.f32.mrf.mxu0
  %v726 = vadd.f32 %v557, %v725
  %727 = vmatmul.bf16.gmra.mxu0 %v315
  %v728 = vpop.f32.mrf.mxu0
  %v729 = vadd.f32 %v560, %v728
  %v730 = vpop.f32.mrf.mxu0
  %v731 = vadd.f32 %v562, %v730
  %732 = vmatmul.bf16.gmra.mxu0 %v317
  %v733 = vpop.f32.mrf.mxu0
  %v734 = vadd.f32 %v565, %v733
  %v735 = vpop.f32.mrf.mxu0
  %v736 = vadd.f32 %v567, %v735
  %737 = vmatmul.bf16.gmra.mxu0 %v319
  %v738 = vpop.f32.mrf.mxu0
  %v739 = vadd.f32 %v570, %v738
  %v740 = vpop.f32.mrf.mxu0
  %v741 = vadd.f32 %v572, %v740
  %742 = vmatmul.bf16.gmra.mxu0 %v321
  %v743 = vpop.f32.mrf.mxu0
  %v744 = vadd.f32 %v575, %v743
  %v745 = vpop.f32.mrf.mxu0
  %v746 = vadd.f32 %v577, %v745
  %747 = vmatmul.bf16.gmra.mxu0 %v323
  %v748 = vpop.f32.mrf.mxu0
  %v749 = vadd.f32 %v580, %v748
  %v750 = vpop.f32.mrf.mxu0
  %v751 = vadd.f32 %v582, %v750
  %752 = vmatmul.bf16.gmra.mxu0 %v325
  %v753 = vpop.f32.mrf.mxu0
  %v754 = vadd.f32 %v585, %v753
  %v755 = vpop.f32.mrf.mxu0
  %v756 = vadd.f32 %v587, %v755
  %757 = vmatmul.bf16.gmra.mxu0 %v327
  %v758 = vpop.f32.mrf.mxu0
  %v759 = vadd.f32 %v590, %v758
  %v760 = vpop.f32.mrf.mxu0
  %v761 = vadd.f32 %v592, %v760
  %762 = vmatmul.bf16.gmra.mxu0 %v329
  %v763 = vpop.f32.mrf.mxu0
  %v764 = vadd.f32 %v595, %v763
  %v765 = vpop.f32.mrf.mxu0
  %v766 = vadd.f32 %v597, %v765
  %767 = vmatmul.bf16.gmra.mxu0 %v331
  %v768 = vpop.f32.mrf.mxu0
  %v769 = vadd.f32 %v600, %v768
  %v770 = vpop.f32.mrf.mxu0
  %v771 = vadd.f32 %v602, %v770
  %772 = vmatmul.bf16.gmra.mxu0 %v333
  %v773 = vpop.f32.mrf.mxu0
  %v774 = vadd.f32 %v605, %v773
  %v775 = vpop.f32.mrf.mxu0
  %v776 = vadd.f32 %v607, %v775
  %777 = vmatmul.bf16.gmra.mxu0 %v335
  %v778 = vpop.f32.mrf.mxu0
  %v779 = vadd.f32 %v610, %v778
  %v780 = vpop.f32.mrf.mxu0
  %v781 = vadd.f32 %v612, %v780
  %782 = vmatmul.bf16.gmra.mxu0 %v337
  %v783 = vpop.f32.mrf.mxu0
  %v784 = vadd.f32 %v615, %v783
  %v785 = vpop.f32.mrf.mxu0
  %v786 = vadd.f32 %v617, %v785
  %787 = vmatmul.bf16.gmra.mxu0 %v339
  %v788 = vpop.f32.mrf.mxu0
  %v789 = vadd.f32 %v620, %v788
  %v790 = vpop.f32.mrf.mxu0
  %v791 = vadd.f32 %v622, %v790
  %792 = vmatmul.bf16.gmra.mxu0 %v341
  %v793 = vpop.f32.mrf.mxu0
  %v794 = vadd.f32 %v625, %v793
  %v795 = vpop.f32.mrf.mxu0
  %v796 = vadd.f32 %v627, %v795
  %797 = vmatmul.bf16.gmra.mxu0 %v343
  %v798 = vpop.f32.mrf.mxu0
  %v799 = vadd.f32 %v630, %v798
  %v800 = vpop.f32.mrf.mxu0
  %v801 = vadd.f32 %v632, %v800
  %802 = vmatmul.bf16.gmra.mxu0 %v345
  %v803 = vpop.f32.mrf.mxu0
  %v804 = vadd.f32 %v635, %v803
  %v805 = vpop.f32.mrf.mxu0
  %v806 = vadd.f32 %v637, %v805
  %807 = vmatmul.bf16.gmra.mxu0 %v347
  %v808 = vpop.f32.mrf.mxu0
  %v809 = vadd.f32 %v640, %v808
  %v810 = vpop.f32.mrf.mxu0
  %v811 = vadd.f32 %v642, %v810
  %812 = vmatmul.bf16.gmra.mxu0 %v349
  %v813 = vpop.f32.mrf.mxu0
  %v814 = vadd.f32 %v645, %v813
  %v815 = vpop.f32.mrf.mxu0
  %v816 = vadd.f32 %v647, %v815
  %817 = vmatmul.bf16.gmra.mxu0 %v351
  %v818 = vpop.f32.mrf.mxu0
  %v819 = vadd.f32 %v650, %v818
  %v820 = vpop.f32.mrf.mxu0
  %v821 = vadd.f32 %v652, %v820
  %822 = vmatmul.bf16.gmra.mxu0 %v353
  %v823 = vpop.f32.mrf.mxu0
  %v824 = vadd.f32 %v655, %v823
  %v825 = vpop.f32.mrf.mxu0
  %v826 = vadd.f32 %v657, %v825
  %827 = vmatmul.bf16.gmra.mxu0 %v355
  %v828 = vpop.f32.mrf.mxu0
  %v829 = vadd.f32 %v660, %v828
  %v830 = vpop.f32.mrf.mxu0
  %v831 = vadd.f32 %v662, %v830
  %832 = vmatmul.bf16.gmra.mxu0 %v357
  %v833 = vpop.f32.mrf.mxu0
  %v834 = vadd.f32 %v665, %v833
  %v835 = vpop.f32.mrf.mxu0
  %v836 = vadd.f32 %v667, %v835
  %837 = vmatmul.bf16.gmra.mxu0 %v359
  %v838 = vpop.f32.mrf.mxu0
  %v839 = vadd.f32 %v670, %v838
  %v840 = vpop.f32.mrf.mxu0
  %v841 = vadd.f32 %v672, %v840
  %842 = vmatmul.bf16.gmra.mxu0 %v361
  %v843 = vpop.f32.mrf.mxu0
  %v844 = vadd.f32 %v675, %v843
  %v845 = vpop.f32.mrf.mxu0
  %v846 = vadd.f32 %v677, %v845
  %847 = vmatmul.bf16.gmra.mxu0 %v363
  %v848 = vpop.f32.mrf.mxu0
  %v849 = vadd.f32 %v680, %v848
  %v850 = vpop.f32.mrf.mxu0
  %v851 = vadd.f32 %v682, %v850
  %852 = vmatmul.bf16.gmra.mxu0 %v365
  %v853 = vpop.f32.mrf.mxu0
  %v854 = vadd.f32 %v685, %v853
  %v855 = vpop.f32.mrf.mxu0
  %v856 = vadd.f32 %v687, %v855
  %857 = vmatmul.bf16.gmra.mxu0 %v367
  %v858 = vpop.f32.mrf.mxu0
  %v859 = vadd.f32 %v690, %v858
  %v860 = vpop.f32.mrf.mxu0
  %v861 = vadd.f32 %v692, %v860
  %862 = vmatmul.bf16.gmra.mxu0 %v369
  %v863 = vpop.f32.mrf.mxu0
  %v864 = vadd.f32 %v695, %v863
  %v865 = vpop.f32.mrf.mxu0
  %v866 = vadd.f32 %v697, %v865
  %867 = vdwg.mxu0
  %v868 = vmax.f32 %v709, 0.0
  %v869 = vmax.f32 %v711, 0.0
  %v870 = vmax.f32 %v714, 0.0
  %v871 = vmax.f32 %v716, 0.0
  %v872 = vmax.f32 %v719, 0.0
  %v873 = vmax.f32 %v721, 0.0
  %v874 = vmax.f32 %v724, 0.0
  %v875 = vmax.f32 %v726, 0.0
  %v876 = vmax.f32 %v729, 0.0
  %v877 = vmax.f32 %v731, 0.0
  %v878 = vmax.f32 %v734, 0.0
  %v879 = vmax.f32 %v736, 0.0
  %v880 = vmax.f32 %v739, 0.0
  %v881 = vmax.f32 %v741, 0.0
  %v882 = vmax.f32 %v744, 0.0
  %v883 = vmax.f32 %v746, 0.0
  %v884 = vmax.f32 %v749, 0.0
  %v885 = vmax.f32 %v751, 0.0
  %v886 = vmax.f32 %v754, 0.0
  %v887 = vmax.f32 %v756, 0.0
  %v888 = vmax.f32 %v759, 0.0
  %v889 = vmax.f32 %v761, 0.0
  %v890 = vmax.f32 %v764, 0.0
  %v891 = vmax.f32 %v766, 0.0
  %v892 = vmax.f32 %v769, 0.0
  %v893 = vmax.f32 %v771, 0.0
  %v894 = vmax.f32 %v774, 0.0
  %v895 = vmax.f32 %v776, 0.0
  %v896 = vmax.f32 %v779, 0.0
  %v897 = vmax.f32 %v781, 0.0
  %v898 = vmax.f32 %v784, 0.0
  %v899 = vmax.f32 %v786, 0.0
  %v900 = vmax.f32 %v789, 0.0
  %v901 = vmax.f32 %v791, 0.0
  %v902 = vmax.f32 %v794, 0.0
  %v903 = vmax.f32 %v796, 0.0
  %v904 = vmax.f32 %v799, 0.0
  %v905 = vmax.f32 %v801, 0.0
  %v906 = vmax.f32 %v804, 0.0
  %v907 = vmax.f32 %v806, 0.0
  %v908 = vmax.f32 %v809, 0.0
  %v909 = vmax.f32 %v811, 0.0
  %v910 = vmax.f32 %v814, 0.0
  %v911 = vmax.f32 %v816, 0.0
  %v912 = vmax.f32 %v819, 0.0
  %v913 = vmax.f32 %v821, 0.0
  %v914 = vmax.f32 %v824, 0.0
  %v915 = vmax.f32 %v826, 0.0
  %v916 = vmax.f32 %v829, 0.0
  %v917 = vmax.f32 %v831, 0.0
  %v918 = vmax.f32 %v834, 0.0
  %v919 = vmax.f32 %v836, 0.0
  %v920 = vmax.f32 %v839, 0.0
  %v921 = vmax.f32 %v841, 0.0
  %v922 = vmax.f32 %v844, 0.0
  %v923 = vmax.f32 %v846, 0.0
  %v924 = vmax.f32 %v849, 0.0
  %v925 = vmax.f32 %v851, 0.0
  %v926 = vmax.f32 %v854, 0.0
  %v927 = vmax.f32 %v856, 0.0
  %v928 = vmax.f32 %v859, 0.0
  %v929 = vmax.f32 %v861, 0.0
  %v930 = vmax.f32 %v864, 0.0
  %v931 = vmax.f32 %v866, 0.0
  %v932 = vpack.c.bf16 %v868, %v868
  %v933 = vpack.c.bf16 %v869, %v869
  %v934 = vpack.c.bf16 %v870, %v870
  %v935 = vpack.c.bf16 %v871, %v871
  %v936 = vpack.c.bf16 %v872, %v872
  %v937 = vpack.c.bf16 %v873, %v873
  %v938 = vpack.c.bf16 %v874, %v874
  %v939 = vpack.c.bf16 %v875, %v875
  %v940 = vpack.c.bf16 %v876, %v876
  %v941 = vpack.c.bf16 %v877, %v877
  %v942 = vpack.c.bf16 %v878, %v878
  %v943 = vpack.c.bf16 %v879, %v879
  %v944 = vpack.c.bf16 %v880, %v880
  %v945 = vpack.c.bf16 %v881, %v881
  %v946 = vpack.c.bf16 %v882, %v882
  %v947 = vpack.c.bf16 %v883, %v883
  %v948 = vpack.c.bf16 %v884, %v884
  %v949 = vpack.c.bf16 %v885, %v885
  %v950 = vpack.c.bf16 %v886, %v886
  %v951 = vpack.c.bf16 %v887, %v887
  %v952 = vpack.c.bf16 %v888, %v888
  %v953 = vpack.c.bf16 %v889, %v889
  %v954 = vpack.c.bf16 %v890, %v890
  %v955 = vpack.c.bf16 %v891, %v891
  %v956 = vpack.c.bf16 %v892, %v892
  %v957 = vpack.c.bf16 %v893, %v893
  %v958 = vpack.c.bf16 %v894, %v894
  %v959 = vpack.c.bf16 %v895, %v895
  %v960 = vpack.c.bf16 %v896, %v896
  %v961 = vpack.c.bf16 %v897, %v897
  %v962 = vpack.c.bf16 %v898, %v898
  %v963 = vpack.c.bf16 %v899, %v899
  %v964 = vpack.c.bf16 %v900, %v900
  %v965 = vpack.c.bf16 %v901, %v901
  %v966 = vpack.c.bf16 %v902, %v902
  %v967 = vpack.c.bf16 %v903, %v903
  %v968 = vpack.c.bf16 %v904, %v904
  %v969 = vpack.c.bf16 %v905, %v905
  %v970 = vpack.c.bf16 %v906, %v906
  %v971 = vpack.c.bf16 %v907, %v907
  %v972 = vpack.c.bf16 %v908, %v908
  %v973 = vpack.c.bf16 %v909, %v909
  %v974 = vpack.c.bf16 %v910, %v910
  %v975 = vpack.c.bf16 %v911, %v911
  %v976 = vpack.c.bf16 %v912, %v912
  %v977 = vpack.c.bf16 %v913, %v913
  %v978 = vpack.c.bf16 %v914, %v914
  %v979 = vpack.c.bf16 %v915, %v915
  %v980 = vpack.c.bf16 %v916, %v916
  %v981 = vpack.c.bf16 %v917, %v917
  %v982 = vpack.c.bf16 %v918, %v918
  %v983 = vpack.c.bf16 %v919, %v919
  %v984 = vpack.c.bf16 %v920, %v920
  %v985 = vpack.c.bf16 %v921, %v921
  %v986 = vpack.c.bf16 %v922, %v922
  %v987 = vpack.c.bf16 %v923, %v923
  %v988 = vpack.c.bf16 %v924, %v924
  %v989 = vpack.c.bf16 %v925, %v925
  %v990 = vpack.c.bf16 %v926, %v926
  %v991 = vpack.c.bf16 %v927, %v927
  %v992 = vpack.c.bf16 %v928, %v928
  %v993 = vpack.c.bf16 %v929, %v929
  %v994 = vpack.c.bf16 %v930, %v930
  %v995 = vpack.c.bf16 %v931, %v931
  %996 = vst [vmem:[%s3] sm:$0xf] %v932
  %997 = vst [vmem:[%s3 + $0x4] sm:$0xf] %v933
  %998 = vst [vmem:[%s3 + $0x8] sm:$0xf] %v934
  %999 = vst [vmem:[%s3 + $0xc] sm:$0xf] %v935
  %1000 = vst [vmem:[%s3 + $0x10] sm:$0xf] %v936
  %1001 = vst [vmem:[%s3 + $0x14] sm:$0xf] %v937
  %1002 = vst [vmem:[%s3 + $0x18] sm:$0xf] %v938
  %1003 = vst [vmem:[%s3 + $0x1c] sm:$0xf] %v939
  %1004 = vst [vmem:[%s3 + $0x20] sm:$0xf] %v940
  %1005 = vst [vmem:[%s3 + $0x24] sm:$0xf] %v941
  %1006 = vst [vmem:[%s3 + $0x28] sm:$0xf] %v942
  %1007 = vst [vmem:[%s3 + $0x2c] sm:$0xf] %v943
  %1008 = vst [vmem:[%s3 + $0x30] sm:$0xf] %v944
  %1009 = vst [vmem:[%s3 + $0x34] sm:$0xf] %v945
  %1010 = vst [vmem:[%s3 + $0x38] sm:$0xf] %v946
  %1011 = vst [vmem:[%s3 + $0x3c] sm:$0xf] %v947
  %1012 = vst [vmem:[%s3 + $0x40] sm:$0xf] %v948
  %1013 = vst [vmem:[%s3 + $0x44] sm:$0xf] %v949
  %1014 = vst [vmem:[%s3 + $0x48] sm:$0xf] %v950
  %1015 = vst [vmem:[%s3 + $0x4c] sm:$0xf] %v951
  %1016 = vst [vmem:[%s3 + $0x50] sm:$0xf] %v952
  %1017 = vst [vmem:[%s3 + $0x54] sm:$0xf] %v953
  %1018 = vst [vmem:[%s3 + $0x58] sm:$0xf] %v954
  %1019 = vst [vmem:[%s3 + $0x5c] sm:$0xf] %v955
  %1020 = vst [vmem:[%s3 + $0x60] sm:$0xf] %v956
  %1021 = vst [vmem:[%s3 + $0x64] sm:$0xf] %v957
  %1022 = vst [vmem:[%s3 + $0x68] sm:$0xf] %v958
  %1023 = vst [vmem:[%s3 + $0x6c] sm:$0xf] %v959
  %1024 = vst [vmem:[%s3 + $0x70] sm:$0xf] %v960
  %1025 = vst [vmem:[%s3 + $0x74] sm:$0xf] %v961
  %1026 = vst [vmem:[%s3 + $0x78] sm:$0xf] %v962
  %1027 = vst [vmem:[%s3 + $0x7c] sm:$0xf] %v963
  %1028 = vst [vmem:[%s3 + $0x80] sm:$0xf] %v964
  %1029 = vst [vmem:[%s3 + $0x84] sm:$0xf] %v965
  %1030 = vst [vmem:[%s3 + $0x88] sm:$0xf] %v966
  %1031 = vst [vmem:[%s3 + $0x8c] sm:$0xf] %v967
  %1032 = vst [vmem:[%s3 + $0x90] sm:$0xf] %v968
  %1033 = vst [vmem:[%s3 + $0x94] sm:$0xf] %v969
  %1034 = vst [vmem:[%s3 + $0x98] sm:$0xf] %v970
  %1035 = vst [vmem:[%s3 + $0x9c] sm:$0xf] %v971
  %1036 = vst [vmem:[%s3 + $0xa0] sm:$0xf] %v972
  %1037 = vst [vmem:[%s3 + $0xa4] sm:$0xf] %v973
  %1038 = vst [vmem:[%s3 + $0xa8] sm:$0xf] %v974
  %1039 = vst [vmem:[%s3 + $0xac] sm:$0xf] %v975
  %1040 = vst [vmem:[%s3 + $0xb0] sm:$0xf] %v976
  %1041 = vst [vmem:[%s3 + $0xb4] sm:$0xf] %v977
  %1042 = vst [vmem:[%s3 + $0xb8] sm:$0xf] %v978
  %1043 = vst [vmem:[%s3 + $0xbc] sm:$0xf] %v979
  %1044 = vst [vmem:[%s3 + $0xc0] sm:$0xf] %v980
  %1045 = vst [vmem:[%s3 + $0xc4] sm:$0xf] %v981
  %1046 = vst [vmem:[%s3 + $0xc8] sm:$0xf] %v982
  %1047 = vst [vmem:[%s3 + $0xcc] sm:$0xf] %v983
  %1048 = vst [vmem:[%s3 + $0xd0] sm:$0xf] %v984
  %1049 = vst [vmem:[%s3 + $0xd4] sm:$0xf] %v985
  %1050 = vst [vmem:[%s3 + $0xd8] sm:$0xf] %v986
  %1051 = vst [vmem:[%s3 + $0xdc] sm:$0xf] %v987
  %1052 = vst [vmem:[%s3 + $0xe0] sm:$0xf] %v988
  %1053 = vst [vmem:[%s3 + $0xe4] sm:$0xf] %v989
  %1054 = vst [vmem:[%s3 + $0xe8] sm:$0xf] %v990
  %1055 = vst [vmem:[%s3 + $0xec] sm:$0xf] %v991
  %1056 = vst [vmem:[%s3 + $0xf0] sm:$0xf] %v992
  %1057 = vst [vmem:[%s3 + $0xf4] sm:$0xf] %v993
  %1058 = vst [vmem:[%s3 + $0xf8] sm:$0xf] %v994
  %1059 = vst [vmem:[%s3 + $0xfc] sm:$0xf] %v995
  // Predicated region
  $region14: #{style_encoder_forward.10} parent=0 // pred_check
    _
  $region15: #{style_encoder_forward.10} parent=0 // pred_check_branch
    %1061 = sbr.rel (0) target = $region17
  $region16: #{style_encoder_forward.10} parent=0 // pred_region
    _
  $region17: #{style_encoder_forward.10} parent=0 // pred_fallthru
    _
  // Predicated region
  $region18: #{style_encoder_forward.10} parent=0 // pred_check
    _
  $region19: #{style_encoder_forward.10} parent=0 // pred_check_branch
    %1063 = sbr.rel (0) target = $region21
  $region20: #{style_encoder_forward.10} parent=0 // pred_region
    _
  $region21: #{style_encoder_forward.10} parent=0 // pred_fallthru
    _

</llo_original>
